<compile_context>
chip_gen: v6e
topology: v6e:2x2x1
jax: 0.10.0
libtpu: 0.0.40
codegen_flags: <defaults>
</compile_context>

<pallas_src>
import functools

import jax
import jax.numpy as jnp
from jax.experimental import pallas as pl
from jax.experimental.pallas import tpu as pltpu


def _round_up(x, m):
    return (x + m - 1) // m * m


# ----------------------------- Pallas kernels -----------------------------

def _matmul_bias_kernel(a_ref, b_ref, bias_ref, o_ref, acc_ref, *, activation):
    k = pl.program_id(2)

    @pl.when(k == 0)
    def _():
        acc_ref[...] = jnp.zeros_like(acc_ref)

    acc_ref[...] += jnp.dot(a_ref[...], b_ref[...],
                            preferred_element_type=jnp.float32)

    @pl.when(k == pl.num_programs(2) - 1)
    def _():
        y = acc_ref[...] + bias_ref[...]
        if activation == "tanh":
            y = jnp.tanh(y)
        o_ref[...] = y.astype(o_ref.dtype)


def matmul_bias(a, b, bias, *, tm=256, tn=256, tk=256,
                out_dtype=jnp.bfloat16, activation=None):
    """a: (M, K), b: (K, N), bias: (N,) -> (M, N) in out_dtype.

    M/N/K tiled grid; A/B cast to bf16 for the MXU, f32 accumulator in VMEM,
    bias (+ optional tanh) fused in the K-epilogue.
    """
    M, K = a.shape
    K2, Nc = b.shape
    assert K == K2
    tm_e = min(tm, _round_up(M, 8))
    tn_e = min(tn, _round_up(Nc, 128))
    tk_e = min(tk, _round_up(K, 128))
    Mp = _round_up(M, tm_e)
    Np = _round_up(Nc, tn_e)
    Kp = _round_up(K, tk_e)

    a_p = jnp.pad(a.astype(jnp.bfloat16), ((0, Mp - M), (0, Kp - K)))
    b_p = jnp.pad(b.astype(jnp.bfloat16), ((0, Kp - K), (0, Np - Nc)))
    bias_p = jnp.pad(bias.astype(jnp.float32), (0, Np - Nc)).reshape(1, Np)

    out = pl.pallas_call(
        functools.partial(_matmul_bias_kernel, activation=activation),
        out_shape=jax.ShapeDtypeStruct((Mp, Np), out_dtype),
        grid_spec=pltpu.PrefetchScalarGridSpec(
            num_scalar_prefetch=0,
            grid=(Mp // tm_e, Np // tn_e, Kp // tk_e),
            in_specs=[
                pl.BlockSpec((tm_e, tk_e), lambda i, j, k: (i, k)),
                pl.BlockSpec((tk_e, tn_e), lambda i, j, k: (k, j)),
                pl.BlockSpec((1, tn_e), lambda i, j, k: (0, j)),
            ],
            out_specs=pl.BlockSpec((tm_e, tn_e), lambda i, j, k: (i, j)),
            scratch_shapes=[pltpu.VMEM((tm_e, tn_e), jnp.float32)],
        ),
        compiler_params=pltpu.CompilerParams(
            dimension_semantics=("parallel", "parallel", "arbitrary"),
            vmem_limit_bytes=48 * 1024 * 1024,
        ),
    )(a_p, b_p, bias_p)
    return out[:M, :Nc]


def _inorm_kernel(x_ref, o_ref, *, eps, relu):
    x = x_ref[...].astype(jnp.float32)
    mean = jnp.mean(x, axis=-1, keepdims=True)
    xc = x - mean
    var = jnp.mean(xc * xc, axis=-1, keepdims=True)   # biased var (PyTorch IN)
    y = xc * jax.lax.rsqrt(var + eps)
    if relu:
        y = jnp.maximum(y, 0.0)
    o_ref[...] = y.astype(o_ref.dtype)


def _inorm_res_kernel(x_ref, r_ref, o_ref, *, eps):
    x = x_ref[...].astype(jnp.float32)
    mean = jnp.mean(x, axis=-1, keepdims=True)
    xc = x - mean
    var = jnp.mean(xc * xc, axis=-1, keepdims=True)
    y = xc * jax.lax.rsqrt(var + eps) + r_ref[...].astype(jnp.float32)
    o_ref[...] = y.astype(o_ref.dtype)


def instance_norm(x_nchw, *, relu=False, residual=None, eps=1e-5,
                  out_dtype=jnp.bfloat16, row_tile=32):
    """InstanceNorm2d (affine=False) fused with optional ReLU / residual add.

    Row-tiled over the N*C axis (each row is one normalization group) so the
    kernel pipelines and never holds a full feature map in VMEM.
    """
    N, C, H, W = x_nchw.shape
    R, L = N * C, H * W
    rt = min(row_tile, _round_up(R, 8))
    Rp = _round_up(R, rt)
    x2 = x_nchw.reshape(R, L)
    if Rp != R:
        x2 = jnp.pad(x2, ((0, Rp - R), (0, 0)))
    spec = pl.BlockSpec((rt, L), lambda i: (i, 0))
    cp = pltpu.CompilerParams(dimension_semantics=("parallel",))

    if residual is None:
        out = pl.pallas_call(
            functools.partial(_inorm_kernel, eps=eps, relu=relu),
            out_shape=jax.ShapeDtypeStruct((Rp, L), out_dtype),
            grid=(Rp // rt,),
            in_specs=[spec],
            out_specs=spec,
            compiler_params=cp,
        )(x2)
    else:
        r2 = residual.reshape(R, L)
        if Rp != R:
            r2 = jnp.pad(r2, ((0, Rp - R), (0, 0)))
        out = pl.pallas_call(
            functools.partial(_inorm_res_kernel, eps=eps),
            out_shape=jax.ShapeDtypeStruct((Rp, L), out_dtype),
            grid=(Rp // rt,),
            in_specs=[spec, spec],
            out_specs=spec,
            compiler_params=cp,
        )(x2, r2)
    return out[:R].reshape(N, C, H, W)


# --------------------------- conv glue (host JAX) ---------------------------
# TODO(synk): for very large feature maps the 7x7 im2col should move the
# kh*kw tap loop into the Pallas kernel (extra grid axis over taps reading a
# padded NHWC activation) instead of materializing a 49x-inflated matrix.

def _im2col(xp, kh, kw, stride):
    N, C, Hp, Wp = xp.shape
    Ho = (Hp - kh) // stride + 1
    Wo = (Wp - kw) // stride + 1
    cols = []
    for di in range(kh):
        for dj in range(kw):
            cols.append(xp[:, :,
                           di:di + (Ho - 1) * stride + 1:stride,
                           dj:dj + (Wo - 1) * stride + 1:stride])
    patches = jnp.stack(cols, axis=2)            # (N, C, kh*kw, Ho, Wo)
    patches = patches.transpose(0, 3, 4, 1, 2)   # (N, Ho, Wo, C, kh*kw)
    return patches.reshape(N * Ho * Wo, C * kh * kw).astype(jnp.bfloat16), Ho, Wo


def conv2d(x, w, b, *, stride=1, padding=0, pad_mode="zero",
           out_dtype=jnp.bfloat16, activation=None):
    """x: (N, C_in, H, W); w: (C_out, C_in, kh, kw); matmul runs in Pallas."""
    C_out, C_in, kh, kw = w.shape
    if padding > 0:
        mode = "reflect" if pad_mode == "reflect" else "constant"
        x = jnp.pad(x, ((0, 0), (0, 0), (padding, padding), (padding, padding)),
                    mode=mode)
    a, Ho, Wo = _im2col(x, kh, kw, stride)
    wm = w.reshape(C_out, C_in * kh * kw).T      # (K, C_out)
    y = matmul_bias(a, wm, b, out_dtype=out_dtype, activation=activation)
    N = x.shape[0]
    return y.reshape(N, Ho, Wo, C_out).transpose(0, 3, 1, 2)


def conv_transpose2d(x, w, b):
    """ConvTranspose2d(k=3, stride=2, padding=1, output_padding=1) via
    sub-pixel decomposition: 4 small phase convolutions, no zero-dilation.

    w: (C_in, C_out, 3, 3) — PyTorch ConvTranspose2d layout.
    """
    N, C_in, H, W = x.shape
    _, C_out, kh, kw = w.shape
    assert (kh, kw) == (3, 3)
    wt = jnp.transpose(w, (1, 0, 2, 3))          # (C_out, C_in, 3, 3)

    # output pixel (2m+r, 2n+s) depends only on kernel taps of matching parity
    w00 = wt[:, :, 1:2, 1:2]                                               # 1x1
    w01 = jnp.stack([wt[:, :, 1, 2], wt[:, :, 1, 0]], axis=-1)[:, :, None, :]  # 1x2
    w10 = jnp.stack([wt[:, :, 2, 1], wt[:, :, 0, 1]], axis=-1)[:, :, :, None]  # 2x1
    w11 = jnp.stack(
        [jnp.stack([wt[:, :, 2, 2], wt[:, :, 2, 0]], axis=-1),
         jnp.stack([wt[:, :, 0, 2], wt[:, :, 0, 0]], axis=-1)], axis=-2)       # 2x2

    x_r = jnp.pad(x, ((0, 0), (0, 0), (0, 0), (0, 1)))
    x_b = jnp.pad(x, ((0, 0), (0, 0), (0, 1), (0, 0)))
    x_br = jnp.pad(x, ((0, 0), (0, 0), (0, 1), (0, 1)))

    p00 = conv2d(x, w00, b)       # -> y[2m,   2n  ]
    p01 = conv2d(x_r, w01, b)     # -> y[2m,   2n+1]
    p10 = conv2d(x_b, w10, b)     # -> y[2m+1, 2n  ]
    p11 = conv2d(x_br, w11, b)    # -> y[2m+1, 2n+1]

    row0 = jnp.stack([p00, p01], axis=-1)        # (N, C_out, H, W, 2)
    row1 = jnp.stack([p10, p11], axis=-1)
    y = jnp.stack([row0, row1], axis=3)          # (N, C_out, H, 2, W, 2)
    return y.reshape(N, C_out, 2 * H, 2 * W)


# ------------------------------ Generator ------------------------------

N_RES_BLOCKS = 9


def init_params(key, n_residual_blocks=N_RES_BLOCKS):
    params = {}
    counter = [0]

    def nk():
        counter[0] += 1
        return jax.random.fold_in(key, counter[0])

    def conv_init(shape):
        fan_in = shape[1] * shape[2] * shape[3]
        w = jax.random.normal(nk(), shape, jnp.float32) / jnp.sqrt(float(fan_in))
        b = jax.random.normal(nk(), (shape[0],), jnp.float32) * 0.01
        return w, b

    def convT_init(shape):  # (C_in, C_out, kh, kw)
        fan_in = shape[0] * shape[2] * shape[3]
        w = jax.random.normal(nk(), shape, jnp.float32) / jnp.sqrt(float(fan_in))
        b = jax.random.normal(nk(), (shape[1],), jnp.float32) * 0.01
        return w, b

    params["c1_w"], params["c1_b"] = conv_init((64, 3, 7, 7))
    params["d1_w"], params["d1_b"] = conv_init((128, 64, 3, 3))
    params["d2_w"], params["d2_b"] = conv_init((256, 128, 3, 3))
    for i in range(n_residual_blocks):
        params[f"r{i}_w1"], params[f"r{i}_b1"] = conv_init((256, 256, 3, 3))
        params[f"r{i}_w2"], params[f"r{i}_b2"] = conv_init((256, 256, 3, 3))
    params["u1_w"], params["u1_b"] = convT_init((256, 128, 3, 3))
    params["u2_w"], params["u2_b"] = convT_init((128, 64, 3, 3))
    params["f_w"], params["f_b"] = conv_init((3, 64, 7, 7))
    return params


def generator_forward(params, x, n_residual_blocks=N_RES_BLOCKS):
    # initial block: ReflectionPad(3) -> Conv 7x7 (3->64) -> IN -> ReLU
    h = conv2d(x, params["c1_w"], params["c1_b"], padding=3, pad_mode="reflect")
    h = instance_norm(h, relu=True)
    # downsampling: Conv 3x3 s2 p1 -> IN -> ReLU, twice (64->128->256)
    h = conv2d(h, params["d1_w"], params["d1_b"], stride=2, padding=1)
    h = instance_norm(h, relu=True)
    h = conv2d(h, params["d2_w"], params["d2_b"], stride=2, padding=1)
    h = instance_norm(h, relu=True)
    # residual blocks (256 ch)
    for i in range(n_residual_blocks):
        r = conv2d(h, params[f"r{i}_w1"], params[f"r{i}_b1"],
                   padding=1, pad_mode="reflect")
        r = instance_norm(r, relu=True)
        r = conv2d(r, params[f"r{i}_w2"], params[f"r{i}_b2"],
                   padding=1, pad_mode="reflect")
        h = instance_norm(r, residual=h)   # x + conv_block(x), fused in kernel
    # upsampling: ConvT 3x3 s2 p1 op1 -> IN -> ReLU, twice (256->128->64)
    h = conv_transpose2d(h, params["u1_w"], params["u1_b"])
    h = instance_norm(h, relu=True)
    h = conv_transpose2d(h, params["u2_w"], params["u2_b"])
    h = instance_norm(h, relu=True)
    # output: ReflectionPad(3) -> Conv 7x7 (64->3) -> Tanh (fused in epilogue)
    h = conv2d(h, params["f_w"], params["f_b"], padding=3, pad_mode="reflect",
               out_dtype=jnp.float32, activation="tanh")
    return h


if __name__ == "__main__":
    key = jax.random.PRNGKey(0)
    pkey, xkey = jax.random.split(key)
    params = init_params(pkey)
    x = jax.random.normal(xkey, (2, 3, 16, 16), jnp.float32)

    fwd = jax.jit(generator_forward)
    y = fwd(params, x)
    jax.block_until_ready(y)
    assert y.shape == (2, 3, 16, 16), y.shape
    assert bool(jnp.all(jnp.isfinite(y)))
    print("KERNEL_OK")
</pallas_src>

<mosaic_0001>
module attributes {stable_mosaic.version = 11 : i64} {
  func.func @_matmul_bias_kernel(%arg0: i32, %arg1: i32, %arg2: i32, %arg3: memref<256x256xbf16, #tpu.memory_space<vmem>>, %arg4: memref<256x128xbf16, #tpu.memory_space<vmem>>, %arg5: memref<1x128xf32, #tpu.memory_space<vmem>>, %arg6: memref<256x128xbf16, #tpu.memory_space<vmem>>, %arg7: memref<256x128xf32, #tpu.memory_space<vmem>>) attributes {dimension_semantics = [#tpu.dimension_semantics<parallel>, #tpu.dimension_semantics<parallel>, #tpu.dimension_semantics<arbitrary>], iteration_bounds = array<i64: 2, 1, 1>, scalar_prefetch = 0 : i64, scratch_operands = 1 : i64, tpu.core_type = #tpu.core_type<tc>, window_params = [{transform_indices = @transform_0, window_bounds = array<i64: 256, 256>}, {transform_indices = @transform_1, window_bounds = array<i64: 256, 128>}, {transform_indices = @transform_2, window_bounds = array<i64: 1, 128>}, {transform_indices = @transform_3, window_bounds = array<i64: 256, 128>}]} {
    %c0_i32 = arith.constant 0 : i32
    %0 = arith.cmpi eq, %arg2, %c0_i32 : i32
    %1 = arith.extui %0 : i1 to i32
    %c0_i32_0 = arith.constant 0 : i32
    %2 = arith.cmpi ne, %1, %c0_i32_0 : i32
    scf.if %2 {
      %cst_10 = arith.constant 0.000000e+00 : f32
      %12 = vector.broadcast %cst_10 : f32 to vector<256x128xf32>
      %c0_11 = arith.constant 0 : index
      %c0_12 = arith.constant 0 : index
      %13 = vector.load %arg7[%c0_11, %c0_12] : memref<256x128xf32, #tpu.memory_space<vmem>>, vector<256x128xf32>
      tpu.vector_store %arg7[%c0_11, %c0_12], %12 {strides = array<i32>} : memref<256x128xf32, #tpu.memory_space<vmem>>, vector<256x128xf32>,
    } else {
    }
    %c0 = arith.constant 0 : index
    %c0_1 = arith.constant 0 : index
    %3 = vector.load %arg7[%c0, %c0_1] : memref<256x128xf32, #tpu.memory_space<vmem>>, vector<256x128xf32>
    %c0_2 = arith.constant 0 : index
    %c0_3 = arith.constant 0 : index
    %4 = vector.load %arg3[%c0_2, %c0_3] : memref<256x256xbf16, #tpu.memory_space<vmem>>, vector<256x256xbf16>
    %c0_4 = arith.constant 0 : index
    %c0_5 = arith.constant 0 : index
    %5 = vector.load %arg4[%c0_4, %c0_5] : memref<256x128xbf16, #tpu.memory_space<vmem>>, vector<256x128xbf16>
    %cst = arith.constant dense<0.000000e+00> : vector<256x128xf32>
    %6 = tpu.matmul %4, %5, %cst {dimension_numbers = #tpu.dot_dimension_numbers<[1], [0], [0], [1], [0, 0, 1, 1], [], []>} : vector<256x256xbf16>, vector<256x128xbf16>, vector<256x128xf32> -> vector<256x128xf32>
    %7 = arith.addf %3, %6 : vector<256x128xf32>
    %c0_6 = arith.constant 0 : index
    %c0_7 = arith.constant 0 : index
    %8 = vector.load %arg7[%c0_6, %c0_7] : memref<256x128xf32, #tpu.memory_space<vmem>>, vector<256x128xf32>
    tpu.vector_store %arg7[%c0_6, %c0_7], %7 {strides = array<i32>} : memref<256x128xf32, #tpu.memory_space<vmem>>, vector<256x128xf32>,
    %c0_i32_8 = arith.constant 0 : i32
    %9 = arith.cmpi eq, %arg2, %c0_i32_8 : i32
    %10 = arith.extui %9 : i1 to i32
    %c0_i32_9 = arith.constant 0 : i32
    %11 = arith.cmpi ne, %10, %c0_i32_9 : i32
    scf.if %11 {
      %c0_10 = arith.constant 0 : index
      %c0_11 = arith.constant 0 : index
      %12 = vector.load %arg7[%c0_10, %c0_11] : memref<256x128xf32, #tpu.memory_space<vmem>>, vector<256x128xf32>
      %c0_12 = arith.constant 0 : index
      %c0_13 = arith.constant 0 : index
      %13 = vector.load %arg5[%c0_12, %c0_13] : memref<1x128xf32, #tpu.memory_space<vmem>>, vector<1x128xf32>
      %14 = vector.broadcast %13 : vector<1x128xf32> to vector<256x128xf32>
      %15 = arith.addf %12, %14 : vector<256x128xf32>
      %16 = arith.truncf %15 : vector<256x128xf32> to vector<256x128xbf16>
      %c0_14 = arith.constant 0 : index
      %c0_15 = arith.constant 0 : index
      %17 = vector.load %arg6[%c0_14, %c0_15] : memref<256x128xbf16, #tpu.memory_space<vmem>>, vector<256x128xbf16>
      tpu.vector_store %arg6[%c0_14, %c0_15], %16 {strides = array<i32>} : memref<256x128xbf16, #tpu.memory_space<vmem>>, vector<256x128xbf16>,
    } else {
    }
    return
  }
  func.func @transform_0(%arg0: i32, %arg1: i32, %arg2: i32) -> (i32, i32) {
    %c0_i32 = arith.constant 0 : i32
    return %arg0, %arg2 : i32, i32
  }
  func.func @transform_1(%arg0: i32, %arg1: i32, %arg2: i32) -> (i32, i32) {
    %c0_i32 = arith.constant 0 : i32
    return %arg2, %arg1 : i32, i32
  }
  func.func @transform_2(%arg0: i32, %arg1: i32, %arg2: i32) -> (i32, i32) {
    %c0_i32 = arith.constant 0 : i32
    %c0_i32_0 = arith.constant 0 : i32
    return %c0_i32, %arg1 : i32, i32
  }
  func.func @transform_3(%arg0: i32, %arg1: i32, %arg2: i32) -> (i32, i32) {
    %c0_i32 = arith.constant 0 : i32
    return %arg0, %arg1 : i32, i32
  }
}

module attributes {stable_mosaic.version = 11 : i64} {
  func.func @_inorm_kernel(%arg0: i32, %arg1: memref<32x256xbf16, #tpu.memory_space<vmem>>, %arg2: memref<32x256xbf16, #tpu.memory_space<vmem>>) attributes {dimension_semantics = [#tpu.dimension_semantics<parallel>], iteration_bounds = array<i64: 4>, scalar_prefetch = 0 : i64, scratch_operands = 0 : i64, tpu.core_type = #tpu.core_type<tc>, window_params = [{transform_indices = @transform_0, window_bounds = array<i64: 32, 256>}, {transform_indices = @transform_1, window_bounds = array<i64: 32, 256>}]} {
    %c0 = arith.constant 0 : index
    %c0_0 = arith.constant 0 : index
    %0 = vector.load %arg1[%c0, %c0_0] : memref<32x256xbf16, #tpu.memory_space<vmem>>, vector<32x256xbf16>
    %1 = arith.extf %0 : vector<32x256xbf16> to vector<32x256xf32>
    %cst = arith.constant dense<0.000000e+00> : vector<32xf32>
    %2 = vector.multi_reduction <add>, %1, %cst [1] : vector<32x256xf32> to vector<32xf32>
    %3 = vector.shape_cast %2 : vector<32xf32> to vector<32x1xf32>
    %cst_1 = arith.constant 2.560000e+02 : f32
    %4 = vector.broadcast %cst_1 : f32 to vector<32x1xf32>
    %5 = arith.divf %3, %4 : vector<32x1xf32>
    %6 = vector.broadcast %5 : vector<32x1xf32> to vector<32x256xf32>
    %7 = arith.subf %1, %6 : vector<32x256xf32>
    %8 = arith.mulf %7, %7 : vector<32x256xf32>
    %cst_2 = arith.constant dense<0.000000e+00> : vector<32xf32>
    %9 = vector.multi_reduction <add>, %8, %cst_2 [1] : vector<32x256xf32> to vector<32xf32>
    %10 = vector.shape_cast %9 : vector<32xf32> to vector<32x1xf32>
    %cst_3 = arith.constant 2.560000e+02 : f32
    %11 = vector.broadcast %cst_3 : f32 to vector<32x1xf32>
    %12 = arith.divf %10, %11 : vector<32x1xf32>
    %cst_4 = arith.constant 9.99999974E-6 : f32
    %13 = vector.broadcast %cst_4 : f32 to vector<32x1xf32>
    %14 = arith.addf %12, %13 : vector<32x1xf32>
    %15 = math.rsqrt %14 : vector<32x1xf32>
    %16 = vector.broadcast %15 : vector<32x1xf32> to vector<32x256xf32>
    %17 = arith.mulf %7, %16 : vector<32x256xf32>
    %cst_5 = arith.constant 0.000000e+00 : f32
    %18 = vector.broadcast %cst_5 : f32 to vector<32x256xf32>
    %19 = arith.maximumf %17, %18 : vector<32x256xf32>
    %20 = arith.truncf %19 : vector<32x256xf32> to vector<32x256xbf16>
    %c0_6 = arith.constant 0 : index
    %c0_7 = arith.constant 0 : index
    %21 = vector.load %arg2[%c0_6, %c0_7] : memref<32x256xbf16, #tpu.memory_space<vmem>>, vector<32x256xbf16>
    tpu.vector_store %arg2[%c0_6, %c0_7], %20 {strides = array<i32>} : memref<32x256xbf16, #tpu.memory_space<vmem>>, vector<32x256xbf16>,
    return
  }
  func.func @transform_0(%arg0: i32) -> (i32, i32) {
    %c0_i32 = arith.constant 0 : i32
    %c0_i32_0 = arith.constant 0 : i32
    return %arg0, %c0_i32 : i32, i32
  }
  func.func @transform_1(%arg0: i32) -> (i32, i32) {
    %c0_i32 = arith.constant 0 : i32
    %c0_i32_0 = arith.constant 0 : i32
    return %arg0, %c0_i32 : i32, i32
  }
}

module attributes {stable_mosaic.version = 11 : i64} {
  func.func @_matmul_bias_kernel(%arg0: i32, %arg1: i32, %arg2: i32, %arg3: memref<128x256xbf16, #tpu.memory_space<vmem>>, %arg4: memref<256x128xbf16, #tpu.memory_space<vmem>>, %arg5: memref<1x128xf32, #tpu.memory_space<vmem>>, %arg6: memref<128x128xbf16, #tpu.memory_space<vmem>>, %arg7: memref<128x128xf32, #tpu.memory_space<vmem>>) attributes {dimension_semantics = [#tpu.dimension_semantics<parallel>, #tpu.dimension_semantics<parallel>, #tpu.dimension_semantics<arbitrary>], iteration_bounds = array<i64: 1, 1, 3>, scalar_prefetch = 0 : i64, scratch_operands = 1 : i64, tpu.core_type = #tpu.core_type<tc>, window_params = [{transform_indices = @transform_0, window_bounds = array<i64: 128, 256>}, {transform_indices = @transform_1, window_bounds = array<i64: 256, 128>}, {transform_indices = @transform_2, window_bounds = array<i64: 1, 128>}, {transform_indices = @transform_3, window_bounds = array<i64: 128, 128>}]} {
    %c0_i32 = arith.constant 0 : i32
    %0 = arith.cmpi eq, %arg2, %c0_i32 : i32
    %1 = arith.extui %0 : i1 to i32
    %c0_i32_0 = arith.constant 0 : i32
    %2 = arith.cmpi ne, %1, %c0_i32_0 : i32
    scf.if %2 {
      %cst_9 = arith.constant 0.000000e+00 : f32
      %12 = vector.broadcast %cst_9 : f32 to vector<128x128xf32>
      %c0_10 = arith.constant 0 : index
      %c0_11 = arith.constant 0 : index
      %13 = vector.load %arg7[%c0_10, %c0_11] : memref<128x128xf32, #tpu.memory_space<vmem>>, vector<128x128xf32>
      tpu.vector_store %arg7[%c0_10, %c0_11], %12 {strides = array<i32>} : memref<128x128xf32, #tpu.memory_space<vmem>>, vector<128x128xf32>,
    } else {
    }
    %c0 = arith.constant 0 : index
    %c0_1 = arith.constant 0 : index
    %3 = vector.load %arg7[%c0, %c0_1] : memref<128x128xf32, #tpu.memory_space<vmem>>, vector<128x128xf32>
    %c0_2 = arith.constant 0 : index
    %c0_3 = arith.constant 0 : index
    %4 = vector.load %arg3[%c0_2, %c0_3] : memref<128x256xbf16, #tpu.memory_space<vmem>>, vector<128x256xbf16>
    %c0_4 = arith.constant 0 : index
    %c0_5 = arith.constant 0 : index
    %5 = vector.load %arg4[%c0_4, %c0_5] : memref<256x128xbf16, #tpu.memory_space<vmem>>, vector<256x128xbf16>
    %cst = arith.constant dense<0.000000e+00> : vector<128x128xf32>
    %6 = tpu.matmul %4, %5, %cst {dimension_numbers = #tpu.dot_dimension_numbers<[1], [0], [0], [1], [0, 0, 1, 1], [], []>} : vector<128x256xbf16>, vector<256x128xbf16>, vector<128x128xf32> -> vector<128x128xf32>
    %7 = arith.addf %3, %6 : vector<128x128xf32>
    %c0_6 = arith.constant 0 : index
    %c0_7 = arith.constant 0 : index
    %8 = vector.load %arg7[%c0_6, %c0_7] : memref<128x128xf32, #tpu.memory_space<vmem>>, vector<128x128xf32>
    tpu.vector_store %arg7[%c0_6, %c0_7], %7 {strides = array<i32>} : memref<128x128xf32, #tpu.memory_space<vmem>>, vector<128x128xf32>,
    %c2_i32 = arith.constant 2 : i32
    %9 = arith.cmpi eq, %arg2, %c2_i32 : i32
    %10 = arith.extui %9 : i1 to i32
    %c0_i32_8 = arith.constant 0 : i32
    %11 = arith.cmpi ne, %10, %c0_i32_8 : i32
    scf.if %11 {
      %c0_9 = arith.constant 0 : index
      %c0_10 = arith.constant 0 : index
      %12 = vector.load %arg7[%c0_9, %c0_10] : memref<128x128xf32, #tpu.memory_space<vmem>>, vector<128x128xf32>
      %c0_11 = arith.constant 0 : index
      %c0_12 = arith.constant 0 : index
      %13 = vector.load %arg5[%c0_11, %c0_12] : memref<1x128xf32, #tpu.memory_space<vmem>>, vector<1x128xf32>
      %14 = vector.broadcast %13 : vector<1x128xf32> to vector<128x128xf32>
      %15 = arith.addf %12, %14 : vector<128x128xf32>
      %16 = arith.truncf %15 : vector<128x128xf32> to vector<128x128xbf16>
      %c0_13 = arith.constant 0 : index
      %c0_14 = arith.constant 0 : index
      %17 = vector.load %arg6[%c0_13, %c0_14] : memref<128x128xbf16, #tpu.memory_space<vmem>>, vector<128x128xbf16>
      tpu.vector_store %arg6[%c0_13, %c0_14], %16 {strides = array<i32>} : memref<128x128xbf16, #tpu.memory_space<vmem>>, vector<128x128xbf16>,
    } else {
    }
    return
  }
  func.func @transform_0(%arg0: i32, %arg1: i32, %arg2: i32) -> (i32, i32) {
    %c0_i32 = arith.constant 0 : i32
    return %arg0, %arg2 : i32, i32
  }
  func.func @transform_1(%arg0: i32, %arg1: i32, %arg2: i32) -> (i32, i32) {
    %c0_i32 = arith.constant 0 : i32
    return %arg2, %arg1 : i32, i32
  }
  func.func @transform_2(%arg0: i32, %arg1: i32, %arg2: i32) -> (i32, i32) {
    %c0_i32 = arith.constant 0 : i32
    %c0_i32_0 = arith.constant 0 : i32
    return %c0_i32, %arg1 : i32, i32
  }
  func.func @transform_3(%arg0: i32, %arg1: i32, %arg2: i32) -> (i32, i32) {
    %c0_i32 = arith.constant 0 : i32
    return %arg0, %arg1 : i32, i32
  }
}

module attributes {stable_mosaic.version = 11 : i64} {
  func.func @_inorm_kernel(%arg0: i32, %arg1: memref<32x64xbf16, #tpu.memory_space<vmem>>, %arg2: memref<32x64xbf16, #tpu.memory_space<vmem>>) attributes {dimension_semantics = [#tpu.dimension_semantics<parallel>], iteration_bounds = array<i64: 8>, scalar_prefetch = 0 : i64, scratch_operands = 0 : i64, tpu.core_type = #tpu.core_type<tc>, window_params = [{transform_indices = @transform_0, window_bounds = array<i64: 32, 64>}, {transform_indices = @transform_1, window_bounds = array<i64: 32, 64>}]} {
    %c0 = arith.constant 0 : index
    %c0_0 = arith.constant 0 : index
    %0 = vector.load %arg1[%c0, %c0_0] : memref<32x64xbf16, #tpu.memory_space<vmem>>, vector<32x64xbf16>
    %1 = arith.extf %0 : vector<32x64xbf16> to vector<32x64xf32>
    %cst = arith.constant dense<0.000000e+00> : vector<32xf32>
    %2 = vector.multi_reduction <add>, %1, %cst [1] : vector<32x64xf32> to vector<32xf32>
    %3 = vector.shape_cast %2 : vector<32xf32> to vector<32x1xf32>
    %cst_1 = arith.constant 6.400000e+01 : f32
    %4 = vector.broadcast %cst_1 : f32 to vector<32x1xf32>
    %5 = arith.divf %3, %4 : vector<32x1xf32>
    %6 = vector.broadcast %5 : vector<32x1xf32> to vector<32x64xf32>
    %7 = arith.subf %1, %6 : vector<32x64xf32>
    %8 = arith.mulf %7, %7 : vector<32x64xf32>
    %cst_2 = arith.constant dense<0.000000e+00> : vector<32xf32>
    %9 = vector.multi_reduction <add>, %8, %cst_2 [1] : vector<32x64xf32> to vector<32xf32>
    %10 = vector.shape_cast %9 : vector<32xf32> to vector<32x1xf32>
    %cst_3 = arith.constant 6.400000e+01 : f32
    %11 = vector.broadcast %cst_3 : f32 to vector<32x1xf32>
    %12 = arith.divf %10, %11 : vector<32x1xf32>
    %cst_4 = arith.constant 9.99999974E-6 : f32
    %13 = vector.broadcast %cst_4 : f32 to vector<32x1xf32>
    %14 = arith.addf %12, %13 : vector<32x1xf32>
    %15 = math.rsqrt %14 : vector<32x1xf32>
    %16 = vector.broadcast %15 : vector<32x1xf32> to vector<32x64xf32>
    %17 = arith.mulf %7, %16 : vector<32x64xf32>
    %cst_5 = arith.constant 0.000000e+00 : f32
    %18 = vector.broadcast %cst_5 : f32 to vector<32x64xf32>
    %19 = arith.maximumf %17, %18 : vector<32x64xf32>
    %20 = arith.truncf %19 : vector<32x64xf32> to vector<32x64xbf16>
    %c0_6 = arith.constant 0 : index
    %c0_7 = arith.constant 0 : index
    %21 = vector.load %arg2[%c0_6, %c0_7] : memref<32x64xbf16, #tpu.memory_space<vmem>>, vector<32x64xbf16>
    tpu.vector_store %arg2[%c0_6, %c0_7], %20 {strides = array<i32>} : memref<32x64xbf16, #tpu.memory_space<vmem>>, vector<32x64xbf16>,
    return
  }
  func.func @transform_0(%arg0: i32) -> (i32, i32) {
    %c0_i32 = arith.constant 0 : i32
    %c0_i32_0 = arith.constant 0 : i32
    return %arg0, %c0_i32 : i32, i32
  }
  func.func @transform_1(%arg0: i32) -> (i32, i32) {
    %c0_i32 = arith.constant 0 : i32
    %c0_i32_0 = arith.constant 0 : i32
    return %arg0, %c0_i32 : i32, i32
  }
}

module attributes {stable_mosaic.version = 11 : i64} {
  func.func @_matmul_bias_kernel(%arg0: i32, %arg1: i32, %arg2: i32, %arg3: memref<32x256xbf16, #tpu.memory_space<vmem>>, %arg4: memref<256x256xbf16, #tpu.memory_space<vmem>>, %arg5: memref<1x256xf32, #tpu.memory_space<vmem>>, %arg6: memref<32x256xbf16, #tpu.memory_space<vmem>>, %arg7: memref<32x256xf32, #tpu.memory_space<vmem>>) attributes {dimension_semantics = [#tpu.dimension_semantics<parallel>, #tpu.dimension_semantics<parallel>, #tpu.dimension_semantics<arbitrary>], iteration_bounds = array<i64: 1, 1, 5>, scalar_prefetch = 0 : i64, scratch_operands = 1 : i64, tpu.core_type = #tpu.core_type<tc>, window_params = [{transform_indices = @transform_0, window_bounds = array<i64: 32, 256>}, {transform_indices = @transform_1, window_bounds = array<i64: 256, 256>}, {transform_indices = @transform_2, window_bounds = array<i64: 1, 256>}, {transform_indices = @transform_3, window_bounds = array<i64: 32, 256>}]} {
    %c0_i32 = arith.constant 0 : i32
    %0 = arith.cmpi eq, %arg2, %c0_i32 : i32
    %1 = arith.extui %0 : i1 to i32
    %c0_i32_0 = arith.constant 0 : i32
    %2 = arith.cmpi ne, %1, %c0_i32_0 : i32
    scf.if %2 {
      %cst_9 = arith.constant 0.000000e+00 : f32
      %12 = vector.broadcast %cst_9 : f32 to vector<32x256xf32>
      %c0_10 = arith.constant 0 : index
      %c0_11 = arith.constant 0 : index
      %13 = vector.load %arg7[%c0_10, %c0_11] : memref<32x256xf32, #tpu.memory_space<vmem>>, vector<32x256xf32>
      tpu.vector_store %arg7[%c0_10, %c0_11], %12 {strides = array<i32>} : memref<32x256xf32, #tpu.memory_space<vmem>>, vector<32x256xf32>,
    } else {
    }
    %c0 = arith.constant 0 : index
    %c0_1 = arith.constant 0 : index
    %3 = vector.load %arg7[%c0, %c0_1] : memref<32x256xf32, #tpu.memory_space<vmem>>, vector<32x256xf32>
    %c0_2 = arith.constant 0 : index
    %c0_3 = arith.constant 0 : index
    %4 = vector.load %arg3[%c0_2, %c0_3] : memref<32x256xbf16, #tpu.memory_space<vmem>>, vector<32x256xbf16>
    %c0_4 = arith.constant 0 : index
    %c0_5 = arith.constant 0 : index
    %5 = vector.load %arg4[%c0_4, %c0_5] : memref<256x256xbf16, #tpu.memory_space<vmem>>, vector<256x256xbf16>
    %cst = arith.constant dense<0.000000e+00> : vector<32x256xf32>
    %6 = tpu.matmul %4, %5, %cst {dimension_numbers = #tpu.dot_dimension_numbers<[1], [0], [0], [1], [0, 0, 1, 1], [], []>} : vector<32x256xbf16>, vector<256x256xbf16>, vector<32x256xf32> -> vector<32x256xf32>
    %7 = arith.addf %3, %6 : vector<32x256xf32>
    %c0_6 = arith.constant 0 : index
    %c0_7 = arith.constant 0 : index
    %8 = vector.load %arg7[%c0_6, %c0_7] : memref<32x256xf32, #tpu.memory_space<vmem>>, vector<32x256xf32>
    tpu.vector_store %arg7[%c0_6, %c0_7], %7 {strides = array<i32>} : memref<32x256xf32, #tpu.memory_space<vmem>>, vector<32x256xf32>,
    %c4_i32 = arith.constant 4 : i32
    %9 = arith.cmpi eq, %arg2, %c4_i32 : i32
    %10 = arith.extui %9 : i1 to i32
    %c0_i32_8 = arith.constant 0 : i32
    %11 = arith.cmpi ne, %10, %c0_i32_8 : i32
    scf.if %11 {
      %c0_9 = arith.constant 0 : index
      %c0_10 = arith.constant 0 : index
      %12 = vector.load %arg7[%c0_9, %c0_10] : memref<32x256xf32, #tpu.memory_space<vmem>>, vector<32x256xf32>
      %c0_11 = arith.constant 0 : index
      %c0_12 = arith.constant 0 : index
      %13 = vector.load %arg5[%c0_11, %c0_12] : memref<1x256xf32, #tpu.memory_space<vmem>>, vector<1x256xf32>
      %14 = vector.broadcast %13 : vector<1x256xf32> to vector<32x256xf32>
      %15 = arith.addf %12, %14 : vector<32x256xf32>
      %16 = arith.truncf %15 : vector<32x256xf32> to vector<32x256xbf16>
      %c0_13 = arith.constant 0 : index
      %c0_14 = arith.constant 0 : index
      %17 = vector.load %arg6[%c0_13, %c0_14] : memref<32x256xbf16, #tpu.memory_space<vmem>>, vector<32x256xbf16>
      tpu.vector_store %arg6[%c0_13, %c0_14], %16 {strides = array<i32>} : memref<32x256xbf16, #tpu.memory_space<vmem>>, vector<32x256xbf16>,
    } else {
    }
    return
  }
  func.func @transform_0(%arg0: i32, %arg1: i32, %arg2: i32) -> (i32, i32) {
    %c0_i32 = arith.constant 0 : i32
    return %arg0, %arg2 : i32, i32
  }
  func.func @transform_1(%arg0: i32, %arg1: i32, %arg2: i32) -> (i32, i32) {
    %c0_i32 = arith.constant 0 : i32
    return %arg2, %arg1 : i32, i32
  }
  func.func @transform_2(%arg0: i32, %arg1: i32, %arg2: i32) -> (i32, i32) {
    %c0_i32 = arith.constant 0 : i32
    %c0_i32_0 = arith.constant 0 : i32
    return %c0_i32, %arg1 : i32, i32
  }
  func.func @transform_3(%arg0: i32, %arg1: i32, %arg2: i32) -> (i32, i32) {
    %c0_i32 = arith.constant 0 : i32
    return %arg0, %arg1 : i32, i32
  }
}

module attributes {stable_mosaic.version = 11 : i64} {
  func.func @_inorm_kernel(%arg0: i32, %arg1: memref<32x16xbf16, #tpu.memory_space<vmem>>, %arg2: memref<32x16xbf16, #tpu.memory_space<vmem>>) attributes {dimension_semantics = [#tpu.dimension_semantics<parallel>], iteration_bounds = array<i64: 16>, scalar_prefetch = 0 : i64, scratch_operands = 0 : i64, tpu.core_type = #tpu.core_type<tc>, window_params = [{transform_indices = @transform_0, window_bounds = array<i64: 32, 16>}, {transform_indices = @transform_1, window_bounds = array<i64: 32, 16>}]} {
    %c0 = arith.constant 0 : index
    %c0_0 = arith.constant 0 : index
    %0 = vector.load %arg1[%c0, %c0_0] : memref<32x16xbf16, #tpu.memory_space<vmem>>, vector<32x16xbf16>
    %1 = arith.extf %0 : vector<32x16xbf16> to vector<32x16xf32>
    %cst = arith.constant dense<0.000000e+00> : vector<32xf32>
    %2 = vector.multi_reduction <add>, %1, %cst [1] : vector<32x16xf32> to vector<32xf32>
    %3 = vector.shape_cast %2 : vector<32xf32> to vector<32x1xf32>
    %cst_1 = arith.constant 1.600000e+01 : f32
    %4 = vector.broadcast %cst_1 : f32 to vector<32x1xf32>
    %5 = arith.divf %3, %4 : vector<32x1xf32>
    %6 = vector.broadcast %5 : vector<32x1xf32> to vector<32x16xf32>
    %7 = arith.subf %1, %6 : vector<32x16xf32>
    %8 = arith.mulf %7, %7 : vector<32x16xf32>
    %cst_2 = arith.constant dense<0.000000e+00> : vector<32xf32>
    %9 = vector.multi_reduction <add>, %8, %cst_2 [1] : vector<32x16xf32> to vector<32xf32>
    %10 = vector.shape_cast %9 : vector<32xf32> to vector<32x1xf32>
    %cst_3 = arith.constant 1.600000e+01 : f32
    %11 = vector.broadcast %cst_3 : f32 to vector<32x1xf32>
    %12 = arith.divf %10, %11 : vector<32x1xf32>
    %cst_4 = arith.constant 9.99999974E-6 : f32
    %13 = vector.broadcast %cst_4 : f32 to vector<32x1xf32>
    %14 = arith.addf %12, %13 : vector<32x1xf32>
    %15 = math.rsqrt %14 : vector<32x1xf32>
    %16 = vector.broadcast %15 : vector<32x1xf32> to vector<32x16xf32>
    %17 = arith.mulf %7, %16 : vector<32x16xf32>
    %cst_5 = arith.constant 0.000000e+00 : f32
    %18 = vector.broadcast %cst_5 : f32 to vector<32x16xf32>
    %19 = arith.maximumf %17, %18 : vector<32x16xf32>
    %20 = arith.truncf %19 : vector<32x16xf32> to vector<32x16xbf16>
    %c0_6 = arith.constant 0 : index
    %c0_7 = arith.constant 0 : index
    %21 = vector.load %arg2[%c0_6, %c0_7] : memref<32x16xbf16, #tpu.memory_space<vmem>>, vector<32x16xbf16>
    tpu.vector_store %arg2[%c0_6, %c0_7], %20 {strides = array<i32>} : memref<32x16xbf16, #tpu.memory_space<vmem>>, vector<32x16xbf16>,
    return
  }
  func.func @transform_0(%arg0: i32) -> (i32, i32) {
    %c0_i32 = arith.constant 0 : i32
    %c0_i32_0 = arith.constant 0 : i32
    return %arg0, %c0_i32 : i32, i32
  }
  func.func @transform_1(%arg0: i32) -> (i32, i32) {
    %c0_i32 = arith.constant 0 : i32
    %c0_i32_0 = arith.constant 0 : i32
    return %arg0, %c0_i32 : i32, i32
  }
}

module attributes {stable_mosaic.version = 11 : i64} {
  func.func @_matmul_bias_kernel(%arg0: i32, %arg1: i32, %arg2: i32, %arg3: memref<32x256xbf16, #tpu.memory_space<vmem>>, %arg4: memref<256x256xbf16, #tpu.memory_space<vmem>>, %arg5: memref<1x256xf32, #tpu.memory_space<vmem>>, %arg6: memref<32x256xbf16, #tpu.memory_space<vmem>>, %arg7: memref<32x256xf32, #tpu.memory_space<vmem>>) attributes {dimension_semantics = [#tpu.dimension_semantics<parallel>, #tpu.dimension_semantics<parallel>, #tpu.dimension_semantics<arbitrary>], iteration_bounds = array<i64: 1, 1, 9>, scalar_prefetch = 0 : i64, scratch_operands = 1 : i64, tpu.core_type = #tpu.core_type<tc>, window_params = [{transform_indices = @transform_0, window_bounds = array<i64: 32, 256>}, {transform_indices = @transform_1, window_bounds = array<i64: 256, 256>}, {transform_indices = @transform_2, window_bounds = array<i64: 1, 256>}, {transform_indices = @transform_3, window_bounds = array<i64: 32, 256>}]} {
    %c0_i32 = arith.constant 0 : i32
    %0 = arith.cmpi eq, %arg2, %c0_i32 : i32
    %1 = arith.extui %0 : i1 to i32
    %c0_i32_0 = arith.constant 0 : i32
    %2 = arith.cmpi ne, %1, %c0_i32_0 : i32
    scf.if %2 {
      %cst_9 = arith.constant 0.000000e+00 : f32
      %12 = vector.broadcast %cst_9 : f32 to vector<32x256xf32>
      %c0_10 = arith.constant 0 : index
      %c0_11 = arith.constant 0 : index
      %13 = vector.load %arg7[%c0_10, %c0_11] : memref<32x256xf32, #tpu.memory_space<vmem>>, vector<32x256xf32>
      tpu.vector_store %arg7[%c0_10, %c0_11], %12 {strides = array<i32>} : memref<32x256xf32, #tpu.memory_space<vmem>>, vector<32x256xf32>,
    } else {
    }
    %c0 = arith.constant 0 : index
    %c0_1 = arith.constant 0 : index
    %3 = vector.load %arg7[%c0, %c0_1] : memref<32x256xf32, #tpu.memory_space<vmem>>, vector<32x256xf32>
    %c0_2 = arith.constant 0 : index
    %c0_3 = arith.constant 0 : index
    %4 = vector.load %arg3[%c0_2, %c0_3] : memref<32x256xbf16, #tpu.memory_space<vmem>>, vector<32x256xbf16>
    %c0_4 = arith.constant 0 : index
    %c0_5 = arith.constant 0 : index
    %5 = vector.load %arg4[%c0_4, %c0_5] : memref<256x256xbf16, #tpu.memory_space<vmem>>, vector<256x256xbf16>
    %cst = arith.constant dense<0.000000e+00> : vector<32x256xf32>
    %6 = tpu.matmul %4, %5, %cst {dimension_numbers = #tpu.dot_dimension_numbers<[1], [0], [0], [1], [0, 0, 1, 1], [], []>} : vector<32x256xbf16>, vector<256x256xbf16>, vector<32x256xf32> -> vector<32x256xf32>
    %7 = arith.addf %3, %6 : vector<32x256xf32>
    %c0_6 = arith.constant 0 : index
    %c0_7 = arith.constant 0 : index
    %8 = vector.load %arg7[%c0_6, %c0_7] : memref<32x256xf32, #tpu.memory_space<vmem>>, vector<32x256xf32>
    tpu.vector_store %arg7[%c0_6, %c0_7], %7 {strides = array<i32>} : memref<32x256xf32, #tpu.memory_space<vmem>>, vector<32x256xf32>,
    %c8_i32 = arith.constant 8 : i32
    %9 = arith.cmpi eq, %arg2, %c8_i32 : i32
    %10 = arith.extui %9 : i1 to i32
    %c0_i32_8 = arith.constant 0 : i32
    %11 = arith.cmpi ne, %10, %c0_i32_8 : i32
    scf.if %11 {
      %c0_9 = arith.constant 0 : index
      %c0_10 = arith.constant 0 : index
      %12 = vector.load %arg7[%c0_9, %c0_10] : memref<32x256xf32, #tpu.memory_space<vmem>>, vector<32x256xf32>
      %c0_11 = arith.constant 0 : index
      %c0_12 = arith.constant 0 : index
      %13 = vector.load %arg5[%c0_11, %c0_12] : memref<1x256xf32, #tpu.memory_space<vmem>>, vector<1x256xf32>
      %14 = vector.broadcast %13 : vector<1x256xf32> to vector<32x256xf32>
      %15 = arith.addf %12, %14 : vector<32x256xf32>
      %16 = arith.truncf %15 : vector<32x256xf32> to vector<32x256xbf16>
      %c0_13 = arith.constant 0 : index
      %c0_14 = arith.constant 0 : index
      %17 = vector.load %arg6[%c0_13, %c0_14] : memref<32x256xbf16, #tpu.memory_space<vmem>>, vector<32x256xbf16>
      tpu.vector_store %arg6[%c0_13, %c0_14], %16 {strides = array<i32>} : memref<32x256xbf16, #tpu.memory_space<vmem>>, vector<32x256xbf16>,
    } else {
    }
    return
  }
  func.func @transform_0(%arg0: i32, %arg1: i32, %arg2: i32) -> (i32, i32) {
    %c0_i32 = arith.constant 0 : i32
    return %arg0, %arg2 : i32, i32
  }
  func.func @transform_1(%arg0: i32, %arg1: i32, %arg2: i32) -> (i32, i32) {
    %c0_i32 = arith.constant 0 : i32
    return %arg2, %arg1 : i32, i32
  }
  func.func @transform_2(%arg0: i32, %arg1: i32, %arg2: i32) -> (i32, i32) {
    %c0_i32 = arith.constant 0 : i32
    %c0_i32_0 = arith.constant 0 : i32
    return %c0_i32, %arg1 : i32, i32
  }
  func.func @transform_3(%arg0: i32, %arg1: i32, %arg2: i32) -> (i32, i32) {
    %c0_i32 = arith.constant 0 : i32
    return %arg0, %arg1 : i32, i32
  }
}

module attributes {stable_mosaic.version = 11 : i64} {
  func.func @_inorm_res_kernel(%arg0: i32, %arg1: memref<32x16xbf16, #tpu.memory_space<vmem>>, %arg2: memref<32x16xbf16, #tpu.memory_space<vmem>>, %arg3: memref<32x16xbf16, #tpu.memory_space<vmem>>) attributes {dimension_semantics = [#tpu.dimension_semantics<parallel>], iteration_bounds = array<i64: 16>, scalar_prefetch = 0 : i64, scratch_operands = 0 : i64, tpu.core_type = #tpu.core_type<tc>, window_params = [{transform_indices = @transform_0, window_bounds = array<i64: 32, 16>}, {transform_indices = @transform_1, window_bounds = array<i64: 32, 16>}, {transform_indices = @transform_2, window_bounds = array<i64: 32, 16>}]} {
    %c0 = arith.constant 0 : index
    %c0_0 = arith.constant 0 : index
    %0 = vector.load %arg1[%c0, %c0_0] : memref<32x16xbf16, #tpu.memory_space<vmem>>, vector<32x16xbf16>
    %1 = arith.extf %0 : vector<32x16xbf16> to vector<32x16xf32>
    %cst = arith.constant dense<0.000000e+00> : vector<32xf32>
    %2 = vector.multi_reduction <add>, %1, %cst [1] : vector<32x16xf32> to vector<32xf32>
    %3 = vector.shape_cast %2 : vector<32xf32> to vector<32x1xf32>
    %cst_1 = arith.constant 1.600000e+01 : f32
    %4 = vector.broadcast %cst_1 : f32 to vector<32x1xf32>
    %5 = arith.divf %3, %4 : vector<32x1xf32>
    %6 = vector.broadcast %5 : vector<32x1xf32> to vector<32x16xf32>
    %7 = arith.subf %1, %6 : vector<32x16xf32>
    %8 = arith.mulf %7, %7 : vector<32x16xf32>
    %cst_2 = arith.constant dense<0.000000e+00> : vector<32xf32>
    %9 = vector.multi_reduction <add>, %8, %cst_2 [1] : vector<32x16xf32> to vector<32xf32>
    %10 = vector.shape_cast %9 : vector<32xf32> to vector<32x1xf32>
    %cst_3 = arith.constant 1.600000e+01 : f32
    %11 = vector.broadcast %cst_3 : f32 to vector<32x1xf32>
    %12 = arith.divf %10, %11 : vector<32x1xf32>
    %cst_4 = arith.constant 9.99999974E-6 : f32
    %13 = vector.broadcast %cst_4 : f32 to vector<32x1xf32>
    %14 = arith.addf %12, %13 : vector<32x1xf32>
    %15 = math.rsqrt %14 : vector<32x1xf32>
    %16 = vector.broadcast %15 : vector<32x1xf32> to vector<32x16xf32>
    %17 = arith.mulf %7, %16 : vector<32x16xf32>
    %c0_5 = arith.constant 0 : index
    %c0_6 = arith.constant 0 : index
    %18 = vector.load %arg2[%c0_5, %c0_6] : memref<32x16xbf16, #tpu.memory_space<vmem>>, vector<32x16xbf16>
    %19 = arith.extf %18 : vector<32x16xbf16> to vector<32x16xf32>
    %20 = arith.addf %17, %19 : vector<32x16xf32>
    %21 = arith.truncf %20 : vector<32x16xf32> to vector<32x16xbf16>
    %c0_7 = arith.constant 0 : index
    %c0_8 = arith.constant 0 : index
    %22 = vector.load %arg3[%c0_7, %c0_8] : memref<32x16xbf16, #tpu.memory_space<vmem>>, vector<32x16xbf16>
    tpu.vector_store %arg3[%c0_7, %c0_8], %21 {strides = array<i32>} : memref<32x16xbf16, #tpu.memory_space<vmem>>, vector<32x16xbf16>,
    return
  }
  func.func @transform_0(%arg0: i32) -> (i32, i32) {
    %c0_i32 = arith.constant 0 : i32
    %c0_i32_0 = arith.constant 0 : i32
    return %arg0, %c0_i32 : i32, i32
  }
  func.func @transform_1(%arg0: i32) -> (i32, i32) {
    %c0_i32 = arith.constant 0 : i32
    %c0_i32_0 = arith.constant 0 : i32
    return %arg0, %c0_i32 : i32, i32
  }
  func.func @transform_2(%arg0: i32) -> (i32, i32) {
    %c0_i32 = arith.constant 0 : i32
    %c0_i32_0 = arith.constant 0 : i32
    return %arg0, %c0_i32 : i32, i32
  }
}

module attributes {stable_mosaic.version = 11 : i64} {
  func.func @_matmul_bias_kernel(%arg0: i32, %arg1: i32, %arg2: i32, %arg3: memref<32x256xbf16, #tpu.memory_space<vmem>>, %arg4: memref<256x128xbf16, #tpu.memory_space<vmem>>, %arg5: memref<1x128xf32, #tpu.memory_space<vmem>>, %arg6: memref<32x128xbf16, #tpu.memory_space<vmem>>, %arg7: memref<32x128xf32, #tpu.memory_space<vmem>>) attributes {dimension_semantics = [#tpu.dimension_semantics<parallel>, #tpu.dimension_semantics<parallel>, #tpu.dimension_semantics<arbitrary>], iteration_bounds = array<i64: 1, 1, 2>, scalar_prefetch = 0 : i64, scratch_operands = 1 : i64, tpu.core_type = #tpu.core_type<tc>, window_params = [{transform_indices = @transform_0, window_bounds = array<i64: 32, 256>}, {transform_indices = @transform_1, window_bounds = array<i64: 256, 128>}, {transform_indices = @transform_2, window_bounds = array<i64: 1, 128>}, {transform_indices = @transform_3, window_bounds = array<i64: 32, 128>}]} {
    %c0_i32 = arith.constant 0 : i32
    %0 = arith.cmpi eq, %arg2, %c0_i32 : i32
    %1 = arith.extui %0 : i1 to i32
    %c0_i32_0 = arith.constant 0 : i32
    %2 = arith.cmpi ne, %1, %c0_i32_0 : i32
    scf.if %2 {
      %cst_9 = arith.constant 0.000000e+00 : f32
      %12 = vector.broadcast %cst_9 : f32 to vector<32x128xf32>
      %c0_10 = arith.constant 0 : index
      %c0_11 = arith.constant 0 : index
      %13 = vector.load %arg7[%c0_10, %c0_11] : memref<32x128xf32, #tpu.memory_space<vmem>>, vector<32x128xf32>
      tpu.vector_store %arg7[%c0_10, %c0_11], %12 {strides = array<i32>} : memref<32x128xf32, #tpu.memory_space<vmem>>, vector<32x128xf32>,
    } else {
    }
    %c0 = arith.constant 0 : index
    %c0_1 = arith.constant 0 : index
    %3 = vector.load %arg7[%c0, %c0_1] : memref<32x128xf32, #tpu.memory_space<vmem>>, vector<32x128xf32>
    %c0_2 = arith.constant 0 : index
    %c0_3 = arith.constant 0 : index
    %4 = vector.load %arg3[%c0_2, %c0_3] : memref<32x256xbf16, #tpu.memory_space<vmem>>, vector<32x256xbf16>
    %c0_4 = arith.constant 0 : index
    %c0_5 = arith.constant 0 : index
    %5 = vector.load %arg4[%c0_4, %c0_5] : memref<256x128xbf16, #tpu.memory_space<vmem>>, vector<256x128xbf16>
    %cst = arith.constant dense<0.000000e+00> : vector<32x128xf32>
    %6 = tpu.matmul %4, %5, %cst {dimension_numbers = #tpu.dot_dimension_numbers<[1], [0], [0], [1], [0, 0, 1, 1], [], []>} : vector<32x256xbf16>, vector<256x128xbf16>, vector<32x128xf32> -> vector<32x128xf32>
    %7 = arith.addf %3, %6 : vector<32x128xf32>
    %c0_6 = arith.constant 0 : index
    %c0_7 = arith.constant 0 : index
    %8 = vector.load %arg7[%c0_6, %c0_7] : memref<32x128xf32, #tpu.memory_space<vmem>>, vector<32x128xf32>
    tpu.vector_store %arg7[%c0_6, %c0_7], %7 {strides = array<i32>} : memref<32x128xf32, #tpu.memory_space<vmem>>, vector<32x128xf32>,
    %c1_i32 = arith.constant 1 : i32
    %9 = arith.cmpi eq, %arg2, %c1_i32 : i32
    %10 = arith.extui %9 : i1 to i32
    %c0_i32_8 = arith.constant 0 : i32
    %11 = arith.cmpi ne, %10, %c0_i32_8 : i32
    scf.if %11 {
      %c0_9 = arith.constant 0 : index
      %c0_10 = arith.constant 0 : index
      %12 = vector.load %arg7[%c0_9, %c0_10] : memref<32x128xf32, #tpu.memory_space<vmem>>, vector<32x128xf32>
      %c0_11 = arith.constant 0 : index
      %c0_12 = arith.constant 0 : index
      %13 = vector.load %arg5[%c0_11, %c0_12] : memref<1x128xf32, #tpu.memory_space<vmem>>, vector<1x128xf32>
      %14 = vector.broadcast %13 : vector<1x128xf32> to vector<32x128xf32>
      %15 = arith.addf %12, %14 : vector<32x128xf32>
      %16 = arith.truncf %15 : vector<32x128xf32> to vector<32x128xbf16>
      %c0_13 = arith.constant 0 : index
      %c0_14 = arith.constant 0 : index
      %17 = vector.load %arg6[%c0_13, %c0_14] : memref<32x128xbf16, #tpu.memory_space<vmem>>, vector<32x128xbf16>
      tpu.vector_store %arg6[%c0_13, %c0_14], %16 {strides = array<i32>} : memref<32x128xbf16, #tpu.memory_space<vmem>>, vector<32x128xbf16>,
    } else {
    }
    return
  }
  func.func @transform_0(%arg0: i32, %arg1: i32, %arg2: i32) -> (i32, i32) {
    %c0_i32 = arith.constant 0 : i32
    return %arg0, %arg2 : i32, i32
  }
  func.func @transform_1(%arg0: i32, %arg1: i32, %arg2: i32) -> (i32, i32) {
    %c0_i32 = arith.constant 0 : i32
    return %arg2, %arg1 : i32, i32
  }
  func.func @transform_2(%arg0: i32, %arg1: i32, %arg2: i32) -> (i32, i32) {
    %c0_i32 = arith.constant 0 : i32
    %c0_i32_0 = arith.constant 0 : i32
    return %c0_i32, %arg1 : i32, i32
  }
  func.func @transform_3(%arg0: i32, %arg1: i32, %arg2: i32) -> (i32, i32) {
    %c0_i32 = arith.constant 0 : i32
    return %arg0, %arg1 : i32, i32
  }
}

module attributes {stable_mosaic.version = 11 : i64} {
  func.func @_matmul_bias_kernel(%arg0: i32, %arg1: i32, %arg2: i32, %arg3: memref<32x256xbf16, #tpu.memory_space<vmem>>, %arg4: memref<256x128xbf16, #tpu.memory_space<vmem>>, %arg5: memref<1x128xf32, #tpu.memory_space<vmem>>, %arg6: memref<32x128xbf16, #tpu.memory_space<vmem>>, %arg7: memref<32x128xf32, #tpu.memory_space<vmem>>) attributes {dimension_semantics = [#tpu.dimension_semantics<parallel>, #tpu.dimension_semantics<parallel>, #tpu.dimension_semantics<arbitrary>], iteration_bounds = array<i64: 1, 1, 1>, scalar_prefetch = 0 : i64, scratch_operands = 1 : i64, tpu.core_type = #tpu.core_type<tc>, window_params = [{transform_indices = @transform_0, window_bounds = array<i64: 32, 256>}, {transform_indices = @transform_1, window_bounds = array<i64: 256, 128>}, {transform_indices = @transform_2, window_bounds = array<i64: 1, 128>}, {transform_indices = @transform_3, window_bounds = array<i64: 32, 128>}]} {
    %c0_i32 = arith.constant 0 : i32
    %0 = arith.cmpi eq, %arg2, %c0_i32 : i32
    %1 = arith.extui %0 : i1 to i32
    %c0_i32_0 = arith.constant 0 : i32
    %2 = arith.cmpi ne, %1, %c0_i32_0 : i32
    scf.if %2 {
      %cst_10 = arith.constant 0.000000e+00 : f32
      %12 = vector.broadcast %cst_10 : f32 to vector<32x128xf32>
      %c0_11 = arith.constant 0 : index
      %c0_12 = arith.constant 0 : index
      %13 = vector.load %arg7[%c0_11, %c0_12] : memref<32x128xf32, #tpu.memory_space<vmem>>, vector<32x128xf32>
      tpu.vector_store %arg7[%c0_11, %c0_12], %12 {strides = array<i32>} : memref<32x128xf32, #tpu.memory_space<vmem>>, vector<32x128xf32>,
    } else {
    }
    %c0 = arith.constant 0 : index
    %c0_1 = arith.constant 0 : index
    %3 = vector.load %arg7[%c0, %c0_1] : memref<32x128xf32, #tpu.memory_space<vmem>>, vector<32x128xf32>
    %c0_2 = arith.constant 0 : index
    %c0_3 = arith.constant 0 : index
    %4 = vector.load %arg3[%c0_2, %c0_3] : memref<32x256xbf16, #tpu.memory_space<vmem>>, vector<32x256xbf16>
    %c0_4 = arith.constant 0 : index
    %c0_5 = arith.constant 0 : index
    %5 = vector.load %arg4[%c0_4, %c0_5] : memref<256x128xbf16, #tpu.memory_space<vmem>>, vector<256x128xbf16>
    %cst = arith.constant dense<0.000000e+00> : vector<32x128xf32>
    %6 = tpu.matmul %4, %5, %cst {dimension_numbers = #tpu.dot_dimension_numbers<[1], [0], [0], [1], [0, 0, 1, 1], [], []>} : vector<32x256xbf16>, vector<256x128xbf16>, vector<32x128xf32> -> vector<32x128xf32>
    %7 = arith.addf %3, %6 : vector<32x128xf32>
    %c0_6 = arith.constant 0 : index
    %c0_7 = arith.constant 0 : index
    %8 = vector.load %arg7[%c0_6, %c0_7] : memref<32x128xf32, #tpu.memory_space<vmem>>, vector<32x128xf32>
    tpu.vector_store %arg7[%c0_6, %c0_7], %7 {strides = array<i32>} : memref<32x128xf32, #tpu.memory_space<vmem>>, vector<32x128xf32>,
    %c0_i32_8 = arith.constant 0 : i32
    %9 = arith.cmpi eq, %arg2, %c0_i32_8 : i32
    %10 = arith.extui %9 : i1 to i32
    %c0_i32_9 = arith.constant 0 : i32
    %11 = arith.cmpi ne, %10, %c0_i32_9 : i32
    scf.if %11 {
      %c0_10 = arith.constant 0 : index
      %c0_11 = arith.constant 0 : index
      %12 = vector.load %arg7[%c0_10, %c0_11] : memref<32x128xf32, #tpu.memory_space<vmem>>, vector<32x128xf32>
      %c0_12 = arith.constant 0 : index
      %c0_13 = arith.constant 0 : index
      %13 = vector.load %arg5[%c0_12, %c0_13] : memref<1x128xf32, #tpu.memory_space<vmem>>, vector<1x128xf32>
      %14 = vector.broadcast %13 : vector<1x128xf32> to vector<32x128xf32>
      %15 = arith.addf %12, %14 : vector<32x128xf32>
      %16 = arith.truncf %15 : vector<32x128xf32> to vector<32x128xbf16>
      %c0_14 = arith.constant 0 : index
      %c0_15 = arith.constant 0 : index
      %17 = vector.load %arg6[%c0_14, %c0_15] : memref<32x128xbf16, #tpu.memory_space<vmem>>, vector<32x128xbf16>
      tpu.vector_store %arg6[%c0_14, %c0_15], %16 {strides = array<i32>} : memref<32x128xbf16, #tpu.memory_space<vmem>>, vector<32x128xbf16>,
    } else {
    }
    return
  }
  func.func @transform_0(%arg0: i32, %arg1: i32, %arg2: i32) -> (i32, i32) {
    %c0_i32 = arith.constant 0 : i32
    return %arg0, %arg2 : i32, i32
  }
  func.func @transform_1(%arg0: i32, %arg1: i32, %arg2: i32) -> (i32, i32) {
    %c0_i32 = arith.constant 0 : i32
    return %arg2, %arg1 : i32, i32
  }
  func.func @transform_2(%arg0: i32, %arg1: i32, %arg2: i32) -> (i32, i32) {
    %c0_i32 = arith.constant 0 : i32
    %c0_i32_0 = arith.constant 0 : i32
    return %c0_i32, %arg1 : i32, i32
  }
  func.func @transform_3(%arg0: i32, %arg1: i32, %arg2: i32) -> (i32, i32) {
    %c0_i32 = arith.constant 0 : i32
    return %arg0, %arg1 : i32, i32
  }
}

module attributes {stable_mosaic.version = 11 : i64} {
  func.func @_matmul_bias_kernel(%arg0: i32, %arg1: i32, %arg2: i32, %arg3: memref<32x256xbf16, #tpu.memory_space<vmem>>, %arg4: memref<256x128xbf16, #tpu.memory_space<vmem>>, %arg5: memref<1x128xf32, #tpu.memory_space<vmem>>, %arg6: memref<32x128xbf16, #tpu.memory_space<vmem>>, %arg7: memref<32x128xf32, #tpu.memory_space<vmem>>) attributes {dimension_semantics = [#tpu.dimension_semantics<parallel>, #tpu.dimension_semantics<parallel>, #tpu.dimension_semantics<arbitrary>], iteration_bounds = array<i64: 1, 1, 4>, scalar_prefetch = 0 : i64, scratch_operands = 1 : i64, tpu.core_type = #tpu.core_type<tc>, window_params = [{transform_indices = @transform_0, window_bounds = array<i64: 32, 256>}, {transform_indices = @transform_1, window_bounds = array<i64: 256, 128>}, {transform_indices = @transform_2, window_bounds = array<i64: 1, 128>}, {transform_indices = @transform_3, window_bounds = array<i64: 32, 128>}]} {
    %c0_i32 = arith.constant 0 : i32
    %0 = arith.cmpi eq, %arg2, %c0_i32 : i32
    %1 = arith.extui %0 : i1 to i32
    %c0_i32_0 = arith.constant 0 : i32
    %2 = arith.cmpi ne, %1, %c0_i32_0 : i32
    scf.if %2 {
      %cst_9 = arith.constant 0.000000e+00 : f32
      %12 = vector.broadcast %cst_9 : f32 to vector<32x128xf32>
      %c0_10 = arith.constant 0 : index
      %c0_11 = arith.constant 0 : index
      %13 = vector.load %arg7[%c0_10, %c0_11] : memref<32x128xf32, #tpu.memory_space<vmem>>, vector<32x128xf32>
      tpu.vector_store %arg7[%c0_10, %c0_11], %12 {strides = array<i32>} : memref<32x128xf32, #tpu.memory_space<vmem>>, vector<32x128xf32>,
    } else {
    }
    %c0 = arith.constant 0 : index
    %c0_1 = arith.constant 0 : index
    %3 = vector.load %arg7[%c0, %c0_1] : memref<32x128xf32, #tpu.memory_space<vmem>>, vector<32x128xf32>
    %c0_2 = arith.constant 0 : index
    %c0_3 = arith.constant 0 : index
    %4 = vector.load %arg3[%c0_2, %c0_3] : memref<32x256xbf16, #tpu.memory_space<vmem>>, vector<32x256xbf16>
    %c0_4 = arith.constant 0 : index
    %c0_5 = arith.constant 0 : index
    %5 = vector.load %arg4[%c0_4, %c0_5] : memref<256x128xbf16, #tpu.memory_space<vmem>>, vector<256x128xbf16>
    %cst = arith.constant dense<0.000000e+00> : vector<32x128xf32>
    %6 = tpu.matmul %4, %5, %cst {dimension_numbers = #tpu.dot_dimension_numbers<[1], [0], [0], [1], [0, 0, 1, 1], [], []>} : vector<32x256xbf16>, vector<256x128xbf16>, vector<32x128xf32> -> vector<32x128xf32>
    %7 = arith.addf %3, %6 : vector<32x128xf32>
    %c0_6 = arith.constant 0 : index
    %c0_7 = arith.constant 0 : index
    %8 = vector.load %arg7[%c0_6, %c0_7] : memref<32x128xf32, #tpu.memory_space<vmem>>, vector<32x128xf32>
    tpu.vector_store %arg7[%c0_6, %c0_7], %7 {strides = array<i32>} : memref<32x128xf32, #tpu.memory_space<vmem>>, vector<32x128xf32>,
    %c3_i32 = arith.constant 3 : i32
    %9 = arith.cmpi eq, %arg2, %c3_i32 : i32
    %10 = arith.extui %9 : i1 to i32
    %c0_i32_8 = arith.constant 0 : i32
    %11 = arith.cmpi ne, %10, %c0_i32_8 : i32
    scf.if %11 {
      %c0_9 = arith.constant 0 : index
      %c0_10 = arith.constant 0 : index
      %12 = vector.load %arg7[%c0_9, %c0_10] : memref<32x128xf32, #tpu.memory_space<vmem>>, vector<32x128xf32>
      %c0_11 = arith.constant 0 : index
      %c0_12 = arith.constant 0 : index
      %13 = vector.load %arg5[%c0_11, %c0_12] : memref<1x128xf32, #tpu.memory_space<vmem>>, vector<1x128xf32>
      %14 = vector.broadcast %13 : vector<1x128xf32> to vector<32x128xf32>
      %15 = arith.addf %12, %14 : vector<32x128xf32>
      %16 = arith.truncf %15 : vector<32x128xf32> to vector<32x128xbf16>
      %c0_13 = arith.constant 0 : index
      %c0_14 = arith.constant 0 : index
      %17 = vector.load %arg6[%c0_13, %c0_14] : memref<32x128xbf16, #tpu.memory_space<vmem>>, vector<32x128xbf16>
      tpu.vector_store %arg6[%c0_13, %c0_14], %16 {strides = array<i32>} : memref<32x128xbf16, #tpu.memory_space<vmem>>, vector<32x128xbf16>,
    } else {
    }
    return
  }
  func.func @transform_0(%arg0: i32, %arg1: i32, %arg2: i32) -> (i32, i32) {
    %c0_i32 = arith.constant 0 : i32
    return %arg0, %arg2 : i32, i32
  }
  func.func @transform_1(%arg0: i32, %arg1: i32, %arg2: i32) -> (i32, i32) {
    %c0_i32 = arith.constant 0 : i32
    return %arg2, %arg1 : i32, i32
  }
  func.func @transform_2(%arg0: i32, %arg1: i32, %arg2: i32) -> (i32, i32) {
    %c0_i32 = arith.constant 0 : i32
    %c0_i32_0 = arith.constant 0 : i32
    return %c0_i32, %arg1 : i32, i32
  }
  func.func @transform_3(%arg0: i32, %arg1: i32, %arg2: i32) -> (i32, i32) {
    %c0_i32 = arith.constant 0 : i32
    return %arg0, %arg1 : i32, i32
  }
}

module attributes {stable_mosaic.version = 11 : i64} {
  func.func @_matmul_bias_kernel(%arg0: i32, %arg1: i32, %arg2: i32, %arg3: memref<128x256xbf16, #tpu.memory_space<vmem>>, %arg4: memref<256x128xbf16, #tpu.memory_space<vmem>>, %arg5: memref<1x128xf32, #tpu.memory_space<vmem>>, %arg6: memref<128x128xbf16, #tpu.memory_space<vmem>>, %arg7: memref<128x128xf32, #tpu.memory_space<vmem>>) attributes {dimension_semantics = [#tpu.dimension_semantics<parallel>, #tpu.dimension_semantics<parallel>, #tpu.dimension_semantics<arbitrary>], iteration_bounds = array<i64: 1, 1, 1>, scalar_prefetch = 0 : i64, scratch_operands = 1 : i64, tpu.core_type = #tpu.core_type<tc>, window_params = [{transform_indices = @transform_0, window_bounds = array<i64: 128, 256>}, {transform_indices = @transform_1, window_bounds = array<i64: 256, 128>}, {transform_indices = @transform_2, window_bounds = array<i64: 1, 128>}, {transform_indices = @transform_3, window_bounds = array<i64: 128, 128>}]} {
    %c0_i32 = arith.constant 0 : i32
    %0 = arith.cmpi eq, %arg2, %c0_i32 : i32
    %1 = arith.extui %0 : i1 to i32
    %c0_i32_0 = arith.constant 0 : i32
    %2 = arith.cmpi ne, %1, %c0_i32_0 : i32
    scf.if %2 {
      %cst_10 = arith.constant 0.000000e+00 : f32
      %12 = vector.broadcast %cst_10 : f32 to vector<128x128xf32>
      %c0_11 = arith.constant 0 : index
      %c0_12 = arith.constant 0 : index
      %13 = vector.load %arg7[%c0_11, %c0_12] : memref<128x128xf32, #tpu.memory_space<vmem>>, vector<128x128xf32>
      tpu.vector_store %arg7[%c0_11, %c0_12], %12 {strides = array<i32>} : memref<128x128xf32, #tpu.memory_space<vmem>>, vector<128x128xf32>,
    } else {
    }
    %c0 = arith.constant 0 : index
    %c0_1 = arith.constant 0 : index
    %3 = vector.load %arg7[%c0, %c0_1] : memref<128x128xf32, #tpu.memory_space<vmem>>, vector<128x128xf32>
    %c0_2 = arith.constant 0 : index
    %c0_3 = arith.constant 0 : index
    %4 = vector.load %arg3[%c0_2, %c0_3] : memref<128x256xbf16, #tpu.memory_space<vmem>>, vector<128x256xbf16>
    %c0_4 = arith.constant 0 : index
    %c0_5 = arith.constant 0 : index
    %5 = vector.load %arg4[%c0_4, %c0_5] : memref<256x128xbf16, #tpu.memory_space<vmem>>, vector<256x128xbf16>
    %cst = arith.constant dense<0.000000e+00> : vector<128x128xf32>
    %6 = tpu.matmul %4, %5, %cst {dimension_numbers = #tpu.dot_dimension_numbers<[1], [0], [0], [1], [0, 0, 1, 1], [], []>} : vector<128x256xbf16>, vector<256x128xbf16>, vector<128x128xf32> -> vector<128x128xf32>
    %7 = arith.addf %3, %6 : vector<128x128xf32>
    %c0_6 = arith.constant 0 : index
    %c0_7 = arith.constant 0 : index
    %8 = vector.load %arg7[%c0_6, %c0_7] : memref<128x128xf32, #tpu.memory_space<vmem>>, vector<128x128xf32>
    tpu.vector_store %arg7[%c0_6, %c0_7], %7 {strides = array<i32>} : memref<128x128xf32, #tpu.memory_space<vmem>>, vector<128x128xf32>,
    %c0_i32_8 = arith.constant 0 : i32
    %9 = arith.cmpi eq, %arg2, %c0_i32_8 : i32
    %10 = arith.extui %9 : i1 to i32
    %c0_i32_9 = arith.constant 0 : i32
    %11 = arith.cmpi ne, %10, %c0_i32_9 : i32
    scf.if %11 {
      %c0_10 = arith.constant 0 : index
      %c0_11 = arith.constant 0 : index
      %12 = vector.load %arg7[%c0_10, %c0_11] : memref<128x128xf32, #tpu.memory_space<vmem>>, vector<128x128xf32>
      %c0_12 = arith.constant 0 : index
      %c0_13 = arith.constant 0 : index
      %13 = vector.load %arg5[%c0_12, %c0_13] : memref<1x128xf32, #tpu.memory_space<vmem>>, vector<1x128xf32>
      %14 = vector.broadcast %13 : vector<1x128xf32> to vector<128x128xf32>
      %15 = arith.addf %12, %14 : vector<128x128xf32>
      %16 = arith.truncf %15 : vector<128x128xf32> to vector<128x128xbf16>
      %c0_14 = arith.constant 0 : index
      %c0_15 = arith.constant 0 : index
      %17 = vector.load %arg6[%c0_14, %c0_15] : memref<128x128xbf16, #tpu.memory_space<vmem>>, vector<128x128xbf16>
      tpu.vector_store %arg6[%c0_14, %c0_15], %16 {strides = array<i32>} : memref<128x128xbf16, #tpu.memory_space<vmem>>, vector<128x128xbf16>,
    } else {
    }
    return
  }
  func.func @transform_0(%arg0: i32, %arg1: i32, %arg2: i32) -> (i32, i32) {
    %c0_i32 = arith.constant 0 : i32
    return %arg0, %arg2 : i32, i32
  }
  func.func @transform_1(%arg0: i32, %arg1: i32, %arg2: i32) -> (i32, i32) {
    %c0_i32 = arith.constant 0 : i32
    return %arg2, %arg1 : i32, i32
  }
  func.func @transform_2(%arg0: i32, %arg1: i32, %arg2: i32) -> (i32, i32) {
    %c0_i32 = arith.constant 0 : i32
    %c0_i32_0 = arith.constant 0 : i32
    return %c0_i32, %arg1 : i32, i32
  }
  func.func @transform_3(%arg0: i32, %arg1: i32, %arg2: i32) -> (i32, i32) {
    %c0_i32 = arith.constant 0 : i32
    return %arg0, %arg1 : i32, i32
  }
}

module attributes {stable_mosaic.version = 11 : i64} {
  func.func @_matmul_bias_kernel(%arg0: i32, %arg1: i32, %arg2: i32, %arg3: memref<128x128xbf16, #tpu.memory_space<vmem>>, %arg4: memref<128x128xbf16, #tpu.memory_space<vmem>>, %arg5: memref<1x128xf32, #tpu.memory_space<vmem>>, %arg6: memref<128x128xbf16, #tpu.memory_space<vmem>>, %arg7: memref<128x128xf32, #tpu.memory_space<vmem>>) attributes {dimension_semantics = [#tpu.dimension_semantics<parallel>, #tpu.dimension_semantics<parallel>, #tpu.dimension_semantics<arbitrary>], iteration_bounds = array<i64: 1, 1, 1>, scalar_prefetch = 0 : i64, scratch_operands = 1 : i64, tpu.core_type = #tpu.core_type<tc>, window_params = [{transform_indices = @transform_0, window_bounds = array<i64: 128, 128>}, {transform_indices = @transform_1, window_bounds = array<i64: 128, 128>}, {transform_indices = @transform_2, window_bounds = array<i64: 1, 128>}, {transform_indices = @transform_3, window_bounds = array<i64: 128, 128>}]} {
    %c0_i32 = arith.constant 0 : i32
    %0 = arith.cmpi eq, %arg2, %c0_i32 : i32
    %1 = arith.extui %0 : i1 to i32
    %c0_i32_0 = arith.constant 0 : i32
    %2 = arith.cmpi ne, %1, %c0_i32_0 : i32
    scf.if %2 {
      %cst_10 = arith.constant 0.000000e+00 : f32
      %12 = vector.broadcast %cst_10 : f32 to vector<128x128xf32>
      %c0_11 = arith.constant 0 : index
      %c0_12 = arith.constant 0 : index
      %13 = vector.load %arg7[%c0_11, %c0_12] : memref<128x128xf32, #tpu.memory_space<vmem>>, vector<128x128xf32>
      tpu.vector_store %arg7[%c0_11, %c0_12], %12 {strides = array<i32>} : memref<128x128xf32, #tpu.memory_space<vmem>>, vector<128x128xf32>,
    } else {
    }
    %c0 = arith.constant 0 : index
    %c0_1 = arith.constant 0 : index
    %3 = vector.load %arg7[%c0, %c0_1] : memref<128x128xf32, #tpu.memory_space<vmem>>, vector<128x128xf32>
    %c0_2 = arith.constant 0 : index
    %c0_3 = arith.constant 0 : index
    %4 = vector.load %arg3[%c0_2, %c0_3] : memref<128x128xbf16, #tpu.memory_space<vmem>>, vector<128x128xbf16>
    %c0_4 = arith.constant 0 : index
    %c0_5 = arith.constant 0 : index
    %5 = vector.load %arg4[%c0_4, %c0_5] : memref<128x128xbf16, #tpu.memory_space<vmem>>, vector<128x128xbf16>
    %cst = arith.constant dense<0.000000e+00> : vector<128x128xf32>
    %6 = tpu.matmul %4, %5, %cst {dimension_numbers = #tpu.dot_dimension_numbers<[1], [0], [0], [1], [0, 0, 1, 1], [], []>} : vector<128x128xbf16>, vector<128x128xbf16>, vector<128x128xf32> -> vector<128x128xf32>
    %7 = arith.addf %3, %6 : vector<128x128xf32>
    %c0_6 = arith.constant 0 : index
    %c0_7 = arith.constant 0 : index
    %8 = vector.load %arg7[%c0_6, %c0_7] : memref<128x128xf32, #tpu.memory_space<vmem>>, vector<128x128xf32>
    tpu.vector_store %arg7[%c0_6, %c0_7], %7 {strides = array<i32>} : memref<128x128xf32, #tpu.memory_space<vmem>>, vector<128x128xf32>,
    %c0_i32_8 = arith.constant 0 : i32
    %9 = arith.cmpi eq, %arg2, %c0_i32_8 : i32
    %10 = arith.extui %9 : i1 to i32
    %c0_i32_9 = arith.constant 0 : i32
    %11 = arith.cmpi ne, %10, %c0_i32_9 : i32
    scf.if %11 {
      %c0_10 = arith.constant 0 : index
      %c0_11 = arith.constant 0 : index
      %12 = vector.load %arg7[%c0_10, %c0_11] : memref<128x128xf32, #tpu.memory_space<vmem>>, vector<128x128xf32>
      %c0_12 = arith.constant 0 : index
      %c0_13 = arith.constant 0 : index
      %13 = vector.load %arg5[%c0_12, %c0_13] : memref<1x128xf32, #tpu.memory_space<vmem>>, vector<1x128xf32>
      %14 = vector.broadcast %13 : vector<1x128xf32> to vector<128x128xf32>
      %15 = arith.addf %12, %14 : vector<128x128xf32>
      %16 = arith.truncf %15 : vector<128x128xf32> to vector<128x128xbf16>
      %c0_14 = arith.constant 0 : index
      %c0_15 = arith.constant 0 : index
      %17 = vector.load %arg6[%c0_14, %c0_15] : memref<128x128xbf16, #tpu.memory_space<vmem>>, vector<128x128xbf16>
      tpu.vector_store %arg6[%c0_14, %c0_15], %16 {strides = array<i32>} : memref<128x128xbf16, #tpu.memory_space<vmem>>, vector<128x128xbf16>,
    } else {
    }
    return
  }
  func.func @transform_0(%arg0: i32, %arg1: i32, %arg2: i32) -> (i32, i32) {
    %c0_i32 = arith.constant 0 : i32
    return %arg0, %arg2 : i32, i32
  }
  func.func @transform_1(%arg0: i32, %arg1: i32, %arg2: i32) -> (i32, i32) {
    %c0_i32 = arith.constant 0 : i32
    return %arg2, %arg1 : i32, i32
  }
  func.func @transform_2(%arg0: i32, %arg1: i32, %arg2: i32) -> (i32, i32) {
    %c0_i32 = arith.constant 0 : i32
    %c0_i32_0 = arith.constant 0 : i32
    return %c0_i32, %arg1 : i32, i32
  }
  func.func @transform_3(%arg0: i32, %arg1: i32, %arg2: i32) -> (i32, i32) {
    %c0_i32 = arith.constant 0 : i32
    return %arg0, %arg1 : i32, i32
  }
}

module attributes {stable_mosaic.version = 11 : i64} {
  func.func @_matmul_bias_kernel(%arg0: i32, %arg1: i32, %arg2: i32, %arg3: memref<128x256xbf16, #tpu.memory_space<vmem>>, %arg4: memref<256x128xbf16, #tpu.memory_space<vmem>>, %arg5: memref<1x128xf32, #tpu.memory_space<vmem>>, %arg6: memref<128x128xbf16, #tpu.memory_space<vmem>>, %arg7: memref<128x128xf32, #tpu.memory_space<vmem>>) attributes {dimension_semantics = [#tpu.dimension_semantics<parallel>, #tpu.dimension_semantics<parallel>, #tpu.dimension_semantics<arbitrary>], iteration_bounds = array<i64: 1, 1, 2>, scalar_prefetch = 0 : i64, scratch_operands = 1 : i64, tpu.core_type = #tpu.core_type<tc>, window_params = [{transform_indices = @transform_0, window_bounds = array<i64: 128, 256>}, {transform_indices = @transform_1, window_bounds = array<i64: 256, 128>}, {transform_indices = @transform_2, window_bounds = array<i64: 1, 128>}, {transform_indices = @transform_3, window_bounds = array<i64: 128, 128>}]} {
    %c0_i32 = arith.constant 0 : i32
    %0 = arith.cmpi eq, %arg2, %c0_i32 : i32
    %1 = arith.extui %0 : i1 to i32
    %c0_i32_0 = arith.constant 0 : i32
    %2 = arith.cmpi ne, %1, %c0_i32_0 : i32
    scf.if %2 {
      %cst_9 = arith.constant 0.000000e+00 : f32
      %12 = vector.broadcast %cst_9 : f32 to vector<128x128xf32>
      %c0_10 = arith.constant 0 : index
      %c0_11 = arith.constant 0 : index
      %13 = vector.load %arg7[%c0_10, %c0_11] : memref<128x128xf32, #tpu.memory_space<vmem>>, vector<128x128xf32>
      tpu.vector_store %arg7[%c0_10, %c0_11], %12 {strides = array<i32>} : memref<128x128xf32, #tpu.memory_space<vmem>>, vector<128x128xf32>,
    } else {
    }
    %c0 = arith.constant 0 : index
    %c0_1 = arith.constant 0 : index
    %3 = vector.load %arg7[%c0, %c0_1] : memref<128x128xf32, #tpu.memory_space<vmem>>, vector<128x128xf32>
    %c0_2 = arith.constant 0 : index
    %c0_3 = arith.constant 0 : index
    %4 = vector.load %arg3[%c0_2, %c0_3] : memref<128x256xbf16, #tpu.memory_space<vmem>>, vector<128x256xbf16>
    %c0_4 = arith.constant 0 : index
    %c0_5 = arith.constant 0 : index
    %5 = vector.load %arg4[%c0_4, %c0_5] : memref<256x128xbf16, #tpu.memory_space<vmem>>, vector<256x128xbf16>
    %cst = arith.constant dense<0.000000e+00> : vector<128x128xf32>
    %6 = tpu.matmul %4, %5, %cst {dimension_numbers = #tpu.dot_dimension_numbers<[1], [0], [0], [1], [0, 0, 1, 1], [], []>} : vector<128x256xbf16>, vector<256x128xbf16>, vector<128x128xf32> -> vector<128x128xf32>
    %7 = arith.addf %3, %6 : vector<128x128xf32>
    %c0_6 = arith.constant 0 : index
    %c0_7 = arith.constant 0 : index
    %8 = vector.load %arg7[%c0_6, %c0_7] : memref<128x128xf32, #tpu.memory_space<vmem>>, vector<128x128xf32>
    tpu.vector_store %arg7[%c0_6, %c0_7], %7 {strides = array<i32>} : memref<128x128xf32, #tpu.memory_space<vmem>>, vector<128x128xf32>,
    %c1_i32 = arith.constant 1 : i32
    %9 = arith.cmpi eq, %arg2, %c1_i32 : i32
    %10 = arith.extui %9 : i1 to i32
    %c0_i32_8 = arith.constant 0 : i32
    %11 = arith.cmpi ne, %10, %c0_i32_8 : i32
    scf.if %11 {
      %c0_9 = arith.constant 0 : index
      %c0_10 = arith.constant 0 : index
      %12 = vector.load %arg7[%c0_9, %c0_10] : memref<128x128xf32, #tpu.memory_space<vmem>>, vector<128x128xf32>
      %c0_11 = arith.constant 0 : index
      %c0_12 = arith.constant 0 : index
      %13 = vector.load %arg5[%c0_11, %c0_12] : memref<1x128xf32, #tpu.memory_space<vmem>>, vector<1x128xf32>
      %14 = vector.broadcast %13 : vector<1x128xf32> to vector<128x128xf32>
      %15 = arith.addf %12, %14 : vector<128x128xf32>
      %16 = arith.truncf %15 : vector<128x128xf32> to vector<128x128xbf16>
      %c0_13 = arith.constant 0 : index
      %c0_14 = arith.constant 0 : index
      %17 = vector.load %arg6[%c0_13, %c0_14] : memref<128x128xbf16, #tpu.memory_space<vmem>>, vector<128x128xbf16>
      tpu.vector_store %arg6[%c0_13, %c0_14], %16 {strides = array<i32>} : memref<128x128xbf16, #tpu.memory_space<vmem>>, vector<128x128xbf16>,
    } else {
    }
    return
  }
  func.func @transform_0(%arg0: i32, %arg1: i32, %arg2: i32) -> (i32, i32) {
    %c0_i32 = arith.constant 0 : i32
    return %arg0, %arg2 : i32, i32
  }
  func.func @transform_1(%arg0: i32, %arg1: i32, %arg2: i32) -> (i32, i32) {
    %c0_i32 = arith.constant 0 : i32
    return %arg2, %arg1 : i32, i32
  }
  func.func @transform_2(%arg0: i32, %arg1: i32, %arg2: i32) -> (i32, i32) {
    %c0_i32 = arith.constant 0 : i32
    %c0_i32_0 = arith.constant 0 : i32
    return %c0_i32, %arg1 : i32, i32
  }
  func.func @transform_3(%arg0: i32, %arg1: i32, %arg2: i32) -> (i32, i32) {
    %c0_i32 = arith.constant 0 : i32
    return %arg0, %arg1 : i32, i32
  }
}

module attributes {stable_mosaic.version = 11 : i64} {
  func.func @_matmul_bias_kernel(%arg0: i32, %arg1: i32, %arg2: i32, %arg3: memref<256x256xbf16, #tpu.memory_space<vmem>>, %arg4: memref<256x128xbf16, #tpu.memory_space<vmem>>, %arg5: memref<1x128xf32, #tpu.memory_space<vmem>>, %arg6: memref<256x128xf32, #tpu.memory_space<vmem>>, %arg7: memref<256x128xf32, #tpu.memory_space<vmem>>) attributes {dimension_semantics = [#tpu.dimension_semantics<parallel>, #tpu.dimension_semantics<parallel>, #tpu.dimension_semantics<arbitrary>], iteration_bounds = array<i64: 2, 1, 13>, scalar_prefetch = 0 : i64, scratch_operands = 1 : i64, tpu.core_type = #tpu.core_type<tc>, window_params = [{transform_indices = @transform_0, window_bounds = array<i64: 256, 256>}, {transform_indices = @transform_1, window_bounds = array<i64: 256, 128>}, {transform_indices = @transform_2, window_bounds = array<i64: 1, 128>}, {transform_indices = @transform_3, window_bounds = array<i64: 256, 128>}]} {
    %c0_i32 = arith.constant 0 : i32
    %0 = arith.cmpi eq, %arg2, %c0_i32 : i32
    %1 = arith.extui %0 : i1 to i32
    %c0_i32_0 = arith.constant 0 : i32
    %2 = arith.cmpi ne, %1, %c0_i32_0 : i32
    scf.if %2 {
      %cst_9 = arith.constant 0.000000e+00 : f32
      %12 = vector.broadcast %cst_9 : f32 to vector<256x128xf32>
      %c0_10 = arith.constant 0 : index
      %c0_11 = arith.constant 0 : index
      %13 = vector.load %arg7[%c0_10, %c0_11] : memref<256x128xf32, #tpu.memory_space<vmem>>, vector<256x128xf32>
      tpu.vector_store %arg7[%c0_10, %c0_11], %12 {strides = array<i32>} : memref<256x128xf32, #tpu.memory_space<vmem>>, vector<256x128xf32>,
    } else {
    }
    %c0 = arith.constant 0 : index
    %c0_1 = arith.constant 0 : index
    %3 = vector.load %arg7[%c0, %c0_1] : memref<256x128xf32, #tpu.memory_space<vmem>>, vector<256x128xf32>
    %c0_2 = arith.constant 0 : index
    %c0_3 = arith.constant 0 : index
    %4 = vector.load %arg3[%c0_2, %c0_3] : memref<256x256xbf16, #tpu.memory_space<vmem>>, vector<256x256xbf16>
    %c0_4 = arith.constant 0 : index
    %c0_5 = arith.constant 0 : index
    %5 = vector.load %arg4[%c0_4, %c0_5] : memref<256x128xbf16, #tpu.memory_space<vmem>>, vector<256x128xbf16>
    %cst = arith.constant dense<0.000000e+00> : vector<256x128xf32>
    %6 = tpu.matmul %4, %5, %cst {dimension_numbers = #tpu.dot_dimension_numbers<[1], [0], [0], [1], [0, 0, 1, 1], [], []>} : vector<256x256xbf16>, vector<256x128xbf16>, vector<256x128xf32> -> vector<256x128xf32>
    %7 = arith.addf %3, %6 : vector<256x128xf32>
    %c0_6 = arith.constant 0 : index
    %c0_7 = arith.constant 0 : index
    %8 = vector.load %arg7[%c0_6, %c0_7] : memref<256x128xf32, #tpu.memory_space<vmem>>, vector<256x128xf32>
    tpu.vector_store %arg7[%c0_6, %c0_7], %7 {strides = array<i32>} : memref<256x128xf32, #tpu.memory_space<vmem>>, vector<256x128xf32>,
    %c12_i32 = arith.constant 12 : i32
    %9 = arith.cmpi eq, %arg2, %c12_i32 : i32
    %10 = arith.extui %9 : i1 to i32
    %c0_i32_8 = arith.constant 0 : i32
    %11 = arith.cmpi ne, %10, %c0_i32_8 : i32
    scf.if %11 {
      %c0_9 = arith.constant 0 : index
      %c0_10 = arith.constant 0 : index
      %12 = vector.load %arg7[%c0_9, %c0_10] : memref<256x128xf32, #tpu.memory_space<vmem>>, vector<256x128xf32>
      %c0_11 = arith.constant 0 : index
      %c0_12 = arith.constant 0 : index
      %13 = vector.load %arg5[%c0_11, %c0_12] : memref<1x128xf32, #tpu.memory_space<vmem>>, vector<1x128xf32>
      %14 = vector.broadcast %13 : vector<1x128xf32> to vector<256x128xf32>
      %15 = arith.addf %12, %14 : vector<256x128xf32>
      %16 = math.tanh %15 : vector<256x128xf32>
      %c0_13 = arith.constant 0 : index
      %c0_14 = arith.constant 0 : index
      %17 = vector.load %arg6[%c0_13, %c0_14] : memref<256x128xf32, #tpu.memory_space<vmem>>, vector<256x128xf32>
      tpu.vector_store %arg6[%c0_13, %c0_14], %16 {strides = array<i32>} : memref<256x128xf32, #tpu.memory_space<vmem>>, vector<256x128xf32>,
    } else {
    }
    return
  }
  func.func @transform_0(%arg0: i32, %arg1: i32, %arg2: i32) -> (i32, i32) {
    %c0_i32 = arith.constant 0 : i32
    return %arg0, %arg2 : i32, i32
  }
  func.func @transform_1(%arg0: i32, %arg1: i32, %arg2: i32) -> (i32, i32) {
    %c0_i32 = arith.constant 0 : i32
    return %arg2, %arg1 : i32, i32
  }
  func.func @transform_2(%arg0: i32, %arg1: i32, %arg2: i32) -> (i32, i32) {
    %c0_i32 = arith.constant 0 : i32
    %c0_i32_0 = arith.constant 0 : i32
    return %c0_i32, %arg1 : i32, i32
  }
  func.func @transform_3(%arg0: i32, %arg1: i32, %arg2: i32) -> (i32, i32) {
    %c0_i32 = arith.constant 0 : i32
    return %arg0, %arg1 : i32, i32
  }
}

</mosaic_0001>

<llo_original>
// kernel: generator_forward.53
$region0: #{generator_forward.53}
  #allocation0 [shape = 'u32[]', space=smem, size = 0x4, offset = 0x4, fixed_abs, tag = 'smem constant byte address 0x4 - core index']
  #allocation1 [shape = 'u32[144,128]{1,0:T(1,128)}', space=vmem, size = 0x12000, scoped, tag = 'internal scratch']
  #allocation2 [shape = 'f32[256,128]{1,0:T(8,128)}', space=vmem, size = 0x20000, scoped, tag = 'scratch operand']
  %s0 = inlined_call_operand.vmem [shape: bf16[512,256], index: 0, kind: input, shape index: {}]
  %s1 = inlined_call_operand.vmem [shape: bf16[256,128], index: 1, kind: input, shape index: {}]
  %s2 = inlined_call_operand.vmem [shape: f32[1,128], index: 2, kind: input, shape index: {}]
  %s3 = inlined_call_operand.vmem [shape: bf16[512,128], index: 3, kind: output, shape index: {}]
  %s4 = sld [smem:[#allocation0]]
  $region53: #{generator_forward.53} parent=0
    _
  %s6 = ssub.s32 1, %s4
  %s7 = scalar_select 0, %s6, %s4
  loop: start=0, step=1, limit=4
  $region2: #{generator_forward.53} parent=0 // loop_pre_header
    _
  $region3: #{generator_forward.53} parent=0 // loop_header
    %s9 = sphi 0, %s13
    %p10 = scmp.ge.s32.totalorder %s9, 4
    %s16 = sphi 0, %s35
    %s17 = sphi 0, %s31
    %s18 = sphi 0, %s27
    %s19 = sphi 0, %s16
    %s20 = sphi 0, %s17
    %s21 = sphi 0, %s18
    %s22 = sphi 0, %s19
    %s23 = sphi 0, %s20
    %s24 = sphi 0, %s21
    %s40 = sphi 0, %s42
    %s43 = sphi 0, %s40
    %s44 = sphi 0, %s43
    %s60 = sphi 0, %s44
    %s68 = sphi 0, %s70
    %s71 = sphi 0, %s68
    %s72 = sphi 0, %s71
    %s88 = sphi 0, %s72
    %s94 = sphi 0, %s96
    %s97 = sphi 0, %s94
    %s98 = sphi 0, %s97
    %s114 = sphi 0, %s98
    %s122 = sphi 0, %s124
    %s125 = sphi 0, %s122
    %s126 = sphi 0, %s125
    %s142 = sphi 0, %s126
  $region4: #{generator_forward.53} parent=0 // loop_header_branch
    %12 = sbr.rel (%p10) target = $region8
  $region5: #{generator_forward.53} parent=0 // loop_body
    %s14 = ssub.s32 %s9, 1
    %s15 = ssub.s32 %s9, 2
    %s25 = sadd.s32 1, %s18
    %p26 = scmp.ge.s32.totalorder %s25, 1
    %s27 = scalar_select %p26, 0, %s25
    %s28 = sadd.s32 1, %s17
    %s29 = scalar_select %p26, %s28, %s17
    %p30 = scmp.ge.s32.totalorder %s29, 1
    %s31 = scalar_select %p30, 0, %s29
    %s32 = sadd.s32 1, %s16
    %s33 = scalar_select %p30, %s32, %s16
    %p34 = scmp.ge.s32.totalorder %s33, 2
    %s35 = scalar_select %p34, 0, %s33
    %s36 = ssub.s32 %s16, %s35
    %s37 = ssub.s32 %s18, %s27
    %s38 = sor.u32 %s36, %s37
    %p39 = scmp.eq.s32.totalorder %s38, 0
    %s41 = sadd.s32 %s40, 1
    %s42 = scalar_select %p39, %s40, %s41
    %p45 = pneg %p39
    %p46 = scmp.eq.s32.totalorder %s9, 1
    %p47 = por %p45, %p46
    %p48 = scmp.ne.s32.totalorder %s40, %s43
    %p49 = scmp.eq.s32.totalorder %s9, 0
    %p50 = por %p48, %p49
    %p51 = scmp.ne.s32.totalorder %s40, %s43
    %p52 = scmp.eq.s32.totalorder %s14, 1
    %p53 = por %p51, %p52
    %p54 = scmp.ne.s32.totalorder %s43, %s44
    %p55 = scmp.eq.s32.totalorder %s14, 0
    %p56 = por %p54, %p55
    %p57 = scmp.ne.s32.totalorder %s43, %s44
    %p58 = scmp.eq.s32.totalorder %s15, 1
    %p59 = por %p57, %p58
    %p61 = scmp.ne.s32.totalorder %s44, %s60
    %p62 = scmp.eq.s32.totalorder %s15, 0
    %p63 = por %p61, %p62
    %s64 = ssub.s32 %s18, %s27
    %s65 = ssub.s32 %s17, %s31
    %s66 = sor.u32 %s64, %s65
    %p67 = scmp.eq.s32.totalorder %s66, 0
    %s69 = sadd.s32 %s68, 1
    %s70 = scalar_select %p67, %s68, %s69
    %p73 = pneg %p67
    %p74 = scmp.eq.s32.totalorder %s9, 1
    %p75 = por %p73, %p74
    %p76 = scmp.ne.s32.totalorder %s68, %s71
    %p77 = scmp.eq.s32.totalorder %s9, 0
    %p78 = por %p76, %p77
    %p79 = scmp.ne.s32.totalorder %s68, %s71
    %p80 = scmp.eq.s32.totalorder %s14, 1
    %p81 = por %p79, %p80
    %p82 = scmp.ne.s32.totalorder %s71, %s72
    %p83 = scmp.eq.s32.totalorder %s14, 0
    %p84 = por %p82, %p83
    %p85 = scmp.ne.s32.totalorder %s71, %s72
    %p86 = scmp.eq.s32.totalorder %s15, 1
    %p87 = por %p85, %p86
    %p89 = scmp.ne.s32.totalorder %s72, %s88
    %p90 = scmp.eq.s32.totalorder %s15, 0
    %p91 = por %p89, %p90
    %s92 = ssub.s32 %s17, %s31
    %p93 = scmp.eq.s32.totalorder %s92, 0
    %s95 = sadd.s32 %s94, 1
    %s96 = scalar_select %p93, %s94, %s95
    %p99 = pneg %p93
    %p100 = scmp.eq.s32.totalorder %s9, 1
    %p101 = por %p99, %p100
    %p102 = scmp.ne.s32.totalorder %s94, %s97
    %p103 = scmp.eq.s32.totalorder %s9, 0
    %p104 = por %p102, %p103
    %p105 = scmp.ne.s32.totalorder %s94, %s97
    %p106 = scmp.eq.s32.totalorder %s14, 1
    %p107 = por %p105, %p106
    %p108 = scmp.ne.s32.totalorder %s97, %s98
    %p109 = scmp.eq.s32.totalorder %s14, 0
    %p110 = por %p108, %p109
    %p111 = scmp.ne.s32.totalorder %s97, %s98
    %p112 = scmp.eq.s32.totalorder %s15, 1
    %p113 = por %p111, %p112
    %p115 = scmp.ne.s32.totalorder %s98, %s114
    %p116 = scmp.eq.s32.totalorder %s15, 0
    %p117 = por %p115, %p116
    %s118 = ssub.s32 %s16, %s35
    %s119 = ssub.s32 %s17, %s31
    %s120 = sor.u32 %s118, %s119
    %p121 = scmp.eq.s32.totalorder %s120, 0
    %s123 = sadd.s32 %s122, 1
    %s124 = scalar_select %p121, %s122, %s123
    %p127 = pneg %p121
    %p128 = scmp.eq.s32.totalorder %s9, 1
    %p129 = por %p127, %p128
    %p130 = scmp.ne.s32.totalorder %s122, %s125
    %p131 = scmp.eq.s32.totalorder %s9, 0
    %p132 = por %p130, %p131
    %p133 = scmp.ne.s32.totalorder %s122, %s125
    %p134 = scmp.eq.s32.totalorder %s14, 1
    %p135 = por %p133, %p134
    %p136 = scmp.ne.s32.totalorder %s125, %s126
    %p137 = scmp.eq.s32.totalorder %s14, 0
    %p138 = por %p136, %p137
    %p139 = scmp.ne.s32.totalorder %s125, %s126
    %p140 = scmp.eq.s32.totalorder %s15, 1
    %p141 = por %p139, %p140
    %p143 = scmp.ne.s32.totalorder %s126, %s142
    %p144 = scmp.eq.s32.totalorder %s15, 0
    %p145 = por %p143, %p144
    %p146 = scmp.le.s32.totalorder 1, %s9
    %p147 = scmp.lt.s32.totalorder %s9, 3
    %p148 = pnand %p146, %p147
    %p149 = pneg %p148
    // Predicated region
    $region9: #{generator_forward.53} parent=5 // pred_check
      _
    $region10: #{generator_forward.53} parent=5 // pred_check_branch
      %151 = sbr.rel (%p148) target = $region12
    $region11: #{generator_forward.53} parent=5 // pred_region
      %s152 = ssub.s32 %s9, 1
      // Predicated region
      $region13: #{generator_forward.53} parent=11 // pred_check
        %p153 = pneg %p84
      $region14: #{generator_forward.53} parent=11 // pred_check_branch
        %155 = sbr.rel (%p153) target = $region16
      $region15: #{generator_forward.53} parent=11 // pred_region
        %s156 = smul.u32 32, %s21
        %p157 = scmp.lt.s32.totalorder %s156, 31
        %s158 = scalar_select %p157, %s156, 31
        %p159 = scmp.lt.s32.totalorder %s20, 0
        %s160 = scalar_select %p159, %s20, 0
        %s161 = sadd.s32 %s160, %s158
        %s162 = smul.addr %s161, 4
        %s163 = scalar_lea.vmem %s1, %s162
        %s164 = smul.u32 32, %s21
      $region16: #{generator_forward.53} parent=11 // pred_fallthru
        _
      // Predicated region
      $region17: #{generator_forward.53} parent=11 // pred_check
        %p165 = pneg %p110
      $region18: #{generator_forward.53} parent=11 // pred_check_branch
        %167 = sbr.rel (%p165) target = $region20
      $region19: #{generator_forward.53} parent=11 // pred_region
        %p168 = scmp.lt.s32.totalorder %s20, 0
        %s169 = scalar_select %p168, %s20, 0
        %s170 = scalar_lea.vmem %s2, %s169
      $region20: #{generator_forward.53} parent=11 // pred_fallthru
        _
    $region12: #{generator_forward.53} parent=5 // pred_fallthru
      _
    %p171 = scmp.lt.s32.totalorder %s9, 2
    // Predicated region
    $region21: #{generator_forward.53} parent=5 // pred_check
      %p172 = pneg %p171
    $region22: #{generator_forward.53} parent=5 // pred_check_branch
      %174 = sbr.rel (%p172) target = $region24
    $region23: #{generator_forward.53} parent=5 // pred_region
      // Predicated region
      $region25: #{generator_forward.53} parent=23 // pred_check
        %p175 = pneg %p50
      $region26: #{generator_forward.53} parent=23 // pred_check_branch
        %177 = sbr.rel (%p175) target = $region28
      $region27: #{generator_forward.53} parent=23 // pred_region
        %s178 = smul.u32 32, %s16
        %s179 = smul.u32 2, %s18
        %p180 = scmp.lt.s32.totalorder %s178, 63
        %s181 = scalar_select %p180, %s178, 63
        %p182 = scmp.lt.s32.totalorder %s179, 1
        %s183 = scalar_select %p182, %s179, 1
        %s184 = smul.addr %s181, 2
        %s185 = sadd.s32 %s183, %s184
        %s186 = smul.addr %s185, 4
        %s187 = scalar_lea.vmem %s0, %s186
        %s188 = smul.u32 32, %s16
        %s189 = smul.u32 2, %s18
      $region28: #{generator_forward.53} parent=23 // pred_fallthru
        _
    $region24: #{generator_forward.53} parent=5 // pred_fallthru
      _
    %p190 = scmp.le.s32.totalorder 1, %s9
    %p191 = scmp.lt.s32.totalorder %s9, 3
    %p192 = pnand %p190, %p191
    %p193 = pneg %p192
    // Predicated region
    $region29: #{generator_forward.53} parent=5 // pred_check
      _
    $region30: #{generator_forward.53} parent=5 // pred_check_branch
      %195 = sbr.rel (%p192) target = $region32
    $region31: #{generator_forward.53} parent=5 // pred_region
      %s196 = ssub.s32 %s9, 1
      %s197 = smul.u32 32, %s19
      %s198 = smul.u32 2, %s21
      %p199 = scmp.lt.s32.totalorder %s197, 63
      %s200 = scalar_select %p199, %s197, 63
      %p201 = scmp.lt.s32.totalorder %s198, 1
      %s202 = scalar_select %p201, %s198, 1
      %s203 = smul.addr %s200, 2
      %s204 = sadd.s32 %s202, %s203
      %s205 = smul.addr %s204, 4
      %s206 = scalar_lea.vmem %s0, %s205
      %p207 = pneg %p56
      %p208 = pneg %p53
      %s209 = smul.u32 32, %s21
      %p210 = scmp.lt.s32.totalorder %s209, 31
      %s211 = scalar_select %p210, %s209, 31
      %p212 = scmp.lt.s32.totalorder %s20, 0
      %s213 = scalar_select %p212, %s20, 0
      %s214 = sadd.s32 %s213, %s211
      %s215 = smul.addr %s214, 4
      %s216 = scalar_lea.vmem %s1, %s215
      %p217 = pneg %p84
      %p218 = pneg %p81
      %p219 = scmp.lt.s32.totalorder %s20, 0
      %s220 = scalar_select %p219, %s20, 0
      %s221 = scalar_lea.vmem %s2, %s220
      %p222 = pneg %p110
      %p223 = pneg %p107
      %p224 = pneg %p138
      %p225 = pneg %p135
      %s226 = smul.u32 32, %s19
      %p227 = scmp.lt.s32.totalorder %s226, 63
      %s228 = scalar_select %p227, %s226, 63
      %p229 = scmp.lt.s32.totalorder %s20, 0
      %s230 = scalar_select %p229, %s20, 0
      %s231 = sadd.s32 %s230, %s228
      %s232 = smul.addr %s231, 4
      %s233 = scalar_lea.vmem %s3, %s232
      %s234 = smul.u32 32, %s19
      %s235 = smul.u32 2, %s21
      %p236 = scmp.lt.s32.totalorder %s234, 63
      %s237 = scalar_select %p236, %s234, 63
      %p238 = scmp.lt.s32.totalorder %s235, 1
      %s239 = scalar_select %p238, %s235, 1
      %s240 = smul.addr %s237, 2
      %s241 = sadd.s32 %s239, %s240
      %s242 = smul.addr %s241, 4
      %s243 = scalar_lea.vmem %s0, %s242
      %s244 = smul.u32 32, %s19
      %s245 = smul.u32 2, %s21
      %s246 = smul.u32 32, %s21
      %p247 = scmp.lt.s32.totalorder %s246, 31
      %s248 = scalar_select %p247, %s246, 31
      %p249 = scmp.lt.s32.totalorder %s20, 0
      %s250 = scalar_select %p249, %s20, 0
      %s251 = sadd.s32 %s250, %s248
      %s252 = smul.addr %s251, 4
      %s253 = scalar_lea.vmem %s1, %s252
      %s254 = smul.u32 32, %s21
      %p255 = scmp.lt.s32.totalorder %s20, 0
      %s256 = scalar_select %p255, %s20, 0
      %s257 = scalar_lea.vmem %s2, %s256
      %s258 = smul.u32 32, %s19
      %p259 = scmp.lt.s32.totalorder %s258, 63
      %s260 = scalar_select %p259, %s258, 63
      %p261 = scmp.lt.s32.totalorder %s20, 0
      %s262 = scalar_select %p261, %s20, 0
      %s263 = sadd.s32 %s262, %s260
      %s264 = smul.addr %s263, 4
      %s265 = scalar_lea.vmem %s3, %s264
      %s266 = smul.u32 32, %s19
      %p268 = scmp.eq.s32.totalorder %s21, 0
      // Predicated region
      $region33: #{generator_forward.53} parent=31 // pred_check
        %p269 = pneg %p268
      $region34: #{generator_forward.53} parent=31 // pred_check_branch
        %271 = sbr.rel (%p269) target = $region36
      $region35: #{generator_forward.53} parent=31 // pred_region
        %272 = vst [vmem:[#allocation2] sm:$0xff] 0.0
        %273 = vst [vmem:[#allocation2 + $0x8] sm:$0xff] 0.0
        %274 = vst [vmem:[#allocation2 + $0x10] sm:$0xff] 0.0
        %275 = vst [vmem:[#allocation2 + $0x18] sm:$0xff] 0.0
        %276 = vst [vmem:[#allocation2 + $0x20] sm:$0xff] 0.0
        %277 = vst [vmem:[#allocation2 + $0x28] sm:$0xff] 0.0
        %278 = vst [vmem:[#allocation2 + $0x30] sm:$0xff] 0.0
        %279 = vst [vmem:[#allocation2 + $0x38] sm:$0xff] 0.0
        %280 = vst [vmem:[#allocation2 + $0x40] sm:$0xff] 0.0
        %281 = vst [vmem:[#allocation2 + $0x48] sm:$0xff] 0.0
        %282 = vst [vmem:[#allocation2 + $0x50] sm:$0xff] 0.0
        %283 = vst [vmem:[#allocation2 + $0x58] sm:$0xff] 0.0
        %284 = vst [vmem:[#allocation2 + $0x60] sm:$0xff] 0.0
        %285 = vst [vmem:[#allocation2 + $0x68] sm:$0xff] 0.0
        %286 = vst [vmem:[#allocation2 + $0x70] sm:$0xff] 0.0
        %287 = vst [vmem:[#allocation2 + $0x78] sm:$0xff] 0.0
        %288 = vst [vmem:[#allocation2 + $0x80] sm:$0xff] 0.0
        %289 = vst [vmem:[#allocation2 + $0x88] sm:$0xff] 0.0
        %290 = vst [vmem:[#allocation2 + $0x90] sm:$0xff] 0.0
        %291 = vst [vmem:[#allocation2 + $0x98] sm:$0xff] 0.0
        %292 = vst [vmem:[#allocation2 + $0xa0] sm:$0xff] 0.0
        %293 = vst [vmem:[#allocation2 + $0xa8] sm:$0xff] 0.0
        %294 = vst [vmem:[#allocation2 + $0xb0] sm:$0xff] 0.0
        %295 = vst [vmem:[#allocation2 + $0xb8] sm:$0xff] 0.0
        %296 = vst [vmem:[#allocation2 + $0xc0] sm:$0xff] 0.0
        %297 = vst [vmem:[#allocation2 + $0xc8] sm:$0xff] 0.0
        %298 = vst [vmem:[#allocation2 + $0xd0] sm:$0xff] 0.0
        %299 = vst [vmem:[#allocation2 + $0xd8] sm:$0xff] 0.0
        %300 = vst [vmem:[#allocation2 + $0xe0] sm:$0xff] 0.0
        %301 = vst [vmem:[#allocation2 + $0xe8] sm:$0xff] 0.0
        %302 = vst [vmem:[#allocation2 + $0xf0] sm:$0xff] 0.0
        %303 = vst [vmem:[#allocation2 + $0xf8] sm:$0xff] 0.0
      $region36: #{generator_forward.53} parent=31 // pred_fallthru
        _
      %v304 = vld [vmem:[#allocation2] sm:$0xff]
      %v305 = vld [vmem:[#allocation2 + $0x8] sm:$0xff]
      %v306 = vld [vmem:[#allocation2 + $0x10] sm:$0xff]
      %v307 = vld [vmem:[#allocation2 + $0x18] sm:$0xff]
      %v308 = vld [vmem:[#allocation2 + $0x20] sm:$0xff]
      %v309 = vld [vmem:[#allocation2 + $0x28] sm:$0xff]
      %v310 = vld [vmem:[#allocation2 + $0x30] sm:$0xff]
      %v311 = vld [vmem:[#allocation2 + $0x38] sm:$0xff]
      %v312 = vld [vmem:[#allocation2 + $0x40] sm:$0xff]
      %v313 = vld [vmem:[#allocation2 + $0x48] sm:$0xff]
      %v314 = vld [vmem:[#allocation2 + $0x50] sm:$0xff]
      %v315 = vld [vmem:[#allocation2 + $0x58] sm:$0xff]
      %v316 = vld [vmem:[#allocation2 + $0x60] sm:$0xff]
      %v317 = vld [vmem:[#allocation2 + $0x68] sm:$0xff]
      %v318 = vld [vmem:[#allocation2 + $0x70] sm:$0xff]
      %v319 = vld [vmem:[#allocation2 + $0x78] sm:$0xff]
      %v320 = vld [vmem:[#allocation2 + $0x80] sm:$0xff]
      %v321 = vld [vmem:[#allocation2 + $0x88] sm:$0xff]
      %v322 = vld [vmem:[#allocation2 + $0x90] sm:$0xff]
      %v323 = vld [vmem:[#allocation2 + $0x98] sm:$0xff]
      %v324 = vld [vmem:[#allocation2 + $0xa0] sm:$0xff]
      %v325 = vld [vmem:[#allocation2 + $0xa8] sm:$0xff]
      %v326 = vld [vmem:[#allocation2 + $0xb0] sm:$0xff]
      %v327 = vld [vmem:[#allocation2 + $0xb8] sm:$0xff]
      %v328 = vld [vmem:[#allocation2 + $0xc0] sm:$0xff]
      %v329 = vld [vmem:[#allocation2 + $0xc8] sm:$0xff]
      %v330 = vld [vmem:[#allocation2 + $0xd0] sm:$0xff]
      %v331 = vld [vmem:[#allocation2 + $0xd8] sm:$0xff]
      %v332 = vld [vmem:[#allocation2 + $0xe0] sm:$0xff]
      %v333 = vld [vmem:[#allocation2 + $0xe8] sm:$0xff]
      %v334 = vld [vmem:[#allocation2 + $0xf0] sm:$0xff]
      %v335 = vld [vmem:[#allocation2 + $0xf8] sm:$0xff]
      %v336 = vld [vmem:[%s243] sm:$0xff]
      %v337 = vld [vmem:[%s243 + $0x8] sm:$0xff]
      %v338 = vld [vmem:[%s243 + $0x10] sm:$0xff]
      %v339 = vld [vmem:[%s243 + $0x18] sm:$0xff]
      %v340 = vld [vmem:[%s243 + $0x20] sm:$0xff]
      %v341 = vld [vmem:[%s243 + $0x28] sm:$0xff]
      %v342 = vld [vmem:[%s243 + $0x30] sm:$0xff]
      %v343 = vld [vmem:[%s243 + $0x38] sm:$0xff]
      %v344 = vld [vmem:[%s243 + $0x40] sm:$0xff]
      %v345 = vld [vmem:[%s243 + $0x48] sm:$0xff]
      %v346 = vld [vmem:[%s243 + $0x50] sm:$0xff]
      %v347 = vld [vmem:[%s243 + $0x58] sm:$0xff]
      %v348 = vld [vmem:[%s243 + $0x60] sm:$0xff]
      %v349 = vld [vmem:[%s243 + $0x68] sm:$0xff]
      %v350 = vld [vmem:[%s243 + $0x70] sm:$0xff]
      %v351 = vld [vmem:[%s243 + $0x78] sm:$0xff]
      %v352 = vld [vmem:[%s243 + $0x80] sm:$0xff]
      %v353 = vld [vmem:[%s243 + $0x88] sm:$0xff]
      %v354 = vld [vmem:[%s243 + $0x90] sm:$0xff]
      %v355 = vld [vmem:[%s243 + $0x98] sm:$0xff]
      %v356 = vld [vmem:[%s243 + $0xa0] sm:$0xff]
      %v357 = vld [vmem:[%s243 + $0xa8] sm:$0xff]
      %v358 = vld [vmem:[%s243 + $0xb0] sm:$0xff]
      %v359 = vld [vmem:[%s243 + $0xb8] sm:$0xff]
      %v360 = vld [vmem:[%s243 + $0xc0] sm:$0xff]
      %v361 = vld [vmem:[%s243 + $0xc8] sm:$0xff]
      %v362 = vld [vmem:[%s243 + $0xd0] sm:$0xff]
      %v363 = vld [vmem:[%s243 + $0xd8] sm:$0xff]
      %v364 = vld [vmem:[%s243 + $0xe0] sm:$0xff]
      %v365 = vld [vmem:[%s243 + $0xe8] sm:$0xff]
      %v366 = vld [vmem:[%s243 + $0xf0] sm:$0xff]
      %v367 = vld [vmem:[%s243 + $0xf8] sm:$0xff]
      %v368 = vld [vmem:[%s253] sm:$0xf]
      %v369 = vld [vmem:[%s253 + $0x4] sm:$0xf]
      %v370 = vld [vmem:[%s253 + $0x8] sm:$0xf]
      %v371 = vld [vmem:[%s253 + $0xc] sm:$0xf]
      %v372 = vld [vmem:[%s253 + $0x10] sm:$0xf]
      %v373 = vld [vmem:[%s253 + $0x14] sm:$0xf]
      %v374 = vld [vmem:[%s253 + $0x18] sm:$0xf]
      %v375 = vld [vmem:[%s253 + $0x1c] sm:$0xf]
      %v376 = vld [vmem:[%s253 + $0x20] sm:$0xf]
      %v377 = vld [vmem:[%s253 + $0x24] sm:$0xf]
      %v378 = vld [vmem:[%s253 + $0x28] sm:$0xf]
      %v379 = vld [vmem:[%s253 + $0x2c] sm:$0xf]
      %v380 = vld [vmem:[%s253 + $0x30] sm:$0xf]
      %v381 = vld [vmem:[%s253 + $0x34] sm:$0xf]
      %v382 = vld [vmem:[%s253 + $0x38] sm:$0xf]
      %v383 = vld [vmem:[%s253 + $0x3c] sm:$0xf]
      %v384 = vld [vmem:[%s253 + $0x40] sm:$0xf]
      %v385 = vld [vmem:[%s253 + $0x44] sm:$0xf]
      %v386 = vld [vmem:[%s253 + $0x48] sm:$0xf]
      %v387 = vld [vmem:[%s253 + $0x4c] sm:$0xf]
      %v388 = vld [vmem:[%s253 + $0x50] sm:$0xf]
      %v389 = vld [vmem:[%s253 + $0x54] sm:$0xf]
      %v390 = vld [vmem:[%s253 + $0x58] sm:$0xf]
      %v391 = vld [vmem:[%s253 + $0x5c] sm:$0xf]
      %v392 = vld [vmem:[%s253 + $0x60] sm:$0xf]
      %v393 = vld [vmem:[%s253 + $0x64] sm:$0xf]
      %v394 = vld [vmem:[%s253 + $0x68] sm:$0xf]
      %v395 = vld [vmem:[%s253 + $0x6c] sm:$0xf]
      %v396 = vld [vmem:[%s253 + $0x70] sm:$0xf]
      %v397 = vld [vmem:[%s253 + $0x74] sm:$0xf]
      %v398 = vld [vmem:[%s253 + $0x78] sm:$0xf]
      %v399 = vld [vmem:[%s253 + $0x7c] sm:$0xf]
      %v432 = vunpack.c.l.b16 %v336
      %v433 = vunpack.c.h.b16 %v336
      %v434 = vunpack.c.l.b16 %v337
      %v435 = vunpack.c.h.b16 %v337
      %v436 = vunpack.c.l.b16 %v338
      %v437 = vunpack.c.h.b16 %v338
      %v438 = vunpack.c.l.b16 %v339
      %v439 = vunpack.c.h.b16 %v339
      %v440 = vunpack.c.l.b16 %v340
      %v441 = vunpack.c.h.b16 %v340
      %v442 = vunpack.c.l.b16 %v341
      %v443 = vunpack.c.h.b16 %v341
      %v444 = vunpack.c.l.b16 %v342
      %v445 = vunpack.c.h.b16 %v342
      %v446 = vunpack.c.l.b16 %v343
      %v447 = vunpack.c.h.b16 %v343
      %v448 = vunpack.c.l.b16 %v344
      %v449 = vunpack.c.h.b16 %v344
      %v450 = vunpack.c.l.b16 %v345
      %v451 = vunpack.c.h.b16 %v345
      %v452 = vunpack.c.l.b16 %v346
      %v453 = vunpack.c.h.b16 %v346
      %v454 = vunpack.c.l.b16 %v347
      %v455 = vunpack.c.h.b16 %v347
      %v456 = vunpack.c.l.b16 %v348
      %v457 = vunpack.c.h.b16 %v348
      %v458 = vunpack.c.l.b16 %v349
      %v459 = vunpack.c.h.b16 %v349
      %v460 = vunpack.c.l.b16 %v350
      %v461 = vunpack.c.h.b16 %v350
      %v462 = vunpack.c.l.b16 %v351
      %v463 = vunpack.c.h.b16 %v351
      %v464 = vunpack.c.l.b16 %v352
      %v465 = vunpack.c.h.b16 %v352
      %v466 = vunpack.c.l.b16 %v353
      %v467 = vunpack.c.h.b16 %v353
      %v468 = vunpack.c.l.b16 %v354
      %v469 = vunpack.c.h.b16 %v354
      %v470 = vunpack.c.l.b16 %v355
      %v471 = vunpack.c.h.b16 %v355
      %v472 = vunpack.c.l.b16 %v356
      %v473 = vunpack.c.h.b16 %v356
      %v474 = vunpack.c.l.b16 %v357
      %v475 = vunpack.c.h.b16 %v357
      %v476 = vunpack.c.l.b16 %v358
      %v477 = vunpack.c.h.b16 %v358
      %v478 = vunpack.c.l.b16 %v359
      %v479 = vunpack.c.h.b16 %v359
      %v480 = vunpack.c.l.b16 %v360
      %v481 = vunpack.c.h.b16 %v360
      %v482 = vunpack.c.l.b16 %v361
      %v483 = vunpack.c.h.b16 %v361
      %v484 = vunpack.c.l.b16 %v362
      %v485 = vunpack.c.h.b16 %v362
      %v486 = vunpack.c.l.b16 %v363
      %v487 = vunpack.c.h.b16 %v363
      %v488 = vunpack.c.l.b16 %v364
      %v489 = vunpack.c.h.b16 %v364
      %v490 = vunpack.c.l.b16 %v365
      %v491 = vunpack.c.h.b16 %v365
      %v492 = vunpack.c.l.b16 %v366
      %v493 = vunpack.c.h.b16 %v366
      %v494 = vunpack.c.l.b16 %v367
      %v495 = vunpack.c.h.b16 %v367
      %v496 = vpack.c.b16 %v434, %v432
      %v497 = vpack.c.b16 %v435, %v433
      %v498 = vpack.c.b16 %v438, %v436
      %v499 = vpack.c.b16 %v439, %v437
      %v500 = vpack.c.b16 %v442, %v440
      %v501 = vpack.c.b16 %v443, %v441
      %v502 = vpack.c.b16 %v446, %v444
      %v503 = vpack.c.b16 %v447, %v445
      %v504 = vpack.c.b16 %v450, %v448
      %v505 = vpack.c.b16 %v451, %v449
      %v506 = vpack.c.b16 %v454, %v452
      %v507 = vpack.c.b16 %v455, %v453
      %v508 = vpack.c.b16 %v458, %v456
      %v509 = vpack.c.b16 %v459, %v457
      %v510 = vpack.c.b16 %v462, %v460
      %v511 = vpack.c.b16 %v463, %v461
      %v512 = vpack.c.b16 %v466, %v464
      %v513 = vpack.c.b16 %v467, %v465
      %v514 = vpack.c.b16 %v470, %v468
      %v515 = vpack.c.b16 %v471, %v469
      %v516 = vpack.c.b16 %v474, %v472
      %v517 = vpack.c.b16 %v475, %v473
      %v518 = vpack.c.b16 %v478, %v476
      %v519 = vpack.c.b16 %v479, %v477
      %v520 = vpack.c.b16 %v482, %v480
      %v521 = vpack.c.b16 %v483, %v481
      %v522 = vpack.c.b16 %v486, %v484
      %v523 = vpack.c.b16 %v487, %v485
      %v524 = vpack.c.b16 %v490, %v488
      %v525 = vpack.c.b16 %v491, %v489
      %v526 = vpack.c.b16 %v494, %v492
      %v527 = vpack.c.b16 %v495, %v493
      %v592 = vunpack.c.l.b16 %v368
      %v593 = vunpack.c.l.b16 %v369
      %v594 = vunpack.c.l.b16 %v370
      %v595 = vunpack.c.l.b16 %v371
      %v596 = vunpack.c.l.b16 %v372
      %v597 = vunpack.c.l.b16 %v373
      %v598 = vunpack.c.l.b16 %v374
      %v599 = vunpack.c.l.b16 %v375
      %v600 = vunpack.c.l.b16 %v376
      %v601 = vunpack.c.l.b16 %v377
      %v602 = vunpack.c.l.b16 %v378
      %v603 = vunpack.c.l.b16 %v379
      %v604 = vunpack.c.l.b16 %v380
      %v605 = vunpack.c.l.b16 %v381
      %v606 = vunpack.c.l.b16 %v382
      %v607 = vunpack.c.l.b16 %v383
      %v608 = vunpack.c.l.b16 %v384
      %v609 = vunpack.c.l.b16 %v385
      %v610 = vunpack.c.l.b16 %v386
      %v611 = vunpack.c.l.b16 %v387
      %v612 = vunpack.c.l.b16 %v388
      %v613 = vunpack.c.l.b16 %v389
      %v614 = vunpack.c.l.b16 %v390
      %v615 = vunpack.c.l.b16 %v391
      %v616 = vunpack.c.l.b16 %v392
      %v617 = vunpack.c.l.b16 %v393
      %v618 = vunpack.c.l.b16 %v394
      %v619 = vunpack.c.l.b16 %v395
      %v620 = vunpack.c.l.b16 %v396
      %v621 = vunpack.c.l.b16 %v397
      %v622 = vunpack.c.l.b16 %v398
      %v623 = vunpack.c.l.b16 %v399
      %v624 = vpack.c.b16 %v593, %v592
      %v625 = vpack.c.b16 %v595, %v594
      %v626 = vpack.c.b16 %v597, %v596
      %v627 = vpack.c.b16 %v599, %v598
      %v628 = vpack.c.b16 %v601, %v600
      %v629 = vpack.c.b16 %v603, %v602
      %v630 = vpack.c.b16 %v605, %v604
      %v631 = vpack.c.b16 %v607, %v606
      %v632 = vpack.c.b16 %v609, %v608
      %v633 = vpack.c.b16 %v611, %v610
      %v634 = vpack.c.b16 %v613, %v612
      %v635 = vpack.c.b16 %v615, %v614
      %v636 = vpack.c.b16 %v617, %v616
      %v637 = vpack.c.b16 %v619, %v618
      %v638 = vpack.c.b16 %v621, %v620
      %v639 = vpack.c.b16 %v623, %v622
      %656 = vmatprep.subr.bf16.mxu0 0
      %657 = vmatpush1.bf16.msra.mxu0 %v631
      %658 = vmatprep.subr.bf16.mxu0 0
      %659 = vmatpush1.bf16.msra.mxu0 %v630
      %660 = vmatprep.subr.bf16.mxu0 0
      %661 = vmatpush1.bf16.msra.mxu0 %v629
      %662 = vmatprep.subr.bf16.mxu0 0
      %663 = vmatpush1.bf16.msra.mxu0 %v628
      %664 = vmatprep.subr.bf16.mxu0 0
      %665 = vmatpush1.bf16.msra.mxu0 %v627
      %666 = vmatprep.subr.bf16.mxu0 0
      %667 = vmatpush1.bf16.msra.mxu0 %v626
      %668 = vmatprep.subr.bf16.mxu0 0
      %669 = vmatpush1.bf16.msra.mxu0 %v625
      %670 = vmatprep.subr.bf16.mxu0 0
      %671 = vmatpush1.bf16.msra.mxu0 %v624
      %672 = vmatprep.subr.bf16.mxu0 0
      %673 = vmatpush2.bf16.msra.mxu0 %v639
      %674 = vmatprep.subr.bf16.mxu0 0
      %675 = vmatpush2.bf16.msra.mxu0 %v638
      %676 = vmatprep.subr.bf16.mxu0 0
      %677 = vmatpush2.bf16.msra.mxu0 %v637
      %678 = vmatprep.subr.bf16.mxu0 0
      %679 = vmatpush2.bf16.msra.mxu0 %v636
      %680 = vmatprep.subr.bf16.mxu0 0
      %681 = vmatpush2.bf16.msra.mxu0 %v635
      %682 = vmatprep.subr.bf16.mxu0 0
      %683 = vmatpush2.bf16.msra.mxu0 %v634
      %684 = vmatprep.subr.bf16.mxu0 0
      %685 = vmatpush2.bf16.msra.mxu0 %v633
      %686 = vmatprep.subr.bf16.mxu0 0
      %687 = vmatpush2.bf16.msra.mxu0 %v632
      %688 = vmatprep.mubr.bf16.mxu0 %v497
      %689 = vmatmul.mubr.bf16.gmra.mxu0 %v496
      %v690 = vpop.f32.mrf.mxu0
      %v691 = vadd.f32 0.0, %v690
      %v692 = vpop.f32.mrf.mxu0
      %v693 = vpop.f32.mrf.mxu0
      %v694 = vadd.f32 0.0, %v693
      %v695 = vpop.f32.mrf.mxu0
      %696 = vmatprep.mubr.bf16.mxu0 %v499
      %697 = vmatmul.mubr.bf16.gmra.mxu0 %v498
      %v698 = vpop.f32.mrf.mxu0
      %v699 = vadd.f32 0.0, %v698
      %v700 = vpop.f32.mrf.mxu0
      %v701 = vpop.f32.mrf.mxu0
      %v702 = vadd.f32 0.0, %v701
      %v703 = vpop.f32.mrf.mxu0
      %704 = vmatprep.mubr.bf16.mxu0 %v501
      %705 = vmatmul.mubr.bf16.gmra.mxu0 %v500
      %v706 = vpop.f32.mrf.mxu0
      %v707 = vadd.f32 0.0, %v706
      %v708 = vpop.f32.mrf.mxu0
      %v709 = vpop.f32.mrf.mxu0
      %v710 = vadd.f32 0.0, %v709
      %v711 = vpop.f32.mrf.mxu0
      %712 = vmatprep.mubr.bf16.mxu0 %v503
      %713 = vmatmul.mubr.bf16.gmra.mxu0 %v502
      %v714 = vpop.f32.mrf.mxu0
      %v715 = vadd.f32 0.0, %v714
      %v716 = vpop.f32.mrf.mxu0
      %v717 = vpop.f32.mrf.mxu0
      %v718 = vadd.f32 0.0, %v717
      %v719 = vpop.f32.mrf.mxu0
      %720 = vmatprep.mubr.bf16.mxu0 %v505
      %721 = vmatmul.mubr.bf16.gmra.mxu0 %v504
      %v722 = vpop.f32.mrf.mxu0
      %v723 = vadd.f32 0.0, %v722
      %v724 = vpop.f32.mrf.mxu0
      %v725 = vpop.f32.mrf.mxu0
      %v726 = vadd.f32 0.0, %v725
      %v727 = vpop.f32.mrf.mxu0
      %728 = vmatprep.mubr.bf16.mxu0 %v507
      %729 = vmatmul.mubr.bf16.gmra.mxu0 %v506
      %v730 = vpop.f32.mrf.mxu0
      %v731 = vadd.f32 0.0, %v730
      %v732 = vpop.f32.mrf.mxu0
      %v733 = vpop.f32.mrf.mxu0
      %v734 = vadd.f32 0.0, %v733
      %v735 = vpop.f32.mrf.mxu0
      %736 = vmatprep.mubr.bf16.mxu0 %v509
      %737 = vmatmul.mubr.bf16.gmra.mxu0 %v508
      %v738 = vpop.f32.mrf.mxu0
      %v739 = vadd.f32 0.0, %v738
      %v740 = vpop.f32.mrf.mxu0
      %v741 = vpop.f32.mrf.mxu0
      %v742 = vadd.f32 0.0, %v741
      %v743 = vpop.f32.mrf.mxu0
      %744 = vmatprep.mubr.bf16.mxu0 %v511
      %745 = vmatmul.mubr.bf16.gmra.mxu0 %v510
      %v746 = vpop.f32.mrf.mxu0
      %v747 = vadd.f32 0.0, %v746
      %v748 = vpop.f32.mrf.mxu0
      %v749 = vpop.f32.mrf.mxu0
      %v750 = vadd.f32 0.0, %v749
      %v751 = vpop.f32.mrf.mxu0
      %752 = vmatprep.mubr.bf16.mxu0 %v513
      %753 = vmatmul.mubr.bf16.gmra.mxu0 %v512
      %v754 = vpop.f32.mrf.mxu0
      %v755 = vadd.f32 0.0, %v754
      %v756 = vpop.f32.mrf.mxu0
      %v757 = vpop.f32.mrf.mxu0
      %v758 = vadd.f32 0.0, %v757
      %v759 = vpop.f32.mrf.mxu0
      %760 = vmatprep.mubr.bf16.mxu0 %v515
      %761 = vmatmul.mubr.bf16.gmra.mxu0 %v514
      %v762 = vpop.f32.mrf.mxu0
      %v763 = vadd.f32 0.0, %v762
      %v764 = vpop.f32.mrf.mxu0
      %v765 = vpop.f32.mrf.mxu0
      %v766 = vadd.f32 0.0, %v765
      %v767 = vpop.f32.mrf.mxu0
      %768 = vmatprep.mubr.bf16.mxu0 %v517
      %769 = vmatmul.mubr.bf16.gmra.mxu0 %v516
      %v770 = vpop.f32.mrf.mxu0
      %v771 = vadd.f32 0.0, %v770
      %v772 = vpop.f32.mrf.mxu0
      %v773 = vpop.f32.mrf.mxu0
      %v774 = vadd.f32 0.0, %v773
      %v775 = vpop.f32.mrf.mxu0
      %776 = vmatprep.mubr.bf16.mxu0 %v519
      %777 = vmatmul.mubr.bf16.gmra.mxu0 %v518
      %v778 = vpop.f32.mrf.mxu0
      %v779 = vadd.f32 0.0, %v778
      %v780 = vpop.f32.mrf.mxu0
      %v781 = vpop.f32.mrf.mxu0
      %v782 = vadd.f32 0.0, %v781
      %v783 = vpop.f32.mrf.mxu0
      %784 = vmatprep.mubr.bf16.mxu0 %v521
      %785 = vmatmul.mubr.bf16.gmra.mxu0 %v520
      %v786 = vpop.f32.mrf.mxu0
      %v787 = vadd.f32 0.0, %v786
      %v788 = vpop.f32.mrf.mxu0
      %v789 = vpop.f32.mrf.mxu0
      %v790 = vadd.f32 0.0, %v789
      %v791 = vpop.f32.mrf.mxu0
      %792 = vmatprep.mubr.bf16.mxu0 %v523
      %793 = vmatmul.mubr.bf16.gmra.mxu0 %v522
      %v794 = vpop.f32.mrf.mxu0
      %v795 = vadd.f32 0.0, %v794
      %v796 = vpop.f32.mrf.mxu0
      %v797 = vpop.f32.mrf.mxu0
      %v798 = vadd.f32 0.0, %v797
      %v799 = vpop.f32.mrf.mxu0
      %800 = vmatprep.mubr.bf16.mxu0 %v525
      %801 = vmatmul.mubr.bf16.gmra.mxu0 %v524
      %v802 = vpop.f32.mrf.mxu0
      %v803 = vadd.f32 0.0, %v802
      %v804 = vpop.f32.mrf.mxu0
      %v805 = vpop.f32.mrf.mxu0
      %v806 = vadd.f32 0.0, %v805
      %v807 = vpop.f32.mrf.mxu0
      %808 = vmatprep.mubr.bf16.mxu0 %v527
      %809 = vmatmul.mubr.bf16.gmra.mxu0 %v526
      %v810 = vpop.f32.mrf.mxu0
      %v811 = vadd.f32 0.0, %v810
      %v812 = vpop.f32.mrf.mxu0
      %v813 = vpop.f32.mrf.mxu0
      %v814 = vadd.f32 0.0, %v813
      %v815 = vpop.f32.mrf.mxu0
      %816 = vdwg.mxu0
      %v817 = vadd.f32 %v304, %v691
      %v818 = vadd.f32 %v305, %v694
      %v819 = vadd.f32 %v306, %v699
      %v820 = vadd.f32 %v307, %v702
      %v821 = vadd.f32 %v308, %v707
      %v822 = vadd.f32 %v309, %v710
      %v823 = vadd.f32 %v310, %v715
      %v824 = vadd.f32 %v311, %v718
      %v825 = vadd.f32 %v312, %v723
      %v826 = vadd.f32 %v313, %v726
      %v827 = vadd.f32 %v314, %v731
      %v828 = vadd.f32 %v315, %v734
      %v829 = vadd.f32 %v316, %v739
      %v830 = vadd.f32 %v317, %v742
      %v831 = vadd.f32 %v318, %v747
      %v832 = vadd.f32 %v319, %v750
      %v833 = vadd.f32 %v320, %v755
      %v834 = vadd.f32 %v321, %v758
      %v835 = vadd.f32 %v322, %v763
      %v836 = vadd.f32 %v323, %v766
      %v837 = vadd.f32 %v324, %v771
      %v838 = vadd.f32 %v325, %v774
      %v839 = vadd.f32 %v326, %v779
      %v840 = vadd.f32 %v327, %v782
      %v841 = vadd.f32 %v328, %v787
      %v842 = vadd.f32 %v329, %v790
      %v843 = vadd.f32 %v330, %v795
      %v844 = vadd.f32 %v331, %v798
      %v845 = vadd.f32 %v332, %v803
      %v846 = vadd.f32 %v333, %v806
      %v847 = vadd.f32 %v334, %v811
      %v848 = vadd.f32 %v335, %v814
      %849 = vst [vmem:[#allocation2] sm:$0xff] %v817
      %850 = vst [vmem:[#allocation2 + $0x8] sm:$0xff] %v818
      %851 = vst [vmem:[#allocation2 + $0x10] sm:$0xff] %v819
      %852 = vst [vmem:[#allocation2 + $0x18] sm:$0xff] %v820
      %853 = vst [vmem:[#allocation2 + $0x20] sm:$0xff] %v821
      %854 = vst [vmem:[#allocation2 + $0x28] sm:$0xff] %v822
      %855 = vst [vmem:[#allocation2 + $0x30] sm:$0xff] %v823
      %856 = vst [vmem:[#allocation2 + $0x38] sm:$0xff] %v824
      %857 = vst [vmem:[#allocation2 + $0x40] sm:$0xff] %v825
      %858 = vst [vmem:[#allocation2 + $0x48] sm:$0xff] %v826
      %859 = vst [vmem:[#allocation2 + $0x50] sm:$0xff] %v827
      %860 = vst [vmem:[#allocation2 + $0x58] sm:$0xff] %v828
      %861 = vst [vmem:[#allocation2 + $0x60] sm:$0xff] %v829
      %862 = vst [vmem:[#allocation2 + $0x68] sm:$0xff] %v830
      %863 = vst [vmem:[#allocation2 + $0x70] sm:$0xff] %v831
      %864 = vst [vmem:[#allocation2 + $0x78] sm:$0xff] %v832
      %865 = vst [vmem:[#allocation2 + $0x80] sm:$0xff] %v833
      %866 = vst [vmem:[#allocation2 + $0x88] sm:$0xff] %v834
      %867 = vst [vmem:[#allocation2 + $0x90] sm:$0xff] %v835
      %868 = vst [vmem:[#allocation2 + $0x98] sm:$0xff] %v836
      %869 = vst [vmem:[#allocation2 + $0xa0] sm:$0xff] %v837
      %870 = vst [vmem:[#allocation2 + $0xa8] sm:$0xff] %v838
      %871 = vst [vmem:[#allocation2 + $0xb0] sm:$0xff] %v839
      %872 = vst [vmem:[#allocation2 + $0xb8] sm:$0xff] %v840
      %873 = vst [vmem:[#allocation2 + $0xc0] sm:$0xff] %v841
      %874 = vst [vmem:[#allocation2 + $0xc8] sm:$0xff] %v842
      %875 = vst [vmem:[#allocation2 + $0xd0] sm:$0xff] %v843
      %876 = vst [vmem:[#allocation2 + $0xd8] sm:$0xff] %v844
      %877 = vst [vmem:[#allocation2 + $0xe0] sm:$0xff] %v845
      %878 = vst [vmem:[#allocation2 + $0xe8] sm:$0xff] %v846
      %879 = vst [vmem:[#allocation2 + $0xf0] sm:$0xff] %v847
      %880 = vst [vmem:[#allocation2 + $0xf8] sm:$0xff] %v848
      // Predicated region
      $region37: #{generator_forward.53} parent=31 // pred_check
        %p881 = pneg %p268
      $region38: #{generator_forward.53} parent=31 // pred_check_branch
        %883 = sbr.rel (%p881) target = $region40
      $region39: #{generator_forward.53} parent=31 // pred_region
        %v884 = vld [vmem:[#allocation2] sm:$0xff]
        %v885 = vld [vmem:[#allocation2 + $0x8] sm:$0xff]
        %v886 = vld [vmem:[#allocation2 + $0x10] sm:$0xff]
        %v887 = vld [vmem:[#allocation2 + $0x18] sm:$0xff]
        %v888 = vld [vmem:[#allocation2 + $0x20] sm:$0xff]
        %v889 = vld [vmem:[#allocation2 + $0x28] sm:$0xff]
        %v890 = vld [vmem:[#allocation2 + $0x30] sm:$0xff]
        %v891 = vld [vmem:[#allocation2 + $0x38] sm:$0xff]
        %v892 = vld [vmem:[#allocation2 + $0x40] sm:$0xff]
        %v893 = vld [vmem:[#allocation2 + $0x48] sm:$0xff]
        %v894 = vld [vmem:[#allocation2 + $0x50] sm:$0xff]
        %v895 = vld [vmem:[#allocation2 + $0x58] sm:$0xff]
        %v896 = vld [vmem:[#allocation2 + $0x60] sm:$0xff]
        %v897 = vld [vmem:[#allocation2 + $0x68] sm:$0xff]
        %v898 = vld [vmem:[#allocation2 + $0x70] sm:$0xff]
        %v899 = vld [vmem:[#allocation2 + $0x78] sm:$0xff]
        %v900 = vld [vmem:[#allocation2 + $0x80] sm:$0xff]
        %v901 = vld [vmem:[#allocation2 + $0x88] sm:$0xff]
        %v902 = vld [vmem:[#allocation2 + $0x90] sm:$0xff]
        %v903 = vld [vmem:[#allocation2 + $0x98] sm:$0xff]
        %v904 = vld [vmem:[#allocation2 + $0xa0] sm:$0xff]
        %v905 = vld [vmem:[#allocation2 + $0xa8] sm:$0xff]
        %v906 = vld [vmem:[#allocation2 + $0xb0] sm:$0xff]
        %v907 = vld [vmem:[#allocation2 + $0xb8] sm:$0xff]
        %v908 = vld [vmem:[#allocation2 + $0xc0] sm:$0xff]
        %v909 = vld [vmem:[#allocation2 + $0xc8] sm:$0xff]
        %v910 = vld [vmem:[#allocation2 + $0xd0] sm:$0xff]
        %v911 = vld [vmem:[#allocation2 + $0xd8] sm:$0xff]
        %v912 = vld [vmem:[#allocation2 + $0xe0] sm:$0xff]
        %v913 = vld [vmem:[#allocation2 + $0xe8] sm:$0xff]
        %v914 = vld [vmem:[#allocation2 + $0xf0] sm:$0xff]
        %v915 = vld [vmem:[#allocation2 + $0xf8] sm:$0xff]
        %v916 = vld [vmem:[%s257] sm:$0x1]
        %v918 = vlaneseq
        %v919 = vshrl.u32 %v918, 7
        %v920 = vsub.s32 0, %v919
        %v921 = vrot.slane %v916, %v920
        %v923 = vadd.f32 %v884, %v921
        %v924 = vadd.f32 %v885, %v921
        %v925 = vadd.f32 %v886, %v921
        %v926 = vadd.f32 %v887, %v921
        %v927 = vadd.f32 %v888, %v921
        %v928 = vadd.f32 %v889, %v921
        %v929 = vadd.f32 %v890, %v921
        %v930 = vadd.f32 %v891, %v921
        %v931 = vadd.f32 %v892, %v921
        %v932 = vadd.f32 %v893, %v921
        %v933 = vadd.f32 %v894, %v921
        %v934 = vadd.f32 %v895, %v921
        %v935 = vadd.f32 %v896, %v921
        %v936 = vadd.f32 %v897, %v921
        %v937 = vadd.f32 %v898, %v921
        %v938 = vadd.f32 %v899, %v921
        %v939 = vadd.f32 %v900, %v921
        %v940 = vadd.f32 %v901, %v921
        %v941 = vadd.f32 %v902, %v921
        %v942 = vadd.f32 %v903, %v921
        %v943 = vadd.f32 %v904, %v921
        %v944 = vadd.f32 %v905, %v921
        %v945 = vadd.f32 %v906, %v921
        %v946 = vadd.f32 %v907, %v921
        %v947 = vadd.f32 %v908, %v921
        %v948 = vadd.f32 %v909, %v921
        %v949 = vadd.f32 %v910, %v921
        %v950 = vadd.f32 %v911, %v921
        %v951 = vadd.f32 %v912, %v921
        %v952 = vadd.f32 %v913, %v921
        %v953 = vadd.f32 %v914, %v921
        %v954 = vadd.f32 %v915, %v921
        %v955 = vpack.c.bf16 %v924, %v923
        %v956 = vpack.c.bf16 %v926, %v925
        %v957 = vpack.c.bf16 %v928, %v927
        %v958 = vpack.c.bf16 %v930, %v929
        %v959 = vpack.c.bf16 %v932, %v931
        %v960 = vpack.c.bf16 %v934, %v933
        %v961 = vpack.c.bf16 %v936, %v935
        %v962 = vpack.c.bf16 %v938, %v937
        %v963 = vpack.c.bf16 %v940, %v939
        %v964 = vpack.c.bf16 %v942, %v941
        %v965 = vpack.c.bf16 %v944, %v943
        %v966 = vpack.c.bf16 %v946, %v945
        %v967 = vpack.c.bf16 %v948, %v947
        %v968 = vpack.c.bf16 %v950, %v949
        %v969 = vpack.c.bf16 %v952, %v951
        %v970 = vpack.c.bf16 %v954, %v953
        %v987 = vunpack.c.l.b16 %v955
        %v988 = vunpack.c.h.b16 %v955
        %v989 = vunpack.c.l.b16 %v956
        %v990 = vunpack.c.h.b16 %v956
        %v991 = vunpack.c.l.b16 %v957
        %v992 = vunpack.c.h.b16 %v957
        %v993 = vunpack.c.l.b16 %v958
        %v994 = vunpack.c.h.b16 %v958
        %v995 = vunpack.c.l.b16 %v959
        %v996 = vunpack.c.h.b16 %v959
        %v997 = vunpack.c.l.b16 %v960
        %v998 = vunpack.c.h.b16 %v960
        %v999 = vunpack.c.l.b16 %v961
        %v1000 = vunpack.c.h.b16 %v961
        %v1001 = vunpack.c.l.b16 %v962
        %v1002 = vunpack.c.h.b16 %v962
        %v1003 = vunpack.c.l.b16 %v963
        %v1004 = vunpack.c.h.b16 %v963
        %v1005 = vunpack.c.l.b16 %v964
        %v1006 = vunpack.c.h.b16 %v964
        %v1007 = vunpack.c.l.b16 %v965
        %v1008 = vunpack.c.h.b16 %v965
        %v1009 = vunpack.c.l.b16 %v966
        %v1010 = vunpack.c.h.b16 %v966
        %v1011 = vunpack.c.l.b16 %v967
        %v1012 = vunpack.c.h.b16 %v967
        %v1013 = vunpack.c.l.b16 %v968
        %v1014 = vunpack.c.h.b16 %v968
        %v1015 = vunpack.c.l.b16 %v969
        %v1016 = vunpack.c.h.b16 %v969
        %v1017 = vunpack.c.l.b16 %v970
        %v1018 = vunpack.c.h.b16 %v970
        %v1019 = vpack.c.b16 %v987, %v987
        %v1020 = vpack.c.b16 %v988, %v988
        %v1021 = vpack.c.b16 %v989, %v989
        %v1022 = vpack.c.b16 %v990, %v990
        %v1023 = vpack.c.b16 %v991, %v991
        %v1024 = vpack.c.b16 %v992, %v992
        %v1025 = vpack.c.b16 %v993, %v993
        %v1026 = vpack.c.b16 %v994, %v994
        %v1027 = vpack.c.b16 %v995, %v995
        %v1028 = vpack.c.b16 %v996, %v996
        %v1029 = vpack.c.b16 %v997, %v997
        %v1030 = vpack.c.b16 %v998, %v998
        %v1031 = vpack.c.b16 %v999, %v999
        %v1032 = vpack.c.b16 %v1000, %v1000
        %v1033 = vpack.c.b16 %v1001, %v1001
        %v1034 = vpack.c.b16 %v1002, %v1002
        %v1035 = vpack.c.b16 %v1003, %v1003
        %v1036 = vpack.c.b16 %v1004, %v1004
        %v1037 = vpack.c.b16 %v1005, %v1005
        %v1038 = vpack.c.b16 %v1006, %v1006
        %v1039 = vpack.c.b16 %v1007, %v1007
        %v1040 = vpack.c.b16 %v1008, %v1008
        %v1041 = vpack.c.b16 %v1009, %v1009
        %v1042 = vpack.c.b16 %v1010, %v1010
        %v1043 = vpack.c.b16 %v1011, %v1011
        %v1044 = vpack.c.b16 %v1012, %v1012
        %v1045 = vpack.c.b16 %v1013, %v1013
        %v1046 = vpack.c.b16 %v1014, %v1014
        %v1047 = vpack.c.b16 %v1015, %v1015
        %v1048 = vpack.c.b16 %v1016, %v1016
        %v1049 = vpack.c.b16 %v1017, %v1017
        %v1050 = vpack.c.b16 %v1018, %v1018
        %1083 = vst [vmem:[%s265] sm:$0xf] %v1019
        %1084 = vst [vmem:[%s265 + $0x4] sm:$0xf] %v1020
        %1085 = vst [vmem:[%s265 + $0x8] sm:$0xf] %v1021
        %1086 = vst [vmem:[%s265 + $0xc] sm:$0xf] %v1022
        %1087 = vst [vmem:[%s265 + $0x10] sm:$0xf] %v1023
        %1088 = vst [vmem:[%s265 + $0x14] sm:$0xf] %v1024
        %1089 = vst [vmem:[%s265 + $0x18] sm:$0xf] %v1025
        %1090 = vst [vmem:[%s265 + $0x1c] sm:$0xf] %v1026
        %1091 = vst [vmem:[%s265 + $0x20] sm:$0xf] %v1027
        %1092 = vst [vmem:[%s265 + $0x24] sm:$0xf] %v1028
        %1093 = vst [vmem:[%s265 + $0x28] sm:$0xf] %v1029
        %1094 = vst [vmem:[%s265 + $0x2c] sm:$0xf] %v1030
        %1095 = vst [vmem:[%s265 + $0x30] sm:$0xf] %v1031
        %1096 = vst [vmem:[%s265 + $0x34] sm:$0xf] %v1032
        %1097 = vst [vmem:[%s265 + $0x38] sm:$0xf] %v1033
        %1098 = vst [vmem:[%s265 + $0x3c] sm:$0xf] %v1034
        %1099 = vst [vmem:[%s265 + $0x40] sm:$0xf] %v1035
        %1100 = vst [vmem:[%s265 + $0x44] sm:$0xf] %v1036
        %1101 = vst [vmem:[%s265 + $0x48] sm:$0xf] %v1037
        %1102 = vst [vmem:[%s265 + $0x4c] sm:$0xf] %v1038
        %1103 = vst [vmem:[%s265 + $0x50] sm:$0xf] %v1039
        %1104 = vst [vmem:[%s265 + $0x54] sm:$0xf] %v1040
        %1105 = vst [vmem:[%s265 + $0x58] sm:$0xf] %v1041
        %1106 = vst [vmem:[%s265 + $0x5c] sm:$0xf] %v1042
        %1107 = vst [vmem:[%s265 + $0x60] sm:$0xf] %v1043
        %1108 = vst [vmem:[%s265 + $0x64] sm:$0xf] %v1044
        %1109 = vst [vmem:[%s265 + $0x68] sm:$0xf] %v1045
        %1110 = vst [vmem:[%s265 + $0x6c] sm:$0xf] %v1046
        %1111 = vst [vmem:[%s265 + $0x70] sm:$0xf] %v1047
        %1112 = vst [vmem:[%s265 + $0x74] sm:$0xf] %v1048
        %1113 = vst [vmem:[%s265 + $0x78] sm:$0xf] %v1049
        %1114 = vst [vmem:[%s265 + $0x7c] sm:$0xf] %v1050
      $region40: #{generator_forward.53} parent=31 // pred_fallthru
        _
      %s1115 = smul.u32 32, %s19
      %p1116 = scmp.lt.s32.totalorder %s1115, 63
      %s1117 = scalar_select %p1116, %s1115, 63
      %p1118 = scmp.lt.s32.totalorder %s20, 0
      %s1119 = scalar_select %p1118, %s20, 0
      %s1120 = sadd.s32 %s1119, %s1117
      %s1121 = smul.addr %s1120, 4
      %s1122 = scalar_lea.vmem %s3, %s1121
      // Predicated region
      $region41: #{generator_forward.53} parent=31 // pred_check
        %p1123 = pneg %p135
      $region42: #{generator_forward.53} parent=31 // pred_check_branch
        %1125 = sbr.rel (%p1123) target = $region44
      $region43: #{generator_forward.53} parent=31 // pred_region
        %s1126 = smul.u32 32, %s19
      $region44: #{generator_forward.53} parent=31 // pred_fallthru
        _
    $region32: #{generator_forward.53} parent=5 // pred_fallthru
      _
    %p1127 = scmp.le.s32.totalorder 2, %s9
    // Predicated region
    $region45: #{generator_forward.53} parent=5 // pred_check
      %p1128 = pneg %p1127
    $region46: #{generator_forward.53} parent=5 // pred_check_branch
      %1130 = sbr.rel (%p1128) target = $region48
    $region47: #{generator_forward.53} parent=5 // pred_region
      %s1131 = ssub.s32 %s9, 2
      // Predicated region
      $region49: #{generator_forward.53} parent=47 // pred_check
        %p1132 = pneg %p141
      $region50: #{generator_forward.53} parent=47 // pred_check_branch
        %1134 = sbr.rel (%p1132) target = $region52
      $region51: #{generator_forward.53} parent=47 // pred_region
        %s1135 = smul.u32 32, %s22
        %p1136 = scmp.lt.s32.totalorder %s1135, 63
        %s1137 = scalar_select %p1136, %s1135, 63
        %p1138 = scmp.lt.s32.totalorder %s23, 0
        %s1139 = scalar_select %p1138, %s23, 0
        %s1140 = sadd.s32 %s1139, %s1137
        %s1141 = smul.addr %s1140, 4
        %s1142 = scalar_lea.vmem %s3, %s1141
      $region52: #{generator_forward.53} parent=47 // pred_fallthru
        _
    $region48: #{generator_forward.53} parent=5 // pred_fallthru
      _
  $region6: #{generator_forward.53} parent=0 // loop_footer
    %s13 = sadd.s32 1, %s9
  $region7: #{generator_forward.53} parent=0 // loop_footer_branch
    %8 = sbr.rel target = $region3
  $region8: #{generator_forward.53} parent=0 // loop_exit
    _

// kernel: generator_forward.54
$region0: #{generator_forward.54}
  #allocation0 [shape = 'u32[]', space=smem, size = 0x4, offset = 0x4, fixed_abs, tag = 'smem constant byte address 0x4 - core index']
  #allocation1 [shape = 'u32[144,128]{1,0:T(1,128)}', space=vmem, size = 0x12000, scoped, tag = 'internal scratch']
  %s0 = inlined_call_operand.vmem [shape: bf16[128,256], index: 0, kind: input, shape index: {}]
  %s1 = inlined_call_operand.vmem [shape: bf16[128,256], index: 1, kind: output, shape index: {}]
  %s2 = sld [smem:[#allocation0]]
  $region37: #{generator_forward.54} parent=0
    _
  %s4 = ssub.s32 1, %s2
  %s5 = scalar_select 0, %s4, %s2
  loop: start=0, step=1, limit=6
  $region2: #{generator_forward.54} parent=0 // loop_pre_header
    _
  $region3: #{generator_forward.54} parent=0 // loop_header
    %s7 = sphi 0, %s11
    %p8 = scmp.ge.s32.totalorder %s7, 6
    %s17 = sphi 0, %s19
    %s20 = sphi 0, %s17
    %s21 = sphi 0, %s20
    %s37 = sphi 0, %s21
    %s43 = sphi 0, %s45
    %s46 = sphi 0, %s43
    %s47 = sphi 0, %s46
    %s63 = sphi 0, %s47
  $region4: #{generator_forward.54} parent=0 // loop_header_branch
    %10 = sbr.rel (%p8) target = $region8
  $region5: #{generator_forward.54} parent=0 // loop_body
    %s12 = ssub.s32 %s7, 1
    %s13 = ssub.s32 %s7, 2
    %s14 = sadd.s32 %s7, 1
    %s15 = ssub.s32 %s7, %s14
    %p16 = scmp.eq.s32.totalorder %s15, 0
    %s18 = sadd.s32 %s17, 1
    %s19 = scalar_select %p16, %s17, %s18
    %p22 = pneg %p16
    %p23 = scmp.eq.s32.totalorder %s7, 3
    %p24 = por %p22, %p23
    %p25 = scmp.ne.s32.totalorder %s17, %s20
    %p26 = scmp.eq.s32.totalorder %s7, 0
    %p27 = por %p25, %p26
    %p28 = scmp.ne.s32.totalorder %s17, %s20
    %p29 = scmp.eq.s32.totalorder %s12, 3
    %p30 = por %p28, %p29
    %p31 = scmp.ne.s32.totalorder %s20, %s21
    %p32 = scmp.eq.s32.totalorder %s12, 0
    %p33 = por %p31, %p32
    %p34 = scmp.ne.s32.totalorder %s20, %s21
    %p35 = scmp.eq.s32.totalorder %s13, 3
    %p36 = por %p34, %p35
    %p38 = scmp.ne.s32.totalorder %s21, %s37
    %p39 = scmp.eq.s32.totalorder %s13, 0
    %p40 = por %p38, %p39
    %s41 = ssub.s32 %s7, %s14
    %p42 = scmp.eq.s32.totalorder %s41, 0
    %s44 = sadd.s32 %s43, 1
    %s45 = scalar_select %p42, %s43, %s44
    %p48 = pneg %p42
    %p49 = scmp.eq.s32.totalorder %s7, 3
    %p50 = por %p48, %p49
    %p51 = scmp.ne.s32.totalorder %s43, %s46
    %p52 = scmp.eq.s32.totalorder %s7, 0
    %p53 = por %p51, %p52
    %p54 = scmp.ne.s32.totalorder %s43, %s46
    %p55 = scmp.eq.s32.totalorder %s12, 3
    %p56 = por %p54, %p55
    %p57 = scmp.ne.s32.totalorder %s46, %s47
    %p58 = scmp.eq.s32.totalorder %s12, 0
    %p59 = por %p57, %p58
    %p60 = scmp.ne.s32.totalorder %s46, %s47
    %p61 = scmp.eq.s32.totalorder %s13, 3
    %p62 = por %p60, %p61
    %p64 = scmp.ne.s32.totalorder %s47, %s63
    %p65 = scmp.eq.s32.totalorder %s13, 0
    %p66 = por %p64, %p65
    %p67 = scmp.le.s32.totalorder 1, %s7
    %p68 = scmp.lt.s32.totalorder %s7, 5
    %p69 = pnand %p67, %p68
    %p70 = pneg %p69
    // Predicated region
    $region9: #{generator_forward.54} parent=5 // pred_check
      _
    $region10: #{generator_forward.54} parent=5 // pred_check_branch
      %72 = sbr.rel (%p69) target = $region12
    $region11: #{generator_forward.54} parent=5 // pred_region
      %s73 = ssub.s32 %s7, 1
    $region12: #{generator_forward.54} parent=5 // pred_fallthru
      _
    %p74 = scmp.lt.s32.totalorder %s7, 4
    // Predicated region
    $region13: #{generator_forward.54} parent=5 // pred_check
      %p75 = pneg %p74
    $region14: #{generator_forward.54} parent=5 // pred_check_branch
      %77 = sbr.rel (%p75) target = $region16
    $region15: #{generator_forward.54} parent=5 // pred_region
      // Predicated region
      $region17: #{generator_forward.54} parent=15 // pred_check
        %p78 = pneg %p27
      $region18: #{generator_forward.54} parent=15 // pred_check_branch
        %80 = sbr.rel (%p78) target = $region20
      $region19: #{generator_forward.54} parent=15 // pred_region
        %s81 = smul.u32 4, %s7
        %p82 = scmp.lt.s32.totalorder %s81, 15
        %s83 = scalar_select %p82, %s81, 15
        %s84 = smul.addr %s83, 2
        %s85 = smul.addr %s84, 4
        %s86 = scalar_lea.vmem %s0, %s85
        %s87 = smul.u32 4, %s7
      $region20: #{generator_forward.54} parent=15 // pred_fallthru
        _
    $region16: #{generator_forward.54} parent=5 // pred_fallthru
      _
    %p88 = scmp.le.s32.totalorder 1, %s7
    %p89 = scmp.lt.s32.totalorder %s7, 5
    %p90 = pnand %p88, %p89
    %p91 = pneg %p90
    // Predicated region
    $region21: #{generator_forward.54} parent=5 // pred_check
      _
    $region22: #{generator_forward.54} parent=5 // pred_check_branch
      %93 = sbr.rel (%p90) target = $region24
    $region23: #{generator_forward.54} parent=5 // pred_region
      %s94 = ssub.s32 %s7, 1
      %s95 = smul.u32 4, %s12
      %p96 = scmp.lt.s32.totalorder %s95, 15
      %s97 = scalar_select %p96, %s95, 15
      %s98 = smul.addr %s97, 2
      %s99 = smul.addr %s98, 4
      %s100 = scalar_lea.vmem %s0, %s99
      %p101 = pneg %p33
      %p102 = pneg %p30
      %p103 = pneg %p59
      %p104 = pneg %p56
      %s105 = smul.u32 4, %s12
      %p106 = scmp.lt.s32.totalorder %s105, 15
      %s107 = scalar_select %p106, %s105, 15
      %s108 = smul.addr %s107, 2
      %s109 = smul.addr %s108, 4
      %s110 = scalar_lea.vmem %s1, %s109
      %s111 = smul.u32 4, %s12
      %p112 = scmp.lt.s32.totalorder %s111, 15
      %s113 = scalar_select %p112, %s111, 15
      %s114 = smul.addr %s113, 2
      %s115 = smul.addr %s114, 4
      %s116 = scalar_lea.vmem %s0, %s115
      %s117 = smul.u32 4, %s12
      %s118 = smul.u32 4, %s12
      %p119 = scmp.lt.s32.totalorder %s118, 15
      %s120 = scalar_select %p119, %s118, 15
      %s121 = smul.addr %s120, 2
      %s122 = smul.addr %s121, 4
      %s123 = scalar_lea.vmem %s1, %s122
      %s124 = smul.u32 4, %s12
      %v125 = vld [vmem:[%s116] sm:$0xff]
      %v126 = vld [vmem:[%s116 + $0x8] sm:$0xff]
      %v127 = vld [vmem:[%s116 + $0x10] sm:$0xff]
      %v128 = vld [vmem:[%s116 + $0x18] sm:$0xff]
      %v129 = vunpack.c.l.bf16 %v125
      %v130 = vunpack.c.h.bf16 %v125
      %v131 = vunpack.c.l.bf16 %v126
      %v132 = vunpack.c.h.bf16 %v126
      %v133 = vunpack.c.l.bf16 %v127
      %v134 = vunpack.c.h.bf16 %v127
      %v135 = vunpack.c.l.bf16 %v128
      %v136 = vunpack.c.h.bf16 %v128
      %v137 = vadd.f32 %v129, %v130
      %138 = vadd.xlane.f32.xlu0 %v137
      %v139 = vpop.xlane.xlu0 %138
      %v140 = vadd.f32 %v131, %v132
      %141 = vadd.xlane.f32.xlu0 %v140
      %v142 = vpop.xlane.xlu0 %141
      %v143 = vadd.f32 %v133, %v134
      %144 = vadd.xlane.f32.xlu0 %v143
      %v145 = vpop.xlane.xlu0 %144
      %v146 = vadd.f32 %v135, %v136
      %147 = vadd.xlane.f32.xlu0 %v146
      %v148 = vpop.xlane.xlu0 %147
      %v149 = vrcp.pop 256.0
      %v150 = vmul.f32 %v139, %v149
      %v151 = vmul.f32 %v142, %v149
      %v152 = vmul.f32 %v145, %v149
      %v153 = vmul.f32 %v148, %v149
      %v154 = vsub.f32 %v129, %v150
      %v155 = vsub.f32 %v130, %v150
      %v156 = vsub.f32 %v131, %v151
      %v157 = vsub.f32 %v132, %v151
      %v158 = vsub.f32 %v133, %v152
      %v159 = vsub.f32 %v134, %v152
      %v160 = vsub.f32 %v135, %v153
      %v161 = vsub.f32 %v136, %v153
      %v162 = vmul.f32 %v154, %v154
      %v163 = vmul.f32 %v155, %v155
      %v164 = vmul.f32 %v156, %v156
      %v165 = vmul.f32 %v157, %v157
      %v166 = vmul.f32 %v158, %v158
      %v167 = vmul.f32 %v159, %v159
      %v168 = vmul.f32 %v160, %v160
      %v169 = vmul.f32 %v161, %v161
      %v170 = vadd.f32 %v162, %v163
      %171 = vadd.xlane.f32.xlu0 %v170
      %v172 = vpop.xlane.xlu0 %171
      %v173 = vadd.f32 %v164, %v165
      %174 = vadd.xlane.f32.xlu0 %v173
      %v175 = vpop.xlane.xlu0 %174
      %v176 = vadd.f32 %v166, %v167
      %177 = vadd.xlane.f32.xlu0 %v176
      %v178 = vpop.xlane.xlu0 %177
      %v179 = vadd.f32 %v168, %v169
      %180 = vadd.xlane.f32.xlu0 %v179
      %v181 = vpop.xlane.xlu0 %180
      %v182 = vmul.f32 %v172, %v149
      %v183 = vmul.f32 %v175, %v149
      %v184 = vmul.f32 %v178, %v149
      %v185 = vmul.f32 %v181, %v149
      %v186 = vadd.f32 %v182, 1e-05
      %v187 = vadd.f32 %v183, 1e-05
      %v188 = vadd.f32 %v184, 1e-05
      %v189 = vadd.f32 %v185, 1e-05
      %v190 = vrsqrt.pop %v186
      %v191 = vrsqrt.pop %v187
      %v192 = vrsqrt.pop %v188
      %v193 = vrsqrt.pop %v189
      %v194 = vmul.f32 %v154, %v190
      %v195 = vmul.f32 %v155, %v190
      %v196 = vmul.f32 %v156, %v191
      %v197 = vmul.f32 %v157, %v191
      %v198 = vmul.f32 %v158, %v192
      %v199 = vmul.f32 %v159, %v192
      %v200 = vmul.f32 %v160, %v193
      %v201 = vmul.f32 %v161, %v193
      %v202 = vmax.f32 %v194, 0.0
      %v203 = vmax.f32 %v195, 0.0
      %v204 = vmax.f32 %v196, 0.0
      %v205 = vmax.f32 %v197, 0.0
      %v206 = vmax.f32 %v198, 0.0
      %v207 = vmax.f32 %v199, 0.0
      %v208 = vmax.f32 %v200, 0.0
      %v209 = vmax.f32 %v201, 0.0
      %v210 = vpack.c.bf16 %v204, %v202
      %v211 = vpack.c.bf16 %v205, %v203
      %v212 = vpack.c.bf16 %v208, %v206
      %v213 = vpack.c.bf16 %v209, %v207
      %v218 = vunpack.c.l.b16 %v210
      %v219 = vunpack.c.l.b16 %v211
      %v220 = vunpack.c.h.b16 %v210
      %v221 = vunpack.c.h.b16 %v211
      %v222 = vunpack.c.l.b16 %v212
      %v223 = vunpack.c.l.b16 %v213
      %v224 = vunpack.c.h.b16 %v212
      %v225 = vunpack.c.h.b16 %v213
      %v226 = vpack.c.b16 %v219, %v218
      %v227 = vpack.c.b16 %v221, %v220
      %v228 = vpack.c.b16 %v223, %v222
      %v229 = vpack.c.b16 %v225, %v224
      %234 = vst [vmem:[%s123] sm:$0xff] %v226
      %235 = vst [vmem:[%s123 + $0x8] sm:$0xff] %v227
      %236 = vst [vmem:[%s123 + $0x10] sm:$0xff] %v228
      %237 = vst [vmem:[%s123 + $0x18] sm:$0xff] %v229
      %s238 = smul.u32 4, %s12
      %p239 = scmp.lt.s32.totalorder %s238, 15
      %s240 = scalar_select %p239, %s238, 15
      %s241 = smul.addr %s240, 2
      %s242 = smul.addr %s241, 4
      %s243 = scalar_lea.vmem %s1, %s242
      // Predicated region
      $region25: #{generator_forward.54} parent=23 // pred_check
        %p244 = pneg %p56
      $region26: #{generator_forward.54} parent=23 // pred_check_branch
        %246 = sbr.rel (%p244) target = $region28
      $region27: #{generator_forward.54} parent=23 // pred_region
        %s247 = smul.u32 4, %s12
      $region28: #{generator_forward.54} parent=23 // pred_fallthru
        _
    $region24: #{generator_forward.54} parent=5 // pred_fallthru
      _
    %p248 = scmp.le.s32.totalorder 2, %s7
    // Predicated region
    $region29: #{generator_forward.54} parent=5 // pred_check
      %p249 = pneg %p248
    $region30: #{generator_forward.54} parent=5 // pred_check_branch
      %251 = sbr.rel (%p249) target = $region32
    $region31: #{generator_forward.54} parent=5 // pred_region
      %s252 = ssub.s32 %s7, 2
      // Predicated region
      $region33: #{generator_forward.54} parent=31 // pred_check
        %p253 = pneg %p62
      $region34: #{generator_forward.54} parent=31 // pred_check_branch
        %255 = sbr.rel (%p253) target = $region36
      $region35: #{generator_forward.54} parent=31 // pred_region
        %s256 = smul.u32 4, %s13
        %p257 = scmp.lt.s32.totalorder %s256, 15
        %s258 = scalar_select %p257, %s256, 15
        %s259 = smul.addr %s258, 2
        %s260 = smul.addr %s259, 4
        %s261 = scalar_lea.vmem %s1, %s260
      $region36: #{generator_forward.54} parent=31 // pred_fallthru
        _
    $region32: #{generator_forward.54} parent=5 // pred_fallthru
      _
  $region6: #{generator_forward.54} parent=0 // loop_footer
    %s11 = sadd.s32 1, %s7
  $region7: #{generator_forward.54} parent=0 // loop_footer_branch
    %6 = sbr.rel target = $region3
  $region8: #{generator_forward.54} parent=0 // loop_exit
    _

// kernel: generator_forward.55
$region0: #{generator_forward.55}
  #allocation0 [shape = 'u32[]', space=smem, size = 0x4, offset = 0x4, fixed_abs, tag = 'smem constant byte address 0x4 - core index']
  #allocation1 [shape = 'u32[144,128]{1,0:T(1,128)}', space=vmem, size = 0x12000, scoped, tag = 'internal scratch']
  #allocation2 [shape = 'f32[128,128]{1,0:T(8,128)}', space=vmem, size = 0x10000, scoped, tag = 'scratch operand']
  %s0 = inlined_call_operand.vmem [shape: bf16[128,768], index: 0, kind: input, shape index: {}]
  %s1 = inlined_call_operand.vmem [shape: bf16[768,128], index: 1, kind: input, shape index: {}]
  %s2 = inlined_call_operand.vmem [shape: f32[1,128], index: 2, kind: input, shape index: {}]
  %s3 = inlined_call_operand.vmem [shape: bf16[128,128], index: 3, kind: output, shape index: {}]
  %s4 = sld [smem:[#allocation0]]
  $region91: #{generator_forward.55} parent=0
    _
  %s6 = ssub.s32 1, %s4
  %s7 = scalar_select 0, %s6, %s4
  $region1: #{generator_forward.55} parent=0
    #allocation3 [shape = 'u8[131072]{0}', space=vmem, size = 0x20000, scoped, tag = 'input window, operand 0']
    loop: start=0, step=1, limit=5
    $region2: #{generator_forward.55} parent=1 // loop_pre_header
      _
    $region3: #{generator_forward.55} parent=1 // loop_header
      %s9 = sphi 0, %s13
      %p10 = scmp.ge.s32.totalorder %s9, 5
      %s16 = sphi 0, %s35
      %s17 = sphi 0, %s31
      %s18 = sphi 0, %s27
      %s19 = sphi 0, %s16
      %s20 = sphi 0, %s17
      %s21 = sphi 0, %s18
      %s22 = sphi 0, %s19
      %s23 = sphi 0, %s20
      %s24 = sphi 0, %s21
      %s40 = sphi 0, %s42
      %s43 = sphi 0, %s40
      %s44 = sphi 0, %s43
      %s60 = sphi 0, %s44
      %s68 = sphi 0, %s70
      %s71 = sphi 0, %s68
      %s72 = sphi 0, %s71
      %s88 = sphi 0, %s72
      %s94 = sphi 0, %s96
      %s97 = sphi 0, %s94
      %s98 = sphi 0, %s97
      %s114 = sphi 0, %s98
      %s122 = sphi 0, %s124
      %s125 = sphi 0, %s122
      %s126 = sphi 0, %s125
      %s142 = sphi 0, %s126
    $region4: #{generator_forward.55} parent=1 // loop_header_branch
      %12 = sbr.rel (%p10) target = $region8
    $region5: #{generator_forward.55} parent=1 // loop_body
      %s14 = ssub.s32 %s9, 1
      %s15 = ssub.s32 %s9, 2
      %s25 = sadd.s32 1, %s18
      %p26 = scmp.ge.s32.totalorder %s25, 3
      %s27 = scalar_select %p26, 0, %s25
      %s28 = sadd.s32 1, %s17
      %s29 = scalar_select %p26, %s28, %s17
      %p30 = scmp.ge.s32.totalorder %s29, 1
      %s31 = scalar_select %p30, 0, %s29
      %s32 = sadd.s32 1, %s16
      %s33 = scalar_select %p30, %s32, %s16
      %p34 = scmp.ge.s32.totalorder %s33, 1
      %s35 = scalar_select %p34, 0, %s33
      %s36 = ssub.s32 %s16, %s35
      %s37 = ssub.s32 %s18, %s27
      %s38 = sor.u32 %s36, %s37
      %p39 = scmp.eq.s32.totalorder %s38, 0
      %s41 = sadd.s32 %s40, 1
      %s42 = scalar_select %p39, %s40, %s41
      %p45 = pneg %p39
      %p46 = scmp.eq.s32.totalorder %s9, 2
      %p47 = por %p45, %p46
      %p48 = scmp.ne.s32.totalorder %s40, %s43
      %p49 = scmp.eq.s32.totalorder %s9, 0
      %p50 = por %p48, %p49
      %p51 = scmp.ne.s32.totalorder %s40, %s43
      %p52 = scmp.eq.s32.totalorder %s14, 2
      %p53 = por %p51, %p52
      %p54 = scmp.ne.s32.totalorder %s43, %s44
      %p55 = scmp.eq.s32.totalorder %s14, 0
      %p56 = por %p54, %p55
      %p57 = scmp.ne.s32.totalorder %s43, %s44
      %p58 = scmp.eq.s32.totalorder %s15, 2
      %p59 = por %p57, %p58
      %p61 = scmp.ne.s32.totalorder %s44, %s60
      %p62 = scmp.eq.s32.totalorder %s15, 0
      %p63 = por %p61, %p62
      %s64 = ssub.s32 %s18, %s27
      %s65 = ssub.s32 %s17, %s31
      %s66 = sor.u32 %s64, %s65
      %p67 = scmp.eq.s32.totalorder %s66, 0
      %s69 = sadd.s32 %s68, 1
      %s70 = scalar_select %p67, %s68, %s69
      %p73 = pneg %p67
      %p74 = scmp.eq.s32.totalorder %s9, 2
      %p75 = por %p73, %p74
      %p76 = scmp.ne.s32.totalorder %s68, %s71
      %p77 = scmp.eq.s32.totalorder %s9, 0
      %p78 = por %p76, %p77
      %p79 = scmp.ne.s32.totalorder %s68, %s71
      %p80 = scmp.eq.s32.totalorder %s14, 2
      %p81 = por %p79, %p80
      %p82 = scmp.ne.s32.totalorder %s71, %s72
      %p83 = scmp.eq.s32.totalorder %s14, 0
      %p84 = por %p82, %p83
      %p85 = scmp.ne.s32.totalorder %s71, %s72
      %p86 = scmp.eq.s32.totalorder %s15, 2
      %p87 = por %p85, %p86
      %p89 = scmp.ne.s32.totalorder %s72, %s88
      %p90 = scmp.eq.s32.totalorder %s15, 0
      %p91 = por %p89, %p90
      %s92 = ssub.s32 %s17, %s31
      %p93 = scmp.eq.s32.totalorder %s92, 0
      %s95 = sadd.s32 %s94, 1
      %s96 = scalar_select %p93, %s94, %s95
      %p99 = pneg %p93
      %p100 = scmp.eq.s32.totalorder %s9, 2
      %p101 = por %p99, %p100
      %p102 = scmp.ne.s32.totalorder %s94, %s97
      %p103 = scmp.eq.s32.totalorder %s9, 0
      %p104 = por %p102, %p103
      %p105 = scmp.ne.s32.totalorder %s94, %s97
      %p106 = scmp.eq.s32.totalorder %s14, 2
      %p107 = por %p105, %p106
      %p108 = scmp.ne.s32.totalorder %s97, %s98
      %p109 = scmp.eq.s32.totalorder %s14, 0
      %p110 = por %p108, %p109
      %p111 = scmp.ne.s32.totalorder %s97, %s98
      %p112 = scmp.eq.s32.totalorder %s15, 2
      %p113 = por %p111, %p112
      %p115 = scmp.ne.s32.totalorder %s98, %s114
      %p116 = scmp.eq.s32.totalorder %s15, 0
      %p117 = por %p115, %p116
      %s118 = ssub.s32 %s16, %s35
      %s119 = ssub.s32 %s17, %s31
      %s120 = sor.u32 %s118, %s119
      %p121 = scmp.eq.s32.totalorder %s120, 0
      %s123 = sadd.s32 %s122, 1
      %s124 = scalar_select %p121, %s122, %s123
      %p127 = pneg %p121
      %p128 = scmp.eq.s32.totalorder %s9, 2
      %p129 = por %p127, %p128
      %p130 = scmp.ne.s32.totalorder %s122, %s125
      %p131 = scmp.eq.s32.totalorder %s9, 0
      %p132 = por %p130, %p131
      %p133 = scmp.ne.s32.totalorder %s122, %s125
      %p134 = scmp.eq.s32.totalorder %s14, 2
      %p135 = por %p133, %p134
      %p136 = scmp.ne.s32.totalorder %s125, %s126
      %p137 = scmp.eq.s32.totalorder %s14, 0
      %p138 = por %p136, %p137
      %p139 = scmp.ne.s32.totalorder %s125, %s126
      %p140 = scmp.eq.s32.totalorder %s15, 2
      %p141 = por %p139, %p140
      %p143 = scmp.ne.s32.totalorder %s126, %s142
      %p144 = scmp.eq.s32.totalorder %s15, 0
      %p145 = por %p143, %p144
      %p146 = scmp.le.s32.totalorder 1, %s9
      %p147 = scmp.lt.s32.totalorder %s9, 4
      %p148 = pnand %p146, %p147
      %p149 = pneg %p148
      // Predicated region
      $region9: #{generator_forward.55} parent=5 // pred_check
        _
      $region10: #{generator_forward.55} parent=5 // pred_check_branch
        %151 = sbr.rel (%p148) target = $region12
      $region11: #{generator_forward.55} parent=5 // pred_region
        %s152 = ssub.s32 %s9, 1
        // Predicated region
        $region13: #{generator_forward.55} parent=11 // pred_check
          %p153 = pneg %p110
        $region14: #{generator_forward.55} parent=11 // pred_check_branch
          %155 = sbr.rel (%p153) target = $region16
        $region15: #{generator_forward.55} parent=11 // pred_region
          %p156 = scmp.lt.s32.totalorder %s20, 0
          %s157 = scalar_select %p156, %s20, 0
          %s158 = scalar_lea.vmem %s2, %s157
        $region16: #{generator_forward.55} parent=11 // pred_fallthru
          _
      $region12: #{generator_forward.55} parent=5 // pred_fallthru
        _
      %p159 = scmp.lt.s32.totalorder %s9, 3
      // Predicated region
      $region17: #{generator_forward.55} parent=5 // pred_check
        %p160 = pneg %p159
      $region18: #{generator_forward.55} parent=5 // pred_check_branch
        %162 = sbr.rel (%p160) target = $region20
      $region19: #{generator_forward.55} parent=5 // pred_region
        // Predicated region
        $region21: #{generator_forward.55} parent=19 // pred_check
          %p163 = pneg %p50
        $region22: #{generator_forward.55} parent=19 // pred_check_branch
          %165 = sbr.rel (%p163) target = $region24
        $region23: #{generator_forward.55} parent=19 // pred_region
          %s166 = sand.u32 %s40, 1
          %s167 = sand.u32 %s40, 1
          %s168 = smul.addr %s167, 128
          %s169 = scalar_lea.vmem [#allocation3], %s168
          %s170 = smul.u32 16, %s16
          %s171 = smul.u32 2, %s18
          %s172 = smul.addr %s170, 6
          %s173 = sadd.s32 %s171, %s172
          %s174 = smul.addr %s173, 4
          %s175 = scalar_lea.vmem %s0, %s174
          // Predicated region
          $region25: #{generator_forward.55} parent=23 // pred_check
            _
          $region26: #{generator_forward.55} parent=23 // pred_check_branch
            %177 = sbr.rel (0) target = $region28
          $region27: #{generator_forward.55} parent=23 // pred_region
            // Predicated region
            $region29: #{generator_forward.55} parent=27 // pred_check
              _
            $region30: #{generator_forward.55} parent=27 // pred_check_branch
              %179 = sbr.rel (0) target = $region32
            $region31: #{generator_forward.55} parent=27 // pred_region
              // Predicated region
              $region44: #{generator_forward.55} parent=31 // pred_check
                _
              $region45: #{generator_forward.55} parent=31 // pred_check_branch
                %225 = sbr.rel (0) target = $region47
              $region46: #{generator_forward.55} parent=31 // pred_region
                loop: start=0, step=1, limit=1
                $region48: #{generator_forward.55} parent=46 // loop_pre_header
                  _
                $region49: #{generator_forward.55} parent=46 // loop_header
                  %s227 = sphi 0, %s231
                  %p228 = scmp.ge.s32.totalorder %s227, 1
                  %s232 = sphi %s175, %s175
                  %s233 = sphi %s169, %s169
                $region50: #{generator_forward.55} parent=46 // loop_header_branch
                  %230 = sbr.rel (%p228) target = $region54
                $region51: #{generator_forward.55} parent=46 // loop_body
                  %v234 = vld [vmem:[%s232] sm:$0xff]
                  %235 = vst [vmem:[%s233] sm:$0xff] %v234
                  %v236 = vld [vmem:[%s232 + $0x18] sm:$0xff]
                  %237 = vst [vmem:[%s233 + $0x8] sm:$0xff] %v236
                  %v238 = vld [vmem:[%s232 + $0x30] sm:$0xff]
                  %239 = vst [vmem:[%s233 + $0x10] sm:$0xff] %v238
                  %v240 = vld [vmem:[%s232 + $0x48] sm:$0xff]
                  %241 = vst [vmem:[%s233 + $0x18] sm:$0xff] %v240
                  %v242 = vld [vmem:[%s232 + $0x60] sm:$0xff]
                  %243 = vst [vmem:[%s233 + $0x20] sm:$0xff] %v242
                  %v244 = vld [vmem:[%s232 + $0x78] sm:$0xff]
                  %245 = vst [vmem:[%s233 + $0x28] sm:$0xff] %v244
                  %v246 = vld [vmem:[%s232 + $0x90] sm:$0xff]
                  %247 = vst [vmem:[%s233 + $0x30] sm:$0xff] %v246
                  %v248 = vld [vmem:[%s232 + $0xa8] sm:$0xff]
                  %249 = vst [vmem:[%s233 + $0x38] sm:$0xff] %v248
                  %v250 = vld [vmem:[%s232 + $0xc0] sm:$0xff]
                  %251 = vst [vmem:[%s233 + $0x40] sm:$0xff] %v250
                  %v252 = vld [vmem:[%s232 + $0xd8] sm:$0xff]
                  %253 = vst [vmem:[%s233 + $0x48] sm:$0xff] %v252
                  %v254 = vld [vmem:[%s232 + $0xf0] sm:$0xff]
                  %255 = vst [vmem:[%s233 + $0x50] sm:$0xff] %v254
                  %v256 = vld [vmem:[%s232 + $0x108] sm:$0xff]
                  %257 = vst [vmem:[%s233 + $0x58] sm:$0xff] %v256
                  %v258 = vld [vmem:[%s232 + $0x120] sm:$0xff]
                  %259 = vst [vmem:[%s233 + $0x60] sm:$0xff] %v258
                  %v260 = vld [vmem:[%s232 + $0x138] sm:$0xff]
                  %261 = vst [vmem:[%s233 + $0x68] sm:$0xff] %v260
                  %v262 = vld [vmem:[%s232 + $0x150] sm:$0xff]
                  %263 = vst [vmem:[%s233 + $0x70] sm:$0xff] %v262
                  %v264 = vld [vmem:[%s232 + $0x168] sm:$0xff]
                  %265 = vst [vmem:[%s233 + $0x78] sm:$0xff] %v264
                $region52: #{generator_forward.55} parent=46 // loop_footer
                  %s231 = sadd.s32 1, %s227
                $region53: #{generator_forward.55} parent=46 // loop_footer_branch
                  %226 = sbr.rel target = $region49
                $region54: #{generator_forward.55} parent=46 // loop_exit
                  _
              $region47: #{generator_forward.55} parent=31 // pred_fallthru
                _
              // Predicated region
              $region55: #{generator_forward.55} parent=31 // pred_check
                _
              $region56: #{generator_forward.55} parent=31 // pred_check_branch
                %267 = sbr.rel target = $region58
              $region57: #{generator_forward.55} parent=31 // pred_region
                _
              $region58: #{generator_forward.55} parent=31 // pred_fallthru
                _
            $region32: #{generator_forward.55} parent=27 // pred_fallthru
              _
            // Predicated region
            $region33: #{generator_forward.55} parent=27 // pred_check
              _
            $region34: #{generator_forward.55} parent=27 // pred_check_branch
              %181 = sbr.rel target = $region36
            $region35: #{generator_forward.55} parent=27 // pred_region
              %s183 = ssub.s32 256, 1
              loop: start=0, step=1, limit=1
              $region37: #{generator_forward.55} parent=35 // loop_pre_header
                _
              $region38: #{generator_forward.55} parent=35 // loop_header
                %s185 = sphi 0, %s189
                %p186 = scmp.ge.s32.totalorder %s185, 1
                %s190 = sphi %s175, %s175
                %s191 = sphi %s169, %s169
              $region39: #{generator_forward.55} parent=35 // loop_header_branch
                %188 = sbr.rel (%p186) target = $region43
              $region40: #{generator_forward.55} parent=35 // loop_body
                %v192 = vld [vmem:[%s190] sm:%s183]
                %193 = vst [vmem:[%s191] sm:%s183] %v192
                %v194 = vld [vmem:[%s190 + $0x18] sm:%s183]
                %195 = vst [vmem:[%s191 + $0x8] sm:%s183] %v194
                %v196 = vld [vmem:[%s190 + $0x30] sm:%s183]
                %197 = vst [vmem:[%s191 + $0x10] sm:%s183] %v196
                %v198 = vld [vmem:[%s190 + $0x48] sm:%s183]
                %199 = vst [vmem:[%s191 + $0x18] sm:%s183] %v198
                %v200 = vld [vmem:[%s190 + $0x60] sm:%s183]
                %201 = vst [vmem:[%s191 + $0x20] sm:%s183] %v200
                %v202 = vld [vmem:[%s190 + $0x78] sm:%s183]
                %203 = vst [vmem:[%s191 + $0x28] sm:%s183] %v202
                %v204 = vld [vmem:[%s190 + $0x90] sm:%s183]
                %205 = vst [vmem:[%s191 + $0x30] sm:%s183] %v204
                %v206 = vld [vmem:[%s190 + $0xa8] sm:%s183]
                %207 = vst [vmem:[%s191 + $0x38] sm:%s183] %v206
                %v208 = vld [vmem:[%s190 + $0xc0] sm:%s183]
                %209 = vst [vmem:[%s191 + $0x40] sm:%s183] %v208
                %v210 = vld [vmem:[%s190 + $0xd8] sm:%s183]
                %211 = vst [vmem:[%s191 + $0x48] sm:%s183] %v210
                %v212 = vld [vmem:[%s190 + $0xf0] sm:%s183]
                %213 = vst [vmem:[%s191 + $0x50] sm:%s183] %v212
                %v214 = vld [vmem:[%s190 + $0x108] sm:%s183]
                %215 = vst [vmem:[%s191 + $0x58] sm:%s183] %v214
                %v216 = vld [vmem:[%s190 + $0x120] sm:%s183]
                %217 = vst [vmem:[%s191 + $0x60] sm:%s183] %v216
                %v218 = vld [vmem:[%s190 + $0x138] sm:%s183]
                %219 = vst [vmem:[%s191 + $0x68] sm:%s183] %v218
                %v220 = vld [vmem:[%s190 + $0x150] sm:%s183]
                %221 = vst [vmem:[%s191 + $0x70] sm:%s183] %v220
                %v222 = vld [vmem:[%s190 + $0x168] sm:%s183]
                %223 = vst [vmem:[%s191 + $0x78] sm:%s183] %v222
              $region41: #{generator_forward.55} parent=35 // loop_footer
                %s189 = sadd.s32 1, %s185
              $region42: #{generator_forward.55} parent=35 // loop_footer_branch
                %184 = sbr.rel target = $region38
              $region43: #{generator_forward.55} parent=35 // loop_exit
                _
            $region36: #{generator_forward.55} parent=27 // pred_fallthru
              _
          $region28: #{generator_forward.55} parent=23 // pred_fallthru
            _
          %268 = vnop
        $region24: #{generator_forward.55} parent=19 // pred_fallthru
          _
        // Predicated region
        $region59: #{generator_forward.55} parent=19 // pred_check
          %p269 = pneg %p78
        $region60: #{generator_forward.55} parent=19 // pred_check_branch
          %271 = sbr.rel (%p269) target = $region62
        $region61: #{generator_forward.55} parent=19 // pred_region
          %s272 = smul.u32 32, %s18
          %p273 = scmp.lt.s32.totalorder %s272, 95
          %s274 = scalar_select %p273, %s272, 95
          %p275 = scmp.lt.s32.totalorder %s17, 0
          %s276 = scalar_select %p275, %s17, 0
          %s277 = sadd.s32 %s276, %s274
          %s278 = smul.addr %s277, 4
          %s279 = scalar_lea.vmem %s1, %s278
          %s280 = smul.u32 32, %s18
        $region62: #{generator_forward.55} parent=19 // pred_fallthru
          _
      $region20: #{generator_forward.55} parent=5 // pred_fallthru
        _
      %p281 = scmp.le.s32.totalorder 1, %s9
      %p282 = scmp.lt.s32.totalorder %s9, 4
      %p283 = pnand %p281, %p282
      %p284 = pneg %p283
      // Predicated region
      $region63: #{generator_forward.55} parent=5 // pred_check
        _
      $region64: #{generator_forward.55} parent=5 // pred_check_branch
        %286 = sbr.rel (%p283) target = $region66
      $region65: #{generator_forward.55} parent=5 // pred_region
        %s287 = ssub.s32 %s9, 1
        %s288 = sand.u32 %s43, 1
        %s289 = sand.u32 %s43, 1
        %s290 = smul.addr %s289, 128
        %s291 = scalar_lea.vmem [#allocation3], %s290
        // Predicated region
        $region67: #{generator_forward.55} parent=65 // pred_check
          %p292 = pneg %p56
        $region68: #{generator_forward.55} parent=65 // pred_check_branch
          %294 = sbr.rel (%p292) target = $region70
        $region69: #{generator_forward.55} parent=65 // pred_region
          _
        $region70: #{generator_forward.55} parent=65 // pred_fallthru
          _
        %s295 = sand.u32 %s43, 1
        %s296 = sand.u32 %s43, 1
        %s297 = smul.addr %s296, 128
        %s298 = scalar_lea.vmem [#allocation3], %s297
        %p299 = pneg %p56
        %p300 = pneg %p53
        %s301 = smul.u32 32, %s21
        %p302 = scmp.lt.s32.totalorder %s301, 95
        %s303 = scalar_select %p302, %s301, 95
        %p304 = scmp.lt.s32.totalorder %s20, 0
        %s305 = scalar_select %p304, %s20, 0
        %s306 = sadd.s32 %s305, %s303
        %s307 = smul.addr %s306, 4
        %s308 = scalar_lea.vmem %s1, %s307
        %p309 = pneg %p84
        %p310 = pneg %p81
        %p311 = scmp.lt.s32.totalorder %s20, 0
        %s312 = scalar_select %p311, %s20, 0
        %s313 = scalar_lea.vmem %s2, %s312
        %p314 = pneg %p110
        %p315 = pneg %p107
        %p316 = pneg %p138
        %p317 = pneg %p135
        %s318 = smul.u32 16, %s19
        %p319 = scmp.lt.s32.totalorder %s318, 15
        %s320 = scalar_select %p319, %s318, 15
        %p321 = scmp.lt.s32.totalorder %s20, 0
        %s322 = scalar_select %p321, %s20, 0
        %s323 = sadd.s32 %s322, %s320
        %s324 = smul.addr %s323, 4
        %s325 = scalar_lea.vmem %s3, %s324
        %s326 = smul.u32 16, %s19
        %s327 = smul.u32 2, %s21
        %s328 = smul.u32 32, %s21
        %p329 = scmp.lt.s32.totalorder %s328, 95
        %s330 = scalar_select %p329, %s328, 95
        %p331 = scmp.lt.s32.totalorder %s20, 0
        %s332 = scalar_select %p331, %s20, 0
        %s333 = sadd.s32 %s332, %s330
        %s334 = smul.addr %s333, 4
        %s335 = scalar_lea.vmem %s1, %s334
        %s336 = smul.u32 32, %s21
        %p337 = scmp.lt.s32.totalorder %s20, 0
        %s338 = scalar_select %p337, %s20, 0
        %s339 = scalar_lea.vmem %s2, %s338
        %s340 = smul.u32 16, %s19
        %p341 = scmp.lt.s32.totalorder %s340, 15
        %s342 = scalar_select %p341, %s340, 15
        %p343 = scmp.lt.s32.totalorder %s20, 0
        %s344 = scalar_select %p343, %s20, 0
        %s345 = sadd.s32 %s344, %s342
        %s346 = smul.addr %s345, 4
        %s347 = scalar_lea.vmem %s3, %s346
        %s348 = smul.u32 16, %s19
        %p350 = scmp.eq.s32.totalorder %s21, 0
        // Predicated region
        $region71: #{generator_forward.55} parent=65 // pred_check
          %p351 = pneg %p350
        $region72: #{generator_forward.55} parent=65 // pred_check_branch
          %353 = sbr.rel (%p351) target = $region74
        $region73: #{generator_forward.55} parent=65 // pred_region
          %354 = vst [vmem:[#allocation2] sm:$0xff] 0.0
          %355 = vst [vmem:[#allocation2 + $0x8] sm:$0xff] 0.0
          %356 = vst [vmem:[#allocation2 + $0x10] sm:$0xff] 0.0
          %357 = vst [vmem:[#allocation2 + $0x18] sm:$0xff] 0.0
          %358 = vst [vmem:[#allocation2 + $0x20] sm:$0xff] 0.0
          %359 = vst [vmem:[#allocation2 + $0x28] sm:$0xff] 0.0
          %360 = vst [vmem:[#allocation2 + $0x30] sm:$0xff] 0.0
          %361 = vst [vmem:[#allocation2 + $0x38] sm:$0xff] 0.0
          %362 = vst [vmem:[#allocation2 + $0x40] sm:$0xff] 0.0
          %363 = vst [vmem:[#allocation2 + $0x48] sm:$0xff] 0.0
          %364 = vst [vmem:[#allocation2 + $0x50] sm:$0xff] 0.0
          %365 = vst [vmem:[#allocation2 + $0x58] sm:$0xff] 0.0
          %366 = vst [vmem:[#allocation2 + $0x60] sm:$0xff] 0.0
          %367 = vst [vmem:[#allocation2 + $0x68] sm:$0xff] 0.0
          %368 = vst [vmem:[#allocation2 + $0x70] sm:$0xff] 0.0
          %369 = vst [vmem:[#allocation2 + $0x78] sm:$0xff] 0.0
        $region74: #{generator_forward.55} parent=65 // pred_fallthru
          _
        %v370 = vld [vmem:[#allocation2] sm:$0xff]
        %v371 = vld [vmem:[#allocation2 + $0x8] sm:$0xff]
        %v372 = vld [vmem:[#allocation2 + $0x10] sm:$0xff]
        %v373 = vld [vmem:[#allocation2 + $0x18] sm:$0xff]
        %v374 = vld [vmem:[#allocation2 + $0x20] sm:$0xff]
        %v375 = vld [vmem:[#allocation2 + $0x28] sm:$0xff]
        %v376 = vld [vmem:[#allocation2 + $0x30] sm:$0xff]
        %v377 = vld [vmem:[#allocation2 + $0x38] sm:$0xff]
        %v378 = vld [vmem:[#allocation2 + $0x40] sm:$0xff]
        %v379 = vld [vmem:[#allocation2 + $0x48] sm:$0xff]
        %v380 = vld [vmem:[#allocation2 + $0x50] sm:$0xff]
        %v381 = vld [vmem:[#allocation2 + $0x58] sm:$0xff]
        %v382 = vld [vmem:[#allocation2 + $0x60] sm:$0xff]
        %v383 = vld [vmem:[#allocation2 + $0x68] sm:$0xff]
        %v384 = vld [vmem:[#allocation2 + $0x70] sm:$0xff]
        %v385 = vld [vmem:[#allocation2 + $0x78] sm:$0xff]
        %v386 = vld [vmem:[%s291] sm:$0xff]
        %v387 = vld [vmem:[%s291 + $0x8] sm:$0xff]
        %v388 = vld [vmem:[%s291 + $0x10] sm:$0xff]
        %v389 = vld [vmem:[%s291 + $0x18] sm:$0xff]
        %v390 = vld [vmem:[%s291 + $0x20] sm:$0xff]
        %v391 = vld [vmem:[%s291 + $0x28] sm:$0xff]
        %v392 = vld [vmem:[%s291 + $0x30] sm:$0xff]
        %v393 = vld [vmem:[%s291 + $0x38] sm:$0xff]
        %v394 = vld [vmem:[%s291 + $0x40] sm:$0xff]
        %v395 = vld [vmem:[%s291 + $0x48] sm:$0xff]
        %v396 = vld [vmem:[%s291 + $0x50] sm:$0xff]
        %v397 = vld [vmem:[%s291 + $0x58] sm:$0xff]
        %v398 = vld [vmem:[%s291 + $0x60] sm:$0xff]
        %v399 = vld [vmem:[%s291 + $0x68] sm:$0xff]
        %v400 = vld [vmem:[%s291 + $0x70] sm:$0xff]
        %v401 = vld [vmem:[%s291 + $0x78] sm:$0xff]
        %v402 = vld [vmem:[%s335] sm:$0xf]
        %v403 = vld [vmem:[%s335 + $0x4] sm:$0xf]
        %v404 = vld [vmem:[%s335 + $0x8] sm:$0xf]
        %v405 = vld [vmem:[%s335 + $0xc] sm:$0xf]
        %v406 = vld [vmem:[%s335 + $0x10] sm:$0xf]
        %v407 = vld [vmem:[%s335 + $0x14] sm:$0xf]
        %v408 = vld [vmem:[%s335 + $0x18] sm:$0xf]
        %v409 = vld [vmem:[%s335 + $0x1c] sm:$0xf]
        %v410 = vld [vmem:[%s335 + $0x20] sm:$0xf]
        %v411 = vld [vmem:[%s335 + $0x24] sm:$0xf]
        %v412 = vld [vmem:[%s335 + $0x28] sm:$0xf]
        %v413 = vld [vmem:[%s335 + $0x2c] sm:$0xf]
        %v414 = vld [vmem:[%s335 + $0x30] sm:$0xf]
        %v415 = vld [vmem:[%s335 + $0x34] sm:$0xf]
        %v416 = vld [vmem:[%s335 + $0x38] sm:$0xf]
        %v417 = vld [vmem:[%s335 + $0x3c] sm:$0xf]
        %v418 = vld [vmem:[%s335 + $0x40] sm:$0xf]
        %v419 = vld [vmem:[%s335 + $0x44] sm:$0xf]
        %v420 = vld [vmem:[%s335 + $0x48] sm:$0xf]
        %v421 = vld [vmem:[%s335 + $0x4c] sm:$0xf]
        %v422 = vld [vmem:[%s335 + $0x50] sm:$0xf]
        %v423 = vld [vmem:[%s335 + $0x54] sm:$0xf]
        %v424 = vld [vmem:[%s335 + $0x58] sm:$0xf]
        %v425 = vld [vmem:[%s335 + $0x5c] sm:$0xf]
        %v426 = vld [vmem:[%s335 + $0x60] sm:$0xf]
        %v427 = vld [vmem:[%s335 + $0x64] sm:$0xf]
        %v428 = vld [vmem:[%s335 + $0x68] sm:$0xf]
        %v429 = vld [vmem:[%s335 + $0x6c] sm:$0xf]
        %v430 = vld [vmem:[%s335 + $0x70] sm:$0xf]
        %v431 = vld [vmem:[%s335 + $0x74] sm:$0xf]
        %v432 = vld [vmem:[%s335 + $0x78] sm:$0xf]
        %v433 = vld [vmem:[%s335 + $0x7c] sm:$0xf]
        %v450 = vunpack.c.l.b16 %v386
        %v451 = vunpack.c.h.b16 %v386
        %v452 = vunpack.c.l.b16 %v387
        %v453 = vunpack.c.h.b16 %v387
        %v454 = vunpack.c.l.b16 %v388
        %v455 = vunpack.c.h.b16 %v388
        %v456 = vunpack.c.l.b16 %v389
        %v457 = vunpack.c.h.b16 %v389
        %v458 = vunpack.c.l.b16 %v390
        %v459 = vunpack.c.h.b16 %v390
        %v460 = vunpack.c.l.b16 %v391
        %v461 = vunpack.c.h.b16 %v391
        %v462 = vunpack.c.l.b16 %v392
        %v463 = vunpack.c.h.b16 %v392
        %v464 = vunpack.c.l.b16 %v393
        %v465 = vunpack.c.h.b16 %v393
        %v466 = vunpack.c.l.b16 %v394
        %v467 = vunpack.c.h.b16 %v394
        %v468 = vunpack.c.l.b16 %v395
        %v469 = vunpack.c.h.b16 %v395
        %v470 = vunpack.c.l.b16 %v396
        %v471 = vunpack.c.h.b16 %v396
        %v472 = vunpack.c.l.b16 %v397
        %v473 = vunpack.c.h.b16 %v397
        %v474 = vunpack.c.l.b16 %v398
        %v475 = vunpack.c.h.b16 %v398
        %v476 = vunpack.c.l.b16 %v399
        %v477 = vunpack.c.h.b16 %v399
        %v478 = vunpack.c.l.b16 %v400
        %v479 = vunpack.c.h.b16 %v400
        %v480 = vunpack.c.l.b16 %v401
        %v481 = vunpack.c.h.b16 %v401
        %v482 = vpack.c.b16 %v452, %v450
        %v483 = vpack.c.b16 %v453, %v451
        %v484 = vpack.c.b16 %v456, %v454
        %v485 = vpack.c.b16 %v457, %v455
        %v486 = vpack.c.b16 %v460, %v458
        %v487 = vpack.c.b16 %v461, %v459
        %v488 = vpack.c.b16 %v464, %v462
        %v489 = vpack.c.b16 %v465, %v463
        %v490 = vpack.c.b16 %v468, %v466
        %v491 = vpack.c.b16 %v469, %v467
        %v492 = vpack.c.b16 %v472, %v470
        %v493 = vpack.c.b16 %v473, %v471
        %v494 = vpack.c.b16 %v476, %v474
        %v495 = vpack.c.b16 %v477, %v475
        %v496 = vpack.c.b16 %v480, %v478
        %v497 = vpack.c.b16 %v481, %v479
        %v546 = vunpack.c.l.b16 %v402
        %v547 = vunpack.c.l.b16 %v403
        %v548 = vunpack.c.l.b16 %v404
        %v549 = vunpack.c.l.b16 %v405
        %v550 = vunpack.c.l.b16 %v406
        %v551 = vunpack.c.l.b16 %v407
        %v552 = vunpack.c.l.b16 %v408
        %v553 = vunpack.c.l.b16 %v409
        %v554 = vunpack.c.l.b16 %v410
        %v555 = vunpack.c.l.b16 %v411
        %v556 = vunpack.c.l.b16 %v412
        %v557 = vunpack.c.l.b16 %v413
        %v558 = vunpack.c.l.b16 %v414
        %v559 = vunpack.c.l.b16 %v415
        %v560 = vunpack.c.l.b16 %v416
        %v561 = vunpack.c.l.b16 %v417
        %v562 = vunpack.c.l.b16 %v418
        %v563 = vunpack.c.l.b16 %v419
        %v564 = vunpack.c.l.b16 %v420
        %v565 = vunpack.c.l.b16 %v421
        %v566 = vunpack.c.l.b16 %v422
        %v567 = vunpack.c.l.b16 %v423
        %v568 = vunpack.c.l.b16 %v424
        %v569 = vunpack.c.l.b16 %v425
        %v570 = vunpack.c.l.b16 %v426
        %v571 = vunpack.c.l.b16 %v427
        %v572 = vunpack.c.l.b16 %v428
        %v573 = vunpack.c.l.b16 %v429
        %v574 = vunpack.c.l.b16 %v430
        %v575 = vunpack.c.l.b16 %v431
        %v576 = vunpack.c.l.b16 %v432
        %v577 = vunpack.c.l.b16 %v433
        %v578 = vpack.c.b16 %v547, %v546
        %v579 = vpack.c.b16 %v549, %v548
        %v580 = vpack.c.b16 %v551, %v550
        %v581 = vpack.c.b16 %v553, %v552
        %v582 = vpack.c.b16 %v555, %v554
        %v583 = vpack.c.b16 %v557, %v556
        %v584 = vpack.c.b16 %v559, %v558
        %v585 = vpack.c.b16 %v561, %v560
        %v586 = vpack.c.b16 %v563, %v562
        %v587 = vpack.c.b16 %v565, %v564
        %v588 = vpack.c.b16 %v567, %v566
        %v589 = vpack.c.b16 %v569, %v568
        %v590 = vpack.c.b16 %v571, %v570
        %v591 = vpack.c.b16 %v573, %v572
        %v592 = vpack.c.b16 %v575, %v574
        %v593 = vpack.c.b16 %v577, %v576
        %610 = vmatprep.subr.bf16.mxu0 0
        %611 = vmatpush1.bf16.msra.mxu0 %v585
        %612 = vmatprep.subr.bf16.mxu0 0
        %613 = vmatpush1.bf16.msra.mxu0 %v584
        %614 = vmatprep.subr.bf16.mxu0 0
        %615 = vmatpush1.bf16.msra.mxu0 %v583
        %616 = vmatprep.subr.bf16.mxu0 0
        %617 = vmatpush1.bf16.msra.mxu0 %v582
        %618 = vmatprep.subr.bf16.mxu0 0
        %619 = vmatpush1.bf16.msra.mxu0 %v581
        %620 = vmatprep.subr.bf16.mxu0 0
        %621 = vmatpush1.bf16.msra.mxu0 %v580
        %622 = vmatprep.subr.bf16.mxu0 0
        %623 = vmatpush1.bf16.msra.mxu0 %v579
        %624 = vmatprep.subr.bf16.mxu0 0
        %625 = vmatpush1.bf16.msra.mxu0 %v578
        %626 = vmatprep.subr.bf16.mxu0 0
        %627 = vmatpush2.bf16.msra.mxu0 %v593
        %628 = vmatprep.subr.bf16.mxu0 0
        %629 = vmatpush2.bf16.msra.mxu0 %v592
        %630 = vmatprep.subr.bf16.mxu0 0
        %631 = vmatpush2.bf16.msra.mxu0 %v591
        %632 = vmatprep.subr.bf16.mxu0 0
        %633 = vmatpush2.bf16.msra.mxu0 %v590
        %634 = vmatprep.subr.bf16.mxu0 0
        %635 = vmatpush2.bf16.msra.mxu0 %v589
        %636 = vmatprep.subr.bf16.mxu0 0
        %637 = vmatpush2.bf16.msra.mxu0 %v588
        %638 = vmatprep.subr.bf16.mxu0 0
        %639 = vmatpush2.bf16.msra.mxu0 %v587
        %640 = vmatprep.subr.bf16.mxu0 0
        %641 = vmatpush2.bf16.msra.mxu0 %v586
        %642 = vmatprep.mubr.bf16.mxu0 %v483
        %643 = vmatmul.mubr.bf16.gmra.mxu0 %v482
        %v644 = vpop.f32.mrf.mxu0
        %v645 = vadd.f32 0.0, %v644
        %v646 = vpop.f32.mrf.mxu0
        %v647 = vpop.f32.mrf.mxu0
        %v648 = vadd.f32 0.0, %v647
        %v649 = vpop.f32.mrf.mxu0
        %650 = vmatprep.mubr.bf16.mxu0 %v485
        %651 = vmatmul.mubr.bf16.gmra.mxu0 %v484
        %v652 = vpop.f32.mrf.mxu0
        %v653 = vadd.f32 0.0, %v652
        %v654 = vpop.f32.mrf.mxu0
        %v655 = vpop.f32.mrf.mxu0
        %v656 = vadd.f32 0.0, %v655
        %v657 = vpop.f32.mrf.mxu0
        %658 = vmatprep.mubr.bf16.mxu0 %v487
        %659 = vmatmul.mubr.bf16.gmra.mxu0 %v486
        %v660 = vpop.f32.mrf.mxu0
        %v661 = vadd.f32 0.0, %v660
        %v662 = vpop.f32.mrf.mxu0
        %v663 = vpop.f32.mrf.mxu0
        %v664 = vadd.f32 0.0, %v663
        %v665 = vpop.f32.mrf.mxu0
        %666 = vmatprep.mubr.bf16.mxu0 %v489
        %667 = vmatmul.mubr.bf16.gmra.mxu0 %v488
        %v668 = vpop.f32.mrf.mxu0
        %v669 = vadd.f32 0.0, %v668
        %v670 = vpop.f32.mrf.mxu0
        %v671 = vpop.f32.mrf.mxu0
        %v672 = vadd.f32 0.0, %v671
        %v673 = vpop.f32.mrf.mxu0
        %674 = vmatprep.mubr.bf16.mxu0 %v491
        %675 = vmatmul.mubr.bf16.gmra.mxu0 %v490
        %v676 = vpop.f32.mrf.mxu0
        %v677 = vadd.f32 0.0, %v676
        %v678 = vpop.f32.mrf.mxu0
        %v679 = vpop.f32.mrf.mxu0
        %v680 = vadd.f32 0.0, %v679
        %v681 = vpop.f32.mrf.mxu0
        %682 = vmatprep.mubr.bf16.mxu0 %v493
        %683 = vmatmul.mubr.bf16.gmra.mxu0 %v492
        %v684 = vpop.f32.mrf.mxu0
        %v685 = vadd.f32 0.0, %v684
        %v686 = vpop.f32.mrf.mxu0
        %v687 = vpop.f32.mrf.mxu0
        %v688 = vadd.f32 0.0, %v687
        %v689 = vpop.f32.mrf.mxu0
        %690 = vmatprep.mubr.bf16.mxu0 %v495
        %691 = vmatmul.mubr.bf16.gmra.mxu0 %v494
        %v692 = vpop.f32.mrf.mxu0
        %v693 = vadd.f32 0.0, %v692
        %v694 = vpop.f32.mrf.mxu0
        %v695 = vpop.f32.mrf.mxu0
        %v696 = vadd.f32 0.0, %v695
        %v697 = vpop.f32.mrf.mxu0
        %698 = vmatprep.mubr.bf16.mxu0 %v497
        %699 = vmatmul.mubr.bf16.gmra.mxu0 %v496
        %v700 = vpop.f32.mrf.mxu0
        %v701 = vadd.f32 0.0, %v700
        %v702 = vpop.f32.mrf.mxu0
        %v703 = vpop.f32.mrf.mxu0
        %v704 = vadd.f32 0.0, %v703
        %v705 = vpop.f32.mrf.mxu0
        %706 = vdwg.mxu0
        %v707 = vadd.f32 %v370, %v645
        %v708 = vadd.f32 %v371, %v648
        %v709 = vadd.f32 %v372, %v653
        %v710 = vadd.f32 %v373, %v656
        %v711 = vadd.f32 %v374, %v661
        %v712 = vadd.f32 %v375, %v664
        %v713 = vadd.f32 %v376, %v669
        %v714 = vadd.f32 %v377, %v672
        %v715 = vadd.f32 %v378, %v677
        %v716 = vadd.f32 %v379, %v680
        %v717 = vadd.f32 %v380, %v685
        %v718 = vadd.f32 %v381, %v688
        %v719 = vadd.f32 %v382, %v693
        %v720 = vadd.f32 %v383, %v696
        %v721 = vadd.f32 %v384, %v701
        %v722 = vadd.f32 %v385, %v704
        %723 = vst [vmem:[#allocation2] sm:$0xff] %v707
        %724 = vst [vmem:[#allocation2 + $0x8] sm:$0xff] %v708
        %725 = vst [vmem:[#allocation2 + $0x10] sm:$0xff] %v709
        %726 = vst [vmem:[#allocation2 + $0x18] sm:$0xff] %v710
        %727 = vst [vmem:[#allocation2 + $0x20] sm:$0xff] %v711
        %728 = vst [vmem:[#allocation2 + $0x28] sm:$0xff] %v712
        %729 = vst [vmem:[#allocation2 + $0x30] sm:$0xff] %v713
        %730 = vst [vmem:[#allocation2 + $0x38] sm:$0xff] %v714
        %731 = vst [vmem:[#allocation2 + $0x40] sm:$0xff] %v715
        %732 = vst [vmem:[#allocation2 + $0x48] sm:$0xff] %v716
        %733 = vst [vmem:[#allocation2 + $0x50] sm:$0xff] %v717
        %734 = vst [vmem:[#allocation2 + $0x58] sm:$0xff] %v718
        %735 = vst [vmem:[#allocation2 + $0x60] sm:$0xff] %v719
        %736 = vst [vmem:[#allocation2 + $0x68] sm:$0xff] %v720
        %737 = vst [vmem:[#allocation2 + $0x70] sm:$0xff] %v721
        %738 = vst [vmem:[#allocation2 + $0x78] sm:$0xff] %v722
        %p739 = scmp.eq.s32.totalorder %s21, 2
        // Predicated region
        $region75: #{generator_forward.55} parent=65 // pred_check
          %p740 = pneg %p739
        $region76: #{generator_forward.55} parent=65 // pred_check_branch
          %742 = sbr.rel (%p740) target = $region78
        $region77: #{generator_forward.55} parent=65 // pred_region
          %v743 = vld [vmem:[#allocation2] sm:$0xff]
          %v744 = vld [vmem:[#allocation2 + $0x8] sm:$0xff]
          %v745 = vld [vmem:[#allocation2 + $0x10] sm:$0xff]
          %v746 = vld [vmem:[#allocation2 + $0x18] sm:$0xff]
          %v747 = vld [vmem:[#allocation2 + $0x20] sm:$0xff]
          %v748 = vld [vmem:[#allocation2 + $0x28] sm:$0xff]
          %v749 = vld [vmem:[#allocation2 + $0x30] sm:$0xff]
          %v750 = vld [vmem:[#allocation2 + $0x38] sm:$0xff]
          %v751 = vld [vmem:[#allocation2 + $0x40] sm:$0xff]
          %v752 = vld [vmem:[#allocation2 + $0x48] sm:$0xff]
          %v753 = vld [vmem:[#allocation2 + $0x50] sm:$0xff]
          %v754 = vld [vmem:[#allocation2 + $0x58] sm:$0xff]
          %v755 = vld [vmem:[#allocation2 + $0x60] sm:$0xff]
          %v756 = vld [vmem:[#allocation2 + $0x68] sm:$0xff]
          %v757 = vld [vmem:[#allocation2 + $0x70] sm:$0xff]
          %v758 = vld [vmem:[#allocation2 + $0x78] sm:$0xff]
          %v759 = vld [vmem:[%s339] sm:$0x1]
          %v761 = vlaneseq
          %v762 = vshrl.u32 %v761, 7
          %v763 = vsub.s32 0, %v762
          %v764 = vrot.slane %v759, %v763
          %v766 = vadd.f32 %v743, %v764
          %v767 = vadd.f32 %v744, %v764
          %v768 = vadd.f32 %v745, %v764
          %v769 = vadd.f32 %v746, %v764
          %v770 = vadd.f32 %v747, %v764
          %v771 = vadd.f32 %v748, %v764
          %v772 = vadd.f32 %v749, %v764
          %v773 = vadd.f32 %v750, %v764
          %v774 = vadd.f32 %v751, %v764
          %v775 = vadd.f32 %v752, %v764
          %v776 = vadd.f32 %v753, %v764
          %v777 = vadd.f32 %v754, %v764
          %v778 = vadd.f32 %v755, %v764
          %v779 = vadd.f32 %v756, %v764
          %v780 = vadd.f32 %v757, %v764
          %v781 = vadd.f32 %v758, %v764
          %v782 = vpack.c.bf16 %v767, %v766
          %v783 = vpack.c.bf16 %v769, %v768
          %v784 = vpack.c.bf16 %v771, %v770
          %v785 = vpack.c.bf16 %v773, %v772
          %v786 = vpack.c.bf16 %v775, %v774
          %v787 = vpack.c.bf16 %v777, %v776
          %v788 = vpack.c.bf16 %v779, %v778
          %v789 = vpack.c.bf16 %v781, %v780
          %v798 = vunpack.c.l.b16 %v782
          %v799 = vunpack.c.h.b16 %v782
          %v800 = vunpack.c.l.b16 %v783
          %v801 = vunpack.c.h.b16 %v783
          %v802 = vunpack.c.l.b16 %v784
          %v803 = vunpack.c.h.b16 %v784
          %v804 = vunpack.c.l.b16 %v785
          %v805 = vunpack.c.h.b16 %v785
          %v806 = vunpack.c.l.b16 %v786
          %v807 = vunpack.c.h.b16 %v786
          %v808 = vunpack.c.l.b16 %v787
          %v809 = vunpack.c.h.b16 %v787
          %v810 = vunpack.c.l.b16 %v788
          %v811 = vunpack.c.h.b16 %v788
          %v812 = vunpack.c.l.b16 %v789
          %v813 = vunpack.c.h.b16 %v789
          %v814 = vpack.c.b16 %v798, %v798
          %v815 = vpack.c.b16 %v799, %v799
          %v816 = vpack.c.b16 %v800, %v800
          %v817 = vpack.c.b16 %v801, %v801
          %v818 = vpack.c.b16 %v802, %v802
          %v819 = vpack.c.b16 %v803, %v803
          %v820 = vpack.c.b16 %v804, %v804
          %v821 = vpack.c.b16 %v805, %v805
          %v822 = vpack.c.b16 %v806, %v806
          %v823 = vpack.c.b16 %v807, %v807
          %v824 = vpack.c.b16 %v808, %v808
          %v825 = vpack.c.b16 %v809, %v809
          %v826 = vpack.c.b16 %v810, %v810
          %v827 = vpack.c.b16 %v811, %v811
          %v828 = vpack.c.b16 %v812, %v812
          %v829 = vpack.c.b16 %v813, %v813
          %846 = vst [vmem:[%s347] sm:$0xf] %v814
          %847 = vst [vmem:[%s347 + $0x4] sm:$0xf] %v815
          %848 = vst [vmem:[%s347 + $0x8] sm:$0xf] %v816
          %849 = vst [vmem:[%s347 + $0xc] sm:$0xf] %v817
          %850 = vst [vmem:[%s347 + $0x10] sm:$0xf] %v818
          %851 = vst [vmem:[%s347 + $0x14] sm:$0xf] %v819
          %852 = vst [vmem:[%s347 + $0x18] sm:$0xf] %v820
          %853 = vst [vmem:[%s347 + $0x1c] sm:$0xf] %v821
          %854 = vst [vmem:[%s347 + $0x20] sm:$0xf] %v822
          %855 = vst [vmem:[%s347 + $0x24] sm:$0xf] %v823
          %856 = vst [vmem:[%s347 + $0x28] sm:$0xf] %v824
          %857 = vst [vmem:[%s347 + $0x2c] sm:$0xf] %v825
          %858 = vst [vmem:[%s347 + $0x30] sm:$0xf] %v826
          %859 = vst [vmem:[%s347 + $0x34] sm:$0xf] %v827
          %860 = vst [vmem:[%s347 + $0x38] sm:$0xf] %v828
          %861 = vst [vmem:[%s347 + $0x3c] sm:$0xf] %v829
        $region78: #{generator_forward.55} parent=65 // pred_fallthru
          _
        %s862 = smul.u32 16, %s19
        %p863 = scmp.lt.s32.totalorder %s862, 15
        %s864 = scalar_select %p863, %s862, 15
        %p865 = scmp.lt.s32.totalorder %s20, 0
        %s866 = scalar_select %p865, %s20, 0
        %s867 = sadd.s32 %s866, %s864
        %s868 = smul.addr %s867, 4
        %s869 = scalar_lea.vmem %s3, %s868
        // Predicated region
        $region79: #{generator_forward.55} parent=65 // pred_check
          %p870 = pneg %p135
        $region80: #{generator_forward.55} parent=65 // pred_check_branch
          %872 = sbr.rel (%p870) target = $region82
        $region81: #{generator_forward.55} parent=65 // pred_region
          %s873 = smul.u32 16, %s19
        $region82: #{generator_forward.55} parent=65 // pred_fallthru
          _
        // Predicated region
        $region83: #{generator_forward.55} parent=65 // pred_check
          %p874 = pneg %p135
        $region84: #{generator_forward.55} parent=65 // pred_check_branch
          %876 = sbr.rel (%p874) target = $region86
        $region85: #{generator_forward.55} parent=65 // pred_region
          %s877 = smul.u32 16, %s19
          %p878 = scmp.lt.s32.totalorder %s877, 15
          %s879 = scalar_select %p878, %s877, 15
          %p880 = scmp.lt.s32.totalorder %s20, 0
          %s881 = scalar_select %p880, %s20, 0
          %s882 = sadd.s32 %s881, %s879
          %s883 = smul.addr %s882, 4
          %s884 = scalar_lea.vmem %s3, %s883
        $region86: #{generator_forward.55} parent=65 // pred_fallthru
          _
      $region66: #{generator_forward.55} parent=5 // pred_fallthru
        _
      %p885 = scmp.le.s32.totalorder 2, %s9
      // Predicated region
      $region87: #{generator_forward.55} parent=5 // pred_check
        %p886 = pneg %p885
      $region88: #{generator_forward.55} parent=5 // pred_check_branch
        %888 = sbr.rel (%p886) target = $region90
      $region89: #{generator_forward.55} parent=5 // pred_region
        %s889 = ssub.s32 %s9, 2
      $region90: #{generator_forward.55} parent=5 // pred_fallthru
        _
    $region6: #{generator_forward.55} parent=1 // loop_footer
      %s13 = sadd.s32 1, %s9
    $region7: #{generator_forward.55} parent=1 // loop_footer_branch
      %8 = sbr.rel target = $region3
    $region8: #{generator_forward.55} parent=1 // loop_exit
      _

// kernel: generator_forward.56
$region0: #{generator_forward.56}
  #allocation0 [shape = 'u32[]', space=smem, size = 0x4, offset = 0x4, fixed_abs, tag = 'smem constant byte address 0x4 - core index']
  #allocation1 [shape = 'u32[144,128]{1,0:T(1,128)}', space=vmem, size = 0x12000, scoped, tag = 'internal scratch']
  %s0 = inlined_call_operand.vmem [shape: bf16[256,64], index: 0, kind: input, shape index: {}]
  %s1 = inlined_call_operand.vmem [shape: bf16[256,64], index: 1, kind: output, shape index: {}]
  %s2 = sld [smem:[#allocation0]]
  $region37: #{generator_forward.56} parent=0
    _
  %s4 = ssub.s32 1, %s2
  %s5 = scalar_select 0, %s4, %s2
  loop: start=0, step=1, limit=10
  $region2: #{generator_forward.56} parent=0 // loop_pre_header
    _
  $region3: #{generator_forward.56} parent=0 // loop_header
    %s7 = sphi 0, %s11
    %p8 = scmp.ge.s32.totalorder %s7, 10
    %s17 = sphi 0, %s19
    %s20 = sphi 0, %s17
    %s21 = sphi 0, %s20
    %s37 = sphi 0, %s21
    %s43 = sphi 0, %s45
    %s46 = sphi 0, %s43
    %s47 = sphi 0, %s46
    %s63 = sphi 0, %s47
  $region4: #{generator_forward.56} parent=0 // loop_header_branch
    %10 = sbr.rel (%p8) target = $region8
  $region5: #{generator_forward.56} parent=0 // loop_body
    %s12 = ssub.s32 %s7, 1
    %s13 = ssub.s32 %s7, 2
    %s14 = sadd.s32 %s7, 1
    %s15 = ssub.s32 %s7, %s14
    %p16 = scmp.eq.s32.totalorder %s15, 0
    %s18 = sadd.s32 %s17, 1
    %s19 = scalar_select %p16, %s17, %s18
    %p22 = pneg %p16
    %p23 = scmp.eq.s32.totalorder %s7, 7
    %p24 = por %p22, %p23
    %p25 = scmp.ne.s32.totalorder %s17, %s20
    %p26 = scmp.eq.s32.totalorder %s7, 0
    %p27 = por %p25, %p26
    %p28 = scmp.ne.s32.totalorder %s17, %s20
    %p29 = scmp.eq.s32.totalorder %s12, 7
    %p30 = por %p28, %p29
    %p31 = scmp.ne.s32.totalorder %s20, %s21
    %p32 = scmp.eq.s32.totalorder %s12, 0
    %p33 = por %p31, %p32
    %p34 = scmp.ne.s32.totalorder %s20, %s21
    %p35 = scmp.eq.s32.totalorder %s13, 7
    %p36 = por %p34, %p35
    %p38 = scmp.ne.s32.totalorder %s21, %s37
    %p39 = scmp.eq.s32.totalorder %s13, 0
    %p40 = por %p38, %p39
    %s41 = ssub.s32 %s7, %s14
    %p42 = scmp.eq.s32.totalorder %s41, 0
    %s44 = sadd.s32 %s43, 1
    %s45 = scalar_select %p42, %s43, %s44
    %p48 = pneg %p42
    %p49 = scmp.eq.s32.totalorder %s7, 7
    %p50 = por %p48, %p49
    %p51 = scmp.ne.s32.totalorder %s43, %s46
    %p52 = scmp.eq.s32.totalorder %s7, 0
    %p53 = por %p51, %p52
    %p54 = scmp.ne.s32.totalorder %s43, %s46
    %p55 = scmp.eq.s32.totalorder %s12, 7
    %p56 = por %p54, %p55
    %p57 = scmp.ne.s32.totalorder %s46, %s47
    %p58 = scmp.eq.s32.totalorder %s12, 0
    %p59 = por %p57, %p58
    %p60 = scmp.ne.s32.totalorder %s46, %s47
    %p61 = scmp.eq.s32.totalorder %s13, 7
    %p62 = por %p60, %p61
    %p64 = scmp.ne.s32.totalorder %s47, %s63
    %p65 = scmp.eq.s32.totalorder %s13, 0
    %p66 = por %p64, %p65
    %p67 = scmp.le.s32.totalorder 1, %s7
    %p68 = scmp.lt.s32.totalorder %s7, 9
    %p69 = pnand %p67, %p68
    %p70 = pneg %p69
    // Predicated region
    $region9: #{generator_forward.56} parent=5 // pred_check
      _
    $region10: #{generator_forward.56} parent=5 // pred_check_branch
      %72 = sbr.rel (%p69) target = $region12
    $region11: #{generator_forward.56} parent=5 // pred_region
      %s73 = ssub.s32 %s7, 1
    $region12: #{generator_forward.56} parent=5 // pred_fallthru
      _
    %p74 = scmp.lt.s32.totalorder %s7, 8
    // Predicated region
    $region13: #{generator_forward.56} parent=5 // pred_check
      %p75 = pneg %p74
    $region14: #{generator_forward.56} parent=5 // pred_check_branch
      %77 = sbr.rel (%p75) target = $region16
    $region15: #{generator_forward.56} parent=5 // pred_region
      // Predicated region
      $region17: #{generator_forward.56} parent=15 // pred_check
        %p78 = pneg %p27
      $region18: #{generator_forward.56} parent=15 // pred_check_branch
        %80 = sbr.rel (%p78) target = $region20
      $region19: #{generator_forward.56} parent=15 // pred_region
        %s81 = smul.u32 4, %s7
        %p82 = scmp.lt.s32.totalorder %s81, 31
        %s83 = scalar_select %p82, %s81, 31
        %s84 = smul.addr %s83, 4
        %s85 = scalar_lea.vmem %s0, %s84
        %s86 = smul.u32 4, %s7
      $region20: #{generator_forward.56} parent=15 // pred_fallthru
        _
    $region16: #{generator_forward.56} parent=5 // pred_fallthru
      _
    %p87 = scmp.le.s32.totalorder 1, %s7
    %p88 = scmp.lt.s32.totalorder %s7, 9
    %p89 = pnand %p87, %p88
    %p90 = pneg %p89
    // Predicated region
    $region21: #{generator_forward.56} parent=5 // pred_check
      _
    $region22: #{generator_forward.56} parent=5 // pred_check_branch
      %92 = sbr.rel (%p89) target = $region24
    $region23: #{generator_forward.56} parent=5 // pred_region
      %s93 = ssub.s32 %s7, 1
      %s94 = smul.u32 4, %s12
      %p95 = scmp.lt.s32.totalorder %s94, 31
      %s96 = scalar_select %p95, %s94, 31
      %s97 = smul.addr %s96, 4
      %s98 = scalar_lea.vmem %s0, %s97
      %p99 = pneg %p33
      %p100 = pneg %p30
      %p101 = pneg %p59
      %p102 = pneg %p56
      %s103 = smul.u32 4, %s12
      %p104 = scmp.lt.s32.totalorder %s103, 31
      %s105 = scalar_select %p104, %s103, 31
      %s106 = smul.addr %s105, 4
      %s107 = scalar_lea.vmem %s1, %s106
      %s108 = smul.u32 4, %s12
      %p109 = scmp.lt.s32.totalorder %s108, 31
      %s110 = scalar_select %p109, %s108, 31
      %s111 = smul.addr %s110, 4
      %s112 = scalar_lea.vmem %s0, %s111
      %s113 = smul.u32 4, %s12
      %s114 = smul.u32 4, %s12
      %p115 = scmp.lt.s32.totalorder %s114, 31
      %s116 = scalar_select %p115, %s114, 31
      %s117 = smul.addr %s116, 4
      %s118 = scalar_lea.vmem %s1, %s117
      %s119 = smul.u32 4, %s12
      %v120 = vld [vmem:[%s112] sm:$0xf]
      %v121 = vld [vmem:[%s112 + $0x4] sm:$0xf]
      %v122 = vld [vmem:[%s112 + $0x8] sm:$0xf]
      %v123 = vld [vmem:[%s112 + $0xc] sm:$0xf]
      %v124 = vunpack.c.l.bf16 %v120
      %v125 = vunpack.c.l.bf16 %v121
      %v126 = vunpack.c.l.bf16 %v122
      %v127 = vunpack.c.l.bf16 %v123
      %vm128 = vcmask 523264
      %v129 = vsel %vm128, %v124, 0.0
      %130 = vadd.xlane.f32.xlu0 %v129
      %v131 = vpop.xlane.xlu0 %130
      %v132 = vsel %vm128, %v125, 0.0
      %133 = vadd.xlane.f32.xlu0 %v132
      %v134 = vpop.xlane.xlu0 %133
      %v135 = vsel %vm128, %v126, 0.0
      %136 = vadd.xlane.f32.xlu0 %v135
      %v137 = vpop.xlane.xlu0 %136
      %v138 = vsel %vm128, %v127, 0.0
      %139 = vadd.xlane.f32.xlu0 %v138
      %v140 = vpop.xlane.xlu0 %139
      %v141 = vrcp.pop 64.0
      %v142 = vmul.f32 %v131, %v141
      %v143 = vmul.f32 %v134, %v141
      %v144 = vmul.f32 %v137, %v141
      %v145 = vmul.f32 %v140, %v141
      %v146 = vsub.f32 %v124, %v142
      %v147 = vsub.f32 %v125, %v143
      %v148 = vsub.f32 %v126, %v144
      %v149 = vsub.f32 %v127, %v145
      %v150 = vmul.f32 %v146, %v146
      %v151 = vmul.f32 %v147, %v147
      %v152 = vmul.f32 %v148, %v148
      %v153 = vmul.f32 %v149, %v149
      %v154 = vsel %vm128, %v150, 0.0
      %155 = vadd.xlane.f32.xlu0 %v154
      %v156 = vpop.xlane.xlu0 %155
      %v157 = vsel %vm128, %v151, 0.0
      %158 = vadd.xlane.f32.xlu0 %v157
      %v159 = vpop.xlane.xlu0 %158
      %v160 = vsel %vm128, %v152, 0.0
      %161 = vadd.xlane.f32.xlu0 %v160
      %v162 = vpop.xlane.xlu0 %161
      %v163 = vsel %vm128, %v153, 0.0
      %164 = vadd.xlane.f32.xlu0 %v163
      %v165 = vpop.xlane.xlu0 %164
      %v166 = vmul.f32 %v156, %v141
      %v167 = vmul.f32 %v159, %v141
      %v168 = vmul.f32 %v162, %v141
      %v169 = vmul.f32 %v165, %v141
      %v170 = vadd.f32 %v166, 1e-05
      %v171 = vadd.f32 %v167, 1e-05
      %v172 = vadd.f32 %v168, 1e-05
      %v173 = vadd.f32 %v169, 1e-05
      %v174 = vrsqrt.pop %v170
      %v175 = vrsqrt.pop %v171
      %v176 = vrsqrt.pop %v172
      %v177 = vrsqrt.pop %v173
      %v178 = vmul.f32 %v146, %v174
      %v179 = vmul.f32 %v147, %v175
      %v180 = vmul.f32 %v148, %v176
      %v181 = vmul.f32 %v149, %v177
      %v182 = vmax.f32 %v178, 0.0
      %v183 = vmax.f32 %v179, 0.0
      %v184 = vmax.f32 %v180, 0.0
      %v185 = vmax.f32 %v181, 0.0
      %v186 = vpack.c.bf16 %v183, %v182
      %v187 = vpack.c.bf16 %v185, %v184
      %v190 = vunpack.c.l.b16 %v186
      %v191 = vunpack.c.h.b16 %v186
      %v192 = vunpack.c.l.b16 %v187
      %v193 = vunpack.c.h.b16 %v187
      %v194 = vpack.c.b16 %v190, %v190
      %v195 = vpack.c.b16 %v191, %v191
      %v196 = vpack.c.b16 %v192, %v192
      %v197 = vpack.c.b16 %v193, %v193
      %vm202 = vcmask 519168
      %203 = vst.msk [vmem:[%s118] sm:$0xf] %vm202, %v194
      %204 = vst.msk [vmem:[%s118 + $0x4] sm:$0xf] %vm202, %v195
      %205 = vst.msk [vmem:[%s118 + $0x8] sm:$0xf] %vm202, %v196
      %206 = vst.msk [vmem:[%s118 + $0xc] sm:$0xf] %vm202, %v197
      %s207 = smul.u32 4, %s12
      %p208 = scmp.lt.s32.totalorder %s207, 31
      %s209 = scalar_select %p208, %s207, 31
      %s210 = smul.addr %s209, 4
      %s211 = scalar_lea.vmem %s1, %s210
      // Predicated region
      $region25: #{generator_forward.56} parent=23 // pred_check
        %p212 = pneg %p56
      $region26: #{generator_forward.56} parent=23 // pred_check_branch
        %214 = sbr.rel (%p212) target = $region28
      $region27: #{generator_forward.56} parent=23 // pred_region
        %s215 = smul.u32 4, %s12
      $region28: #{generator_forward.56} parent=23 // pred_fallthru
        _
    $region24: #{generator_forward.56} parent=5 // pred_fallthru
      _
    %p216 = scmp.le.s32.totalorder 2, %s7
    // Predicated region
    $region29: #{generator_forward.56} parent=5 // pred_check
      %p217 = pneg %p216
    $region30: #{generator_forward.56} parent=5 // pred_check_branch
      %219 = sbr.rel (%p217) target = $region32
    $region31: #{generator_forward.56} parent=5 // pred_region
      %s220 = ssub.s32 %s7, 2
      // Predicated region
      $region33: #{generator_forward.56} parent=31 // pred_check
        %p221 = pneg %p62
      $region34: #{generator_forward.56} parent=31 // pred_check_branch
        %223 = sbr.rel (%p221) target = $region36
      $region35: #{generator_forward.56} parent=31 // pred_region
        %s224 = smul.u32 4, %s13
        %p225 = scmp.lt.s32.totalorder %s224, 31
        %s226 = scalar_select %p225, %s224, 31
        %s227 = smul.addr %s226, 4
        %s228 = scalar_lea.vmem %s1, %s227
      $region36: #{generator_forward.56} parent=31 // pred_fallthru
        _
    $region32: #{generator_forward.56} parent=5 // pred_fallthru
      _
  $region6: #{generator_forward.56} parent=0 // loop_footer
    %s11 = sadd.s32 1, %s7
  $region7: #{generator_forward.56} parent=0 // loop_footer_branch
    %6 = sbr.rel target = $region3
  $region8: #{generator_forward.56} parent=0 // loop_exit
    _

// kernel: generator_forward.57
$region0: #{generator_forward.57}
  #allocation0 [shape = 'u32[]', space=smem, size = 0x4, offset = 0x4, fixed_abs, tag = 'smem constant byte address 0x4 - core index']
  #allocation1 [shape = 'u32[144,128]{1,0:T(1,128)}', space=vmem, size = 0x12000, scoped, tag = 'internal scratch']
  #allocation2 [shape = 'f32[32,256]{1,0:T(8,128)}', space=vmem, size = 0x8000, scoped, tag = 'scratch operand']
  %s0 = inlined_call_operand.vmem [shape: bf16[32,1280], index: 0, kind: input, shape index: {}]
  %s1 = inlined_call_operand.vmem [shape: bf16[1280,256], index: 1, kind: input, shape index: {}]
  %s2 = inlined_call_operand.vmem [shape: f32[1,256], index: 2, kind: input, shape index: {}]
  %s3 = inlined_call_operand.vmem [shape: bf16[32,256], index: 3, kind: output, shape index: {}]
  %s4 = sld [smem:[#allocation0]]
  $region91: #{generator_forward.57} parent=0
    _
  %s6 = ssub.s32 1, %s4
  %s7 = scalar_select 0, %s6, %s4
  $region1: #{generator_forward.57} parent=0
    #allocation3 [shape = 'u8[32768]{0}', space=vmem, size = 0x8000, scoped, tag = 'input window, operand 0']
    loop: start=0, step=1, limit=7
    $region2: #{generator_forward.57} parent=1 // loop_pre_header
      _
    $region3: #{generator_forward.57} parent=1 // loop_header
      %s9 = sphi 0, %s13
      %p10 = scmp.ge.s32.totalorder %s9, 7
      %s16 = sphi 0, %s35
      %s17 = sphi 0, %s31
      %s18 = sphi 0, %s27
      %s19 = sphi 0, %s16
      %s20 = sphi 0, %s17
      %s21 = sphi 0, %s18
      %s22 = sphi 0, %s19
      %s23 = sphi 0, %s20
      %s24 = sphi 0, %s21
      %s40 = sphi 0, %s42
      %s43 = sphi 0, %s40
      %s44 = sphi 0, %s43
      %s60 = sphi 0, %s44
      %s68 = sphi 0, %s70
      %s71 = sphi 0, %s68
      %s72 = sphi 0, %s71
      %s88 = sphi 0, %s72
      %s94 = sphi 0, %s96
      %s97 = sphi 0, %s94
      %s98 = sphi 0, %s97
      %s114 = sphi 0, %s98
      %s122 = sphi 0, %s124
      %s125 = sphi 0, %s122
      %s126 = sphi 0, %s125
      %s142 = sphi 0, %s126
    $region4: #{generator_forward.57} parent=1 // loop_header_branch
      %12 = sbr.rel (%p10) target = $region8
    $region5: #{generator_forward.57} parent=1 // loop_body
      %s14 = ssub.s32 %s9, 1
      %s15 = ssub.s32 %s9, 2
      %s25 = sadd.s32 1, %s18
      %p26 = scmp.ge.s32.totalorder %s25, 5
      %s27 = scalar_select %p26, 0, %s25
      %s28 = sadd.s32 1, %s17
      %s29 = scalar_select %p26, %s28, %s17
      %p30 = scmp.ge.s32.totalorder %s29, 1
      %s31 = scalar_select %p30, 0, %s29
      %s32 = sadd.s32 1, %s16
      %s33 = scalar_select %p30, %s32, %s16
      %p34 = scmp.ge.s32.totalorder %s33, 1
      %s35 = scalar_select %p34, 0, %s33
      %s36 = ssub.s32 %s16, %s35
      %s37 = ssub.s32 %s18, %s27
      %s38 = sor.u32 %s36, %s37
      %p39 = scmp.eq.s32.totalorder %s38, 0
      %s41 = sadd.s32 %s40, 1
      %s42 = scalar_select %p39, %s40, %s41
      %p45 = pneg %p39
      %p46 = scmp.eq.s32.totalorder %s9, 4
      %p47 = por %p45, %p46
      %p48 = scmp.ne.s32.totalorder %s40, %s43
      %p49 = scmp.eq.s32.totalorder %s9, 0
      %p50 = por %p48, %p49
      %p51 = scmp.ne.s32.totalorder %s40, %s43
      %p52 = scmp.eq.s32.totalorder %s14, 4
      %p53 = por %p51, %p52
      %p54 = scmp.ne.s32.totalorder %s43, %s44
      %p55 = scmp.eq.s32.totalorder %s14, 0
      %p56 = por %p54, %p55
      %p57 = scmp.ne.s32.totalorder %s43, %s44
      %p58 = scmp.eq.s32.totalorder %s15, 4
      %p59 = por %p57, %p58
      %p61 = scmp.ne.s32.totalorder %s44, %s60
      %p62 = scmp.eq.s32.totalorder %s15, 0
      %p63 = por %p61, %p62
      %s64 = ssub.s32 %s18, %s27
      %s65 = ssub.s32 %s17, %s31
      %s66 = sor.u32 %s64, %s65
      %p67 = scmp.eq.s32.totalorder %s66, 0
      %s69 = sadd.s32 %s68, 1
      %s70 = scalar_select %p67, %s68, %s69
      %p73 = pneg %p67
      %p74 = scmp.eq.s32.totalorder %s9, 4
      %p75 = por %p73, %p74
      %p76 = scmp.ne.s32.totalorder %s68, %s71
      %p77 = scmp.eq.s32.totalorder %s9, 0
      %p78 = por %p76, %p77
      %p79 = scmp.ne.s32.totalorder %s68, %s71
      %p80 = scmp.eq.s32.totalorder %s14, 4
      %p81 = por %p79, %p80
      %p82 = scmp.ne.s32.totalorder %s71, %s72
      %p83 = scmp.eq.s32.totalorder %s14, 0
      %p84 = por %p82, %p83
      %p85 = scmp.ne.s32.totalorder %s71, %s72
      %p86 = scmp.eq.s32.totalorder %s15, 4
      %p87 = por %p85, %p86
      %p89 = scmp.ne.s32.totalorder %s72, %s88
      %p90 = scmp.eq.s32.totalorder %s15, 0
      %p91 = por %p89, %p90
      %s92 = ssub.s32 %s17, %s31
      %p93 = scmp.eq.s32.totalorder %s92, 0
      %s95 = sadd.s32 %s94, 1
      %s96 = scalar_select %p93, %s94, %s95
      %p99 = pneg %p93
      %p100 = scmp.eq.s32.totalorder %s9, 4
      %p101 = por %p99, %p100
      %p102 = scmp.ne.s32.totalorder %s94, %s97
      %p103 = scmp.eq.s32.totalorder %s9, 0
      %p104 = por %p102, %p103
      %p105 = scmp.ne.s32.totalorder %s94, %s97
      %p106 = scmp.eq.s32.totalorder %s14, 4
      %p107 = por %p105, %p106
      %p108 = scmp.ne.s32.totalorder %s97, %s98
      %p109 = scmp.eq.s32.totalorder %s14, 0
      %p110 = por %p108, %p109
      %p111 = scmp.ne.s32.totalorder %s97, %s98
      %p112 = scmp.eq.s32.totalorder %s15, 4
      %p113 = por %p111, %p112
      %p115 = scmp.ne.s32.totalorder %s98, %s114
      %p116 = scmp.eq.s32.totalorder %s15, 0
      %p117 = por %p115, %p116
      %s118 = ssub.s32 %s16, %s35
      %s119 = ssub.s32 %s17, %s31
      %s120 = sor.u32 %s118, %s119
      %p121 = scmp.eq.s32.totalorder %s120, 0
      %s123 = sadd.s32 %s122, 1
      %s124 = scalar_select %p121, %s122, %s123
      %p127 = pneg %p121
      %p128 = scmp.eq.s32.totalorder %s9, 4
      %p129 = por %p127, %p128
      %p130 = scmp.ne.s32.totalorder %s122, %s125
      %p131 = scmp.eq.s32.totalorder %s9, 0
      %p132 = por %p130, %p131
      %p133 = scmp.ne.s32.totalorder %s122, %s125
      %p134 = scmp.eq.s32.totalorder %s14, 4
      %p135 = por %p133, %p134
      %p136 = scmp.ne.s32.totalorder %s125, %s126
      %p137 = scmp.eq.s32.totalorder %s14, 0
      %p138 = por %p136, %p137
      %p139 = scmp.ne.s32.totalorder %s125, %s126
      %p140 = scmp.eq.s32.totalorder %s15, 4
      %p141 = por %p139, %p140
      %p143 = scmp.ne.s32.totalorder %s126, %s142
      %p144 = scmp.eq.s32.totalorder %s15, 0
      %p145 = por %p143, %p144
      %p146 = scmp.le.s32.totalorder 1, %s9
      %p147 = scmp.lt.s32.totalorder %s9, 6
      %p148 = pnand %p146, %p147
      %p149 = pneg %p148
      // Predicated region
      $region9: #{generator_forward.57} parent=5 // pred_check
        _
      $region10: #{generator_forward.57} parent=5 // pred_check_branch
        %151 = sbr.rel (%p148) target = $region12
      $region11: #{generator_forward.57} parent=5 // pred_region
        %s152 = ssub.s32 %s9, 1
        // Predicated region
        $region13: #{generator_forward.57} parent=11 // pred_check
          %p153 = pneg %p110
        $region14: #{generator_forward.57} parent=11 // pred_check_branch
          %155 = sbr.rel (%p153) target = $region16
        $region15: #{generator_forward.57} parent=11 // pred_region
          %s156 = smul.u32 2, %s20
          %p157 = scmp.lt.s32.totalorder %s156, 1
          %s158 = scalar_select %p157, %s156, 1
          %s159 = scalar_lea.vmem %s2, %s158
          %s160 = smul.u32 2, %s20
        $region16: #{generator_forward.57} parent=11 // pred_fallthru
          _
      $region12: #{generator_forward.57} parent=5 // pred_fallthru
        _
      %p161 = scmp.lt.s32.totalorder %s9, 5
      // Predicated region
      $region17: #{generator_forward.57} parent=5 // pred_check
        %p162 = pneg %p161
      $region18: #{generator_forward.57} parent=5 // pred_check_branch
        %164 = sbr.rel (%p162) target = $region20
      $region19: #{generator_forward.57} parent=5 // pred_region
        // Predicated region
        $region21: #{generator_forward.57} parent=19 // pred_check
          %p165 = pneg %p50
        $region22: #{generator_forward.57} parent=19 // pred_check_branch
          %167 = sbr.rel (%p165) target = $region24
        $region23: #{generator_forward.57} parent=19 // pred_region
          %s168 = sand.u32 %s40, 1
          %s169 = sand.u32 %s40, 1
          %s170 = smul.addr %s169, 32
          %s171 = scalar_lea.vmem [#allocation3], %s170
          %s172 = smul.u32 4, %s16
          %s173 = smul.u32 2, %s18
          %s174 = smul.addr %s172, 10
          %s175 = sadd.s32 %s173, %s174
          %s176 = smul.addr %s175, 4
          %s177 = scalar_lea.vmem %s0, %s176
          // Predicated region
          $region25: #{generator_forward.57} parent=23 // pred_check
            _
          $region26: #{generator_forward.57} parent=23 // pred_check_branch
            %179 = sbr.rel (0) target = $region28
          $region27: #{generator_forward.57} parent=23 // pred_region
            // Predicated region
            $region29: #{generator_forward.57} parent=27 // pred_check
              _
            $region30: #{generator_forward.57} parent=27 // pred_check_branch
              %181 = sbr.rel (0) target = $region32
            $region31: #{generator_forward.57} parent=27 // pred_region
              // Predicated region
              $region44: #{generator_forward.57} parent=31 // pred_check
                _
              $region45: #{generator_forward.57} parent=31 // pred_check_branch
                %203 = sbr.rel (0) target = $region47
              $region46: #{generator_forward.57} parent=31 // pred_region
                loop: start=0, step=1, limit=1
                $region48: #{generator_forward.57} parent=46 // loop_pre_header
                  _
                $region49: #{generator_forward.57} parent=46 // loop_header
                  %s205 = sphi 0, %s209
                  %p206 = scmp.ge.s32.totalorder %s205, 1
                  %s210 = sphi %s177, %s177
                  %s211 = sphi %s171, %s171
                $region50: #{generator_forward.57} parent=46 // loop_header_branch
                  %208 = sbr.rel (%p206) target = $region54
                $region51: #{generator_forward.57} parent=46 // loop_body
                  %v212 = vld [vmem:[%s210] sm:$0xff]
                  %213 = vst [vmem:[%s211] sm:$0xff] %v212
                  %v214 = vld [vmem:[%s210 + $0x28] sm:$0xff]
                  %215 = vst [vmem:[%s211 + $0x8] sm:$0xff] %v214
                  %v216 = vld [vmem:[%s210 + $0x50] sm:$0xff]
                  %217 = vst [vmem:[%s211 + $0x10] sm:$0xff] %v216
                  %v218 = vld [vmem:[%s210 + $0x78] sm:$0xff]
                  %219 = vst [vmem:[%s211 + $0x18] sm:$0xff] %v218
                $region52: #{generator_forward.57} parent=46 // loop_footer
                  %s209 = sadd.s32 1, %s205
                $region53: #{generator_forward.57} parent=46 // loop_footer_branch
                  %204 = sbr.rel target = $region49
                $region54: #{generator_forward.57} parent=46 // loop_exit
                  _
              $region47: #{generator_forward.57} parent=31 // pred_fallthru
                _
              // Predicated region
              $region55: #{generator_forward.57} parent=31 // pred_check
                _
              $region56: #{generator_forward.57} parent=31 // pred_check_branch
                %221 = sbr.rel target = $region58
              $region57: #{generator_forward.57} parent=31 // pred_region
                _
              $region58: #{generator_forward.57} parent=31 // pred_fallthru
                _
            $region32: #{generator_forward.57} parent=27 // pred_fallthru
              _
            // Predicated region
            $region33: #{generator_forward.57} parent=27 // pred_check
              _
            $region34: #{generator_forward.57} parent=27 // pred_check_branch
              %183 = sbr.rel target = $region36
            $region35: #{generator_forward.57} parent=27 // pred_region
              %s185 = ssub.s32 256, 1
              loop: start=0, step=1, limit=1
              $region37: #{generator_forward.57} parent=35 // loop_pre_header
                _
              $region38: #{generator_forward.57} parent=35 // loop_header
                %s187 = sphi 0, %s191
                %p188 = scmp.ge.s32.totalorder %s187, 1
                %s192 = sphi %s177, %s177
                %s193 = sphi %s171, %s171
              $region39: #{generator_forward.57} parent=35 // loop_header_branch
                %190 = sbr.rel (%p188) target = $region43
              $region40: #{generator_forward.57} parent=35 // loop_body
                %v194 = vld [vmem:[%s192] sm:%s185]
                %195 = vst [vmem:[%s193] sm:%s185] %v194
                %v196 = vld [vmem:[%s192 + $0x28] sm:%s185]
                %197 = vst [vmem:[%s193 + $0x8] sm:%s185] %v196
                %v198 = vld [vmem:[%s192 + $0x50] sm:%s185]
                %199 = vst [vmem:[%s193 + $0x10] sm:%s185] %v198
                %v200 = vld [vmem:[%s192 + $0x78] sm:%s185]
                %201 = vst [vmem:[%s193 + $0x18] sm:%s185] %v200
              $region41: #{generator_forward.57} parent=35 // loop_footer
                %s191 = sadd.s32 1, %s187
              $region42: #{generator_forward.57} parent=35 // loop_footer_branch
                %186 = sbr.rel target = $region38
              $region43: #{generator_forward.57} parent=35 // loop_exit
                _
            $region36: #{generator_forward.57} parent=27 // pred_fallthru
              _
          $region28: #{generator_forward.57} parent=23 // pred_fallthru
            _
          %222 = vnop
        $region24: #{generator_forward.57} parent=19 // pred_fallthru
          _
        // Predicated region
        $region59: #{generator_forward.57} parent=19 // pred_check
          %p223 = pneg %p78
        $region60: #{generator_forward.57} parent=19 // pred_check_branch
          %225 = sbr.rel (%p223) target = $region62
        $region61: #{generator_forward.57} parent=19 // pred_region
          %s226 = smul.u32 32, %s18
          %s227 = smul.u32 2, %s17
          %p228 = scmp.lt.s32.totalorder %s226, 159
          %s229 = scalar_select %p228, %s226, 159
          %p230 = scmp.lt.s32.totalorder %s227, 1
          %s231 = scalar_select %p230, %s227, 1
          %s232 = smul.addr %s229, 2
          %s233 = sadd.s32 %s231, %s232
          %s234 = smul.addr %s233, 4
          %s235 = scalar_lea.vmem %s1, %s234
          %s236 = smul.u32 32, %s18
          %s237 = smul.u32 2, %s17
        $region62: #{generator_forward.57} parent=19 // pred_fallthru
          _
      $region20: #{generator_forward.57} parent=5 // pred_fallthru
        _
      %p238 = scmp.le.s32.totalorder 1, %s9
      %p239 = scmp.lt.s32.totalorder %s9, 6
      %p240 = pnand %p238, %p239
      %p241 = pneg %p240
      // Predicated region
      $region63: #{generator_forward.57} parent=5 // pred_check
        _
      $region64: #{generator_forward.57} parent=5 // pred_check_branch
        %243 = sbr.rel (%p240) target = $region66
      $region65: #{generator_forward.57} parent=5 // pred_region
        %s244 = ssub.s32 %s9, 1
        %s245 = sand.u32 %s43, 1
        %s246 = sand.u32 %s43, 1
        %s247 = smul.addr %s246, 32
        %s248 = scalar_lea.vmem [#allocation3], %s247
        // Predicated region
        $region67: #{generator_forward.57} parent=65 // pred_check
          %p249 = pneg %p56
        $region68: #{generator_forward.57} parent=65 // pred_check_branch
          %251 = sbr.rel (%p249) target = $region70
        $region69: #{generator_forward.57} parent=65 // pred_region
          _
        $region70: #{generator_forward.57} parent=65 // pred_fallthru
          _
        %s252 = sand.u32 %s43, 1
        %s253 = sand.u32 %s43, 1
        %s254 = smul.addr %s253, 32
        %s255 = scalar_lea.vmem [#allocation3], %s254
        %p256 = pneg %p56
        %p257 = pneg %p53
        %s258 = smul.u32 32, %s21
        %s259 = smul.u32 2, %s20
        %p260 = scmp.lt.s32.totalorder %s258, 159
        %s261 = scalar_select %p260, %s258, 159
        %p262 = scmp.lt.s32.totalorder %s259, 1
        %s263 = scalar_select %p262, %s259, 1
        %s264 = smul.addr %s261, 2
        %s265 = sadd.s32 %s263, %s264
        %s266 = smul.addr %s265, 4
        %s267 = scalar_lea.vmem %s1, %s266
        %p268 = pneg %p84
        %p269 = pneg %p81
        %s270 = smul.u32 2, %s20
        %p271 = scmp.lt.s32.totalorder %s270, 1
        %s272 = scalar_select %p271, %s270, 1
        %s273 = scalar_lea.vmem %s2, %s272
        %p274 = pneg %p110
        %p275 = pneg %p107
        %p276 = pneg %p138
        %p277 = pneg %p135
        %s278 = smul.u32 4, %s19
        %s279 = smul.u32 2, %s20
        %p280 = scmp.lt.s32.totalorder %s278, 3
        %s281 = scalar_select %p280, %s278, 3
        %p282 = scmp.lt.s32.totalorder %s279, 1
        %s283 = scalar_select %p282, %s279, 1
        %s284 = smul.addr %s281, 2
        %s285 = sadd.s32 %s283, %s284
        %s286 = smul.addr %s285, 4
        %s287 = scalar_lea.vmem %s3, %s286
        %s288 = smul.u32 4, %s19
        %s289 = smul.u32 2, %s21
        %s290 = smul.u32 32, %s21
        %s291 = smul.u32 2, %s20
        %p292 = scmp.lt.s32.totalorder %s290, 159
        %s293 = scalar_select %p292, %s290, 159
        %p294 = scmp.lt.s32.totalorder %s291, 1
        %s295 = scalar_select %p294, %s291, 1
        %s296 = smul.addr %s293, 2
        %s297 = sadd.s32 %s295, %s296
        %s298 = smul.addr %s297, 4
        %s299 = scalar_lea.vmem %s1, %s298
        %s300 = smul.u32 32, %s21
        %s301 = smul.u32 2, %s20
        %s302 = smul.u32 2, %s20
        %p303 = scmp.lt.s32.totalorder %s302, 1
        %s304 = scalar_select %p303, %s302, 1
        %s305 = scalar_lea.vmem %s2, %s304
        %s306 = smul.u32 2, %s20
        %s307 = smul.u32 4, %s19
        %s308 = smul.u32 2, %s20
        %p309 = scmp.lt.s32.totalorder %s307, 3
        %s310 = scalar_select %p309, %s307, 3
        %p311 = scmp.lt.s32.totalorder %s308, 1
        %s312 = scalar_select %p311, %s308, 1
        %s313 = smul.addr %s310, 2
        %s314 = sadd.s32 %s312, %s313
        %s315 = smul.addr %s314, 4
        %s316 = scalar_lea.vmem %s3, %s315
        %s317 = smul.u32 4, %s19
        %s318 = smul.u32 2, %s20
        %p319 = scmp.eq.s32.totalorder %s21, 0
        // Predicated region
        $region71: #{generator_forward.57} parent=65 // pred_check
          %p320 = pneg %p319
        $region72: #{generator_forward.57} parent=65 // pred_check_branch
          %322 = sbr.rel (%p320) target = $region74
        $region73: #{generator_forward.57} parent=65 // pred_region
          %323 = vst [vmem:[#allocation2] sm:$0xff] 0.0
          %324 = vst [vmem:[#allocation2 + $0x8] sm:$0xff] 0.0
          %325 = vst [vmem:[#allocation2 + $0x10] sm:$0xff] 0.0
          %326 = vst [vmem:[#allocation2 + $0x18] sm:$0xff] 0.0
          %327 = vst [vmem:[#allocation2 + $0x20] sm:$0xff] 0.0
          %328 = vst [vmem:[#allocation2 + $0x28] sm:$0xff] 0.0
          %329 = vst [vmem:[#allocation2 + $0x30] sm:$0xff] 0.0
          %330 = vst [vmem:[#allocation2 + $0x38] sm:$0xff] 0.0
        $region74: #{generator_forward.57} parent=65 // pred_fallthru
          _
        %v331 = vld [vmem:[#allocation2] sm:$0xff]
        %v332 = vld [vmem:[#allocation2 + $0x8] sm:$0xff]
        %v333 = vld [vmem:[#allocation2 + $0x10] sm:$0xff]
        %v334 = vld [vmem:[#allocation2 + $0x18] sm:$0xff]
        %v335 = vld [vmem:[#allocation2 + $0x20] sm:$0xff]
        %v336 = vld [vmem:[#allocation2 + $0x28] sm:$0xff]
        %v337 = vld [vmem:[#allocation2 + $0x30] sm:$0xff]
        %v338 = vld [vmem:[#allocation2 + $0x38] sm:$0xff]
        %v339 = vld [vmem:[%s248] sm:$0xff]
        %v340 = vld [vmem:[%s248 + $0x8] sm:$0xff]
        %v341 = vld [vmem:[%s248 + $0x10] sm:$0xff]
        %v342 = vld [vmem:[%s248 + $0x18] sm:$0xff]
        %v343 = vld [vmem:[%s299] sm:$0xff]
        %v344 = vld [vmem:[%s299 + $0x8] sm:$0xff]
        %v345 = vld [vmem:[%s299 + $0x10] sm:$0xff]
        %v346 = vld [vmem:[%s299 + $0x18] sm:$0xff]
        %v347 = vld [vmem:[%s299 + $0x20] sm:$0xff]
        %v348 = vld [vmem:[%s299 + $0x28] sm:$0xff]
        %v349 = vld [vmem:[%s299 + $0x30] sm:$0xff]
        %v350 = vld [vmem:[%s299 + $0x38] sm:$0xff]
        %v351 = vld [vmem:[%s299 + $0x40] sm:$0xff]
        %v352 = vld [vmem:[%s299 + $0x48] sm:$0xff]
        %v353 = vld [vmem:[%s299 + $0x50] sm:$0xff]
        %v354 = vld [vmem:[%s299 + $0x58] sm:$0xff]
        %v355 = vld [vmem:[%s299 + $0x60] sm:$0xff]
        %v356 = vld [vmem:[%s299 + $0x68] sm:$0xff]
        %v357 = vld [vmem:[%s299 + $0x70] sm:$0xff]
        %v358 = vld [vmem:[%s299 + $0x78] sm:$0xff]
        %v359 = vld [vmem:[%s299 + $0x80] sm:$0xff]
        %v360 = vld [vmem:[%s299 + $0x88] sm:$0xff]
        %v361 = vld [vmem:[%s299 + $0x90] sm:$0xff]
        %v362 = vld [vmem:[%s299 + $0x98] sm:$0xff]
        %v363 = vld [vmem:[%s299 + $0xa0] sm:$0xff]
        %v364 = vld [vmem:[%s299 + $0xa8] sm:$0xff]
        %v365 = vld [vmem:[%s299 + $0xb0] sm:$0xff]
        %v366 = vld [vmem:[%s299 + $0xb8] sm:$0xff]
        %v367 = vld [vmem:[%s299 + $0xc0] sm:$0xff]
        %v368 = vld [vmem:[%s299 + $0xc8] sm:$0xff]
        %v369 = vld [vmem:[%s299 + $0xd0] sm:$0xff]
        %v370 = vld [vmem:[%s299 + $0xd8] sm:$0xff]
        %v371 = vld [vmem:[%s299 + $0xe0] sm:$0xff]
        %v372 = vld [vmem:[%s299 + $0xe8] sm:$0xff]
        %v373 = vld [vmem:[%s299 + $0xf0] sm:$0xff]
        %v374 = vld [vmem:[%s299 + $0xf8] sm:$0xff]
        %v379 = vunpack.c.l.b16 %v339
        %v380 = vunpack.c.h.b16 %v339
        %v381 = vunpack.c.l.b16 %v340
        %v382 = vunpack.c.h.b16 %v340
        %v383 = vunpack.c.l.b16 %v341
        %v384 = vunpack.c.h.b16 %v341
        %v385 = vunpack.c.l.b16 %v342
        %v386 = vunpack.c.h.b16 %v342
        %v387 = vpack.c.b16 %v381, %v379
        %v388 = vpack.c.b16 %v382, %v380
        %v389 = vpack.c.b16 %v385, %v383
        %v390 = vpack.c.b16 %v386, %v384
        %v427 = vunpack.c.l.b16 %v343
        %v428 = vunpack.c.h.b16 %v343
        %v429 = vunpack.c.l.b16 %v344
        %v430 = vunpack.c.h.b16 %v344
        %v431 = vunpack.c.l.b16 %v345
        %v432 = vunpack.c.h.b16 %v345
        %v433 = vunpack.c.l.b16 %v346
        %v434 = vunpack.c.h.b16 %v346
        %v435 = vunpack.c.l.b16 %v347
        %v436 = vunpack.c.h.b16 %v347
        %v437 = vunpack.c.l.b16 %v348
        %v438 = vunpack.c.h.b16 %v348
        %v439 = vunpack.c.l.b16 %v349
        %v440 = vunpack.c.h.b16 %v349
        %v441 = vunpack.c.l.b16 %v350
        %v442 = vunpack.c.h.b16 %v350
        %v443 = vunpack.c.l.b16 %v351
        %v444 = vunpack.c.h.b16 %v351
        %v445 = vunpack.c.l.b16 %v352
        %v446 = vunpack.c.h.b16 %v352
        %v447 = vunpack.c.l.b16 %v353
        %v448 = vunpack.c.h.b16 %v353
        %v449 = vunpack.c.l.b16 %v354
        %v450 = vunpack.c.h.b16 %v354
        %v451 = vunpack.c.l.b16 %v355
        %v452 = vunpack.c.h.b16 %v355
        %v453 = vunpack.c.l.b16 %v356
        %v454 = vunpack.c.h.b16 %v356
        %v455 = vunpack.c.l.b16 %v357
        %v456 = vunpack.c.h.b16 %v357
        %v457 = vunpack.c.l.b16 %v358
        %v458 = vunpack.c.h.b16 %v358
        %v459 = vunpack.c.l.b16 %v359
        %v460 = vunpack.c.h.b16 %v359
        %v461 = vunpack.c.l.b16 %v360
        %v462 = vunpack.c.h.b16 %v360
        %v463 = vunpack.c.l.b16 %v361
        %v464 = vunpack.c.h.b16 %v361
        %v465 = vunpack.c.l.b16 %v362
        %v466 = vunpack.c.h.b16 %v362
        %v467 = vunpack.c.l.b16 %v363
        %v468 = vunpack.c.h.b16 %v363
        %v469 = vunpack.c.l.b16 %v364
        %v470 = vunpack.c.h.b16 %v364
        %v471 = vunpack.c.l.b16 %v365
        %v472 = vunpack.c.h.b16 %v365
        %v473 = vunpack.c.l.b16 %v366
        %v474 = vunpack.c.h.b16 %v366
        %v475 = vunpack.c.l.b16 %v367
        %v476 = vunpack.c.h.b16 %v367
        %v477 = vunpack.c.l.b16 %v368
        %v478 = vunpack.c.h.b16 %v368
        %v479 = vunpack.c.l.b16 %v369
        %v480 = vunpack.c.h.b16 %v369
        %v481 = vunpack.c.l.b16 %v370
        %v482 = vunpack.c.h.b16 %v370
        %v483 = vunpack.c.l.b16 %v371
        %v484 = vunpack.c.h.b16 %v371
        %v485 = vunpack.c.l.b16 %v372
        %v486 = vunpack.c.h.b16 %v372
        %v487 = vunpack.c.l.b16 %v373
        %v488 = vunpack.c.h.b16 %v373
        %v489 = vunpack.c.l.b16 %v374
        %v490 = vunpack.c.h.b16 %v374
        %v491 = vpack.c.b16 %v429, %v427
        %v492 = vpack.c.b16 %v430, %v428
        %v493 = vpack.c.b16 %v433, %v431
        %v494 = vpack.c.b16 %v434, %v432
        %v495 = vpack.c.b16 %v437, %v435
        %v496 = vpack.c.b16 %v438, %v436
        %v497 = vpack.c.b16 %v441, %v439
        %v498 = vpack.c.b16 %v442, %v440
        %v499 = vpack.c.b16 %v445, %v443
        %v500 = vpack.c.b16 %v446, %v444
        %v501 = vpack.c.b16 %v449, %v447
        %v502 = vpack.c.b16 %v450, %v448
        %v503 = vpack.c.b16 %v453, %v451
        %v504 = vpack.c.b16 %v454, %v452
        %v505 = vpack.c.b16 %v457, %v455
        %v506 = vpack.c.b16 %v458, %v456
        %v507 = vpack.c.b16 %v461, %v459
        %v508 = vpack.c.b16 %v462, %v460
        %v509 = vpack.c.b16 %v465, %v463
        %v510 = vpack.c.b16 %v466, %v464
        %v511 = vpack.c.b16 %v469, %v467
        %v512 = vpack.c.b16 %v470, %v468
        %v513 = vpack.c.b16 %v473, %v471
        %v514 = vpack.c.b16 %v474, %v472
        %v515 = vpack.c.b16 %v477, %v475
        %v516 = vpack.c.b16 %v478, %v476
        %v517 = vpack.c.b16 %v481, %v479
        %v518 = vpack.c.b16 %v482, %v480
        %v519 = vpack.c.b16 %v485, %v483
        %v520 = vpack.c.b16 %v486, %v484
        %v521 = vpack.c.b16 %v489, %v487
        %v522 = vpack.c.b16 %v490, %v488
        %555 = vmatprep.subr.bf16.mxu0 %v506
        %556 = vmatpush1.bf16.msra.mxu0 %v505
        %557 = vmatprep.subr.bf16.mxu0 %v504
        %558 = vmatpush1.bf16.msra.mxu0 %v503
        %559 = vmatprep.subr.bf16.mxu0 %v502
        %560 = vmatpush1.bf16.msra.mxu0 %v501
        %561 = vmatprep.subr.bf16.mxu0 %v500
        %562 = vmatpush1.bf16.msra.mxu0 %v499
        %563 = vmatprep.subr.bf16.mxu0 %v498
        %564 = vmatpush1.bf16.msra.mxu0 %v497
        %565 = vmatprep.subr.bf16.mxu0 %v496
        %566 = vmatpush1.bf16.msra.mxu0 %v495
        %567 = vmatprep.subr.bf16.mxu0 %v494
        %568 = vmatpush1.bf16.msra.mxu0 %v493
        %569 = vmatprep.subr.bf16.mxu0 %v492
        %570 = vmatpush1.bf16.msra.mxu0 %v491
        %571 = vmatprep.subr.bf16.mxu0 %v522
        %572 = vmatpush2.bf16.msra.mxu0 %v521
        %573 = vmatprep.subr.bf16.mxu0 %v520
        %574 = vmatpush2.bf16.msra.mxu0 %v519
        %575 = vmatprep.subr.bf16.mxu0 %v518
        %576 = vmatpush2.bf16.msra.mxu0 %v517
        %577 = vmatprep.subr.bf16.mxu0 %v516
        %578 = vmatpush2.bf16.msra.mxu0 %v515
        %579 = vmatprep.subr.bf16.mxu0 %v514
        %580 = vmatpush2.bf16.msra.mxu0 %v513
        %581 = vmatprep.subr.bf16.mxu0 %v512
        %582 = vmatpush2.bf16.msra.mxu0 %v511
        %583 = vmatprep.subr.bf16.mxu0 %v510
        %584 = vmatpush2.bf16.msra.mxu0 %v509
        %585 = vmatprep.subr.bf16.mxu0 %v508
        %586 = vmatpush2.bf16.msra.mxu0 %v507
        %587 = vmatprep.mubr.bf16.mxu0 %v388
        %588 = vmatmul.mubr.bf16.gmra.mxu0 %v387
        %v589 = vpop.f32.mrf.mxu0
        %v590 = vadd.f32 0.0, %v589
        %v591 = vpop.f32.mrf.mxu0
        %v592 = vadd.f32 0.0, %v591
        %v593 = vpop.f32.mrf.mxu0
        %v594 = vadd.f32 0.0, %v593
        %v595 = vpop.f32.mrf.mxu0
        %v596 = vadd.f32 0.0, %v595
        %597 = vmatprep.mubr.bf16.mxu0 %v390
        %598 = vmatmul.mubr.bf16.gmra.mxu0 %v389
        %v599 = vpop.f32.mrf.mxu0
        %v600 = vadd.f32 0.0, %v599
        %v601 = vpop.f32.mrf.mxu0
        %v602 = vadd.f32 0.0, %v601
        %v603 = vpop.f32.mrf.mxu0
        %v604 = vadd.f32 0.0, %v603
        %v605 = vpop.f32.mrf.mxu0
        %v606 = vadd.f32 0.0, %v605
        %607 = vdwg.mxu0
        %v608 = vadd.f32 %v331, %v590
        %v609 = vadd.f32 %v332, %v592
        %v610 = vadd.f32 %v333, %v594
        %v611 = vadd.f32 %v334, %v596
        %v612 = vadd.f32 %v335, %v600
        %v613 = vadd.f32 %v336, %v602
        %v614 = vadd.f32 %v337, %v604
        %v615 = vadd.f32 %v338, %v606
        %616 = vst [vmem:[#allocation2] sm:$0xff] %v608
        %617 = vst [vmem:[#allocation2 + $0x8] sm:$0xff] %v609
        %618 = vst [vmem:[#allocation2 + $0x10] sm:$0xff] %v610
        %619 = vst [vmem:[#allocation2 + $0x18] sm:$0xff] %v611
        %620 = vst [vmem:[#allocation2 + $0x20] sm:$0xff] %v612
        %621 = vst [vmem:[#allocation2 + $0x28] sm:$0xff] %v613
        %622 = vst [vmem:[#allocation2 + $0x30] sm:$0xff] %v614
        %623 = vst [vmem:[#allocation2 + $0x38] sm:$0xff] %v615
        %p624 = scmp.eq.s32.totalorder %s21, 4
        // Predicated region
        $region75: #{generator_forward.57} parent=65 // pred_check
          %p625 = pneg %p624
        $region76: #{generator_forward.57} parent=65 // pred_check_branch
          %627 = sbr.rel (%p625) target = $region78
        $region77: #{generator_forward.57} parent=65 // pred_region
          %v628 = vld [vmem:[#allocation2] sm:$0xff]
          %v629 = vld [vmem:[#allocation2 + $0x8] sm:$0xff]
          %v630 = vld [vmem:[#allocation2 + $0x10] sm:$0xff]
          %v631 = vld [vmem:[#allocation2 + $0x18] sm:$0xff]
          %v632 = vld [vmem:[#allocation2 + $0x20] sm:$0xff]
          %v633 = vld [vmem:[#allocation2 + $0x28] sm:$0xff]
          %v634 = vld [vmem:[#allocation2 + $0x30] sm:$0xff]
          %v635 = vld [vmem:[#allocation2 + $0x38] sm:$0xff]
          %v636 = vld [vmem:[%s305] sm:$0x3]
          %v638 = vlaneseq
          %v639 = vshrl.u32 %v638, 7
          %v640 = vsub.s32 0, %v639
          %v641 = vrot.slane %v636, %v640
          %v642 = vlaneseq
          %v643 = vshrl.u32 %v642, 7
          %v644 = vsub.s32 1, %v643
          %v645 = vrot.slane %v636, %v644
          %v648 = vadd.f32 %v628, %v641
          %v649 = vadd.f32 %v629, %v645
          %v650 = vadd.f32 %v630, %v641
          %v651 = vadd.f32 %v631, %v645
          %v652 = vadd.f32 %v632, %v641
          %v653 = vadd.f32 %v633, %v645
          %v654 = vadd.f32 %v634, %v641
          %v655 = vadd.f32 %v635, %v645
          %v656 = vpack.c.bf16 %v650, %v648
          %v657 = vpack.c.bf16 %v651, %v649
          %v658 = vpack.c.bf16 %v654, %v652
          %v659 = vpack.c.bf16 %v655, %v653
          %v664 = vunpack.c.l.b16 %v656
          %v665 = vunpack.c.l.b16 %v657
          %v666 = vunpack.c.h.b16 %v656
          %v667 = vunpack.c.h.b16 %v657
          %v668 = vunpack.c.l.b16 %v658
          %v669 = vunpack.c.l.b16 %v659
          %v670 = vunpack.c.h.b16 %v658
          %v671 = vunpack.c.h.b16 %v659
          %v672 = vpack.c.b16 %v665, %v664
          %v673 = vpack.c.b16 %v667, %v666
          %v674 = vpack.c.b16 %v669, %v668
          %v675 = vpack.c.b16 %v671, %v670
          %680 = vst [vmem:[%s316] sm:$0xff] %v672
          %681 = vst [vmem:[%s316 + $0x8] sm:$0xff] %v673
          %682 = vst [vmem:[%s316 + $0x10] sm:$0xff] %v674
          %683 = vst [vmem:[%s316 + $0x18] sm:$0xff] %v675
        $region78: #{generator_forward.57} parent=65 // pred_fallthru
          _
        %s684 = smul.u32 4, %s19
        %s685 = smul.u32 2, %s20
        %p686 = scmp.lt.s32.totalorder %s684, 3
        %s687 = scalar_select %p686, %s684, 3
        %p688 = scmp.lt.s32.totalorder %s685, 1
        %s689 = scalar_select %p688, %s685, 1
        %s690 = smul.addr %s687, 2
        %s691 = sadd.s32 %s689, %s690
        %s692 = smul.addr %s691, 4
        %s693 = scalar_lea.vmem %s3, %s692
        // Predicated region
        $region79: #{generator_forward.57} parent=65 // pred_check
          %p694 = pneg %p135
        $region80: #{generator_forward.57} parent=65 // pred_check_branch
          %696 = sbr.rel (%p694) target = $region82
        $region81: #{generator_forward.57} parent=65 // pred_region
          %s697 = smul.u32 4, %s19
          %s698 = smul.u32 2, %s20
        $region82: #{generator_forward.57} parent=65 // pred_fallthru
          _
        // Predicated region
        $region83: #{generator_forward.57} parent=65 // pred_check
          %p699 = pneg %p135
        $region84: #{generator_forward.57} parent=65 // pred_check_branch
          %701 = sbr.rel (%p699) target = $region86
        $region85: #{generator_forward.57} parent=65 // pred_region
          %s702 = smul.u32 4, %s19
          %s703 = smul.u32 2, %s20
          %p704 = scmp.lt.s32.totalorder %s702, 3
          %s705 = scalar_select %p704, %s702, 3
          %p706 = scmp.lt.s32.totalorder %s703, 1
          %s707 = scalar_select %p706, %s703, 1
          %s708 = smul.addr %s705, 2
          %s709 = sadd.s32 %s707, %s708
          %s710 = smul.addr %s709, 4
          %s711 = scalar_lea.vmem %s3, %s710
        $region86: #{generator_forward.57} parent=65 // pred_fallthru
          _
      $region66: #{generator_forward.57} parent=5 // pred_fallthru
        _
      %p712 = scmp.le.s32.totalorder 2, %s9
      // Predicated region
      $region87: #{generator_forward.57} parent=5 // pred_check
        %p713 = pneg %p712
      $region88: #{generator_forward.57} parent=5 // pred_check_branch
        %715 = sbr.rel (%p713) target = $region90
      $region89: #{generator_forward.57} parent=5 // pred_region
        %s716 = ssub.s32 %s9, 2
      $region90: #{generator_forward.57} parent=5 // pred_fallthru
        _
    $region6: #{generator_forward.57} parent=1 // loop_footer
      %s13 = sadd.s32 1, %s9
    $region7: #{generator_forward.57} parent=1 // loop_footer_branch
      %8 = sbr.rel target = $region3
    $region8: #{generator_forward.57} parent=1 // loop_exit
      _

// kernel: generator_forward.58
$region0: #{generator_forward.58}
  #allocation0 [shape = 'u32[]', space=smem, size = 0x4, offset = 0x4, fixed_abs, tag = 'smem constant byte address 0x4 - core index']
  #allocation1 [shape = 'u32[144,128]{1,0:T(1,128)}', space=vmem, size = 0x12000, scoped, tag = 'internal scratch']
  %s0 = inlined_call_operand.vmem [shape: bf16[512,16], index: 0, kind: input, shape index: {}]
  %s1 = inlined_call_operand.vmem [shape: bf16[512,16], index: 1, kind: output, shape index: {}]
  %s2 = sld [smem:[#allocation0]]
  $region37: #{generator_forward.58} parent=0
    _
  %s4 = ssub.s32 1, %s2
  %s5 = scalar_select 0, %s4, %s2
  loop: start=0, step=1, limit=18
  $region2: #{generator_forward.58} parent=0 // loop_pre_header
    _
  $region3: #{generator_forward.58} parent=0 // loop_header
    %s7 = sphi 0, %s11
    %p8 = scmp.ge.s32.totalorder %s7, 18
    %s17 = sphi 0, %s19
    %s20 = sphi 0, %s17
    %s21 = sphi 0, %s20
    %s37 = sphi 0, %s21
    %s43 = sphi 0, %s45
    %s46 = sphi 0, %s43
    %s47 = sphi 0, %s46
    %s63 = sphi 0, %s47
  $region4: #{generator_forward.58} parent=0 // loop_header_branch
    %10 = sbr.rel (%p8) target = $region8
  $region5: #{generator_forward.58} parent=0 // loop_body
    %s12 = ssub.s32 %s7, 1
    %s13 = ssub.s32 %s7, 2
    %s14 = sadd.s32 %s7, 1
    %s15 = ssub.s32 %s7, %s14
    %p16 = scmp.eq.s32.totalorder %s15, 0
    %s18 = sadd.s32 %s17, 1
    %s19 = scalar_select %p16, %s17, %s18
    %p22 = pneg %p16
    %p23 = scmp.eq.s32.totalorder %s7, 15
    %p24 = por %p22, %p23
    %p25 = scmp.ne.s32.totalorder %s17, %s20
    %p26 = scmp.eq.s32.totalorder %s7, 0
    %p27 = por %p25, %p26
    %p28 = scmp.ne.s32.totalorder %s17, %s20
    %p29 = scmp.eq.s32.totalorder %s12, 15
    %p30 = por %p28, %p29
    %p31 = scmp.ne.s32.totalorder %s20, %s21
    %p32 = scmp.eq.s32.totalorder %s12, 0
    %p33 = por %p31, %p32
    %p34 = scmp.ne.s32.totalorder %s20, %s21
    %p35 = scmp.eq.s32.totalorder %s13, 15
    %p36 = por %p34, %p35
    %p38 = scmp.ne.s32.totalorder %s21, %s37
    %p39 = scmp.eq.s32.totalorder %s13, 0
    %p40 = por %p38, %p39
    %s41 = ssub.s32 %s7, %s14
    %p42 = scmp.eq.s32.totalorder %s41, 0
    %s44 = sadd.s32 %s43, 1
    %s45 = scalar_select %p42, %s43, %s44
    %p48 = pneg %p42
    %p49 = scmp.eq.s32.totalorder %s7, 15
    %p50 = por %p48, %p49
    %p51 = scmp.ne.s32.totalorder %s43, %s46
    %p52 = scmp.eq.s32.totalorder %s7, 0
    %p53 = por %p51, %p52
    %p54 = scmp.ne.s32.totalorder %s43, %s46
    %p55 = scmp.eq.s32.totalorder %s12, 15
    %p56 = por %p54, %p55
    %p57 = scmp.ne.s32.totalorder %s46, %s47
    %p58 = scmp.eq.s32.totalorder %s12, 0
    %p59 = por %p57, %p58
    %p60 = scmp.ne.s32.totalorder %s46, %s47
    %p61 = scmp.eq.s32.totalorder %s13, 15
    %p62 = por %p60, %p61
    %p64 = scmp.ne.s32.totalorder %s47, %s63
    %p65 = scmp.eq.s32.totalorder %s13, 0
    %p66 = por %p64, %p65
    %p67 = scmp.le.s32.totalorder 1, %s7
    %p68 = scmp.lt.s32.totalorder %s7, 17
    %p69 = pnand %p67, %p68
    %p70 = pneg %p69
    // Predicated region
    $region9: #{generator_forward.58} parent=5 // pred_check
      _
    $region10: #{generator_forward.58} parent=5 // pred_check_branch
      %72 = sbr.rel (%p69) target = $region12
    $region11: #{generator_forward.58} parent=5 // pred_region
      %s73 = ssub.s32 %s7, 1
    $region12: #{generator_forward.58} parent=5 // pred_fallthru
      _
    %p74 = scmp.lt.s32.totalorder %s7, 16
    // Predicated region
    $region13: #{generator_forward.58} parent=5 // pred_check
      %p75 = pneg %p74
    $region14: #{generator_forward.58} parent=5 // pred_check_branch
      %77 = sbr.rel (%p75) target = $region16
    $region15: #{generator_forward.58} parent=5 // pred_region
      // Predicated region
      $region17: #{generator_forward.58} parent=15 // pred_check
        %p78 = pneg %p27
      $region18: #{generator_forward.58} parent=15 // pred_check_branch
        %80 = sbr.rel (%p78) target = $region20
      $region19: #{generator_forward.58} parent=15 // pred_region
        %s81 = smul.u32 4, %s7
        %p82 = scmp.lt.s32.totalorder %s81, 63
        %s83 = scalar_select %p82, %s81, 63
        %s84 = smul.addr %s83, 4
        %s85 = scalar_lea.vmem %s0, %s84
        %s86 = smul.u32 4, %s7
      $region20: #{generator_forward.58} parent=15 // pred_fallthru
        _
    $region16: #{generator_forward.58} parent=5 // pred_fallthru
      _
    %p87 = scmp.le.s32.totalorder 1, %s7
    %p88 = scmp.lt.s32.totalorder %s7, 17
    %p89 = pnand %p87, %p88
    %p90 = pneg %p89
    // Predicated region
    $region21: #{generator_forward.58} parent=5 // pred_check
      _
    $region22: #{generator_forward.58} parent=5 // pred_check_branch
      %92 = sbr.rel (%p89) target = $region24
    $region23: #{generator_forward.58} parent=5 // pred_region
      %s93 = ssub.s32 %s7, 1
      %s94 = smul.u32 4, %s12
      %p95 = scmp.lt.s32.totalorder %s94, 63
      %s96 = scalar_select %p95, %s94, 63
      %s97 = smul.addr %s96, 4
      %s98 = scalar_lea.vmem %s0, %s97
      %p99 = pneg %p33
      %p100 = pneg %p30
      %p101 = pneg %p59
      %p102 = pneg %p56
      %s103 = smul.u32 4, %s12
      %p104 = scmp.lt.s32.totalorder %s103, 63
      %s105 = scalar_select %p104, %s103, 63
      %s106 = smul.addr %s105, 4
      %s107 = scalar_lea.vmem %s1, %s106
      %s108 = smul.u32 4, %s12
      %p109 = scmp.lt.s32.totalorder %s108, 63
      %s110 = scalar_select %p109, %s108, 63
      %s111 = smul.addr %s110, 4
      %s112 = scalar_lea.vmem %s0, %s111
      %s113 = smul.u32 4, %s12
      %s114 = smul.u32 4, %s12
      %p115 = scmp.lt.s32.totalorder %s114, 63
      %s116 = scalar_select %p115, %s114, 63
      %s117 = smul.addr %s116, 4
      %s118 = scalar_lea.vmem %s1, %s117
      %s119 = smul.u32 4, %s12
      %v120 = vld [vmem:[%s112] sm:$0xf]
      %v121 = vld [vmem:[%s112 + $0x4] sm:$0xf]
      %v122 = vld [vmem:[%s112 + $0x8] sm:$0xf]
      %v123 = vld [vmem:[%s112 + $0xc] sm:$0xf]
      %v124 = vunpack.c.l.bf16 %v120
      %v125 = vunpack.c.l.bf16 %v121
      %v126 = vunpack.c.l.bf16 %v122
      %v127 = vunpack.c.l.bf16 %v123
      %vm128 = vcmask 130048
      %v129 = vsel %vm128, %v124, 0.0
      %130 = vadd.xlane.f32.xlu0 %v129
      %v131 = vpop.xlane.xlu0 %130
      %v132 = vsel %vm128, %v125, 0.0
      %133 = vadd.xlane.f32.xlu0 %v132
      %v134 = vpop.xlane.xlu0 %133
      %v135 = vsel %vm128, %v126, 0.0
      %136 = vadd.xlane.f32.xlu0 %v135
      %v137 = vpop.xlane.xlu0 %136
      %v138 = vsel %vm128, %v127, 0.0
      %139 = vadd.xlane.f32.xlu0 %v138
      %v140 = vpop.xlane.xlu0 %139
      %v141 = vrcp.pop 16.0
      %v142 = vmul.f32 %v131, %v141
      %v143 = vmul.f32 %v134, %v141
      %v144 = vmul.f32 %v137, %v141
      %v145 = vmul.f32 %v140, %v141
      %v146 = vsub.f32 %v124, %v142
      %v147 = vsub.f32 %v125, %v143
      %v148 = vsub.f32 %v126, %v144
      %v149 = vsub.f32 %v127, %v145
      %v150 = vmul.f32 %v146, %v146
      %v151 = vmul.f32 %v147, %v147
      %v152 = vmul.f32 %v148, %v148
      %v153 = vmul.f32 %v149, %v149
      %v154 = vsel %vm128, %v150, 0.0
      %155 = vadd.xlane.f32.xlu0 %v154
      %v156 = vpop.xlane.xlu0 %155
      %v157 = vsel %vm128, %v151, 0.0
      %158 = vadd.xlane.f32.xlu0 %v157
      %v159 = vpop.xlane.xlu0 %158
      %v160 = vsel %vm128, %v152, 0.0
      %161 = vadd.xlane.f32.xlu0 %v160
      %v162 = vpop.xlane.xlu0 %161
      %v163 = vsel %vm128, %v153, 0.0
      %164 = vadd.xlane.f32.xlu0 %v163
      %v165 = vpop.xlane.xlu0 %164
      %v166 = vmul.f32 %v156, %v141
      %v167 = vmul.f32 %v159, %v141
      %v168 = vmul.f32 %v162, %v141
      %v169 = vmul.f32 %v165, %v141
      %v170 = vadd.f32 %v166, 1e-05
      %v171 = vadd.f32 %v167, 1e-05
      %v172 = vadd.f32 %v168, 1e-05
      %v173 = vadd.f32 %v169, 1e-05
      %v174 = vrsqrt.pop %v170
      %v175 = vrsqrt.pop %v171
      %v176 = vrsqrt.pop %v172
      %v177 = vrsqrt.pop %v173
      %v178 = vmul.f32 %v146, %v174
      %v179 = vmul.f32 %v147, %v175
      %v180 = vmul.f32 %v148, %v176
      %v181 = vmul.f32 %v149, %v177
      %v182 = vmax.f32 %v178, 0.0
      %v183 = vmax.f32 %v179, 0.0
      %v184 = vmax.f32 %v180, 0.0
      %v185 = vmax.f32 %v181, 0.0
      %v186 = vpack.c.bf16 %v183, %v182
      %v187 = vpack.c.bf16 %v185, %v184
      %v190 = vunpack.c.l.b16 %v186
      %v191 = vunpack.c.h.b16 %v186
      %v192 = vunpack.c.l.b16 %v187
      %v193 = vunpack.c.h.b16 %v187
      %v194 = vpack.c.b16 %v190, %v190
      %v195 = vpack.c.b16 %v191, %v191
      %v196 = vpack.c.b16 %v192, %v192
      %v197 = vpack.c.b16 %v193, %v193
      %vm202 = vcmask 125952
      %203 = vst.msk [vmem:[%s118] sm:$0xf] %vm202, %v194
      %204 = vst.msk [vmem:[%s118 + $0x4] sm:$0xf] %vm202, %v195
      %205 = vst.msk [vmem:[%s118 + $0x8] sm:$0xf] %vm202, %v196
      %206 = vst.msk [vmem:[%s118 + $0xc] sm:$0xf] %vm202, %v197
      %s207 = smul.u32 4, %s12
      %p208 = scmp.lt.s32.totalorder %s207, 63
      %s209 = scalar_select %p208, %s207, 63
      %s210 = smul.addr %s209, 4
      %s211 = scalar_lea.vmem %s1, %s210
      // Predicated region
      $region25: #{generator_forward.58} parent=23 // pred_check
        %p212 = pneg %p56
      $region26: #{generator_forward.58} parent=23 // pred_check_branch
        %214 = sbr.rel (%p212) target = $region28
      $region27: #{generator_forward.58} parent=23 // pred_region
        %s215 = smul.u32 4, %s12
      $region28: #{generator_forward.58} parent=23 // pred_fallthru
        _
    $region24: #{generator_forward.58} parent=5 // pred_fallthru
      _
    %p216 = scmp.le.s32.totalorder 2, %s7
    // Predicated region
    $region29: #{generator_forward.58} parent=5 // pred_check
      %p217 = pneg %p216
    $region30: #{generator_forward.58} parent=5 // pred_check_branch
      %219 = sbr.rel (%p217) target = $region32
    $region31: #{generator_forward.58} parent=5 // pred_region
      %s220 = ssub.s32 %s7, 2
      // Predicated region
      $region33: #{generator_forward.58} parent=31 // pred_check
        %p221 = pneg %p62
      $region34: #{generator_forward.58} parent=31 // pred_check_branch
        %223 = sbr.rel (%p221) target = $region36
      $region35: #{generator_forward.58} parent=31 // pred_region
        %s224 = smul.u32 4, %s13
        %p225 = scmp.lt.s32.totalorder %s224, 63
        %s226 = scalar_select %p225, %s224, 63
        %s227 = smul.addr %s226, 4
        %s228 = scalar_lea.vmem %s1, %s227
      $region36: #{generator_forward.58} parent=31 // pred_fallthru
        _
    $region32: #{generator_forward.58} parent=5 // pred_fallthru
      _
  $region6: #{generator_forward.58} parent=0 // loop_footer
    %s11 = sadd.s32 1, %s7
  $region7: #{generator_forward.58} parent=0 // loop_footer_branch
    %6 = sbr.rel target = $region3
  $region8: #{generator_forward.58} parent=0 // loop_exit
    _

// kernel: generator_forward.59
$region0: #{generator_forward.59}
  #allocation0 [shape = 'u32[]', space=smem, size = 0x4, offset = 0x4, fixed_abs, tag = 'smem constant byte address 0x4 - core index']
  #allocation1 [shape = 'u32[144,128]{1,0:T(1,128)}', space=vmem, size = 0x12000, scoped, tag = 'internal scratch']
  #allocation2 [shape = 'f32[32,256]{1,0:T(8,128)}', space=vmem, size = 0x8000, scoped, tag = 'scratch operand']
  %s0 = inlined_call_operand.vmem [shape: bf16[32,2304], index: 0, kind: input, shape index: {}]
  %s1 = inlined_call_operand.vmem [shape: bf16[2304,256], index: 1, kind: input, shape index: {}]
  %s2 = inlined_call_operand.vmem [shape: f32[1,256], index: 2, kind: input, shape index: {}]
  %s3 = inlined_call_operand.vmem [shape: bf16[32,256], index: 3, kind: output, shape index: {}]
  %s4 = sld [smem:[#allocation0]]
  $region91: #{generator_forward.59} parent=0
    _
  %s6 = ssub.s32 1, %s4
  %s7 = scalar_select 0, %s6, %s4
  $region1: #{generator_forward.59} parent=0
    #allocation3 [shape = 'u8[32768]{0}', space=vmem, size = 0x8000, scoped, tag = 'input window, operand 0']
    loop: start=0, step=1, limit=11
    $region2: #{generator_forward.59} parent=1 // loop_pre_header
      _
    $region3: #{generator_forward.59} parent=1 // loop_header
      %s9 = sphi 0, %s13
      %p10 = scmp.ge.s32.totalorder %s9, 11
      %s16 = sphi 0, %s35
      %s17 = sphi 0, %s31
      %s18 = sphi 0, %s27
      %s19 = sphi 0, %s16
      %s20 = sphi 0, %s17
      %s21 = sphi 0, %s18
      %s22 = sphi 0, %s19
      %s23 = sphi 0, %s20
      %s24 = sphi 0, %s21
      %s40 = sphi 0, %s42
      %s43 = sphi 0, %s40
      %s44 = sphi 0, %s43
      %s60 = sphi 0, %s44
      %s68 = sphi 0, %s70
      %s71 = sphi 0, %s68
      %s72 = sphi 0, %s71
      %s88 = sphi 0, %s72
      %s94 = sphi 0, %s96
      %s97 = sphi 0, %s94
      %s98 = sphi 0, %s97
      %s114 = sphi 0, %s98
      %s122 = sphi 0, %s124
      %s125 = sphi 0, %s122
      %s126 = sphi 0, %s125
      %s142 = sphi 0, %s126
    $region4: #{generator_forward.59} parent=1 // loop_header_branch
      %12 = sbr.rel (%p10) target = $region8
    $region5: #{generator_forward.59} parent=1 // loop_body
      %s14 = ssub.s32 %s9, 1
      %s15 = ssub.s32 %s9, 2
      %s25 = sadd.s32 1, %s18
      %p26 = scmp.ge.s32.totalorder %s25, 9
      %s27 = scalar_select %p26, 0, %s25
      %s28 = sadd.s32 1, %s17
      %s29 = scalar_select %p26, %s28, %s17
      %p30 = scmp.ge.s32.totalorder %s29, 1
      %s31 = scalar_select %p30, 0, %s29
      %s32 = sadd.s32 1, %s16
      %s33 = scalar_select %p30, %s32, %s16
      %p34 = scmp.ge.s32.totalorder %s33, 1
      %s35 = scalar_select %p34, 0, %s33
      %s36 = ssub.s32 %s16, %s35
      %s37 = ssub.s32 %s18, %s27
      %s38 = sor.u32 %s36, %s37
      %p39 = scmp.eq.s32.totalorder %s38, 0
      %s41 = sadd.s32 %s40, 1
      %s42 = scalar_select %p39, %s40, %s41
      %p45 = pneg %p39
      %p46 = scmp.eq.s32.totalorder %s9, 8
      %p47 = por %p45, %p46
      %p48 = scmp.ne.s32.totalorder %s40, %s43
      %p49 = scmp.eq.s32.totalorder %s9, 0
      %p50 = por %p48, %p49
      %p51 = scmp.ne.s32.totalorder %s40, %s43
      %p52 = scmp.eq.s32.totalorder %s14, 8
      %p53 = por %p51, %p52
      %p54 = scmp.ne.s32.totalorder %s43, %s44
      %p55 = scmp.eq.s32.totalorder %s14, 0
      %p56 = por %p54, %p55
      %p57 = scmp.ne.s32.totalorder %s43, %s44
      %p58 = scmp.eq.s32.totalorder %s15, 8
      %p59 = por %p57, %p58
      %p61 = scmp.ne.s32.totalorder %s44, %s60
      %p62 = scmp.eq.s32.totalorder %s15, 0
      %p63 = por %p61, %p62
      %s64 = ssub.s32 %s18, %s27
      %s65 = ssub.s32 %s17, %s31
      %s66 = sor.u32 %s64, %s65
      %p67 = scmp.eq.s32.totalorder %s66, 0
      %s69 = sadd.s32 %s68, 1
      %s70 = scalar_select %p67, %s68, %s69
      %p73 = pneg %p67
      %p74 = scmp.eq.s32.totalorder %s9, 8
      %p75 = por %p73, %p74
      %p76 = scmp.ne.s32.totalorder %s68, %s71
      %p77 = scmp.eq.s32.totalorder %s9, 0
      %p78 = por %p76, %p77
      %p79 = scmp.ne.s32.totalorder %s68, %s71
      %p80 = scmp.eq.s32.totalorder %s14, 8
      %p81 = por %p79, %p80
      %p82 = scmp.ne.s32.totalorder %s71, %s72
      %p83 = scmp.eq.s32.totalorder %s14, 0
      %p84 = por %p82, %p83
      %p85 = scmp.ne.s32.totalorder %s71, %s72
      %p86 = scmp.eq.s32.totalorder %s15, 8
      %p87 = por %p85, %p86
      %p89 = scmp.ne.s32.totalorder %s72, %s88
      %p90 = scmp.eq.s32.totalorder %s15, 0
      %p91 = por %p89, %p90
      %s92 = ssub.s32 %s17, %s31
      %p93 = scmp.eq.s32.totalorder %s92, 0
      %s95 = sadd.s32 %s94, 1
      %s96 = scalar_select %p93, %s94, %s95
      %p99 = pneg %p93
      %p100 = scmp.eq.s32.totalorder %s9, 8
      %p101 = por %p99, %p100
      %p102 = scmp.ne.s32.totalorder %s94, %s97
      %p103 = scmp.eq.s32.totalorder %s9, 0
      %p104 = por %p102, %p103
      %p105 = scmp.ne.s32.totalorder %s94, %s97
      %p106 = scmp.eq.s32.totalorder %s14, 8
      %p107 = por %p105, %p106
      %p108 = scmp.ne.s32.totalorder %s97, %s98
      %p109 = scmp.eq.s32.totalorder %s14, 0
      %p110 = por %p108, %p109
      %p111 = scmp.ne.s32.totalorder %s97, %s98
      %p112 = scmp.eq.s32.totalorder %s15, 8
      %p113 = por %p111, %p112
      %p115 = scmp.ne.s32.totalorder %s98, %s114
      %p116 = scmp.eq.s32.totalorder %s15, 0
      %p117 = por %p115, %p116
      %s118 = ssub.s32 %s16, %s35
      %s119 = ssub.s32 %s17, %s31
      %s120 = sor.u32 %s118, %s119
      %p121 = scmp.eq.s32.totalorder %s120, 0
      %s123 = sadd.s32 %s122, 1
      %s124 = scalar_select %p121, %s122, %s123
      %p127 = pneg %p121
      %p128 = scmp.eq.s32.totalorder %s9, 8
      %p129 = por %p127, %p128
      %p130 = scmp.ne.s32.totalorder %s122, %s125
      %p131 = scmp.eq.s32.totalorder %s9, 0
      %p132 = por %p130, %p131
      %p133 = scmp.ne.s32.totalorder %s122, %s125
      %p134 = scmp.eq.s32.totalorder %s14, 8
      %p135 = por %p133, %p134
      %p136 = scmp.ne.s32.totalorder %s125, %s126
      %p137 = scmp.eq.s32.totalorder %s14, 0
      %p138 = por %p136, %p137
      %p139 = scmp.ne.s32.totalorder %s125, %s126
      %p140 = scmp.eq.s32.totalorder %s15, 8
      %p141 = por %p139, %p140
      %p143 = scmp.ne.s32.totalorder %s126, %s142
      %p144 = scmp.eq.s32.totalorder %s15, 0
      %p145 = por %p143, %p144
      %p146 = scmp.le.s32.totalorder 1, %s9
      %p147 = scmp.lt.s32.totalorder %s9, 10
      %p148 = pnand %p146, %p147
      %p149 = pneg %p148
      // Predicated region
      $region9: #{generator_forward.59} parent=5 // pred_check
        _
      $region10: #{generator_forward.59} parent=5 // pred_check_branch
        %151 = sbr.rel (%p148) target = $region12
      $region11: #{generator_forward.59} parent=5 // pred_region
        %s152 = ssub.s32 %s9, 1
        // Predicated region
        $region13: #{generator_forward.59} parent=11 // pred_check
          %p153 = pneg %p110
        $region14: #{generator_forward.59} parent=11 // pred_check_branch
          %155 = sbr.rel (%p153) target = $region16
        $region15: #{generator_forward.59} parent=11 // pred_region
          %s156 = smul.u32 2, %s20
          %p157 = scmp.lt.s32.totalorder %s156, 1
          %s158 = scalar_select %p157, %s156, 1
          %s159 = scalar_lea.vmem %s2, %s158
          %s160 = smul.u32 2, %s20
        $region16: #{generator_forward.59} parent=11 // pred_fallthru
          _
      $region12: #{generator_forward.59} parent=5 // pred_fallthru
        _
      %p161 = scmp.lt.s32.totalorder %s9, 9
      // Predicated region
      $region17: #{generator_forward.59} parent=5 // pred_check
        %p162 = pneg %p161
      $region18: #{generator_forward.59} parent=5 // pred_check_branch
        %164 = sbr.rel (%p162) target = $region20
      $region19: #{generator_forward.59} parent=5 // pred_region
        // Predicated region
        $region21: #{generator_forward.59} parent=19 // pred_check
          %p165 = pneg %p50
        $region22: #{generator_forward.59} parent=19 // pred_check_branch
          %167 = sbr.rel (%p165) target = $region24
        $region23: #{generator_forward.59} parent=19 // pred_region
          %s168 = sand.u32 %s40, 1
          %s169 = sand.u32 %s40, 1
          %s170 = smul.addr %s169, 32
          %s171 = scalar_lea.vmem [#allocation3], %s170
          %s172 = smul.u32 4, %s16
          %s173 = smul.u32 2, %s18
          %s174 = smul.addr %s172, 18
          %s175 = sadd.s32 %s173, %s174
          %s176 = smul.addr %s175, 4
          %s177 = scalar_lea.vmem %s0, %s176
          // Predicated region
          $region25: #{generator_forward.59} parent=23 // pred_check
            _
          $region26: #{generator_forward.59} parent=23 // pred_check_branch
            %179 = sbr.rel (0) target = $region28
          $region27: #{generator_forward.59} parent=23 // pred_region
            // Predicated region
            $region29: #{generator_forward.59} parent=27 // pred_check
              _
            $region30: #{generator_forward.59} parent=27 // pred_check_branch
              %181 = sbr.rel (0) target = $region32
            $region31: #{generator_forward.59} parent=27 // pred_region
              // Predicated region
              $region44: #{generator_forward.59} parent=31 // pred_check
                _
              $region45: #{generator_forward.59} parent=31 // pred_check_branch
                %203 = sbr.rel (0) target = $region47
              $region46: #{generator_forward.59} parent=31 // pred_region
                loop: start=0, step=1, limit=1
                $region48: #{generator_forward.59} parent=46 // loop_pre_header
                  _
                $region49: #{generator_forward.59} parent=46 // loop_header
                  %s205 = sphi 0, %s209
                  %p206 = scmp.ge.s32.totalorder %s205, 1
                  %s210 = sphi %s177, %s177
                  %s211 = sphi %s171, %s171
                $region50: #{generator_forward.59} parent=46 // loop_header_branch
                  %208 = sbr.rel (%p206) target = $region54
                $region51: #{generator_forward.59} parent=46 // loop_body
                  %v212 = vld [vmem:[%s210] sm:$0xff]
                  %213 = vst [vmem:[%s211] sm:$0xff] %v212
                  %v214 = vld [vmem:[%s210 + $0x48] sm:$0xff]
                  %215 = vst [vmem:[%s211 + $0x8] sm:$0xff] %v214
                  %v216 = vld [vmem:[%s210 + $0x90] sm:$0xff]
                  %217 = vst [vmem:[%s211 + $0x10] sm:$0xff] %v216
                  %v218 = vld [vmem:[%s210 + $0xd8] sm:$0xff]
                  %219 = vst [vmem:[%s211 + $0x18] sm:$0xff] %v218
                $region52: #{generator_forward.59} parent=46 // loop_footer
                  %s209 = sadd.s32 1, %s205
                $region53: #{generator_forward.59} parent=46 // loop_footer_branch
                  %204 = sbr.rel target = $region49
                $region54: #{generator_forward.59} parent=46 // loop_exit
                  _
              $region47: #{generator_forward.59} parent=31 // pred_fallthru
                _
              // Predicated region
              $region55: #{generator_forward.59} parent=31 // pred_check
                _
              $region56: #{generator_forward.59} parent=31 // pred_check_branch
                %221 = sbr.rel target = $region58
              $region57: #{generator_forward.59} parent=31 // pred_region
                _
              $region58: #{generator_forward.59} parent=31 // pred_fallthru
                _
            $region32: #{generator_forward.59} parent=27 // pred_fallthru
              _
            // Predicated region
            $region33: #{generator_forward.59} parent=27 // pred_check
              _
            $region34: #{generator_forward.59} parent=27 // pred_check_branch
              %183 = sbr.rel target = $region36
            $region35: #{generator_forward.59} parent=27 // pred_region
              %s185 = ssub.s32 256, 1
              loop: start=0, step=1, limit=1
              $region37: #{generator_forward.59} parent=35 // loop_pre_header
                _
              $region38: #{generator_forward.59} parent=35 // loop_header
                %s187 = sphi 0, %s191
                %p188 = scmp.ge.s32.totalorder %s187, 1
                %s192 = sphi %s177, %s177
                %s193 = sphi %s171, %s171
              $region39: #{generator_forward.59} parent=35 // loop_header_branch
                %190 = sbr.rel (%p188) target = $region43
              $region40: #{generator_forward.59} parent=35 // loop_body
                %v194 = vld [vmem:[%s192] sm:%s185]
                %195 = vst [vmem:[%s193] sm:%s185] %v194
                %v196 = vld [vmem:[%s192 + $0x48] sm:%s185]
                %197 = vst [vmem:[%s193 + $0x8] sm:%s185] %v196
                %v198 = vld [vmem:[%s192 + $0x90] sm:%s185]
                %199 = vst [vmem:[%s193 + $0x10] sm:%s185] %v198
                %v200 = vld [vmem:[%s192 + $0xd8] sm:%s185]
                %201 = vst [vmem:[%s193 + $0x18] sm:%s185] %v200
              $region41: #{generator_forward.59} parent=35 // loop_footer
                %s191 = sadd.s32 1, %s187
              $region42: #{generator_forward.59} parent=35 // loop_footer_branch
                %186 = sbr.rel target = $region38
              $region43: #{generator_forward.59} parent=35 // loop_exit
                _
            $region36: #{generator_forward.59} parent=27 // pred_fallthru
              _
          $region28: #{generator_forward.59} parent=23 // pred_fallthru
            _
          %222 = vnop
        $region24: #{generator_forward.59} parent=19 // pred_fallthru
          _
        // Predicated region
        $region59: #{generator_forward.59} parent=19 // pred_check
          %p223 = pneg %p78
        $region60: #{generator_forward.59} parent=19 // pred_check_branch
          %225 = sbr.rel (%p223) target = $region62
        $region61: #{generator_forward.59} parent=19 // pred_region
          %s226 = smul.u32 32, %s18
          %s227 = smul.u32 2, %s17
          %p228 = scmp.lt.s32.totalorder %s226, 287
          %s229 = scalar_select %p228, %s226, 287
          %p230 = scmp.lt.s32.totalorder %s227, 1
          %s231 = scalar_select %p230, %s227, 1
          %s232 = smul.addr %s229, 2
          %s233 = sadd.s32 %s231, %s232
          %s234 = smul.addr %s233, 4
          %s235 = scalar_lea.vmem %s1, %s234
          %s236 = smul.u32 32, %s18
          %s237 = smul.u32 2, %s17
        $region62: #{generator_forward.59} parent=19 // pred_fallthru
          _
      $region20: #{generator_forward.59} parent=5 // pred_fallthru
        _
      %p238 = scmp.le.s32.totalorder 1, %s9
      %p239 = scmp.lt.s32.totalorder %s9, 10
      %p240 = pnand %p238, %p239
      %p241 = pneg %p240
      // Predicated region
      $region63: #{generator_forward.59} parent=5 // pred_check
        _
      $region64: #{generator_forward.59} parent=5 // pred_check_branch
        %243 = sbr.rel (%p240) target = $region66
      $region65: #{generator_forward.59} parent=5 // pred_region
        %s244 = ssub.s32 %s9, 1
        %s245 = sand.u32 %s43, 1
        %s246 = sand.u32 %s43, 1
        %s247 = smul.addr %s246, 32
        %s248 = scalar_lea.vmem [#allocation3], %s247
        // Predicated region
        $region67: #{generator_forward.59} parent=65 // pred_check
          %p249 = pneg %p56
        $region68: #{generator_forward.59} parent=65 // pred_check_branch
          %251 = sbr.rel (%p249) target = $region70
        $region69: #{generator_forward.59} parent=65 // pred_region
          _
        $region70: #{generator_forward.59} parent=65 // pred_fallthru
          _
        %s252 = sand.u32 %s43, 1
        %s253 = sand.u32 %s43, 1
        %s254 = smul.addr %s253, 32
        %s255 = scalar_lea.vmem [#allocation3], %s254
        %p256 = pneg %p56
        %p257 = pneg %p53
        %s258 = smul.u32 32, %s21
        %s259 = smul.u32 2, %s20
        %p260 = scmp.lt.s32.totalorder %s258, 287
        %s261 = scalar_select %p260, %s258, 287
        %p262 = scmp.lt.s32.totalorder %s259, 1
        %s263 = scalar_select %p262, %s259, 1
        %s264 = smul.addr %s261, 2
        %s265 = sadd.s32 %s263, %s264
        %s266 = smul.addr %s265, 4
        %s267 = scalar_lea.vmem %s1, %s266
        %p268 = pneg %p84
        %p269 = pneg %p81
        %s270 = smul.u32 2, %s20
        %p271 = scmp.lt.s32.totalorder %s270, 1
        %s272 = scalar_select %p271, %s270, 1
        %s273 = scalar_lea.vmem %s2, %s272
        %p274 = pneg %p110
        %p275 = pneg %p107
        %p276 = pneg %p138
        %p277 = pneg %p135
        %s278 = smul.u32 4, %s19
        %s279 = smul.u32 2, %s20
        %p280 = scmp.lt.s32.totalorder %s278, 3
        %s281 = scalar_select %p280, %s278, 3
        %p282 = scmp.lt.s32.totalorder %s279, 1
        %s283 = scalar_select %p282, %s279, 1
        %s284 = smul.addr %s281, 2
        %s285 = sadd.s32 %s283, %s284
        %s286 = smul.addr %s285, 4
        %s287 = scalar_lea.vmem %s3, %s286
        %s288 = smul.u32 4, %s19
        %s289 = smul.u32 2, %s21
        %s290 = smul.u32 32, %s21
        %s291 = smul.u32 2, %s20
        %p292 = scmp.lt.s32.totalorder %s290, 287
        %s293 = scalar_select %p292, %s290, 287
        %p294 = scmp.lt.s32.totalorder %s291, 1
        %s295 = scalar_select %p294, %s291, 1
        %s296 = smul.addr %s293, 2
        %s297 = sadd.s32 %s295, %s296
        %s298 = smul.addr %s297, 4
        %s299 = scalar_lea.vmem %s1, %s298
        %s300 = smul.u32 32, %s21
        %s301 = smul.u32 2, %s20
        %s302 = smul.u32 2, %s20
        %p303 = scmp.lt.s32.totalorder %s302, 1
        %s304 = scalar_select %p303, %s302, 1
        %s305 = scalar_lea.vmem %s2, %s304
        %s306 = smul.u32 2, %s20
        %s307 = smul.u32 4, %s19
        %s308 = smul.u32 2, %s20
        %p309 = scmp.lt.s32.totalorder %s307, 3
        %s310 = scalar_select %p309, %s307, 3
        %p311 = scmp.lt.s32.totalorder %s308, 1
        %s312 = scalar_select %p311, %s308, 1
        %s313 = smul.addr %s310, 2
        %s314 = sadd.s32 %s312, %s313
        %s315 = smul.addr %s314, 4
        %s316 = scalar_lea.vmem %s3, %s315
        %s317 = smul.u32 4, %s19
        %s318 = smul.u32 2, %s20
        %p319 = scmp.eq.s32.totalorder %s21, 0
        // Predicated region
        $region71: #{generator_forward.59} parent=65 // pred_check
          %p320 = pneg %p319
        $region72: #{generator_forward.59} parent=65 // pred_check_branch
          %322 = sbr.rel (%p320) target = $region74
        $region73: #{generator_forward.59} parent=65 // pred_region
          %323 = vst [vmem:[#allocation2] sm:$0xff] 0.0
          %324 = vst [vmem:[#allocation2 + $0x8] sm:$0xff] 0.0
          %325 = vst [vmem:[#allocation2 + $0x10] sm:$0xff] 0.0
          %326 = vst [vmem:[#allocation2 + $0x18] sm:$0xff] 0.0
          %327 = vst [vmem:[#allocation2 + $0x20] sm:$0xff] 0.0
          %328 = vst [vmem:[#allocation2 + $0x28] sm:$0xff] 0.0
          %329 = vst [vmem:[#allocation2 + $0x30] sm:$0xff] 0.0
          %330 = vst [vmem:[#allocation2 + $0x38] sm:$0xff] 0.0
        $region74: #{generator_forward.59} parent=65 // pred_fallthru
          _
        %v331 = vld [vmem:[#allocation2] sm:$0xff]
        %v332 = vld [vmem:[#allocation2 + $0x8] sm:$0xff]
        %v333 = vld [vmem:[#allocation2 + $0x10] sm:$0xff]
        %v334 = vld [vmem:[#allocation2 + $0x18] sm:$0xff]
        %v335 = vld [vmem:[#allocation2 + $0x20] sm:$0xff]
        %v336 = vld [vmem:[#allocation2 + $0x28] sm:$0xff]
        %v337 = vld [vmem:[#allocation2 + $0x30] sm:$0xff]
        %v338 = vld [vmem:[#allocation2 + $0x38] sm:$0xff]
        %v339 = vld [vmem:[%s248] sm:$0xff]
        %v340 = vld [vmem:[%s248 + $0x8] sm:$0xff]
        %v341 = vld [vmem:[%s248 + $0x10] sm:$0xff]
        %v342 = vld [vmem:[%s248 + $0x18] sm:$0xff]
        %v343 = vld [vmem:[%s299] sm:$0xff]
        %v344 = vld [vmem:[%s299 + $0x8] sm:$0xff]
        %v345 = vld [vmem:[%s299 + $0x10] sm:$0xff]
        %v346 = vld [vmem:[%s299 + $0x18] sm:$0xff]
        %v347 = vld [vmem:[%s299 + $0x20] sm:$0xff]
        %v348 = vld [vmem:[%s299 + $0x28] sm:$0xff]
        %v349 = vld [vmem:[%s299 + $0x30] sm:$0xff]
        %v350 = vld [vmem:[%s299 + $0x38] sm:$0xff]
        %v351 = vld [vmem:[%s299 + $0x40] sm:$0xff]
        %v352 = vld [vmem:[%s299 + $0x48] sm:$0xff]
        %v353 = vld [vmem:[%s299 + $0x50] sm:$0xff]
        %v354 = vld [vmem:[%s299 + $0x58] sm:$0xff]
        %v355 = vld [vmem:[%s299 + $0x60] sm:$0xff]
        %v356 = vld [vmem:[%s299 + $0x68] sm:$0xff]
        %v357 = vld [vmem:[%s299 + $0x70] sm:$0xff]
        %v358 = vld [vmem:[%s299 + $0x78] sm:$0xff]
        %v359 = vld [vmem:[%s299 + $0x80] sm:$0xff]
        %v360 = vld [vmem:[%s299 + $0x88] sm:$0xff]
        %v361 = vld [vmem:[%s299 + $0x90] sm:$0xff]
        %v362 = vld [vmem:[%s299 + $0x98] sm:$0xff]
        %v363 = vld [vmem:[%s299 + $0xa0] sm:$0xff]
        %v364 = vld [vmem:[%s299 + $0xa8] sm:$0xff]
        %v365 = vld [vmem:[%s299 + $0xb0] sm:$0xff]
        %v366 = vld [vmem:[%s299 + $0xb8] sm:$0xff]
        %v367 = vld [vmem:[%s299 + $0xc0] sm:$0xff]
        %v368 = vld [vmem:[%s299 + $0xc8] sm:$0xff]
        %v369 = vld [vmem:[%s299 + $0xd0] sm:$0xff]
        %v370 = vld [vmem:[%s299 + $0xd8] sm:$0xff]
        %v371 = vld [vmem:[%s299 + $0xe0] sm:$0xff]
        %v372 = vld [vmem:[%s299 + $0xe8] sm:$0xff]
        %v373 = vld [vmem:[%s299 + $0xf0] sm:$0xff]
        %v374 = vld [vmem:[%s299 + $0xf8] sm:$0xff]
        %v379 = vunpack.c.l.b16 %v339
        %v380 = vunpack.c.h.b16 %v339
        %v381 = vunpack.c.l.b16 %v340
        %v382 = vunpack.c.h.b16 %v340
        %v383 = vunpack.c.l.b16 %v341
        %v384 = vunpack.c.h.b16 %v341
        %v385 = vunpack.c.l.b16 %v342
        %v386 = vunpack.c.h.b16 %v342
        %v387 = vpack.c.b16 %v381, %v379
        %v388 = vpack.c.b16 %v382, %v380
        %v389 = vpack.c.b16 %v385, %v383
        %v390 = vpack.c.b16 %v386, %v384
        %v427 = vunpack.c.l.b16 %v343
        %v428 = vunpack.c.h.b16 %v343
        %v429 = vunpack.c.l.b16 %v344
        %v430 = vunpack.c.h.b16 %v344
        %v431 = vunpack.c.l.b16 %v345
        %v432 = vunpack.c.h.b16 %v345
        %v433 = vunpack.c.l.b16 %v346
        %v434 = vunpack.c.h.b16 %v346
        %v435 = vunpack.c.l.b16 %v347
        %v436 = vunpack.c.h.b16 %v347
        %v437 = vunpack.c.l.b16 %v348
        %v438 = vunpack.c.h.b16 %v348
        %v439 = vunpack.c.l.b16 %v349
        %v440 = vunpack.c.h.b16 %v349
        %v441 = vunpack.c.l.b16 %v350
        %v442 = vunpack.c.h.b16 %v350
        %v443 = vunpack.c.l.b16 %v351
        %v444 = vunpack.c.h.b16 %v351
        %v445 = vunpack.c.l.b16 %v352
        %v446 = vunpack.c.h.b16 %v352
        %v447 = vunpack.c.l.b16 %v353
        %v448 = vunpack.c.h.b16 %v353
        %v449 = vunpack.c.l.b16 %v354
        %v450 = vunpack.c.h.b16 %v354
        %v451 = vunpack.c.l.b16 %v355
        %v452 = vunpack.c.h.b16 %v355
        %v453 = vunpack.c.l.b16 %v356
        %v454 = vunpack.c.h.b16 %v356
        %v455 = vunpack.c.l.b16 %v357
        %v456 = vunpack.c.h.b16 %v357
        %v457 = vunpack.c.l.b16 %v358
        %v458 = vunpack.c.h.b16 %v358
        %v459 = vunpack.c.l.b16 %v359
        %v460 = vunpack.c.h.b16 %v359
        %v461 = vunpack.c.l.b16 %v360
        %v462 = vunpack.c.h.b16 %v360
        %v463 = vunpack.c.l.b16 %v361
        %v464 = vunpack.c.h.b16 %v361
        %v465 = vunpack.c.l.b16 %v362
        %v466 = vunpack.c.h.b16 %v362
        %v467 = vunpack.c.l.b16 %v363
        %v468 = vunpack.c.h.b16 %v363
        %v469 = vunpack.c.l.b16 %v364
        %v470 = vunpack.c.h.b16 %v364
        %v471 = vunpack.c.l.b16 %v365
        %v472 = vunpack.c.h.b16 %v365
        %v473 = vunpack.c.l.b16 %v366
        %v474 = vunpack.c.h.b16 %v366
        %v475 = vunpack.c.l.b16 %v367
        %v476 = vunpack.c.h.b16 %v367
        %v477 = vunpack.c.l.b16 %v368
        %v478 = vunpack.c.h.b16 %v368
        %v479 = vunpack.c.l.b16 %v369
        %v480 = vunpack.c.h.b16 %v369
        %v481 = vunpack.c.l.b16 %v370
        %v482 = vunpack.c.h.b16 %v370
        %v483 = vunpack.c.l.b16 %v371
        %v484 = vunpack.c.h.b16 %v371
        %v485 = vunpack.c.l.b16 %v372
        %v486 = vunpack.c.h.b16 %v372
        %v487 = vunpack.c.l.b16 %v373
        %v488 = vunpack.c.h.b16 %v373
        %v489 = vunpack.c.l.b16 %v374
        %v490 = vunpack.c.h.b16 %v374
        %v491 = vpack.c.b16 %v429, %v427
        %v492 = vpack.c.b16 %v430, %v428
        %v493 = vpack.c.b16 %v433, %v431
        %v494 = vpack.c.b16 %v434, %v432
        %v495 = vpack.c.b16 %v437, %v435
        %v496 = vpack.c.b16 %v438, %v436
        %v497 = vpack.c.b16 %v441, %v439
        %v498 = vpack.c.b16 %v442, %v440
        %v499 = vpack.c.b16 %v445, %v443
        %v500 = vpack.c.b16 %v446, %v444
        %v501 = vpack.c.b16 %v449, %v447
        %v502 = vpack.c.b16 %v450, %v448
        %v503 = vpack.c.b16 %v453, %v451
        %v504 = vpack.c.b16 %v454, %v452
        %v505 = vpack.c.b16 %v457, %v455
        %v506 = vpack.c.b16 %v458, %v456
        %v507 = vpack.c.b16 %v461, %v459
        %v508 = vpack.c.b16 %v462, %v460
        %v509 = vpack.c.b16 %v465, %v463
        %v510 = vpack.c.b16 %v466, %v464
        %v511 = vpack.c.b16 %v469, %v467
        %v512 = vpack.c.b16 %v470, %v468
        %v513 = vpack.c.b16 %v473, %v471
        %v514 = vpack.c.b16 %v474, %v472
        %v515 = vpack.c.b16 %v477, %v475
        %v516 = vpack.c.b16 %v478, %v476
        %v517 = vpack.c.b16 %v481, %v479
        %v518 = vpack.c.b16 %v482, %v480
        %v519 = vpack.c.b16 %v485, %v483
        %v520 = vpack.c.b16 %v486, %v484
        %v521 = vpack.c.b16 %v489, %v487
        %v522 = vpack.c.b16 %v490, %v488
        %555 = vmatprep.subr.bf16.mxu0 %v506
        %556 = vmatpush1.bf16.msra.mxu0 %v505
        %557 = vmatprep.subr.bf16.mxu0 %v504
        %558 = vmatpush1.bf16.msra.mxu0 %v503
        %559 = vmatprep.subr.bf16.mxu0 %v502
        %560 = vmatpush1.bf16.msra.mxu0 %v501
        %561 = vmatprep.subr.bf16.mxu0 %v500
        %562 = vmatpush1.bf16.msra.mxu0 %v499
        %563 = vmatprep.subr.bf16.mxu0 %v498
        %564 = vmatpush1.bf16.msra.mxu0 %v497
        %565 = vmatprep.subr.bf16.mxu0 %v496
        %566 = vmatpush1.bf16.msra.mxu0 %v495
        %567 = vmatprep.subr.bf16.mxu0 %v494
        %568 = vmatpush1.bf16.msra.mxu0 %v493
        %569 = vmatprep.subr.bf16.mxu0 %v492
        %570 = vmatpush1.bf16.msra.mxu0 %v491
        %571 = vmatprep.subr.bf16.mxu0 %v522
        %572 = vmatpush2.bf16.msra.mxu0 %v521
        %573 = vmatprep.subr.bf16.mxu0 %v520
        %574 = vmatpush2.bf16.msra.mxu0 %v519
        %575 = vmatprep.subr.bf16.mxu0 %v518
        %576 = vmatpush2.bf16.msra.mxu0 %v517
        %577 = vmatprep.subr.bf16.mxu0 %v516
        %578 = vmatpush2.bf16.msra.mxu0 %v515
        %579 = vmatprep.subr.bf16.mxu0 %v514
        %580 = vmatpush2.bf16.msra.mxu0 %v513
        %581 = vmatprep.subr.bf16.mxu0 %v512
        %582 = vmatpush2.bf16.msra.mxu0 %v511
        %583 = vmatprep.subr.bf16.mxu0 %v510
        %584 = vmatpush2.bf16.msra.mxu0 %v509
        %585 = vmatprep.subr.bf16.mxu0 %v508
        %586 = vmatpush2.bf16.msra.mxu0 %v507
        %587 = vmatprep.mubr.bf16.mxu0 %v388
        %588 = vmatmul.mubr.bf16.gmra.mxu0 %v387
        %v589 = vpop.f32.mrf.mxu0
        %v590 = vadd.f32 0.0, %v589
        %v591 = vpop.f32.mrf.mxu0
        %v592 = vadd.f32 0.0, %v591
        %v593 = vpop.f32.mrf.mxu0
        %v594 = vadd.f32 0.0, %v593
        %v595 = vpop.f32.mrf.mxu0
        %v596 = vadd.f32 0.0, %v595
        %597 = vmatprep.mubr.bf16.mxu0 %v390
        %598 = vmatmul.mubr.bf16.gmra.mxu0 %v389
        %v599 = vpop.f32.mrf.mxu0
        %v600 = vadd.f32 0.0, %v599
        %v601 = vpop.f32.mrf.mxu0
        %v602 = vadd.f32 0.0, %v601
        %v603 = vpop.f32.mrf.mxu0
        %v604 = vadd.f32 0.0, %v603
        %v605 = vpop.f32.mrf.mxu0
        %v606 = vadd.f32 0.0, %v605
        %607 = vdwg.mxu0
        %v608 = vadd.f32 %v331, %v590
        %v609 = vadd.f32 %v332, %v592
        %v610 = vadd.f32 %v333, %v594
        %v611 = vadd.f32 %v334, %v596
        %v612 = vadd.f32 %v335, %v600
        %v613 = vadd.f32 %v336, %v602
        %v614 = vadd.f32 %v337, %v604
        %v615 = vadd.f32 %v338, %v606
        %616 = vst [vmem:[#allocation2] sm:$0xff] %v608
        %617 = vst [vmem:[#allocation2 + $0x8] sm:$0xff] %v609
        %618 = vst [vmem:[#allocation2 + $0x10] sm:$0xff] %v610
        %619 = vst [vmem:[#allocation2 + $0x18] sm:$0xff] %v611
        %620 = vst [vmem:[#allocation2 + $0x20] sm:$0xff] %v612
        %621 = vst [vmem:[#allocation2 + $0x28] sm:$0xff] %v613
        %622 = vst [vmem:[#allocation2 + $0x30] sm:$0xff] %v614
        %623 = vst [vmem:[#allocation2 + $0x38] sm:$0xff] %v615
        %p624 = scmp.eq.s32.totalorder %s21, 8
        // Predicated region
        $region75: #{generator_forward.59} parent=65 // pred_check
          %p625 = pneg %p624
        $region76: #{generator_forward.59} parent=65 // pred_check_branch
          %627 = sbr.rel (%p625) target = $region78
        $region77: #{generator_forward.59} parent=65 // pred_region
          %v628 = vld [vmem:[#allocation2] sm:$0xff]
          %v629 = vld [vmem:[#allocation2 + $0x8] sm:$0xff]
          %v630 = vld [vmem:[#allocation2 + $0x10] sm:$0xff]
          %v631 = vld [vmem:[#allocation2 + $0x18] sm:$0xff]
          %v632 = vld [vmem:[#allocation2 + $0x20] sm:$0xff]
          %v633 = vld [vmem:[#allocation2 + $0x28] sm:$0xff]
          %v634 = vld [vmem:[#allocation2 + $0x30] sm:$0xff]
          %v635 = vld [vmem:[#allocation2 + $0x38] sm:$0xff]
          %v636 = vld [vmem:[%s305] sm:$0x3]
          %v638 = vlaneseq
          %v639 = vshrl.u32 %v638, 7
          %v640 = vsub.s32 0, %v639
          %v641 = vrot.slane %v636, %v640
          %v642 = vlaneseq
          %v643 = vshrl.u32 %v642, 7
          %v644 = vsub.s32 1, %v643
          %v645 = vrot.slane %v636, %v644
          %v648 = vadd.f32 %v628, %v641
          %v649 = vadd.f32 %v629, %v645
          %v650 = vadd.f32 %v630, %v641
          %v651 = vadd.f32 %v631, %v645
          %v652 = vadd.f32 %v632, %v641
          %v653 = vadd.f32 %v633, %v645
          %v654 = vadd.f32 %v634, %v641
          %v655 = vadd.f32 %v635, %v645
          %v656 = vpack.c.bf16 %v650, %v648
          %v657 = vpack.c.bf16 %v651, %v649
          %v658 = vpack.c.bf16 %v654, %v652
          %v659 = vpack.c.bf16 %v655, %v653
          %v664 = vunpack.c.l.b16 %v656
          %v665 = vunpack.c.l.b16 %v657
          %v666 = vunpack.c.h.b16 %v656
          %v667 = vunpack.c.h.b16 %v657
          %v668 = vunpack.c.l.b16 %v658
          %v669 = vunpack.c.l.b16 %v659
          %v670 = vunpack.c.h.b16 %v658
          %v671 = vunpack.c.h.b16 %v659
          %v672 = vpack.c.b16 %v665, %v664
          %v673 = vpack.c.b16 %v667, %v666
          %v674 = vpack.c.b16 %v669, %v668
          %v675 = vpack.c.b16 %v671, %v670
          %680 = vst [vmem:[%s316] sm:$0xff] %v672
          %681 = vst [vmem:[%s316 + $0x8] sm:$0xff] %v673
          %682 = vst [vmem:[%s316 + $0x10] sm:$0xff] %v674
          %683 = vst [vmem:[%s316 + $0x18] sm:$0xff] %v675
        $region78: #{generator_forward.59} parent=65 // pred_fallthru
          _
        %s684 = smul.u32 4, %s19
        %s685 = smul.u32 2, %s20
        %p686 = scmp.lt.s32.totalorder %s684, 3
        %s687 = scalar_select %p686, %s684, 3
        %p688 = scmp.lt.s32.totalorder %s685, 1
        %s689 = scalar_select %p688, %s685, 1
        %s690 = smul.addr %s687, 2
        %s691 = sadd.s32 %s689, %s690
        %s692 = smul.addr %s691, 4
        %s693 = scalar_lea.vmem %s3, %s692
        // Predicated region
        $region79: #{generator_forward.59} parent=65 // pred_check
          %p694 = pneg %p135
        $region80: #{generator_forward.59} parent=65 // pred_check_branch
          %696 = sbr.rel (%p694) target = $region82
        $region81: #{generator_forward.59} parent=65 // pred_region
          %s697 = smul.u32 4, %s19
          %s698 = smul.u32 2, %s20
        $region82: #{generator_forward.59} parent=65 // pred_fallthru
          _
        // Predicated region
        $region83: #{generator_forward.59} parent=65 // pred_check
          %p699 = pneg %p135
        $region84: #{generator_forward.59} parent=65 // pred_check_branch
          %701 = sbr.rel (%p699) target = $region86
        $region85: #{generator_forward.59} parent=65 // pred_region
          %s702 = smul.u32 4, %s19
          %s703 = smul.u32 2, %s20
          %p704 = scmp.lt.s32.totalorder %s702, 3
          %s705 = scalar_select %p704, %s702, 3
          %p706 = scmp.lt.s32.totalorder %s703, 1
          %s707 = scalar_select %p706, %s703, 1
          %s708 = smul.addr %s705, 2
          %s709 = sadd.s32 %s707, %s708
          %s710 = smul.addr %s709, 4
          %s711 = scalar_lea.vmem %s3, %s710
        $region86: #{generator_forward.59} parent=65 // pred_fallthru
          _
      $region66: #{generator_forward.59} parent=5 // pred_fallthru
        _
      %p712 = scmp.le.s32.totalorder 2, %s9
      // Predicated region
      $region87: #{generator_forward.59} parent=5 // pred_check
        %p713 = pneg %p712
      $region88: #{generator_forward.59} parent=5 // pred_check_branch
        %715 = sbr.rel (%p713) target = $region90
      $region89: #{generator_forward.59} parent=5 // pred_region
        %s716 = ssub.s32 %s9, 2
      $region90: #{generator_forward.59} parent=5 // pred_fallthru
        _
    $region6: #{generator_forward.59} parent=1 // loop_footer
      %s13 = sadd.s32 1, %s9
    $region7: #{generator_forward.59} parent=1 // loop_footer_branch
      %8 = sbr.rel target = $region3
    $region8: #{generator_forward.59} parent=1 // loop_exit
      _

// kernel: generator_forward.62
$region0: #{generator_forward.62}
  #allocation0 [shape = 'u32[]', space=smem, size = 0x4, offset = 0x4, fixed_abs, tag = 'smem constant byte address 0x4 - core index']
  #allocation1 [shape = 'u32[144,128]{1,0:T(1,128)}', space=vmem, size = 0x12000, scoped, tag = 'internal scratch']
  %s0 = inlined_call_operand.vmem [shape: bf16[512,16], index: 0, kind: input, shape index: {}]
  %s1 = inlined_call_operand.vmem [shape: bf16[512,16], index: 1, kind: input, shape index: {}]
  %s2 = inlined_call_operand.vmem [shape: bf16[512,16], index: 2, kind: output, shape index: {}]
  %s3 = sld [smem:[#allocation0]]
  $region41: #{generator_forward.62} parent=0
    _
  %s5 = ssub.s32 1, %s3
  %s6 = scalar_select 0, %s5, %s3
  loop: start=0, step=1, limit=18
  $region2: #{generator_forward.62} parent=0 // loop_pre_header
    _
  $region3: #{generator_forward.62} parent=0 // loop_header
    %s8 = sphi 0, %s12
    %p9 = scmp.ge.s32.totalorder %s8, 18
    %s18 = sphi 0, %s20
    %s21 = sphi 0, %s18
    %s22 = sphi 0, %s21
    %s38 = sphi 0, %s22
    %s44 = sphi 0, %s46
    %s47 = sphi 0, %s44
    %s48 = sphi 0, %s47
    %s64 = sphi 0, %s48
    %s70 = sphi 0, %s72
    %s73 = sphi 0, %s70
    %s74 = sphi 0, %s73
    %s90 = sphi 0, %s74
  $region4: #{generator_forward.62} parent=0 // loop_header_branch
    %11 = sbr.rel (%p9) target = $region8
  $region5: #{generator_forward.62} parent=0 // loop_body
    %s13 = ssub.s32 %s8, 1
    %s14 = ssub.s32 %s8, 2
    %s15 = sadd.s32 %s8, 1
    %s16 = ssub.s32 %s8, %s15
    %p17 = scmp.eq.s32.totalorder %s16, 0
    %s19 = sadd.s32 %s18, 1
    %s20 = scalar_select %p17, %s18, %s19
    %p23 = pneg %p17
    %p24 = scmp.eq.s32.totalorder %s8, 15
    %p25 = por %p23, %p24
    %p26 = scmp.ne.s32.totalorder %s18, %s21
    %p27 = scmp.eq.s32.totalorder %s8, 0
    %p28 = por %p26, %p27
    %p29 = scmp.ne.s32.totalorder %s18, %s21
    %p30 = scmp.eq.s32.totalorder %s13, 15
    %p31 = por %p29, %p30
    %p32 = scmp.ne.s32.totalorder %s21, %s22
    %p33 = scmp.eq.s32.totalorder %s13, 0
    %p34 = por %p32, %p33
    %p35 = scmp.ne.s32.totalorder %s21, %s22
    %p36 = scmp.eq.s32.totalorder %s14, 15
    %p37 = por %p35, %p36
    %p39 = scmp.ne.s32.totalorder %s22, %s38
    %p40 = scmp.eq.s32.totalorder %s14, 0
    %p41 = por %p39, %p40
    %s42 = ssub.s32 %s8, %s15
    %p43 = scmp.eq.s32.totalorder %s42, 0
    %s45 = sadd.s32 %s44, 1
    %s46 = scalar_select %p43, %s44, %s45
    %p49 = pneg %p43
    %p50 = scmp.eq.s32.totalorder %s8, 15
    %p51 = por %p49, %p50
    %p52 = scmp.ne.s32.totalorder %s44, %s47
    %p53 = scmp.eq.s32.totalorder %s8, 0
    %p54 = por %p52, %p53
    %p55 = scmp.ne.s32.totalorder %s44, %s47
    %p56 = scmp.eq.s32.totalorder %s13, 15
    %p57 = por %p55, %p56
    %p58 = scmp.ne.s32.totalorder %s47, %s48
    %p59 = scmp.eq.s32.totalorder %s13, 0
    %p60 = por %p58, %p59
    %p61 = scmp.ne.s32.totalorder %s47, %s48
    %p62 = scmp.eq.s32.totalorder %s14, 15
    %p63 = por %p61, %p62
    %p65 = scmp.ne.s32.totalorder %s48, %s64
    %p66 = scmp.eq.s32.totalorder %s14, 0
    %p67 = por %p65, %p66
    %s68 = ssub.s32 %s8, %s15
    %p69 = scmp.eq.s32.totalorder %s68, 0
    %s71 = sadd.s32 %s70, 1
    %s72 = scalar_select %p69, %s70, %s71
    %p75 = pneg %p69
    %p76 = scmp.eq.s32.totalorder %s8, 15
    %p77 = por %p75, %p76
    %p78 = scmp.ne.s32.totalorder %s70, %s73
    %p79 = scmp.eq.s32.totalorder %s8, 0
    %p80 = por %p78, %p79
    %p81 = scmp.ne.s32.totalorder %s70, %s73
    %p82 = scmp.eq.s32.totalorder %s13, 15
    %p83 = por %p81, %p82
    %p84 = scmp.ne.s32.totalorder %s73, %s74
    %p85 = scmp.eq.s32.totalorder %s13, 0
    %p86 = por %p84, %p85
    %p87 = scmp.ne.s32.totalorder %s73, %s74
    %p88 = scmp.eq.s32.totalorder %s14, 15
    %p89 = por %p87, %p88
    %p91 = scmp.ne.s32.totalorder %s74, %s90
    %p92 = scmp.eq.s32.totalorder %s14, 0
    %p93 = por %p91, %p92
    %p94 = scmp.le.s32.totalorder 1, %s8
    %p95 = scmp.lt.s32.totalorder %s8, 17
    %p96 = pnand %p94, %p95
    %p97 = pneg %p96
    // Predicated region
    $region9: #{generator_forward.62} parent=5 // pred_check
      _
    $region10: #{generator_forward.62} parent=5 // pred_check_branch
      %99 = sbr.rel (%p96) target = $region12
    $region11: #{generator_forward.62} parent=5 // pred_region
      %s100 = ssub.s32 %s8, 1
    $region12: #{generator_forward.62} parent=5 // pred_fallthru
      _
    %p101 = scmp.lt.s32.totalorder %s8, 16
    // Predicated region
    $region13: #{generator_forward.62} parent=5 // pred_check
      %p102 = pneg %p101
    $region14: #{generator_forward.62} parent=5 // pred_check_branch
      %104 = sbr.rel (%p102) target = $region16
    $region15: #{generator_forward.62} parent=5 // pred_region
      // Predicated region
      $region17: #{generator_forward.62} parent=15 // pred_check
        %p105 = pneg %p28
      $region18: #{generator_forward.62} parent=15 // pred_check_branch
        %107 = sbr.rel (%p105) target = $region20
      $region19: #{generator_forward.62} parent=15 // pred_region
        %s108 = smul.u32 4, %s8
        %p109 = scmp.lt.s32.totalorder %s108, 63
        %s110 = scalar_select %p109, %s108, 63
        %s111 = smul.addr %s110, 4
        %s112 = scalar_lea.vmem %s0, %s111
        %s113 = smul.u32 4, %s8
      $region20: #{generator_forward.62} parent=15 // pred_fallthru
        _
      // Predicated region
      $region21: #{generator_forward.62} parent=15 // pred_check
        %p114 = pneg %p54
      $region22: #{generator_forward.62} parent=15 // pred_check_branch
        %116 = sbr.rel (%p114) target = $region24
      $region23: #{generator_forward.62} parent=15 // pred_region
        %s117 = smul.u32 4, %s8
        %p118 = scmp.lt.s32.totalorder %s117, 63
        %s119 = scalar_select %p118, %s117, 63
        %s120 = smul.addr %s119, 4
        %s121 = scalar_lea.vmem %s1, %s120
        %s122 = smul.u32 4, %s8
      $region24: #{generator_forward.62} parent=15 // pred_fallthru
        _
    $region16: #{generator_forward.62} parent=5 // pred_fallthru
      _
    %p123 = scmp.le.s32.totalorder 1, %s8
    %p124 = scmp.lt.s32.totalorder %s8, 17
    %p125 = pnand %p123, %p124
    %p126 = pneg %p125
    // Predicated region
    $region25: #{generator_forward.62} parent=5 // pred_check
      _
    $region26: #{generator_forward.62} parent=5 // pred_check_branch
      %128 = sbr.rel (%p125) target = $region28
    $region27: #{generator_forward.62} parent=5 // pred_region
      %s129 = ssub.s32 %s8, 1
      %s130 = smul.u32 4, %s13
      %p131 = scmp.lt.s32.totalorder %s130, 63
      %s132 = scalar_select %p131, %s130, 63
      %s133 = smul.addr %s132, 4
      %s134 = scalar_lea.vmem %s0, %s133
      %p135 = pneg %p34
      %p136 = pneg %p31
      %s137 = smul.u32 4, %s13
      %p138 = scmp.lt.s32.totalorder %s137, 63
      %s139 = scalar_select %p138, %s137, 63
      %s140 = smul.addr %s139, 4
      %s141 = scalar_lea.vmem %s1, %s140
      %p142 = pneg %p60
      %p143 = pneg %p57
      %p144 = pneg %p86
      %p145 = pneg %p83
      %s146 = smul.u32 4, %s13
      %p147 = scmp.lt.s32.totalorder %s146, 63
      %s148 = scalar_select %p147, %s146, 63
      %s149 = smul.addr %s148, 4
      %s150 = scalar_lea.vmem %s2, %s149
      %s151 = smul.u32 4, %s13
      %p152 = scmp.lt.s32.totalorder %s151, 63
      %s153 = scalar_select %p152, %s151, 63
      %s154 = smul.addr %s153, 4
      %s155 = scalar_lea.vmem %s0, %s154
      %s156 = smul.u32 4, %s13
      %s157 = smul.u32 4, %s13
      %p158 = scmp.lt.s32.totalorder %s157, 63
      %s159 = scalar_select %p158, %s157, 63
      %s160 = smul.addr %s159, 4
      %s161 = scalar_lea.vmem %s1, %s160
      %s162 = smul.u32 4, %s13
      %s163 = smul.u32 4, %s13
      %p164 = scmp.lt.s32.totalorder %s163, 63
      %s165 = scalar_select %p164, %s163, 63
      %s166 = smul.addr %s165, 4
      %s167 = scalar_lea.vmem %s2, %s166
      %s168 = smul.u32 4, %s13
      %v169 = vld [vmem:[%s155] sm:$0xf]
      %v170 = vld [vmem:[%s155 + $0x4] sm:$0xf]
      %v171 = vld [vmem:[%s155 + $0x8] sm:$0xf]
      %v172 = vld [vmem:[%s155 + $0xc] sm:$0xf]
      %v173 = vunpack.c.l.bf16 %v169
      %v174 = vunpack.c.l.bf16 %v170
      %v175 = vunpack.c.l.bf16 %v171
      %v176 = vunpack.c.l.bf16 %v172
      %vm177 = vcmask 130048
      %v178 = vsel %vm177, %v173, 0.0
      %179 = vadd.xlane.f32.xlu0 %v178
      %v180 = vpop.xlane.xlu0 %179
      %v181 = vsel %vm177, %v174, 0.0
      %182 = vadd.xlane.f32.xlu0 %v181
      %v183 = vpop.xlane.xlu0 %182
      %v184 = vsel %vm177, %v175, 0.0
      %185 = vadd.xlane.f32.xlu0 %v184
      %v186 = vpop.xlane.xlu0 %185
      %v187 = vsel %vm177, %v176, 0.0
      %188 = vadd.xlane.f32.xlu0 %v187
      %v189 = vpop.xlane.xlu0 %188
      %v190 = vrcp.pop 16.0
      %v191 = vmul.f32 %v180, %v190
      %v192 = vmul.f32 %v183, %v190
      %v193 = vmul.f32 %v186, %v190
      %v194 = vmul.f32 %v189, %v190
      %v195 = vsub.f32 %v173, %v191
      %v196 = vsub.f32 %v174, %v192
      %v197 = vsub.f32 %v175, %v193
      %v198 = vsub.f32 %v176, %v194
      %v199 = vmul.f32 %v195, %v195
      %v200 = vmul.f32 %v196, %v196
      %v201 = vmul.f32 %v197, %v197
      %v202 = vmul.f32 %v198, %v198
      %v203 = vsel %vm177, %v199, 0.0
      %204 = vadd.xlane.f32.xlu0 %v203
      %v205 = vpop.xlane.xlu0 %204
      %v206 = vsel %vm177, %v200, 0.0
      %207 = vadd.xlane.f32.xlu0 %v206
      %v208 = vpop.xlane.xlu0 %207
      %v209 = vsel %vm177, %v201, 0.0
      %210 = vadd.xlane.f32.xlu0 %v209
      %v211 = vpop.xlane.xlu0 %210
      %v212 = vsel %vm177, %v202, 0.0
      %213 = vadd.xlane.f32.xlu0 %v212
      %v214 = vpop.xlane.xlu0 %213
      %v215 = vmul.f32 %v205, %v190
      %v216 = vmul.f32 %v208, %v190
      %v217 = vmul.f32 %v211, %v190
      %v218 = vmul.f32 %v214, %v190
      %v219 = vadd.f32 %v215, 1e-05
      %v220 = vadd.f32 %v216, 1e-05
      %v221 = vadd.f32 %v217, 1e-05
      %v222 = vadd.f32 %v218, 1e-05
      %v223 = vrsqrt.pop %v219
      %v224 = vrsqrt.pop %v220
      %v225 = vrsqrt.pop %v221
      %v226 = vrsqrt.pop %v222
      %v227 = vmul.f32 %v195, %v223
      %v228 = vmul.f32 %v196, %v224
      %v229 = vmul.f32 %v197, %v225
      %v230 = vmul.f32 %v198, %v226
      %v231 = vld [vmem:[%s161] sm:$0xf]
      %v232 = vld [vmem:[%s161 + $0x4] sm:$0xf]
      %v233 = vld [vmem:[%s161 + $0x8] sm:$0xf]
      %v234 = vld [vmem:[%s161 + $0xc] sm:$0xf]
      %v235 = vunpack.c.l.bf16 %v231
      %v236 = vunpack.c.l.bf16 %v232
      %v237 = vunpack.c.l.bf16 %v233
      %v238 = vunpack.c.l.bf16 %v234
      %v239 = vadd.f32 %v227, %v235
      %v240 = vadd.f32 %v228, %v236
      %v241 = vadd.f32 %v229, %v237
      %v242 = vadd.f32 %v230, %v238
      %v243 = vpack.c.bf16 %v240, %v239
      %v244 = vpack.c.bf16 %v242, %v241
      %v247 = vunpack.c.l.b16 %v243
      %v248 = vunpack.c.h.b16 %v243
      %v249 = vunpack.c.l.b16 %v244
      %v250 = vunpack.c.h.b16 %v244
      %v251 = vpack.c.b16 %v247, %v247
      %v252 = vpack.c.b16 %v248, %v248
      %v253 = vpack.c.b16 %v249, %v249
      %v254 = vpack.c.b16 %v250, %v250
      %vm259 = vcmask 125952
      %260 = vst.msk [vmem:[%s167] sm:$0xf] %vm259, %v251
      %261 = vst.msk [vmem:[%s167 + $0x4] sm:$0xf] %vm259, %v252
      %262 = vst.msk [vmem:[%s167 + $0x8] sm:$0xf] %vm259, %v253
      %263 = vst.msk [vmem:[%s167 + $0xc] sm:$0xf] %vm259, %v254
      %s264 = smul.u32 4, %s13
      %p265 = scmp.lt.s32.totalorder %s264, 63
      %s266 = scalar_select %p265, %s264, 63
      %s267 = smul.addr %s266, 4
      %s268 = scalar_lea.vmem %s2, %s267
      // Predicated region
      $region29: #{generator_forward.62} parent=27 // pred_check
        %p269 = pneg %p83
      $region30: #{generator_forward.62} parent=27 // pred_check_branch
        %271 = sbr.rel (%p269) target = $region32
      $region31: #{generator_forward.62} parent=27 // pred_region
        %s272 = smul.u32 4, %s13
      $region32: #{generator_forward.62} parent=27 // pred_fallthru
        _
    $region28: #{generator_forward.62} parent=5 // pred_fallthru
      _
    %p273 = scmp.le.s32.totalorder 2, %s8
    // Predicated region
    $region33: #{generator_forward.62} parent=5 // pred_check
      %p274 = pneg %p273
    $region34: #{generator_forward.62} parent=5 // pred_check_branch
      %276 = sbr.rel (%p274) target = $region36
    $region35: #{generator_forward.62} parent=5 // pred_region
      %s277 = ssub.s32 %s8, 2
      // Predicated region
      $region37: #{generator_forward.62} parent=35 // pred_check
        %p278 = pneg %p89
      $region38: #{generator_forward.62} parent=35 // pred_check_branch
        %280 = sbr.rel (%p278) target = $region40
      $region39: #{generator_forward.62} parent=35 // pred_region
        %s281 = smul.u32 4, %s14
        %p282 = scmp.lt.s32.totalorder %s281, 63
        %s283 = scalar_select %p282, %s281, 63
        %s284 = smul.addr %s283, 4
        %s285 = scalar_lea.vmem %s2, %s284
      $region40: #{generator_forward.62} parent=35 // pred_fallthru
        _
    $region36: #{generator_forward.62} parent=5 // pred_fallthru
      _
  $region6: #{generator_forward.62} parent=0 // loop_footer
    %s12 = sadd.s32 1, %s8
  $region7: #{generator_forward.62} parent=0 // loop_footer_branch
    %7 = sbr.rel target = $region3
  $region8: #{generator_forward.62} parent=0 // loop_exit
    _

// kernel: generator_forward.96
$region0: #{generator_forward.96}
  #allocation0 [shape = 'u32[]', space=smem, size = 0x4, offset = 0x4, fixed_abs, tag = 'smem constant byte address 0x4 - core index']
  #allocation1 [shape = 'u32[144,128]{1,0:T(1,128)}', space=vmem, size = 0x12000, scoped, tag = 'internal scratch']
  #allocation2 [shape = 'f32[32,128]{1,0:T(8,128)}', space=vmem, size = 0x4000, scoped, tag = 'scratch operand']
  %s0 = inlined_call_operand.vmem [shape: bf16[32,512], index: 0, kind: input, shape index: {}]
  %s1 = inlined_call_operand.vmem [shape: bf16[512,128], index: 1, kind: input, shape index: {}]
  %s2 = inlined_call_operand.vmem [shape: f32[1,128], index: 2, kind: input, shape index: {}]
  %s3 = inlined_call_operand.vmem [shape: bf16[32,128], index: 3, kind: output, shape index: {}]
  %s4 = sld [smem:[#allocation0]]
  $region91: #{generator_forward.96} parent=0
    _
  %s6 = ssub.s32 1, %s4
  %s7 = scalar_select 0, %s6, %s4
  $region1: #{generator_forward.96} parent=0
    #allocation3 [shape = 'u8[32768]{0}', space=vmem, size = 0x8000, scoped, tag = 'input window, operand 0']
    loop: start=0, step=1, limit=4
    $region2: #{generator_forward.96} parent=1 // loop_pre_header
      _
    $region3: #{generator_forward.96} parent=1 // loop_header
      %s9 = sphi 0, %s13
      %p10 = scmp.ge.s32.totalorder %s9, 4
      %s16 = sphi 0, %s35
      %s17 = sphi 0, %s31
      %s18 = sphi 0, %s27
      %s19 = sphi 0, %s16
      %s20 = sphi 0, %s17
      %s21 = sphi 0, %s18
      %s22 = sphi 0, %s19
      %s23 = sphi 0, %s20
      %s24 = sphi 0, %s21
      %s40 = sphi 0, %s42
      %s43 = sphi 0, %s40
      %s44 = sphi 0, %s43
      %s60 = sphi 0, %s44
      %s68 = sphi 0, %s70
      %s71 = sphi 0, %s68
      %s72 = sphi 0, %s71
      %s88 = sphi 0, %s72
      %s94 = sphi 0, %s96
      %s97 = sphi 0, %s94
      %s98 = sphi 0, %s97
      %s114 = sphi 0, %s98
      %s122 = sphi 0, %s124
      %s125 = sphi 0, %s122
      %s126 = sphi 0, %s125
      %s142 = sphi 0, %s126
    $region4: #{generator_forward.96} parent=1 // loop_header_branch
      %12 = sbr.rel (%p10) target = $region8
    $region5: #{generator_forward.96} parent=1 // loop_body
      %s14 = ssub.s32 %s9, 1
      %s15 = ssub.s32 %s9, 2
      %s25 = sadd.s32 1, %s18
      %p26 = scmp.ge.s32.totalorder %s25, 2
      %s27 = scalar_select %p26, 0, %s25
      %s28 = sadd.s32 1, %s17
      %s29 = scalar_select %p26, %s28, %s17
      %p30 = scmp.ge.s32.totalorder %s29, 1
      %s31 = scalar_select %p30, 0, %s29
      %s32 = sadd.s32 1, %s16
      %s33 = scalar_select %p30, %s32, %s16
      %p34 = scmp.ge.s32.totalorder %s33, 1
      %s35 = scalar_select %p34, 0, %s33
      %s36 = ssub.s32 %s16, %s35
      %s37 = ssub.s32 %s18, %s27
      %s38 = sor.u32 %s36, %s37
      %p39 = scmp.eq.s32.totalorder %s38, 0
      %s41 = sadd.s32 %s40, 1
      %s42 = scalar_select %p39, %s40, %s41
      %p45 = pneg %p39
      %p46 = scmp.eq.s32.totalorder %s9, 1
      %p47 = por %p45, %p46
      %p48 = scmp.ne.s32.totalorder %s40, %s43
      %p49 = scmp.eq.s32.totalorder %s9, 0
      %p50 = por %p48, %p49
      %p51 = scmp.ne.s32.totalorder %s40, %s43
      %p52 = scmp.eq.s32.totalorder %s14, 1
      %p53 = por %p51, %p52
      %p54 = scmp.ne.s32.totalorder %s43, %s44
      %p55 = scmp.eq.s32.totalorder %s14, 0
      %p56 = por %p54, %p55
      %p57 = scmp.ne.s32.totalorder %s43, %s44
      %p58 = scmp.eq.s32.totalorder %s15, 1
      %p59 = por %p57, %p58
      %p61 = scmp.ne.s32.totalorder %s44, %s60
      %p62 = scmp.eq.s32.totalorder %s15, 0
      %p63 = por %p61, %p62
      %s64 = ssub.s32 %s18, %s27
      %s65 = ssub.s32 %s17, %s31
      %s66 = sor.u32 %s64, %s65
      %p67 = scmp.eq.s32.totalorder %s66, 0
      %s69 = sadd.s32 %s68, 1
      %s70 = scalar_select %p67, %s68, %s69
      %p73 = pneg %p67
      %p74 = scmp.eq.s32.totalorder %s9, 1
      %p75 = por %p73, %p74
      %p76 = scmp.ne.s32.totalorder %s68, %s71
      %p77 = scmp.eq.s32.totalorder %s9, 0
      %p78 = por %p76, %p77
      %p79 = scmp.ne.s32.totalorder %s68, %s71
      %p80 = scmp.eq.s32.totalorder %s14, 1
      %p81 = por %p79, %p80
      %p82 = scmp.ne.s32.totalorder %s71, %s72
      %p83 = scmp.eq.s32.totalorder %s14, 0
      %p84 = por %p82, %p83
      %p85 = scmp.ne.s32.totalorder %s71, %s72
      %p86 = scmp.eq.s32.totalorder %s15, 1
      %p87 = por %p85, %p86
      %p89 = scmp.ne.s32.totalorder %s72, %s88
      %p90 = scmp.eq.s32.totalorder %s15, 0
      %p91 = por %p89, %p90
      %s92 = ssub.s32 %s17, %s31
      %p93 = scmp.eq.s32.totalorder %s92, 0
      %s95 = sadd.s32 %s94, 1
      %s96 = scalar_select %p93, %s94, %s95
      %p99 = pneg %p93
      %p100 = scmp.eq.s32.totalorder %s9, 1
      %p101 = por %p99, %p100
      %p102 = scmp.ne.s32.totalorder %s94, %s97
      %p103 = scmp.eq.s32.totalorder %s9, 0
      %p104 = por %p102, %p103
      %p105 = scmp.ne.s32.totalorder %s94, %s97
      %p106 = scmp.eq.s32.totalorder %s14, 1
      %p107 = por %p105, %p106
      %p108 = scmp.ne.s32.totalorder %s97, %s98
      %p109 = scmp.eq.s32.totalorder %s14, 0
      %p110 = por %p108, %p109
      %p111 = scmp.ne.s32.totalorder %s97, %s98
      %p112 = scmp.eq.s32.totalorder %s15, 1
      %p113 = por %p111, %p112
      %p115 = scmp.ne.s32.totalorder %s98, %s114
      %p116 = scmp.eq.s32.totalorder %s15, 0
      %p117 = por %p115, %p116
      %s118 = ssub.s32 %s16, %s35
      %s119 = ssub.s32 %s17, %s31
      %s120 = sor.u32 %s118, %s119
      %p121 = scmp.eq.s32.totalorder %s120, 0
      %s123 = sadd.s32 %s122, 1
      %s124 = scalar_select %p121, %s122, %s123
      %p127 = pneg %p121
      %p128 = scmp.eq.s32.totalorder %s9, 1
      %p129 = por %p127, %p128
      %p130 = scmp.ne.s32.totalorder %s122, %s125
      %p131 = scmp.eq.s32.totalorder %s9, 0
      %p132 = por %p130, %p131
      %p133 = scmp.ne.s32.totalorder %s122, %s125
      %p134 = scmp.eq.s32.totalorder %s14, 1
      %p135 = por %p133, %p134
      %p136 = scmp.ne.s32.totalorder %s125, %s126
      %p137 = scmp.eq.s32.totalorder %s14, 0
      %p138 = por %p136, %p137
      %p139 = scmp.ne.s32.totalorder %s125, %s126
      %p140 = scmp.eq.s32.totalorder %s15, 1
      %p141 = por %p139, %p140
      %p143 = scmp.ne.s32.totalorder %s126, %s142
      %p144 = scmp.eq.s32.totalorder %s15, 0
      %p145 = por %p143, %p144
      %p146 = scmp.le.s32.totalorder 1, %s9
      %p147 = scmp.lt.s32.totalorder %s9, 3
      %p148 = pnand %p146, %p147
      %p149 = pneg %p148
      // Predicated region
      $region9: #{generator_forward.96} parent=5 // pred_check
        _
      $region10: #{generator_forward.96} parent=5 // pred_check_branch
        %151 = sbr.rel (%p148) target = $region12
      $region11: #{generator_forward.96} parent=5 // pred_region
        %s152 = ssub.s32 %s9, 1
        // Predicated region
        $region13: #{generator_forward.96} parent=11 // pred_check
          %p153 = pneg %p110
        $region14: #{generator_forward.96} parent=11 // pred_check_branch
          %155 = sbr.rel (%p153) target = $region16
        $region15: #{generator_forward.96} parent=11 // pred_region
          %p156 = scmp.lt.s32.totalorder %s20, 0
          %s157 = scalar_select %p156, %s20, 0
          %s158 = scalar_lea.vmem %s2, %s157
        $region16: #{generator_forward.96} parent=11 // pred_fallthru
          _
      $region12: #{generator_forward.96} parent=5 // pred_fallthru
        _
      %p159 = scmp.lt.s32.totalorder %s9, 2
      // Predicated region
      $region17: #{generator_forward.96} parent=5 // pred_check
        %p160 = pneg %p159
      $region18: #{generator_forward.96} parent=5 // pred_check_branch
        %162 = sbr.rel (%p160) target = $region20
      $region19: #{generator_forward.96} parent=5 // pred_region
        // Predicated region
        $region21: #{generator_forward.96} parent=19 // pred_check
          %p163 = pneg %p50
        $region22: #{generator_forward.96} parent=19 // pred_check_branch
          %165 = sbr.rel (%p163) target = $region24
        $region23: #{generator_forward.96} parent=19 // pred_region
          %s166 = sand.u32 %s40, 1
          %s167 = sand.u32 %s40, 1
          %s168 = smul.addr %s167, 32
          %s169 = scalar_lea.vmem [#allocation3], %s168
          %s170 = smul.u32 4, %s16
          %s171 = smul.u32 2, %s18
          %s172 = smul.addr %s170, 4
          %s173 = sadd.s32 %s171, %s172
          %s174 = smul.addr %s173, 4
          %s175 = scalar_lea.vmem %s0, %s174
          // Predicated region
          $region25: #{generator_forward.96} parent=23 // pred_check
            _
          $region26: #{generator_forward.96} parent=23 // pred_check_branch
            %177 = sbr.rel (0) target = $region28
          $region27: #{generator_forward.96} parent=23 // pred_region
            // Predicated region
            $region29: #{generator_forward.96} parent=27 // pred_check
              _
            $region30: #{generator_forward.96} parent=27 // pred_check_branch
              %179 = sbr.rel (0) target = $region32
            $region31: #{generator_forward.96} parent=27 // pred_region
              // Predicated region
              $region44: #{generator_forward.96} parent=31 // pred_check
                _
              $region45: #{generator_forward.96} parent=31 // pred_check_branch
                %201 = sbr.rel (0) target = $region47
              $region46: #{generator_forward.96} parent=31 // pred_region
                loop: start=0, step=1, limit=1
                $region48: #{generator_forward.96} parent=46 // loop_pre_header
                  _
                $region49: #{generator_forward.96} parent=46 // loop_header
                  %s203 = sphi 0, %s207
                  %p204 = scmp.ge.s32.totalorder %s203, 1
                  %s208 = sphi %s175, %s175
                  %s209 = sphi %s169, %s169
                $region50: #{generator_forward.96} parent=46 // loop_header_branch
                  %206 = sbr.rel (%p204) target = $region54
                $region51: #{generator_forward.96} parent=46 // loop_body
                  %v210 = vld [vmem:[%s208] sm:$0xff]
                  %211 = vst [vmem:[%s209] sm:$0xff] %v210
                  %v212 = vld [vmem:[%s208 + $0x10] sm:$0xff]
                  %213 = vst [vmem:[%s209 + $0x8] sm:$0xff] %v212
                  %v214 = vld [vmem:[%s208 + $0x20] sm:$0xff]
                  %215 = vst [vmem:[%s209 + $0x10] sm:$0xff] %v214
                  %v216 = vld [vmem:[%s208 + $0x30] sm:$0xff]
                  %217 = vst [vmem:[%s209 + $0x18] sm:$0xff] %v216
                $region52: #{generator_forward.96} parent=46 // loop_footer
                  %s207 = sadd.s32 1, %s203
                $region53: #{generator_forward.96} parent=46 // loop_footer_branch
                  %202 = sbr.rel target = $region49
                $region54: #{generator_forward.96} parent=46 // loop_exit
                  _
              $region47: #{generator_forward.96} parent=31 // pred_fallthru
                _
              // Predicated region
              $region55: #{generator_forward.96} parent=31 // pred_check
                _
              $region56: #{generator_forward.96} parent=31 // pred_check_branch
                %219 = sbr.rel target = $region58
              $region57: #{generator_forward.96} parent=31 // pred_region
                _
              $region58: #{generator_forward.96} parent=31 // pred_fallthru
                _
            $region32: #{generator_forward.96} parent=27 // pred_fallthru
              _
            // Predicated region
            $region33: #{generator_forward.96} parent=27 // pred_check
              _
            $region34: #{generator_forward.96} parent=27 // pred_check_branch
              %181 = sbr.rel target = $region36
            $region35: #{generator_forward.96} parent=27 // pred_region
              %s183 = ssub.s32 256, 1
              loop: start=0, step=1, limit=1
              $region37: #{generator_forward.96} parent=35 // loop_pre_header
                _
              $region38: #{generator_forward.96} parent=35 // loop_header
                %s185 = sphi 0, %s189
                %p186 = scmp.ge.s32.totalorder %s185, 1
                %s190 = sphi %s175, %s175
                %s191 = sphi %s169, %s169
              $region39: #{generator_forward.96} parent=35 // loop_header_branch
                %188 = sbr.rel (%p186) target = $region43
              $region40: #{generator_forward.96} parent=35 // loop_body
                %v192 = vld [vmem:[%s190] sm:%s183]
                %193 = vst [vmem:[%s191] sm:%s183] %v192
                %v194 = vld [vmem:[%s190 + $0x10] sm:%s183]
                %195 = vst [vmem:[%s191 + $0x8] sm:%s183] %v194
                %v196 = vld [vmem:[%s190 + $0x20] sm:%s183]
                %197 = vst [vmem:[%s191 + $0x10] sm:%s183] %v196
                %v198 = vld [vmem:[%s190 + $0x30] sm:%s183]
                %199 = vst [vmem:[%s191 + $0x18] sm:%s183] %v198
              $region41: #{generator_forward.96} parent=35 // loop_footer
                %s189 = sadd.s32 1, %s185
              $region42: #{generator_forward.96} parent=35 // loop_footer_branch
                %184 = sbr.rel target = $region38
              $region43: #{generator_forward.96} parent=35 // loop_exit
                _
            $region36: #{generator_forward.96} parent=27 // pred_fallthru
              _
          $region28: #{generator_forward.96} parent=23 // pred_fallthru
            _
          %220 = vnop
        $region24: #{generator_forward.96} parent=19 // pred_fallthru
          _
        // Predicated region
        $region59: #{generator_forward.96} parent=19 // pred_check
          %p221 = pneg %p78
        $region60: #{generator_forward.96} parent=19 // pred_check_branch
          %223 = sbr.rel (%p221) target = $region62
        $region61: #{generator_forward.96} parent=19 // pred_region
          %s224 = smul.u32 32, %s18
          %p225 = scmp.lt.s32.totalorder %s224, 63
          %s226 = scalar_select %p225, %s224, 63
          %p227 = scmp.lt.s32.totalorder %s17, 0
          %s228 = scalar_select %p227, %s17, 0
          %s229 = sadd.s32 %s228, %s226
          %s230 = smul.addr %s229, 4
          %s231 = scalar_lea.vmem %s1, %s230
          %s232 = smul.u32 32, %s18
        $region62: #{generator_forward.96} parent=19 // pred_fallthru
          _
      $region20: #{generator_forward.96} parent=5 // pred_fallthru
        _
      %p233 = scmp.le.s32.totalorder 1, %s9
      %p234 = scmp.lt.s32.totalorder %s9, 3
      %p235 = pnand %p233, %p234
      %p236 = pneg %p235
      // Predicated region
      $region63: #{generator_forward.96} parent=5 // pred_check
        _
      $region64: #{generator_forward.96} parent=5 // pred_check_branch
        %238 = sbr.rel (%p235) target = $region66
      $region65: #{generator_forward.96} parent=5 // pred_region
        %s239 = ssub.s32 %s9, 1
        %s240 = sand.u32 %s43, 1
        %s241 = sand.u32 %s43, 1
        %s242 = smul.addr %s241, 32
        %s243 = scalar_lea.vmem [#allocation3], %s242
        // Predicated region
        $region67: #{generator_forward.96} parent=65 // pred_check
          %p244 = pneg %p56
        $region68: #{generator_forward.96} parent=65 // pred_check_branch
          %246 = sbr.rel (%p244) target = $region70
        $region69: #{generator_forward.96} parent=65 // pred_region
          _
        $region70: #{generator_forward.96} parent=65 // pred_fallthru
          _
        %s247 = sand.u32 %s43, 1
        %s248 = sand.u32 %s43, 1
        %s249 = smul.addr %s248, 32
        %s250 = scalar_lea.vmem [#allocation3], %s249
        %p251 = pneg %p56
        %p252 = pneg %p53
        %s253 = smul.u32 32, %s21
        %p254 = scmp.lt.s32.totalorder %s253, 63
        %s255 = scalar_select %p254, %s253, 63
        %p256 = scmp.lt.s32.totalorder %s20, 0
        %s257 = scalar_select %p256, %s20, 0
        %s258 = sadd.s32 %s257, %s255
        %s259 = smul.addr %s258, 4
        %s260 = scalar_lea.vmem %s1, %s259
        %p261 = pneg %p84
        %p262 = pneg %p81
        %p263 = scmp.lt.s32.totalorder %s20, 0
        %s264 = scalar_select %p263, %s20, 0
        %s265 = scalar_lea.vmem %s2, %s264
        %p266 = pneg %p110
        %p267 = pneg %p107
        %p268 = pneg %p138
        %p269 = pneg %p135
        %s270 = smul.u32 4, %s19
        %p271 = scmp.lt.s32.totalorder %s270, 3
        %s272 = scalar_select %p271, %s270, 3
        %p273 = scmp.lt.s32.totalorder %s20, 0
        %s274 = scalar_select %p273, %s20, 0
        %s275 = sadd.s32 %s274, %s272
        %s276 = smul.addr %s275, 4
        %s277 = scalar_lea.vmem %s3, %s276
        %s278 = smul.u32 4, %s19
        %s279 = smul.u32 2, %s21
        %s280 = smul.u32 32, %s21
        %p281 = scmp.lt.s32.totalorder %s280, 63
        %s282 = scalar_select %p281, %s280, 63
        %p283 = scmp.lt.s32.totalorder %s20, 0
        %s284 = scalar_select %p283, %s20, 0
        %s285 = sadd.s32 %s284, %s282
        %s286 = smul.addr %s285, 4
        %s287 = scalar_lea.vmem %s1, %s286
        %s288 = smul.u32 32, %s21
        %p289 = scmp.lt.s32.totalorder %s20, 0
        %s290 = scalar_select %p289, %s20, 0
        %s291 = scalar_lea.vmem %s2, %s290
        %s292 = smul.u32 4, %s19
        %p293 = scmp.lt.s32.totalorder %s292, 3
        %s294 = scalar_select %p293, %s292, 3
        %p295 = scmp.lt.s32.totalorder %s20, 0
        %s296 = scalar_select %p295, %s20, 0
        %s297 = sadd.s32 %s296, %s294
        %s298 = smul.addr %s297, 4
        %s299 = scalar_lea.vmem %s3, %s298
        %s300 = smul.u32 4, %s19
        %p302 = scmp.eq.s32.totalorder %s21, 0
        // Predicated region
        $region71: #{generator_forward.96} parent=65 // pred_check
          %p303 = pneg %p302
        $region72: #{generator_forward.96} parent=65 // pred_check_branch
          %305 = sbr.rel (%p303) target = $region74
        $region73: #{generator_forward.96} parent=65 // pred_region
          %306 = vst [vmem:[#allocation2] sm:$0xff] 0.0
          %307 = vst [vmem:[#allocation2 + $0x8] sm:$0xff] 0.0
          %308 = vst [vmem:[#allocation2 + $0x10] sm:$0xff] 0.0
          %309 = vst [vmem:[#allocation2 + $0x18] sm:$0xff] 0.0
        $region74: #{generator_forward.96} parent=65 // pred_fallthru
          _
        %v310 = vld [vmem:[#allocation2] sm:$0xff]
        %v311 = vld [vmem:[#allocation2 + $0x8] sm:$0xff]
        %v312 = vld [vmem:[#allocation2 + $0x10] sm:$0xff]
        %v313 = vld [vmem:[#allocation2 + $0x18] sm:$0xff]
        %v314 = vld [vmem:[%s243] sm:$0xff]
        %v315 = vld [vmem:[%s243 + $0x8] sm:$0xff]
        %v316 = vld [vmem:[%s243 + $0x10] sm:$0xff]
        %v317 = vld [vmem:[%s243 + $0x18] sm:$0xff]
        %v318 = vld [vmem:[%s287] sm:$0xf]
        %v319 = vld [vmem:[%s287 + $0x4] sm:$0xf]
        %v320 = vld [vmem:[%s287 + $0x8] sm:$0xf]
        %v321 = vld [vmem:[%s287 + $0xc] sm:$0xf]
        %v322 = vld [vmem:[%s287 + $0x10] sm:$0xf]
        %v323 = vld [vmem:[%s287 + $0x14] sm:$0xf]
        %v324 = vld [vmem:[%s287 + $0x18] sm:$0xf]
        %v325 = vld [vmem:[%s287 + $0x1c] sm:$0xf]
        %v326 = vld [vmem:[%s287 + $0x20] sm:$0xf]
        %v327 = vld [vmem:[%s287 + $0x24] sm:$0xf]
        %v328 = vld [vmem:[%s287 + $0x28] sm:$0xf]
        %v329 = vld [vmem:[%s287 + $0x2c] sm:$0xf]
        %v330 = vld [vmem:[%s287 + $0x30] sm:$0xf]
        %v331 = vld [vmem:[%s287 + $0x34] sm:$0xf]
        %v332 = vld [vmem:[%s287 + $0x38] sm:$0xf]
        %v333 = vld [vmem:[%s287 + $0x3c] sm:$0xf]
        %v334 = vld [vmem:[%s287 + $0x40] sm:$0xf]
        %v335 = vld [vmem:[%s287 + $0x44] sm:$0xf]
        %v336 = vld [vmem:[%s287 + $0x48] sm:$0xf]
        %v337 = vld [vmem:[%s287 + $0x4c] sm:$0xf]
        %v338 = vld [vmem:[%s287 + $0x50] sm:$0xf]
        %v339 = vld [vmem:[%s287 + $0x54] sm:$0xf]
        %v340 = vld [vmem:[%s287 + $0x58] sm:$0xf]
        %v341 = vld [vmem:[%s287 + $0x5c] sm:$0xf]
        %v342 = vld [vmem:[%s287 + $0x60] sm:$0xf]
        %v343 = vld [vmem:[%s287 + $0x64] sm:$0xf]
        %v344 = vld [vmem:[%s287 + $0x68] sm:$0xf]
        %v345 = vld [vmem:[%s287 + $0x6c] sm:$0xf]
        %v346 = vld [vmem:[%s287 + $0x70] sm:$0xf]
        %v347 = vld [vmem:[%s287 + $0x74] sm:$0xf]
        %v348 = vld [vmem:[%s287 + $0x78] sm:$0xf]
        %v349 = vld [vmem:[%s287 + $0x7c] sm:$0xf]
        %v354 = vunpack.c.l.b16 %v314
        %v355 = vunpack.c.h.b16 %v314
        %v356 = vunpack.c.l.b16 %v315
        %v357 = vunpack.c.h.b16 %v315
        %v358 = vunpack.c.l.b16 %v316
        %v359 = vunpack.c.h.b16 %v316
        %v360 = vunpack.c.l.b16 %v317
        %v361 = vunpack.c.h.b16 %v317
        %v362 = vpack.c.b16 %v356, %v354
        %v363 = vpack.c.b16 %v357, %v355
        %v364 = vpack.c.b16 %v360, %v358
        %v365 = vpack.c.b16 %v361, %v359
        %v402 = vunpack.c.l.b16 %v318
        %v403 = vunpack.c.l.b16 %v319
        %v404 = vunpack.c.l.b16 %v320
        %v405 = vunpack.c.l.b16 %v321
        %v406 = vunpack.c.l.b16 %v322
        %v407 = vunpack.c.l.b16 %v323
        %v408 = vunpack.c.l.b16 %v324
        %v409 = vunpack.c.l.b16 %v325
        %v410 = vunpack.c.l.b16 %v326
        %v411 = vunpack.c.l.b16 %v327
        %v412 = vunpack.c.l.b16 %v328
        %v413 = vunpack.c.l.b16 %v329
        %v414 = vunpack.c.l.b16 %v330
        %v415 = vunpack.c.l.b16 %v331
        %v416 = vunpack.c.l.b16 %v332
        %v417 = vunpack.c.l.b16 %v333
        %v418 = vunpack.c.l.b16 %v334
        %v419 = vunpack.c.l.b16 %v335
        %v420 = vunpack.c.l.b16 %v336
        %v421 = vunpack.c.l.b16 %v337
        %v422 = vunpack.c.l.b16 %v338
        %v423 = vunpack.c.l.b16 %v339
        %v424 = vunpack.c.l.b16 %v340
        %v425 = vunpack.c.l.b16 %v341
        %v426 = vunpack.c.l.b16 %v342
        %v427 = vunpack.c.l.b16 %v343
        %v428 = vunpack.c.l.b16 %v344
        %v429 = vunpack.c.l.b16 %v345
        %v430 = vunpack.c.l.b16 %v346
        %v431 = vunpack.c.l.b16 %v347
        %v432 = vunpack.c.l.b16 %v348
        %v433 = vunpack.c.l.b16 %v349
        %v434 = vpack.c.b16 %v403, %v402
        %v435 = vpack.c.b16 %v405, %v404
        %v436 = vpack.c.b16 %v407, %v406
        %v437 = vpack.c.b16 %v409, %v408
        %v438 = vpack.c.b16 %v411, %v410
        %v439 = vpack.c.b16 %v413, %v412
        %v440 = vpack.c.b16 %v415, %v414
        %v441 = vpack.c.b16 %v417, %v416
        %v442 = vpack.c.b16 %v419, %v418
        %v443 = vpack.c.b16 %v421, %v420
        %v444 = vpack.c.b16 %v423, %v422
        %v445 = vpack.c.b16 %v425, %v424
        %v446 = vpack.c.b16 %v427, %v426
        %v447 = vpack.c.b16 %v429, %v428
        %v448 = vpack.c.b16 %v431, %v430
        %v449 = vpack.c.b16 %v433, %v432
        %466 = vmatprep.subr.bf16.mxu0 0
        %467 = vmatpush1.bf16.msra.mxu0 %v441
        %468 = vmatprep.subr.bf16.mxu0 0
        %469 = vmatpush1.bf16.msra.mxu0 %v440
        %470 = vmatprep.subr.bf16.mxu0 0
        %471 = vmatpush1.bf16.msra.mxu0 %v439
        %472 = vmatprep.subr.bf16.mxu0 0
        %473 = vmatpush1.bf16.msra.mxu0 %v438
        %474 = vmatprep.subr.bf16.mxu0 0
        %475 = vmatpush1.bf16.msra.mxu0 %v437
        %476 = vmatprep.subr.bf16.mxu0 0
        %477 = vmatpush1.bf16.msra.mxu0 %v436
        %478 = vmatprep.subr.bf16.mxu0 0
        %479 = vmatpush1.bf16.msra.mxu0 %v435
        %480 = vmatprep.subr.bf16.mxu0 0
        %481 = vmatpush1.bf16.msra.mxu0 %v434
        %482 = vmatprep.subr.bf16.mxu0 0
        %483 = vmatpush2.bf16.msra.mxu0 %v449
        %484 = vmatprep.subr.bf16.mxu0 0
        %485 = vmatpush2.bf16.msra.mxu0 %v448
        %486 = vmatprep.subr.bf16.mxu0 0
        %487 = vmatpush2.bf16.msra.mxu0 %v447
        %488 = vmatprep.subr.bf16.mxu0 0
        %489 = vmatpush2.bf16.msra.mxu0 %v446
        %490 = vmatprep.subr.bf16.mxu0 0
        %491 = vmatpush2.bf16.msra.mxu0 %v445
        %492 = vmatprep.subr.bf16.mxu0 0
        %493 = vmatpush2.bf16.msra.mxu0 %v444
        %494 = vmatprep.subr.bf16.mxu0 0
        %495 = vmatpush2.bf16.msra.mxu0 %v443
        %496 = vmatprep.subr.bf16.mxu0 0
        %497 = vmatpush2.bf16.msra.mxu0 %v442
        %498 = vmatprep.mubr.bf16.mxu0 %v363
        %499 = vmatmul.mubr.bf16.gmra.mxu0 %v362
        %v500 = vpop.f32.mrf.mxu0
        %v501 = vadd.f32 0.0, %v500
        %v502 = vpop.f32.mrf.mxu0
        %v503 = vpop.f32.mrf.mxu0
        %v504 = vadd.f32 0.0, %v503
        %v505 = vpop.f32.mrf.mxu0
        %506 = vmatprep.mubr.bf16.mxu0 %v365
        %507 = vmatmul.mubr.bf16.gmra.mxu0 %v364
        %v508 = vpop.f32.mrf.mxu0
        %v509 = vadd.f32 0.0, %v508
        %v510 = vpop.f32.mrf.mxu0
        %v511 = vpop.f32.mrf.mxu0
        %v512 = vadd.f32 0.0, %v511
        %v513 = vpop.f32.mrf.mxu0
        %514 = vdwg.mxu0
        %v515 = vadd.f32 %v310, %v501
        %v516 = vadd.f32 %v311, %v504
        %v517 = vadd.f32 %v312, %v509
        %v518 = vadd.f32 %v313, %v512
        %519 = vst [vmem:[#allocation2] sm:$0xff] %v515
        %520 = vst [vmem:[#allocation2 + $0x8] sm:$0xff] %v516
        %521 = vst [vmem:[#allocation2 + $0x10] sm:$0xff] %v517
        %522 = vst [vmem:[#allocation2 + $0x18] sm:$0xff] %v518
        %p523 = scmp.eq.s32.totalorder %s21, 1
        // Predicated region
        $region75: #{generator_forward.96} parent=65 // pred_check
          %p524 = pneg %p523
        $region76: #{generator_forward.96} parent=65 // pred_check_branch
          %526 = sbr.rel (%p524) target = $region78
        $region77: #{generator_forward.96} parent=65 // pred_region
          %v527 = vld [vmem:[#allocation2] sm:$0xff]
          %v528 = vld [vmem:[#allocation2 + $0x8] sm:$0xff]
          %v529 = vld [vmem:[#allocation2 + $0x10] sm:$0xff]
          %v530 = vld [vmem:[#allocation2 + $0x18] sm:$0xff]
          %v531 = vld [vmem:[%s291] sm:$0x1]
          %v533 = vlaneseq
          %v534 = vshrl.u32 %v533, 7
          %v535 = vsub.s32 0, %v534
          %v536 = vrot.slane %v531, %v535
          %v538 = vadd.f32 %v527, %v536
          %v539 = vadd.f32 %v528, %v536
          %v540 = vadd.f32 %v529, %v536
          %v541 = vadd.f32 %v530, %v536
          %v542 = vpack.c.bf16 %v539, %v538
          %v543 = vpack.c.bf16 %v541, %v540
          %v546 = vunpack.c.l.b16 %v542
          %v547 = vunpack.c.h.b16 %v542
          %v548 = vunpack.c.l.b16 %v543
          %v549 = vunpack.c.h.b16 %v543
          %v550 = vpack.c.b16 %v546, %v546
          %v551 = vpack.c.b16 %v547, %v547
          %v552 = vpack.c.b16 %v548, %v548
          %v553 = vpack.c.b16 %v549, %v549
          %558 = vst [vmem:[%s299] sm:$0xf] %v550
          %559 = vst [vmem:[%s299 + $0x4] sm:$0xf] %v551
          %560 = vst [vmem:[%s299 + $0x8] sm:$0xf] %v552
          %561 = vst [vmem:[%s299 + $0xc] sm:$0xf] %v553
        $region78: #{generator_forward.96} parent=65 // pred_fallthru
          _
        %s562 = smul.u32 4, %s19
        %p563 = scmp.lt.s32.totalorder %s562, 3
        %s564 = scalar_select %p563, %s562, 3
        %p565 = scmp.lt.s32.totalorder %s20, 0
        %s566 = scalar_select %p565, %s20, 0
        %s567 = sadd.s32 %s566, %s564
        %s568 = smul.addr %s567, 4
        %s569 = scalar_lea.vmem %s3, %s568
        // Predicated region
        $region79: #{generator_forward.96} parent=65 // pred_check
          %p570 = pneg %p135
        $region80: #{generator_forward.96} parent=65 // pred_check_branch
          %572 = sbr.rel (%p570) target = $region82
        $region81: #{generator_forward.96} parent=65 // pred_region
          %s573 = smul.u32 4, %s19
        $region82: #{generator_forward.96} parent=65 // pred_fallthru
          _
        // Predicated region
        $region83: #{generator_forward.96} parent=65 // pred_check
          %p574 = pneg %p135
        $region84: #{generator_forward.96} parent=65 // pred_check_branch
          %576 = sbr.rel (%p574) target = $region86
        $region85: #{generator_forward.96} parent=65 // pred_region
          %s577 = smul.u32 4, %s19
          %p578 = scmp.lt.s32.totalorder %s577, 3
          %s579 = scalar_select %p578, %s577, 3
          %p580 = scmp.lt.s32.totalorder %s20, 0
          %s581 = scalar_select %p580, %s20, 0
          %s582 = sadd.s32 %s581, %s579
          %s583 = smul.addr %s582, 4
          %s584 = scalar_lea.vmem %s3, %s583
        $region86: #{generator_forward.96} parent=65 // pred_fallthru
          _
      $region66: #{generator_forward.96} parent=5 // pred_fallthru
        _
      %p585 = scmp.le.s32.totalorder 2, %s9
      // Predicated region
      $region87: #{generator_forward.96} parent=5 // pred_check
        %p586 = pneg %p585
      $region88: #{generator_forward.96} parent=5 // pred_check_branch
        %588 = sbr.rel (%p586) target = $region90
      $region89: #{generator_forward.96} parent=5 // pred_region
        %s589 = ssub.s32 %s9, 2
      $region90: #{generator_forward.96} parent=5 // pred_fallthru
        _
    $region6: #{generator_forward.96} parent=1 // loop_footer
      %s13 = sadd.s32 1, %s9
    $region7: #{generator_forward.96} parent=1 // loop_footer_branch
      %8 = sbr.rel target = $region3
    $region8: #{generator_forward.96} parent=1 // loop_exit
      _

// kernel: generator_forward.95
$region0: #{generator_forward.95}
  #allocation0 [shape = 'u32[]', space=smem, size = 0x4, offset = 0x4, fixed_abs, tag = 'smem constant byte address 0x4 - core index']
  #allocation1 [shape = 'u32[144,128]{1,0:T(1,128)}', space=vmem, size = 0x12000, scoped, tag = 'internal scratch']
  #allocation2 [shape = 'f32[32,128]{1,0:T(8,128)}', space=vmem, size = 0x4000, scoped, tag = 'scratch operand']
  %s0 = inlined_call_operand.vmem [shape: bf16[32,256], index: 0, kind: input, shape index: {}]
  %s1 = inlined_call_operand.vmem [shape: bf16[256,128], index: 1, kind: input, shape index: {}]
  %s2 = inlined_call_operand.vmem [shape: f32[1,128], index: 2, kind: input, shape index: {}]
  %s3 = inlined_call_operand.vmem [shape: bf16[32,128], index: 3, kind: output, shape index: {}]
  %s4 = sld [smem:[#allocation0]]
  $region30: #{generator_forward.95} parent=0
    _
  %s6 = ssub.s32 1, %s4
  %s7 = scalar_select 0, %s6, %s4
  // Predicated region
  $region2: #{generator_forward.95} parent=0 // pred_check
    _
  $region3: #{generator_forward.95} parent=0 // pred_check_branch
    %9 = sbr.rel (0) target = $region5
  $region4: #{generator_forward.95} parent=0 // pred_region
    _
  $region5: #{generator_forward.95} parent=0 // pred_fallthru
    _
  // Predicated region
  $region6: #{generator_forward.95} parent=0 // pred_check
    _
  $region7: #{generator_forward.95} parent=0 // pred_check_branch
    %11 = sbr.rel (0) target = $region9
  $region8: #{generator_forward.95} parent=0 // pred_region
    _
  $region9: #{generator_forward.95} parent=0 // pred_fallthru
    _
  // Predicated region
  $region10: #{generator_forward.95} parent=0 // pred_check
    _
  $region11: #{generator_forward.95} parent=0 // pred_check_branch
    %13 = sbr.rel (0) target = $region13
  $region12: #{generator_forward.95} parent=0 // pred_region
    _
  $region13: #{generator_forward.95} parent=0 // pred_fallthru
    _
  %p15 = scmp.eq.s32.totalorder 0, 0
  // Predicated region
  $region14: #{generator_forward.95} parent=0 // pred_check
    %p16 = pneg %p15
  $region15: #{generator_forward.95} parent=0 // pred_check_branch
    %18 = sbr.rel (%p16) target = $region17
  $region16: #{generator_forward.95} parent=0 // pred_region
    %19 = vst [vmem:[#allocation2] sm:$0xff] 0.0
    %20 = vst [vmem:[#allocation2 + $0x8] sm:$0xff] 0.0
    %21 = vst [vmem:[#allocation2 + $0x10] sm:$0xff] 0.0
    %22 = vst [vmem:[#allocation2 + $0x18] sm:$0xff] 0.0
  $region17: #{generator_forward.95} parent=0 // pred_fallthru
    _
  %v23 = vld [vmem:[#allocation2] sm:$0xff]
  %v24 = vld [vmem:[#allocation2 + $0x8] sm:$0xff]
  %v25 = vld [vmem:[#allocation2 + $0x10] sm:$0xff]
  %v26 = vld [vmem:[#allocation2 + $0x18] sm:$0xff]
  %v27 = vld [vmem:[%s0] sm:$0xff]
  %v28 = vld [vmem:[%s0 + $0x8] sm:$0xff]
  %v29 = vld [vmem:[%s0 + $0x10] sm:$0xff]
  %v30 = vld [vmem:[%s0 + $0x18] sm:$0xff]
  %v31 = vld [vmem:[%s1] sm:$0xf]
  %v32 = vld [vmem:[%s1 + $0x4] sm:$0xf]
  %v33 = vld [vmem:[%s1 + $0x8] sm:$0xf]
  %v34 = vld [vmem:[%s1 + $0xc] sm:$0xf]
  %v35 = vld [vmem:[%s1 + $0x10] sm:$0xf]
  %v36 = vld [vmem:[%s1 + $0x14] sm:$0xf]
  %v37 = vld [vmem:[%s1 + $0x18] sm:$0xf]
  %v38 = vld [vmem:[%s1 + $0x1c] sm:$0xf]
  %v39 = vld [vmem:[%s1 + $0x20] sm:$0xf]
  %v40 = vld [vmem:[%s1 + $0x24] sm:$0xf]
  %v41 = vld [vmem:[%s1 + $0x28] sm:$0xf]
  %v42 = vld [vmem:[%s1 + $0x2c] sm:$0xf]
  %v43 = vld [vmem:[%s1 + $0x30] sm:$0xf]
  %v44 = vld [vmem:[%s1 + $0x34] sm:$0xf]
  %v45 = vld [vmem:[%s1 + $0x38] sm:$0xf]
  %v46 = vld [vmem:[%s1 + $0x3c] sm:$0xf]
  %v47 = vld [vmem:[%s1 + $0x40] sm:$0xf]
  %v48 = vld [vmem:[%s1 + $0x44] sm:$0xf]
  %v49 = vld [vmem:[%s1 + $0x48] sm:$0xf]
  %v50 = vld [vmem:[%s1 + $0x4c] sm:$0xf]
  %v51 = vld [vmem:[%s1 + $0x50] sm:$0xf]
  %v52 = vld [vmem:[%s1 + $0x54] sm:$0xf]
  %v53 = vld [vmem:[%s1 + $0x58] sm:$0xf]
  %v54 = vld [vmem:[%s1 + $0x5c] sm:$0xf]
  %v55 = vld [vmem:[%s1 + $0x60] sm:$0xf]
  %v56 = vld [vmem:[%s1 + $0x64] sm:$0xf]
  %v57 = vld [vmem:[%s1 + $0x68] sm:$0xf]
  %v58 = vld [vmem:[%s1 + $0x6c] sm:$0xf]
  %v59 = vld [vmem:[%s1 + $0x70] sm:$0xf]
  %v60 = vld [vmem:[%s1 + $0x74] sm:$0xf]
  %v61 = vld [vmem:[%s1 + $0x78] sm:$0xf]
  %v62 = vld [vmem:[%s1 + $0x7c] sm:$0xf]
  %v67 = vunpack.c.l.b16 %v27
  %v68 = vunpack.c.h.b16 %v27
  %v69 = vunpack.c.l.b16 %v28
  %v70 = vunpack.c.h.b16 %v28
  %v71 = vunpack.c.l.b16 %v29
  %v72 = vunpack.c.h.b16 %v29
  %v73 = vunpack.c.l.b16 %v30
  %v74 = vunpack.c.h.b16 %v30
  %v75 = vpack.c.b16 %v69, %v67
  %v76 = vpack.c.b16 %v70, %v68
  %v77 = vpack.c.b16 %v73, %v71
  %v78 = vpack.c.b16 %v74, %v72
  %v115 = vunpack.c.l.b16 %v31
  %v116 = vunpack.c.l.b16 %v32
  %v117 = vunpack.c.l.b16 %v33
  %v118 = vunpack.c.l.b16 %v34
  %v119 = vunpack.c.l.b16 %v35
  %v120 = vunpack.c.l.b16 %v36
  %v121 = vunpack.c.l.b16 %v37
  %v122 = vunpack.c.l.b16 %v38
  %v123 = vunpack.c.l.b16 %v39
  %v124 = vunpack.c.l.b16 %v40
  %v125 = vunpack.c.l.b16 %v41
  %v126 = vunpack.c.l.b16 %v42
  %v127 = vunpack.c.l.b16 %v43
  %v128 = vunpack.c.l.b16 %v44
  %v129 = vunpack.c.l.b16 %v45
  %v130 = vunpack.c.l.b16 %v46
  %v131 = vunpack.c.l.b16 %v47
  %v132 = vunpack.c.l.b16 %v48
  %v133 = vunpack.c.l.b16 %v49
  %v134 = vunpack.c.l.b16 %v50
  %v135 = vunpack.c.l.b16 %v51
  %v136 = vunpack.c.l.b16 %v52
  %v137 = vunpack.c.l.b16 %v53
  %v138 = vunpack.c.l.b16 %v54
  %v139 = vunpack.c.l.b16 %v55
  %v140 = vunpack.c.l.b16 %v56
  %v141 = vunpack.c.l.b16 %v57
  %v142 = vunpack.c.l.b16 %v58
  %v143 = vunpack.c.l.b16 %v59
  %v144 = vunpack.c.l.b16 %v60
  %v145 = vunpack.c.l.b16 %v61
  %v146 = vunpack.c.l.b16 %v62
  %v147 = vpack.c.b16 %v116, %v115
  %v148 = vpack.c.b16 %v118, %v117
  %v149 = vpack.c.b16 %v120, %v119
  %v150 = vpack.c.b16 %v122, %v121
  %v151 = vpack.c.b16 %v124, %v123
  %v152 = vpack.c.b16 %v126, %v125
  %v153 = vpack.c.b16 %v128, %v127
  %v154 = vpack.c.b16 %v130, %v129
  %v155 = vpack.c.b16 %v132, %v131
  %v156 = vpack.c.b16 %v134, %v133
  %v157 = vpack.c.b16 %v136, %v135
  %v158 = vpack.c.b16 %v138, %v137
  %v159 = vpack.c.b16 %v140, %v139
  %v160 = vpack.c.b16 %v142, %v141
  %v161 = vpack.c.b16 %v144, %v143
  %v162 = vpack.c.b16 %v146, %v145
  %179 = vmatprep.subr.bf16.mxu0 0
  %180 = vmatpush1.bf16.msra.mxu0 %v154
  %181 = vmatprep.subr.bf16.mxu0 0
  %182 = vmatpush1.bf16.msra.mxu0 %v153
  %183 = vmatprep.subr.bf16.mxu0 0
  %184 = vmatpush1.bf16.msra.mxu0 %v152
  %185 = vmatprep.subr.bf16.mxu0 0
  %186 = vmatpush1.bf16.msra.mxu0 %v151
  %187 = vmatprep.subr.bf16.mxu0 0
  %188 = vmatpush1.bf16.msra.mxu0 %v150
  %189 = vmatprep.subr.bf16.mxu0 0
  %190 = vmatpush1.bf16.msra.mxu0 %v149
  %191 = vmatprep.subr.bf16.mxu0 0
  %192 = vmatpush1.bf16.msra.mxu0 %v148
  %193 = vmatprep.subr.bf16.mxu0 0
  %194 = vmatpush1.bf16.msra.mxu0 %v147
  %195 = vmatprep.subr.bf16.mxu0 0
  %196 = vmatpush2.bf16.msra.mxu0 %v162
  %197 = vmatprep.subr.bf16.mxu0 0
  %198 = vmatpush2.bf16.msra.mxu0 %v161
  %199 = vmatprep.subr.bf16.mxu0 0
  %200 = vmatpush2.bf16.msra.mxu0 %v160
  %201 = vmatprep.subr.bf16.mxu0 0
  %202 = vmatpush2.bf16.msra.mxu0 %v159
  %203 = vmatprep.subr.bf16.mxu0 0
  %204 = vmatpush2.bf16.msra.mxu0 %v158
  %205 = vmatprep.subr.bf16.mxu0 0
  %206 = vmatpush2.bf16.msra.mxu0 %v157
  %207 = vmatprep.subr.bf16.mxu0 0
  %208 = vmatpush2.bf16.msra.mxu0 %v156
  %209 = vmatprep.subr.bf16.mxu0 0
  %210 = vmatpush2.bf16.msra.mxu0 %v155
  %211 = vmatprep.mubr.bf16.mxu0 %v76
  %212 = vmatmul.mubr.bf16.gmra.mxu0 %v75
  %v213 = vpop.f32.mrf.mxu0
  %v214 = vadd.f32 0.0, %v213
  %v215 = vpop.f32.mrf.mxu0
  %v216 = vpop.f32.mrf.mxu0
  %v217 = vadd.f32 0.0, %v216
  %v218 = vpop.f32.mrf.mxu0
  %219 = vmatprep.mubr.bf16.mxu0 %v78
  %220 = vmatmul.mubr.bf16.gmra.mxu0 %v77
  %v221 = vpop.f32.mrf.mxu0
  %v222 = vadd.f32 0.0, %v221
  %v223 = vpop.f32.mrf.mxu0
  %v224 = vpop.f32.mrf.mxu0
  %v225 = vadd.f32 0.0, %v224
  %v226 = vpop.f32.mrf.mxu0
  %227 = vdwg.mxu0
  %v228 = vadd.f32 %v23, %v214
  %v229 = vadd.f32 %v24, %v217
  %v230 = vadd.f32 %v25, %v222
  %v231 = vadd.f32 %v26, %v225
  %232 = vst [vmem:[#allocation2] sm:$0xff] %v228
  %233 = vst [vmem:[#allocation2 + $0x8] sm:$0xff] %v229
  %234 = vst [vmem:[#allocation2 + $0x10] sm:$0xff] %v230
  %235 = vst [vmem:[#allocation2 + $0x18] sm:$0xff] %v231
  // Predicated region
  $region18: #{generator_forward.95} parent=0 // pred_check
    %p236 = pneg %p15
  $region19: #{generator_forward.95} parent=0 // pred_check_branch
    %238 = sbr.rel (%p236) target = $region21
  $region20: #{generator_forward.95} parent=0 // pred_region
    %v239 = vld [vmem:[#allocation2] sm:$0xff]
    %v240 = vld [vmem:[#allocation2 + $0x8] sm:$0xff]
    %v241 = vld [vmem:[#allocation2 + $0x10] sm:$0xff]
    %v242 = vld [vmem:[#allocation2 + $0x18] sm:$0xff]
    %v243 = vld [vmem:[%s2] sm:$0x1]
    %v245 = vlaneseq
    %v246 = vshrl.u32 %v245, 7
    %v247 = vsub.s32 0, %v246
    %v248 = vrot.slane %v243, %v247
    %v250 = vadd.f32 %v239, %v248
    %v251 = vadd.f32 %v240, %v248
    %v252 = vadd.f32 %v241, %v248
    %v253 = vadd.f32 %v242, %v248
    %v254 = vpack.c.bf16 %v251, %v250
    %v255 = vpack.c.bf16 %v253, %v252
    %v258 = vunpack.c.l.b16 %v254
    %v259 = vunpack.c.h.b16 %v254
    %v260 = vunpack.c.l.b16 %v255
    %v261 = vunpack.c.h.b16 %v255
    %v262 = vpack.c.b16 %v258, %v258
    %v263 = vpack.c.b16 %v259, %v259
    %v264 = vpack.c.b16 %v260, %v260
    %v265 = vpack.c.b16 %v261, %v261
    %270 = vst [vmem:[%s3] sm:$0xf] %v262
    %271 = vst [vmem:[%s3 + $0x4] sm:$0xf] %v263
    %272 = vst [vmem:[%s3 + $0x8] sm:$0xf] %v264
    %273 = vst [vmem:[%s3 + $0xc] sm:$0xf] %v265
  $region21: #{generator_forward.95} parent=0 // pred_fallthru
    _
  // Predicated region
  $region22: #{generator_forward.95} parent=0 // pred_check
    _
  $region23: #{generator_forward.95} parent=0 // pred_check_branch
    %275 = sbr.rel (0) target = $region25
  $region24: #{generator_forward.95} parent=0 // pred_region
    _
  $region25: #{generator_forward.95} parent=0 // pred_fallthru
    _
  // Predicated region
  $region26: #{generator_forward.95} parent=0 // pred_check
    _
  $region27: #{generator_forward.95} parent=0 // pred_check_branch
    %277 = sbr.rel (0) target = $region29
  $region28: #{generator_forward.95} parent=0 // pred_region
    _
  $region29: #{generator_forward.95} parent=0 // pred_fallthru
    _

// kernel: generator_forward.98
$region0: #{generator_forward.98}
  #allocation0 [shape = 'u32[]', space=smem, size = 0x4, offset = 0x4, fixed_abs, tag = 'smem constant byte address 0x4 - core index']
  #allocation1 [shape = 'u32[144,128]{1,0:T(1,128)}', space=vmem, size = 0x12000, scoped, tag = 'internal scratch']
  #allocation2 [shape = 'f32[32,128]{1,0:T(8,128)}', space=vmem, size = 0x4000, scoped, tag = 'scratch operand']
  %s0 = inlined_call_operand.vmem [shape: bf16[32,1024], index: 0, kind: input, shape index: {}]
  %s1 = inlined_call_operand.vmem [shape: bf16[1024,128], index: 1, kind: input, shape index: {}]
  %s2 = inlined_call_operand.vmem [shape: f32[1,128], index: 2, kind: input, shape index: {}]
  %s3 = inlined_call_operand.vmem [shape: bf16[32,128], index: 3, kind: output, shape index: {}]
  %s4 = sld [smem:[#allocation0]]
  $region91: #{generator_forward.98} parent=0
    _
  %s6 = ssub.s32 1, %s4
  %s7 = scalar_select 0, %s6, %s4
  $region1: #{generator_forward.98} parent=0
    #allocation3 [shape = 'u8[32768]{0}', space=vmem, size = 0x8000, scoped, tag = 'input window, operand 0']
    loop: start=0, step=1, limit=6
    $region2: #{generator_forward.98} parent=1 // loop_pre_header
      _
    $region3: #{generator_forward.98} parent=1 // loop_header
      %s9 = sphi 0, %s13
      %p10 = scmp.ge.s32.totalorder %s9, 6
      %s16 = sphi 0, %s35
      %s17 = sphi 0, %s31
      %s18 = sphi 0, %s27
      %s19 = sphi 0, %s16
      %s20 = sphi 0, %s17
      %s21 = sphi 0, %s18
      %s22 = sphi 0, %s19
      %s23 = sphi 0, %s20
      %s24 = sphi 0, %s21
      %s40 = sphi 0, %s42
      %s43 = sphi 0, %s40
      %s44 = sphi 0, %s43
      %s60 = sphi 0, %s44
      %s68 = sphi 0, %s70
      %s71 = sphi 0, %s68
      %s72 = sphi 0, %s71
      %s88 = sphi 0, %s72
      %s94 = sphi 0, %s96
      %s97 = sphi 0, %s94
      %s98 = sphi 0, %s97
      %s114 = sphi 0, %s98
      %s122 = sphi 0, %s124
      %s125 = sphi 0, %s122
      %s126 = sphi 0, %s125
      %s142 = sphi 0, %s126
    $region4: #{generator_forward.98} parent=1 // loop_header_branch
      %12 = sbr.rel (%p10) target = $region8
    $region5: #{generator_forward.98} parent=1 // loop_body
      %s14 = ssub.s32 %s9, 1
      %s15 = ssub.s32 %s9, 2
      %s25 = sadd.s32 1, %s18
      %p26 = scmp.ge.s32.totalorder %s25, 4
      %s27 = scalar_select %p26, 0, %s25
      %s28 = sadd.s32 1, %s17
      %s29 = scalar_select %p26, %s28, %s17
      %p30 = scmp.ge.s32.totalorder %s29, 1
      %s31 = scalar_select %p30, 0, %s29
      %s32 = sadd.s32 1, %s16
      %s33 = scalar_select %p30, %s32, %s16
      %p34 = scmp.ge.s32.totalorder %s33, 1
      %s35 = scalar_select %p34, 0, %s33
      %s36 = ssub.s32 %s16, %s35
      %s37 = ssub.s32 %s18, %s27
      %s38 = sor.u32 %s36, %s37
      %p39 = scmp.eq.s32.totalorder %s38, 0
      %s41 = sadd.s32 %s40, 1
      %s42 = scalar_select %p39, %s40, %s41
      %p45 = pneg %p39
      %p46 = scmp.eq.s32.totalorder %s9, 3
      %p47 = por %p45, %p46
      %p48 = scmp.ne.s32.totalorder %s40, %s43
      %p49 = scmp.eq.s32.totalorder %s9, 0
      %p50 = por %p48, %p49
      %p51 = scmp.ne.s32.totalorder %s40, %s43
      %p52 = scmp.eq.s32.totalorder %s14, 3
      %p53 = por %p51, %p52
      %p54 = scmp.ne.s32.totalorder %s43, %s44
      %p55 = scmp.eq.s32.totalorder %s14, 0
      %p56 = por %p54, %p55
      %p57 = scmp.ne.s32.totalorder %s43, %s44
      %p58 = scmp.eq.s32.totalorder %s15, 3
      %p59 = por %p57, %p58
      %p61 = scmp.ne.s32.totalorder %s44, %s60
      %p62 = scmp.eq.s32.totalorder %s15, 0
      %p63 = por %p61, %p62
      %s64 = ssub.s32 %s18, %s27
      %s65 = ssub.s32 %s17, %s31
      %s66 = sor.u32 %s64, %s65
      %p67 = scmp.eq.s32.totalorder %s66, 0
      %s69 = sadd.s32 %s68, 1
      %s70 = scalar_select %p67, %s68, %s69
      %p73 = pneg %p67
      %p74 = scmp.eq.s32.totalorder %s9, 3
      %p75 = por %p73, %p74
      %p76 = scmp.ne.s32.totalorder %s68, %s71
      %p77 = scmp.eq.s32.totalorder %s9, 0
      %p78 = por %p76, %p77
      %p79 = scmp.ne.s32.totalorder %s68, %s71
      %p80 = scmp.eq.s32.totalorder %s14, 3
      %p81 = por %p79, %p80
      %p82 = scmp.ne.s32.totalorder %s71, %s72
      %p83 = scmp.eq.s32.totalorder %s14, 0
      %p84 = por %p82, %p83
      %p85 = scmp.ne.s32.totalorder %s71, %s72
      %p86 = scmp.eq.s32.totalorder %s15, 3
      %p87 = por %p85, %p86
      %p89 = scmp.ne.s32.totalorder %s72, %s88
      %p90 = scmp.eq.s32.totalorder %s15, 0
      %p91 = por %p89, %p90
      %s92 = ssub.s32 %s17, %s31
      %p93 = scmp.eq.s32.totalorder %s92, 0
      %s95 = sadd.s32 %s94, 1
      %s96 = scalar_select %p93, %s94, %s95
      %p99 = pneg %p93
      %p100 = scmp.eq.s32.totalorder %s9, 3
      %p101 = por %p99, %p100
      %p102 = scmp.ne.s32.totalorder %s94, %s97
      %p103 = scmp.eq.s32.totalorder %s9, 0
      %p104 = por %p102, %p103
      %p105 = scmp.ne.s32.totalorder %s94, %s97
      %p106 = scmp.eq.s32.totalorder %s14, 3
      %p107 = por %p105, %p106
      %p108 = scmp.ne.s32.totalorder %s97, %s98
      %p109 = scmp.eq.s32.totalorder %s14, 0
      %p110 = por %p108, %p109
      %p111 = scmp.ne.s32.totalorder %s97, %s98
      %p112 = scmp.eq.s32.totalorder %s15, 3
      %p113 = por %p111, %p112
      %p115 = scmp.ne.s32.totalorder %s98, %s114
      %p116 = scmp.eq.s32.totalorder %s15, 0
      %p117 = por %p115, %p116
      %s118 = ssub.s32 %s16, %s35
      %s119 = ssub.s32 %s17, %s31
      %s120 = sor.u32 %s118, %s119
      %p121 = scmp.eq.s32.totalorder %s120, 0
      %s123 = sadd.s32 %s122, 1
      %s124 = scalar_select %p121, %s122, %s123
      %p127 = pneg %p121
      %p128 = scmp.eq.s32.totalorder %s9, 3
      %p129 = por %p127, %p128
      %p130 = scmp.ne.s32.totalorder %s122, %s125
      %p131 = scmp.eq.s32.totalorder %s9, 0
      %p132 = por %p130, %p131
      %p133 = scmp.ne.s32.totalorder %s122, %s125
      %p134 = scmp.eq.s32.totalorder %s14, 3
      %p135 = por %p133, %p134
      %p136 = scmp.ne.s32.totalorder %s125, %s126
      %p137 = scmp.eq.s32.totalorder %s14, 0
      %p138 = por %p136, %p137
      %p139 = scmp.ne.s32.totalorder %s125, %s126
      %p140 = scmp.eq.s32.totalorder %s15, 3
      %p141 = por %p139, %p140
      %p143 = scmp.ne.s32.totalorder %s126, %s142
      %p144 = scmp.eq.s32.totalorder %s15, 0
      %p145 = por %p143, %p144
      %p146 = scmp.le.s32.totalorder 1, %s9
      %p147 = scmp.lt.s32.totalorder %s9, 5
      %p148 = pnand %p146, %p147
      %p149 = pneg %p148
      // Predicated region
      $region9: #{generator_forward.98} parent=5 // pred_check
        _
      $region10: #{generator_forward.98} parent=5 // pred_check_branch
        %151 = sbr.rel (%p148) target = $region12
      $region11: #{generator_forward.98} parent=5 // pred_region
        %s152 = ssub.s32 %s9, 1
        // Predicated region
        $region13: #{generator_forward.98} parent=11 // pred_check
          %p153 = pneg %p110
        $region14: #{generator_forward.98} parent=11 // pred_check_branch
          %155 = sbr.rel (%p153) target = $region16
        $region15: #{generator_forward.98} parent=11 // pred_region
          %p156 = scmp.lt.s32.totalorder %s20, 0
          %s157 = scalar_select %p156, %s20, 0
          %s158 = scalar_lea.vmem %s2, %s157
        $region16: #{generator_forward.98} parent=11 // pred_fallthru
          _
      $region12: #{generator_forward.98} parent=5 // pred_fallthru
        _
      %p159 = scmp.lt.s32.totalorder %s9, 4
      // Predicated region
      $region17: #{generator_forward.98} parent=5 // pred_check
        %p160 = pneg %p159
      $region18: #{generator_forward.98} parent=5 // pred_check_branch
        %162 = sbr.rel (%p160) target = $region20
      $region19: #{generator_forward.98} parent=5 // pred_region
        // Predicated region
        $region21: #{generator_forward.98} parent=19 // pred_check
          %p163 = pneg %p50
        $region22: #{generator_forward.98} parent=19 // pred_check_branch
          %165 = sbr.rel (%p163) target = $region24
        $region23: #{generator_forward.98} parent=19 // pred_region
          %s166 = sand.u32 %s40, 1
          %s167 = sand.u32 %s40, 1
          %s168 = smul.addr %s167, 32
          %s169 = scalar_lea.vmem [#allocation3], %s168
          %s170 = smul.u32 4, %s16
          %s171 = smul.u32 2, %s18
          %s172 = smul.addr %s170, 8
          %s173 = sadd.s32 %s171, %s172
          %s174 = smul.addr %s173, 4
          %s175 = scalar_lea.vmem %s0, %s174
          // Predicated region
          $region25: #{generator_forward.98} parent=23 // pred_check
            _
          $region26: #{generator_forward.98} parent=23 // pred_check_branch
            %177 = sbr.rel (0) target = $region28
          $region27: #{generator_forward.98} parent=23 // pred_region
            // Predicated region
            $region29: #{generator_forward.98} parent=27 // pred_check
              _
            $region30: #{generator_forward.98} parent=27 // pred_check_branch
              %179 = sbr.rel (0) target = $region32
            $region31: #{generator_forward.98} parent=27 // pred_region
              // Predicated region
              $region44: #{generator_forward.98} parent=31 // pred_check
                _
              $region45: #{generator_forward.98} parent=31 // pred_check_branch
                %201 = sbr.rel (0) target = $region47
              $region46: #{generator_forward.98} parent=31 // pred_region
                loop: start=0, step=1, limit=1
                $region48: #{generator_forward.98} parent=46 // loop_pre_header
                  _
                $region49: #{generator_forward.98} parent=46 // loop_header
                  %s203 = sphi 0, %s207
                  %p204 = scmp.ge.s32.totalorder %s203, 1
                  %s208 = sphi %s175, %s175
                  %s209 = sphi %s169, %s169
                $region50: #{generator_forward.98} parent=46 // loop_header_branch
                  %206 = sbr.rel (%p204) target = $region54
                $region51: #{generator_forward.98} parent=46 // loop_body
                  %v210 = vld [vmem:[%s208] sm:$0xff]
                  %211 = vst [vmem:[%s209] sm:$0xff] %v210
                  %v212 = vld [vmem:[%s208 + $0x20] sm:$0xff]
                  %213 = vst [vmem:[%s209 + $0x8] sm:$0xff] %v212
                  %v214 = vld [vmem:[%s208 + $0x40] sm:$0xff]
                  %215 = vst [vmem:[%s209 + $0x10] sm:$0xff] %v214
                  %v216 = vld [vmem:[%s208 + $0x60] sm:$0xff]
                  %217 = vst [vmem:[%s209 + $0x18] sm:$0xff] %v216
                $region52: #{generator_forward.98} parent=46 // loop_footer
                  %s207 = sadd.s32 1, %s203
                $region53: #{generator_forward.98} parent=46 // loop_footer_branch
                  %202 = sbr.rel target = $region49
                $region54: #{generator_forward.98} parent=46 // loop_exit
                  _
              $region47: #{generator_forward.98} parent=31 // pred_fallthru
                _
              // Predicated region
              $region55: #{generator_forward.98} parent=31 // pred_check
                _
              $region56: #{generator_forward.98} parent=31 // pred_check_branch
                %219 = sbr.rel target = $region58
              $region57: #{generator_forward.98} parent=31 // pred_region
                _
              $region58: #{generator_forward.98} parent=31 // pred_fallthru
                _
            $region32: #{generator_forward.98} parent=27 // pred_fallthru
              _
            // Predicated region
            $region33: #{generator_forward.98} parent=27 // pred_check
              _
            $region34: #{generator_forward.98} parent=27 // pred_check_branch
              %181 = sbr.rel target = $region36
            $region35: #{generator_forward.98} parent=27 // pred_region
              %s183 = ssub.s32 256, 1
              loop: start=0, step=1, limit=1
              $region37: #{generator_forward.98} parent=35 // loop_pre_header
                _
              $region38: #{generator_forward.98} parent=35 // loop_header
                %s185 = sphi 0, %s189
                %p186 = scmp.ge.s32.totalorder %s185, 1
                %s190 = sphi %s175, %s175
                %s191 = sphi %s169, %s169
              $region39: #{generator_forward.98} parent=35 // loop_header_branch
                %188 = sbr.rel (%p186) target = $region43
              $region40: #{generator_forward.98} parent=35 // loop_body
                %v192 = vld [vmem:[%s190] sm:%s183]
                %193 = vst [vmem:[%s191] sm:%s183] %v192
                %v194 = vld [vmem:[%s190 + $0x20] sm:%s183]
                %195 = vst [vmem:[%s191 + $0x8] sm:%s183] %v194
                %v196 = vld [vmem:[%s190 + $0x40] sm:%s183]
                %197 = vst [vmem:[%s191 + $0x10] sm:%s183] %v196
                %v198 = vld [vmem:[%s190 + $0x60] sm:%s183]
                %199 = vst [vmem:[%s191 + $0x18] sm:%s183] %v198
              $region41: #{generator_forward.98} parent=35 // loop_footer
                %s189 = sadd.s32 1, %s185
              $region42: #{generator_forward.98} parent=35 // loop_footer_branch
                %184 = sbr.rel target = $region38
              $region43: #{generator_forward.98} parent=35 // loop_exit
                _
            $region36: #{generator_forward.98} parent=27 // pred_fallthru
              _
          $region28: #{generator_forward.98} parent=23 // pred_fallthru
            _
          %220 = vnop
        $region24: #{generator_forward.98} parent=19 // pred_fallthru
          _
        // Predicated region
        $region59: #{generator_forward.98} parent=19 // pred_check
          %p221 = pneg %p78
        $region60: #{generator_forward.98} parent=19 // pred_check_branch
          %223 = sbr.rel (%p221) target = $region62
        $region61: #{generator_forward.98} parent=19 // pred_region
          %s224 = smul.u32 32, %s18
          %p225 = scmp.lt.s32.totalorder %s224, 127
          %s226 = scalar_select %p225, %s224, 127
          %p227 = scmp.lt.s32.totalorder %s17, 0
          %s228 = scalar_select %p227, %s17, 0
          %s229 = sadd.s32 %s228, %s226
          %s230 = smul.addr %s229, 4
          %s231 = scalar_lea.vmem %s1, %s230
          %s232 = smul.u32 32, %s18
        $region62: #{generator_forward.98} parent=19 // pred_fallthru
          _
      $region20: #{generator_forward.98} parent=5 // pred_fallthru
        _
      %p233 = scmp.le.s32.totalorder 1, %s9
      %p234 = scmp.lt.s32.totalorder %s9, 5
      %p235 = pnand %p233, %p234
      %p236 = pneg %p235
      // Predicated region
      $region63: #{generator_forward.98} parent=5 // pred_check
        _
      $region64: #{generator_forward.98} parent=5 // pred_check_branch
        %238 = sbr.rel (%p235) target = $region66
      $region65: #{generator_forward.98} parent=5 // pred_region
        %s239 = ssub.s32 %s9, 1
        %s240 = sand.u32 %s43, 1
        %s241 = sand.u32 %s43, 1
        %s242 = smul.addr %s241, 32
        %s243 = scalar_lea.vmem [#allocation3], %s242
        // Predicated region
        $region67: #{generator_forward.98} parent=65 // pred_check
          %p244 = pneg %p56
        $region68: #{generator_forward.98} parent=65 // pred_check_branch
          %246 = sbr.rel (%p244) target = $region70
        $region69: #{generator_forward.98} parent=65 // pred_region
          _
        $region70: #{generator_forward.98} parent=65 // pred_fallthru
          _
        %s247 = sand.u32 %s43, 1
        %s248 = sand.u32 %s43, 1
        %s249 = smul.addr %s248, 32
        %s250 = scalar_lea.vmem [#allocation3], %s249
        %p251 = pneg %p56
        %p252 = pneg %p53
        %s253 = smul.u32 32, %s21
        %p254 = scmp.lt.s32.totalorder %s253, 127
        %s255 = scalar_select %p254, %s253, 127
        %p256 = scmp.lt.s32.totalorder %s20, 0
        %s257 = scalar_select %p256, %s20, 0
        %s258 = sadd.s32 %s257, %s255
        %s259 = smul.addr %s258, 4
        %s260 = scalar_lea.vmem %s1, %s259
        %p261 = pneg %p84
        %p262 = pneg %p81
        %p263 = scmp.lt.s32.totalorder %s20, 0
        %s264 = scalar_select %p263, %s20, 0
        %s265 = scalar_lea.vmem %s2, %s264
        %p266 = pneg %p110
        %p267 = pneg %p107
        %p268 = pneg %p138
        %p269 = pneg %p135
        %s270 = smul.u32 4, %s19
        %p271 = scmp.lt.s32.totalorder %s270, 3
        %s272 = scalar_select %p271, %s270, 3
        %p273 = scmp.lt.s32.totalorder %s20, 0
        %s274 = scalar_select %p273, %s20, 0
        %s275 = sadd.s32 %s274, %s272
        %s276 = smul.addr %s275, 4
        %s277 = scalar_lea.vmem %s3, %s276
        %s278 = smul.u32 4, %s19
        %s279 = smul.u32 2, %s21
        %s280 = smul.u32 32, %s21
        %p281 = scmp.lt.s32.totalorder %s280, 127
        %s282 = scalar_select %p281, %s280, 127
        %p283 = scmp.lt.s32.totalorder %s20, 0
        %s284 = scalar_select %p283, %s20, 0
        %s285 = sadd.s32 %s284, %s282
        %s286 = smul.addr %s285, 4
        %s287 = scalar_lea.vmem %s1, %s286
        %s288 = smul.u32 32, %s21
        %p289 = scmp.lt.s32.totalorder %s20, 0
        %s290 = scalar_select %p289, %s20, 0
        %s291 = scalar_lea.vmem %s2, %s290
        %s292 = smul.u32 4, %s19
        %p293 = scmp.lt.s32.totalorder %s292, 3
        %s294 = scalar_select %p293, %s292, 3
        %p295 = scmp.lt.s32.totalorder %s20, 0
        %s296 = scalar_select %p295, %s20, 0
        %s297 = sadd.s32 %s296, %s294
        %s298 = smul.addr %s297, 4
        %s299 = scalar_lea.vmem %s3, %s298
        %s300 = smul.u32 4, %s19
        %p302 = scmp.eq.s32.totalorder %s21, 0
        // Predicated region
        $region71: #{generator_forward.98} parent=65 // pred_check
          %p303 = pneg %p302
        $region72: #{generator_forward.98} parent=65 // pred_check_branch
          %305 = sbr.rel (%p303) target = $region74
        $region73: #{generator_forward.98} parent=65 // pred_region
          %306 = vst [vmem:[#allocation2] sm:$0xff] 0.0
          %307 = vst [vmem:[#allocation2 + $0x8] sm:$0xff] 0.0
          %308 = vst [vmem:[#allocation2 + $0x10] sm:$0xff] 0.0
          %309 = vst [vmem:[#allocation2 + $0x18] sm:$0xff] 0.0
        $region74: #{generator_forward.98} parent=65 // pred_fallthru
          _
        %v310 = vld [vmem:[#allocation2] sm:$0xff]
        %v311 = vld [vmem:[#allocation2 + $0x8] sm:$0xff]
        %v312 = vld [vmem:[#allocation2 + $0x10] sm:$0xff]
        %v313 = vld [vmem:[#allocation2 + $0x18] sm:$0xff]
        %v314 = vld [vmem:[%s243] sm:$0xff]
        %v315 = vld [vmem:[%s243 + $0x8] sm:$0xff]
        %v316 = vld [vmem:[%s243 + $0x10] sm:$0xff]
        %v317 = vld [vmem:[%s243 + $0x18] sm:$0xff]
        %v318 = vld [vmem:[%s287] sm:$0xf]
        %v319 = vld [vmem:[%s287 + $0x4] sm:$0xf]
        %v320 = vld [vmem:[%s287 + $0x8] sm:$0xf]
        %v321 = vld [vmem:[%s287 + $0xc] sm:$0xf]
        %v322 = vld [vmem:[%s287 + $0x10] sm:$0xf]
        %v323 = vld [vmem:[%s287 + $0x14] sm:$0xf]
        %v324 = vld [vmem:[%s287 + $0x18] sm:$0xf]
        %v325 = vld [vmem:[%s287 + $0x1c] sm:$0xf]
        %v326 = vld [vmem:[%s287 + $0x20] sm:$0xf]
        %v327 = vld [vmem:[%s287 + $0x24] sm:$0xf]
        %v328 = vld [vmem:[%s287 + $0x28] sm:$0xf]
        %v329 = vld [vmem:[%s287 + $0x2c] sm:$0xf]
        %v330 = vld [vmem:[%s287 + $0x30] sm:$0xf]
        %v331 = vld [vmem:[%s287 + $0x34] sm:$0xf]
        %v332 = vld [vmem:[%s287 + $0x38] sm:$0xf]
        %v333 = vld [vmem:[%s287 + $0x3c] sm:$0xf]
        %v334 = vld [vmem:[%s287 + $0x40] sm:$0xf]
        %v335 = vld [vmem:[%s287 + $0x44] sm:$0xf]
        %v336 = vld [vmem:[%s287 + $0x48] sm:$0xf]
        %v337 = vld [vmem:[%s287 + $0x4c] sm:$0xf]
        %v338 = vld [vmem:[%s287 + $0x50] sm:$0xf]
        %v339 = vld [vmem:[%s287 + $0x54] sm:$0xf]
        %v340 = vld [vmem:[%s287 + $0x58] sm:$0xf]
        %v341 = vld [vmem:[%s287 + $0x5c] sm:$0xf]
        %v342 = vld [vmem:[%s287 + $0x60] sm:$0xf]
        %v343 = vld [vmem:[%s287 + $0x64] sm:$0xf]
        %v344 = vld [vmem:[%s287 + $0x68] sm:$0xf]
        %v345 = vld [vmem:[%s287 + $0x6c] sm:$0xf]
        %v346 = vld [vmem:[%s287 + $0x70] sm:$0xf]
        %v347 = vld [vmem:[%s287 + $0x74] sm:$0xf]
        %v348 = vld [vmem:[%s287 + $0x78] sm:$0xf]
        %v349 = vld [vmem:[%s287 + $0x7c] sm:$0xf]
        %v354 = vunpack.c.l.b16 %v314
        %v355 = vunpack.c.h.b16 %v314
        %v356 = vunpack.c.l.b16 %v315
        %v357 = vunpack.c.h.b16 %v315
        %v358 = vunpack.c.l.b16 %v316
        %v359 = vunpack.c.h.b16 %v316
        %v360 = vunpack.c.l.b16 %v317
        %v361 = vunpack.c.h.b16 %v317
        %v362 = vpack.c.b16 %v356, %v354
        %v363 = vpack.c.b16 %v357, %v355
        %v364 = vpack.c.b16 %v360, %v358
        %v365 = vpack.c.b16 %v361, %v359
        %v402 = vunpack.c.l.b16 %v318
        %v403 = vunpack.c.l.b16 %v319
        %v404 = vunpack.c.l.b16 %v320
        %v405 = vunpack.c.l.b16 %v321
        %v406 = vunpack.c.l.b16 %v322
        %v407 = vunpack.c.l.b16 %v323
        %v408 = vunpack.c.l.b16 %v324
        %v409 = vunpack.c.l.b16 %v325
        %v410 = vunpack.c.l.b16 %v326
        %v411 = vunpack.c.l.b16 %v327
        %v412 = vunpack.c.l.b16 %v328
        %v413 = vunpack.c.l.b16 %v329
        %v414 = vunpack.c.l.b16 %v330
        %v415 = vunpack.c.l.b16 %v331
        %v416 = vunpack.c.l.b16 %v332
        %v417 = vunpack.c.l.b16 %v333
        %v418 = vunpack.c.l.b16 %v334
        %v419 = vunpack.c.l.b16 %v335
        %v420 = vunpack.c.l.b16 %v336
        %v421 = vunpack.c.l.b16 %v337
        %v422 = vunpack.c.l.b16 %v338
        %v423 = vunpack.c.l.b16 %v339
        %v424 = vunpack.c.l.b16 %v340
        %v425 = vunpack.c.l.b16 %v341
        %v426 = vunpack.c.l.b16 %v342
        %v427 = vunpack.c.l.b16 %v343
        %v428 = vunpack.c.l.b16 %v344
        %v429 = vunpack.c.l.b16 %v345
        %v430 = vunpack.c.l.b16 %v346
        %v431 = vunpack.c.l.b16 %v347
        %v432 = vunpack.c.l.b16 %v348
        %v433 = vunpack.c.l.b16 %v349
        %v434 = vpack.c.b16 %v403, %v402
        %v435 = vpack.c.b16 %v405, %v404
        %v436 = vpack.c.b16 %v407, %v406
        %v437 = vpack.c.b16 %v409, %v408
        %v438 = vpack.c.b16 %v411, %v410
        %v439 = vpack.c.b16 %v413, %v412
        %v440 = vpack.c.b16 %v415, %v414
        %v441 = vpack.c.b16 %v417, %v416
        %v442 = vpack.c.b16 %v419, %v418
        %v443 = vpack.c.b16 %v421, %v420
        %v444 = vpack.c.b16 %v423, %v422
        %v445 = vpack.c.b16 %v425, %v424
        %v446 = vpack.c.b16 %v427, %v426
        %v447 = vpack.c.b16 %v429, %v428
        %v448 = vpack.c.b16 %v431, %v430
        %v449 = vpack.c.b16 %v433, %v432
        %466 = vmatprep.subr.bf16.mxu0 0
        %467 = vmatpush1.bf16.msra.mxu0 %v441
        %468 = vmatprep.subr.bf16.mxu0 0
        %469 = vmatpush1.bf16.msra.mxu0 %v440
        %470 = vmatprep.subr.bf16.mxu0 0
        %471 = vmatpush1.bf16.msra.mxu0 %v439
        %472 = vmatprep.subr.bf16.mxu0 0
        %473 = vmatpush1.bf16.msra.mxu0 %v438
        %474 = vmatprep.subr.bf16.mxu0 0
        %475 = vmatpush1.bf16.msra.mxu0 %v437
        %476 = vmatprep.subr.bf16.mxu0 0
        %477 = vmatpush1.bf16.msra.mxu0 %v436
        %478 = vmatprep.subr.bf16.mxu0 0
        %479 = vmatpush1.bf16.msra.mxu0 %v435
        %480 = vmatprep.subr.bf16.mxu0 0
        %481 = vmatpush1.bf16.msra.mxu0 %v434
        %482 = vmatprep.subr.bf16.mxu0 0
        %483 = vmatpush2.bf16.msra.mxu0 %v449
        %484 = vmatprep.subr.bf16.mxu0 0
        %485 = vmatpush2.bf16.msra.mxu0 %v448
        %486 = vmatprep.subr.bf16.mxu0 0
        %487 = vmatpush2.bf16.msra.mxu0 %v447
        %488 = vmatprep.subr.bf16.mxu0 0
        %489 = vmatpush2.bf16.msra.mxu0 %v446
        %490 = vmatprep.subr.bf16.mxu0 0
        %491 = vmatpush2.bf16.msra.mxu0 %v445
        %492 = vmatprep.subr.bf16.mxu0 0
        %493 = vmatpush2.bf16.msra.mxu0 %v444
        %494 = vmatprep.subr.bf16.mxu0 0
        %495 = vmatpush2.bf16.msra.mxu0 %v443
        %496 = vmatprep.subr.bf16.mxu0 0
        %497 = vmatpush2.bf16.msra.mxu0 %v442
        %498 = vmatprep.mubr.bf16.mxu0 %v363
        %499 = vmatmul.mubr.bf16.gmra.mxu0 %v362
        %v500 = vpop.f32.mrf.mxu0
        %v501 = vadd.f32 0.0, %v500
        %v502 = vpop.f32.mrf.mxu0
        %v503 = vpop.f32.mrf.mxu0
        %v504 = vadd.f32 0.0, %v503
        %v505 = vpop.f32.mrf.mxu0
        %506 = vmatprep.mubr.bf16.mxu0 %v365
        %507 = vmatmul.mubr.bf16.gmra.mxu0 %v364
        %v508 = vpop.f32.mrf.mxu0
        %v509 = vadd.f32 0.0, %v508
        %v510 = vpop.f32.mrf.mxu0
        %v511 = vpop.f32.mrf.mxu0
        %v512 = vadd.f32 0.0, %v511
        %v513 = vpop.f32.mrf.mxu0
        %514 = vdwg.mxu0
        %v515 = vadd.f32 %v310, %v501
        %v516 = vadd.f32 %v311, %v504
        %v517 = vadd.f32 %v312, %v509
        %v518 = vadd.f32 %v313, %v512
        %519 = vst [vmem:[#allocation2] sm:$0xff] %v515
        %520 = vst [vmem:[#allocation2 + $0x8] sm:$0xff] %v516
        %521 = vst [vmem:[#allocation2 + $0x10] sm:$0xff] %v517
        %522 = vst [vmem:[#allocation2 + $0x18] sm:$0xff] %v518
        %p523 = scmp.eq.s32.totalorder %s21, 3
        // Predicated region
        $region75: #{generator_forward.98} parent=65 // pred_check
          %p524 = pneg %p523
        $region76: #{generator_forward.98} parent=65 // pred_check_branch
          %526 = sbr.rel (%p524) target = $region78
        $region77: #{generator_forward.98} parent=65 // pred_region
          %v527 = vld [vmem:[#allocation2] sm:$0xff]
          %v528 = vld [vmem:[#allocation2 + $0x8] sm:$0xff]
          %v529 = vld [vmem:[#allocation2 + $0x10] sm:$0xff]
          %v530 = vld [vmem:[#allocation2 + $0x18] sm:$0xff]
          %v531 = vld [vmem:[%s291] sm:$0x1]
          %v533 = vlaneseq
          %v534 = vshrl.u32 %v533, 7
          %v535 = vsub.s32 0, %v534
          %v536 = vrot.slane %v531, %v535
          %v538 = vadd.f32 %v527, %v536
          %v539 = vadd.f32 %v528, %v536
          %v540 = vadd.f32 %v529, %v536
          %v541 = vadd.f32 %v530, %v536
          %v542 = vpack.c.bf16 %v539, %v538
          %v543 = vpack.c.bf16 %v541, %v540
          %v546 = vunpack.c.l.b16 %v542
          %v547 = vunpack.c.h.b16 %v542
          %v548 = vunpack.c.l.b16 %v543
          %v549 = vunpack.c.h.b16 %v543
          %v550 = vpack.c.b16 %v546, %v546
          %v551 = vpack.c.b16 %v547, %v547
          %v552 = vpack.c.b16 %v548, %v548
          %v553 = vpack.c.b16 %v549, %v549
          %558 = vst [vmem:[%s299] sm:$0xf] %v550
          %559 = vst [vmem:[%s299 + $0x4] sm:$0xf] %v551
          %560 = vst [vmem:[%s299 + $0x8] sm:$0xf] %v552
          %561 = vst [vmem:[%s299 + $0xc] sm:$0xf] %v553
        $region78: #{generator_forward.98} parent=65 // pred_fallthru
          _
        %s562 = smul.u32 4, %s19
        %p563 = scmp.lt.s32.totalorder %s562, 3
        %s564 = scalar_select %p563, %s562, 3
        %p565 = scmp.lt.s32.totalorder %s20, 0
        %s566 = scalar_select %p565, %s20, 0
        %s567 = sadd.s32 %s566, %s564
        %s568 = smul.addr %s567, 4
        %s569 = scalar_lea.vmem %s3, %s568
        // Predicated region
        $region79: #{generator_forward.98} parent=65 // pred_check
          %p570 = pneg %p135
        $region80: #{generator_forward.98} parent=65 // pred_check_branch
          %572 = sbr.rel (%p570) target = $region82
        $region81: #{generator_forward.98} parent=65 // pred_region
          %s573 = smul.u32 4, %s19
        $region82: #{generator_forward.98} parent=65 // pred_fallthru
          _
        // Predicated region
        $region83: #{generator_forward.98} parent=65 // pred_check
          %p574 = pneg %p135
        $region84: #{generator_forward.98} parent=65 // pred_check_branch
          %576 = sbr.rel (%p574) target = $region86
        $region85: #{generator_forward.98} parent=65 // pred_region
          %s577 = smul.u32 4, %s19
          %p578 = scmp.lt.s32.totalorder %s577, 3
          %s579 = scalar_select %p578, %s577, 3
          %p580 = scmp.lt.s32.totalorder %s20, 0
          %s581 = scalar_select %p580, %s20, 0
          %s582 = sadd.s32 %s581, %s579
          %s583 = smul.addr %s582, 4
          %s584 = scalar_lea.vmem %s3, %s583
        $region86: #{generator_forward.98} parent=65 // pred_fallthru
          _
      $region66: #{generator_forward.98} parent=5 // pred_fallthru
        _
      %p585 = scmp.le.s32.totalorder 2, %s9
      // Predicated region
      $region87: #{generator_forward.98} parent=5 // pred_check
        %p586 = pneg %p585
      $region88: #{generator_forward.98} parent=5 // pred_check_branch
        %588 = sbr.rel (%p586) target = $region90
      $region89: #{generator_forward.98} parent=5 // pred_region
        %s589 = ssub.s32 %s9, 2
      $region90: #{generator_forward.98} parent=5 // pred_fallthru
        _
    $region6: #{generator_forward.98} parent=1 // loop_footer
      %s13 = sadd.s32 1, %s9
    $region7: #{generator_forward.98} parent=1 // loop_footer_branch
      %8 = sbr.rel target = $region3
    $region8: #{generator_forward.98} parent=1 // loop_exit
      _

// kernel: generator_forward.101
$region0: #{generator_forward.101}
  #allocation0 [shape = 'u32[]', space=smem, size = 0x4, offset = 0x4, fixed_abs, tag = 'smem constant byte address 0x4 - core index']
  #allocation1 [shape = 'u32[144,128]{1,0:T(1,128)}', space=vmem, size = 0x12000, scoped, tag = 'internal scratch']
  #allocation2 [shape = 'f32[128,128]{1,0:T(8,128)}', space=vmem, size = 0x10000, scoped, tag = 'scratch operand']
  %s0 = inlined_call_operand.vmem [shape: bf16[128,256], index: 0, kind: input, shape index: {}]
  %s1 = inlined_call_operand.vmem [shape: bf16[256,128], index: 1, kind: input, shape index: {}]
  %s2 = inlined_call_operand.vmem [shape: f32[1,128], index: 2, kind: input, shape index: {}]
  %s3 = inlined_call_operand.vmem [shape: bf16[128,128], index: 3, kind: output, shape index: {}]
  %s4 = sld [smem:[#allocation0]]
  $region30: #{generator_forward.101} parent=0
    _
  %s6 = ssub.s32 1, %s4
  %s7 = scalar_select 0, %s6, %s4
  // Predicated region
  $region2: #{generator_forward.101} parent=0 // pred_check
    _
  $region3: #{generator_forward.101} parent=0 // pred_check_branch
    %9 = sbr.rel (0) target = $region5
  $region4: #{generator_forward.101} parent=0 // pred_region
    _
  $region5: #{generator_forward.101} parent=0 // pred_fallthru
    _
  // Predicated region
  $region6: #{generator_forward.101} parent=0 // pred_check
    _
  $region7: #{generator_forward.101} parent=0 // pred_check_branch
    %11 = sbr.rel (0) target = $region9
  $region8: #{generator_forward.101} parent=0 // pred_region
    _
  $region9: #{generator_forward.101} parent=0 // pred_fallthru
    _
  // Predicated region
  $region10: #{generator_forward.101} parent=0 // pred_check
    _
  $region11: #{generator_forward.101} parent=0 // pred_check_branch
    %13 = sbr.rel (0) target = $region13
  $region12: #{generator_forward.101} parent=0 // pred_region
    _
  $region13: #{generator_forward.101} parent=0 // pred_fallthru
    _
  %p15 = scmp.eq.s32.totalorder 0, 0
  // Predicated region
  $region14: #{generator_forward.101} parent=0 // pred_check
    %p16 = pneg %p15
  $region15: #{generator_forward.101} parent=0 // pred_check_branch
    %18 = sbr.rel (%p16) target = $region17
  $region16: #{generator_forward.101} parent=0 // pred_region
    %19 = vst [vmem:[#allocation2] sm:$0xff] 0.0
    %20 = vst [vmem:[#allocation2 + $0x8] sm:$0xff] 0.0
    %21 = vst [vmem:[#allocation2 + $0x10] sm:$0xff] 0.0
    %22 = vst [vmem:[#allocation2 + $0x18] sm:$0xff] 0.0
    %23 = vst [vmem:[#allocation2 + $0x20] sm:$0xff] 0.0
    %24 = vst [vmem:[#allocation2 + $0x28] sm:$0xff] 0.0
    %25 = vst [vmem:[#allocation2 + $0x30] sm:$0xff] 0.0
    %26 = vst [vmem:[#allocation2 + $0x38] sm:$0xff] 0.0
    %27 = vst [vmem:[#allocation2 + $0x40] sm:$0xff] 0.0
    %28 = vst [vmem:[#allocation2 + $0x48] sm:$0xff] 0.0
    %29 = vst [vmem:[#allocation2 + $0x50] sm:$0xff] 0.0
    %30 = vst [vmem:[#allocation2 + $0x58] sm:$0xff] 0.0
    %31 = vst [vmem:[#allocation2 + $0x60] sm:$0xff] 0.0
    %32 = vst [vmem:[#allocation2 + $0x68] sm:$0xff] 0.0
    %33 = vst [vmem:[#allocation2 + $0x70] sm:$0xff] 0.0
    %34 = vst [vmem:[#allocation2 + $0x78] sm:$0xff] 0.0
  $region17: #{generator_forward.101} parent=0 // pred_fallthru
    _
  %v35 = vld [vmem:[#allocation2] sm:$0xff]
  %v36 = vld [vmem:[#allocation2 + $0x8] sm:$0xff]
  %v37 = vld [vmem:[#allocation2 + $0x10] sm:$0xff]
  %v38 = vld [vmem:[#allocation2 + $0x18] sm:$0xff]
  %v39 = vld [vmem:[#allocation2 + $0x20] sm:$0xff]
  %v40 = vld [vmem:[#allocation2 + $0x28] sm:$0xff]
  %v41 = vld [vmem:[#allocation2 + $0x30] sm:$0xff]
  %v42 = vld [vmem:[#allocation2 + $0x38] sm:$0xff]
  %v43 = vld [vmem:[#allocation2 + $0x40] sm:$0xff]
  %v44 = vld [vmem:[#allocation2 + $0x48] sm:$0xff]
  %v45 = vld [vmem:[#allocation2 + $0x50] sm:$0xff]
  %v46 = vld [vmem:[#allocation2 + $0x58] sm:$0xff]
  %v47 = vld [vmem:[#allocation2 + $0x60] sm:$0xff]
  %v48 = vld [vmem:[#allocation2 + $0x68] sm:$0xff]
  %v49 = vld [vmem:[#allocation2 + $0x70] sm:$0xff]
  %v50 = vld [vmem:[#allocation2 + $0x78] sm:$0xff]
  %v51 = vld [vmem:[%s0] sm:$0xff]
  %v52 = vld [vmem:[%s0 + $0x8] sm:$0xff]
  %v53 = vld [vmem:[%s0 + $0x10] sm:$0xff]
  %v54 = vld [vmem:[%s0 + $0x18] sm:$0xff]
  %v55 = vld [vmem:[%s0 + $0x20] sm:$0xff]
  %v56 = vld [vmem:[%s0 + $0x28] sm:$0xff]
  %v57 = vld [vmem:[%s0 + $0x30] sm:$0xff]
  %v58 = vld [vmem:[%s0 + $0x38] sm:$0xff]
  %v59 = vld [vmem:[%s0 + $0x40] sm:$0xff]
  %v60 = vld [vmem:[%s0 + $0x48] sm:$0xff]
  %v61 = vld [vmem:[%s0 + $0x50] sm:$0xff]
  %v62 = vld [vmem:[%s0 + $0x58] sm:$0xff]
  %v63 = vld [vmem:[%s0 + $0x60] sm:$0xff]
  %v64 = vld [vmem:[%s0 + $0x68] sm:$0xff]
  %v65 = vld [vmem:[%s0 + $0x70] sm:$0xff]
  %v66 = vld [vmem:[%s0 + $0x78] sm:$0xff]
  %v67 = vld [vmem:[%s1] sm:$0xf]
  %v68 = vld [vmem:[%s1 + $0x4] sm:$0xf]
  %v69 = vld [vmem:[%s1 + $0x8] sm:$0xf]
  %v70 = vld [vmem:[%s1 + $0xc] sm:$0xf]
  %v71 = vld [vmem:[%s1 + $0x10] sm:$0xf]
  %v72 = vld [vmem:[%s1 + $0x14] sm:$0xf]
  %v73 = vld [vmem:[%s1 + $0x18] sm:$0xf]
  %v74 = vld [vmem:[%s1 + $0x1c] sm:$0xf]
  %v75 = vld [vmem:[%s1 + $0x20] sm:$0xf]
  %v76 = vld [vmem:[%s1 + $0x24] sm:$0xf]
  %v77 = vld [vmem:[%s1 + $0x28] sm:$0xf]
  %v78 = vld [vmem:[%s1 + $0x2c] sm:$0xf]
  %v79 = vld [vmem:[%s1 + $0x30] sm:$0xf]
  %v80 = vld [vmem:[%s1 + $0x34] sm:$0xf]
  %v81 = vld [vmem:[%s1 + $0x38] sm:$0xf]
  %v82 = vld [vmem:[%s1 + $0x3c] sm:$0xf]
  %v83 = vld [vmem:[%s1 + $0x40] sm:$0xf]
  %v84 = vld [vmem:[%s1 + $0x44] sm:$0xf]
  %v85 = vld [vmem:[%s1 + $0x48] sm:$0xf]
  %v86 = vld [vmem:[%s1 + $0x4c] sm:$0xf]
  %v87 = vld [vmem:[%s1 + $0x50] sm:$0xf]
  %v88 = vld [vmem:[%s1 + $0x54] sm:$0xf]
  %v89 = vld [vmem:[%s1 + $0x58] sm:$0xf]
  %v90 = vld [vmem:[%s1 + $0x5c] sm:$0xf]
  %v91 = vld [vmem:[%s1 + $0x60] sm:$0xf]
  %v92 = vld [vmem:[%s1 + $0x64] sm:$0xf]
  %v93 = vld [vmem:[%s1 + $0x68] sm:$0xf]
  %v94 = vld [vmem:[%s1 + $0x6c] sm:$0xf]
  %v95 = vld [vmem:[%s1 + $0x70] sm:$0xf]
  %v96 = vld [vmem:[%s1 + $0x74] sm:$0xf]
  %v97 = vld [vmem:[%s1 + $0x78] sm:$0xf]
  %v98 = vld [vmem:[%s1 + $0x7c] sm:$0xf]
  %v115 = vunpack.c.l.b16 %v51
  %v116 = vunpack.c.h.b16 %v51
  %v117 = vunpack.c.l.b16 %v52
  %v118 = vunpack.c.h.b16 %v52
  %v119 = vunpack.c.l.b16 %v53
  %v120 = vunpack.c.h.b16 %v53
  %v121 = vunpack.c.l.b16 %v54
  %v122 = vunpack.c.h.b16 %v54
  %v123 = vunpack.c.l.b16 %v55
  %v124 = vunpack.c.h.b16 %v55
  %v125 = vunpack.c.l.b16 %v56
  %v126 = vunpack.c.h.b16 %v56
  %v127 = vunpack.c.l.b16 %v57
  %v128 = vunpack.c.h.b16 %v57
  %v129 = vunpack.c.l.b16 %v58
  %v130 = vunpack.c.h.b16 %v58
  %v131 = vunpack.c.l.b16 %v59
  %v132 = vunpack.c.h.b16 %v59
  %v133 = vunpack.c.l.b16 %v60
  %v134 = vunpack.c.h.b16 %v60
  %v135 = vunpack.c.l.b16 %v61
  %v136 = vunpack.c.h.b16 %v61
  %v137 = vunpack.c.l.b16 %v62
  %v138 = vunpack.c.h.b16 %v62
  %v139 = vunpack.c.l.b16 %v63
  %v140 = vunpack.c.h.b16 %v63
  %v141 = vunpack.c.l.b16 %v64
  %v142 = vunpack.c.h.b16 %v64
  %v143 = vunpack.c.l.b16 %v65
  %v144 = vunpack.c.h.b16 %v65
  %v145 = vunpack.c.l.b16 %v66
  %v146 = vunpack.c.h.b16 %v66
  %v147 = vpack.c.b16 %v117, %v115
  %v148 = vpack.c.b16 %v118, %v116
  %v149 = vpack.c.b16 %v121, %v119
  %v150 = vpack.c.b16 %v122, %v120
  %v151 = vpack.c.b16 %v125, %v123
  %v152 = vpack.c.b16 %v126, %v124
  %v153 = vpack.c.b16 %v129, %v127
  %v154 = vpack.c.b16 %v130, %v128
  %v155 = vpack.c.b16 %v133, %v131
  %v156 = vpack.c.b16 %v134, %v132
  %v157 = vpack.c.b16 %v137, %v135
  %v158 = vpack.c.b16 %v138, %v136
  %v159 = vpack.c.b16 %v141, %v139
  %v160 = vpack.c.b16 %v142, %v140
  %v161 = vpack.c.b16 %v145, %v143
  %v162 = vpack.c.b16 %v146, %v144
  %v211 = vunpack.c.l.b16 %v67
  %v212 = vunpack.c.l.b16 %v68
  %v213 = vunpack.c.l.b16 %v69
  %v214 = vunpack.c.l.b16 %v70
  %v215 = vunpack.c.l.b16 %v71
  %v216 = vunpack.c.l.b16 %v72
  %v217 = vunpack.c.l.b16 %v73
  %v218 = vunpack.c.l.b16 %v74
  %v219 = vunpack.c.l.b16 %v75
  %v220 = vunpack.c.l.b16 %v76
  %v221 = vunpack.c.l.b16 %v77
  %v222 = vunpack.c.l.b16 %v78
  %v223 = vunpack.c.l.b16 %v79
  %v224 = vunpack.c.l.b16 %v80
  %v225 = vunpack.c.l.b16 %v81
  %v226 = vunpack.c.l.b16 %v82
  %v227 = vunpack.c.l.b16 %v83
  %v228 = vunpack.c.l.b16 %v84
  %v229 = vunpack.c.l.b16 %v85
  %v230 = vunpack.c.l.b16 %v86
  %v231 = vunpack.c.l.b16 %v87
  %v232 = vunpack.c.l.b16 %v88
  %v233 = vunpack.c.l.b16 %v89
  %v234 = vunpack.c.l.b16 %v90
  %v235 = vunpack.c.l.b16 %v91
  %v236 = vunpack.c.l.b16 %v92
  %v237 = vunpack.c.l.b16 %v93
  %v238 = vunpack.c.l.b16 %v94
  %v239 = vunpack.c.l.b16 %v95
  %v240 = vunpack.c.l.b16 %v96
  %v241 = vunpack.c.l.b16 %v97
  %v242 = vunpack.c.l.b16 %v98
  %v243 = vpack.c.b16 %v212, %v211
  %v244 = vpack.c.b16 %v214, %v213
  %v245 = vpack.c.b16 %v216, %v215
  %v246 = vpack.c.b16 %v218, %v217
  %v247 = vpack.c.b16 %v220, %v219
  %v248 = vpack.c.b16 %v222, %v221
  %v249 = vpack.c.b16 %v224, %v223
  %v250 = vpack.c.b16 %v226, %v225
  %v251 = vpack.c.b16 %v228, %v227
  %v252 = vpack.c.b16 %v230, %v229
  %v253 = vpack.c.b16 %v232, %v231
  %v254 = vpack.c.b16 %v234, %v233
  %v255 = vpack.c.b16 %v236, %v235
  %v256 = vpack.c.b16 %v238, %v237
  %v257 = vpack.c.b16 %v240, %v239
  %v258 = vpack.c.b16 %v242, %v241
  %275 = vmatprep.subr.bf16.mxu0 0
  %276 = vmatpush1.bf16.msra.mxu0 %v250
  %277 = vmatprep.subr.bf16.mxu0 0
  %278 = vmatpush1.bf16.msra.mxu0 %v249
  %279 = vmatprep.subr.bf16.mxu0 0
  %280 = vmatpush1.bf16.msra.mxu0 %v248
  %281 = vmatprep.subr.bf16.mxu0 0
  %282 = vmatpush1.bf16.msra.mxu0 %v247
  %283 = vmatprep.subr.bf16.mxu0 0
  %284 = vmatpush1.bf16.msra.mxu0 %v246
  %285 = vmatprep.subr.bf16.mxu0 0
  %286 = vmatpush1.bf16.msra.mxu0 %v245
  %287 = vmatprep.subr.bf16.mxu0 0
  %288 = vmatpush1.bf16.msra.mxu0 %v244
  %289 = vmatprep.subr.bf16.mxu0 0
  %290 = vmatpush1.bf16.msra.mxu0 %v243
  %291 = vmatprep.subr.bf16.mxu0 0
  %292 = vmatpush2.bf16.msra.mxu0 %v258
  %293 = vmatprep.subr.bf16.mxu0 0
  %294 = vmatpush2.bf16.msra.mxu0 %v257
  %295 = vmatprep.subr.bf16.mxu0 0
  %296 = vmatpush2.bf16.msra.mxu0 %v256
  %297 = vmatprep.subr.bf16.mxu0 0
  %298 = vmatpush2.bf16.msra.mxu0 %v255
  %299 = vmatprep.subr.bf16.mxu0 0
  %300 = vmatpush2.bf16.msra.mxu0 %v254
  %301 = vmatprep.subr.bf16.mxu0 0
  %302 = vmatpush2.bf16.msra.mxu0 %v253
  %303 = vmatprep.subr.bf16.mxu0 0
  %304 = vmatpush2.bf16.msra.mxu0 %v252
  %305 = vmatprep.subr.bf16.mxu0 0
  %306 = vmatpush2.bf16.msra.mxu0 %v251
  %307 = vmatprep.mubr.bf16.mxu0 %v148
  %308 = vmatmul.mubr.bf16.gmra.mxu0 %v147
  %v309 = vpop.f32.mrf.mxu0
  %v310 = vadd.f32 0.0, %v309
  %v311 = vpop.f32.mrf.mxu0
  %v312 = vpop.f32.mrf.mxu0
  %v313 = vadd.f32 0.0, %v312
  %v314 = vpop.f32.mrf.mxu0
  %315 = vmatprep.mubr.bf16.mxu0 %v150
  %316 = vmatmul.mubr.bf16.gmra.mxu0 %v149
  %v317 = vpop.f32.mrf.mxu0
  %v318 = vadd.f32 0.0, %v317
  %v319 = vpop.f32.mrf.mxu0
  %v320 = vpop.f32.mrf.mxu0
  %v321 = vadd.f32 0.0, %v320
  %v322 = vpop.f32.mrf.mxu0
  %323 = vmatprep.mubr.bf16.mxu0 %v152
  %324 = vmatmul.mubr.bf16.gmra.mxu0 %v151
  %v325 = vpop.f32.mrf.mxu0
  %v326 = vadd.f32 0.0, %v325
  %v327 = vpop.f32.mrf.mxu0
  %v328 = vpop.f32.mrf.mxu0
  %v329 = vadd.f32 0.0, %v328
  %v330 = vpop.f32.mrf.mxu0
  %331 = vmatprep.mubr.bf16.mxu0 %v154
  %332 = vmatmul.mubr.bf16.gmra.mxu0 %v153
  %v333 = vpop.f32.mrf.mxu0
  %v334 = vadd.f32 0.0, %v333
  %v335 = vpop.f32.mrf.mxu0
  %v336 = vpop.f32.mrf.mxu0
  %v337 = vadd.f32 0.0, %v336
  %v338 = vpop.f32.mrf.mxu0
  %339 = vmatprep.mubr.bf16.mxu0 %v156
  %340 = vmatmul.mubr.bf16.gmra.mxu0 %v155
  %v341 = vpop.f32.mrf.mxu0
  %v342 = vadd.f32 0.0, %v341
  %v343 = vpop.f32.mrf.mxu0
  %v344 = vpop.f32.mrf.mxu0
  %v345 = vadd.f32 0.0, %v344
  %v346 = vpop.f32.mrf.mxu0
  %347 = vmatprep.mubr.bf16.mxu0 %v158
  %348 = vmatmul.mubr.bf16.gmra.mxu0 %v157
  %v349 = vpop.f32.mrf.mxu0
  %v350 = vadd.f32 0.0, %v349
  %v351 = vpop.f32.mrf.mxu0
  %v352 = vpop.f32.mrf.mxu0
  %v353 = vadd.f32 0.0, %v352
  %v354 = vpop.f32.mrf.mxu0
  %355 = vmatprep.mubr.bf16.mxu0 %v160
  %356 = vmatmul.mubr.bf16.gmra.mxu0 %v159
  %v357 = vpop.f32.mrf.mxu0
  %v358 = vadd.f32 0.0, %v357
  %v359 = vpop.f32.mrf.mxu0
  %v360 = vpop.f32.mrf.mxu0
  %v361 = vadd.f32 0.0, %v360
  %v362 = vpop.f32.mrf.mxu0
  %363 = vmatprep.mubr.bf16.mxu0 %v162
  %364 = vmatmul.mubr.bf16.gmra.mxu0 %v161
  %v365 = vpop.f32.mrf.mxu0
  %v366 = vadd.f32 0.0, %v365
  %v367 = vpop.f32.mrf.mxu0
  %v368 = vpop.f32.mrf.mxu0
  %v369 = vadd.f32 0.0, %v368
  %v370 = vpop.f32.mrf.mxu0
  %371 = vdwg.mxu0
  %v372 = vadd.f32 %v35, %v310
  %v373 = vadd.f32 %v36, %v313
  %v374 = vadd.f32 %v37, %v318
  %v375 = vadd.f32 %v38, %v321
  %v376 = vadd.f32 %v39, %v326
  %v377 = vadd.f32 %v40, %v329
  %v378 = vadd.f32 %v41, %v334
  %v379 = vadd.f32 %v42, %v337
  %v380 = vadd.f32 %v43, %v342
  %v381 = vadd.f32 %v44, %v345
  %v382 = vadd.f32 %v45, %v350
  %v383 = vadd.f32 %v46, %v353
  %v384 = vadd.f32 %v47, %v358
  %v385 = vadd.f32 %v48, %v361
  %v386 = vadd.f32 %v49, %v366
  %v387 = vadd.f32 %v50, %v369
  %388 = vst [vmem:[#allocation2] sm:$0xff] %v372
  %389 = vst [vmem:[#allocation2 + $0x8] sm:$0xff] %v373
  %390 = vst [vmem:[#allocation2 + $0x10] sm:$0xff] %v374
  %391 = vst [vmem:[#allocation2 + $0x18] sm:$0xff] %v375
  %392 = vst [vmem:[#allocation2 + $0x20] sm:$0xff] %v376
  %393 = vst [vmem:[#allocation2 + $0x28] sm:$0xff] %v377
  %394 = vst [vmem:[#allocation2 + $0x30] sm:$0xff] %v378
  %395 = vst [vmem:[#allocation2 + $0x38] sm:$0xff] %v379
  %396 = vst [vmem:[#allocation2 + $0x40] sm:$0xff] %v380
  %397 = vst [vmem:[#allocation2 + $0x48] sm:$0xff] %v381
  %398 = vst [vmem:[#allocation2 + $0x50] sm:$0xff] %v382
  %399 = vst [vmem:[#allocation2 + $0x58] sm:$0xff] %v383
  %400 = vst [vmem:[#allocation2 + $0x60] sm:$0xff] %v384
  %401 = vst [vmem:[#allocation2 + $0x68] sm:$0xff] %v385
  %402 = vst [vmem:[#allocation2 + $0x70] sm:$0xff] %v386
  %403 = vst [vmem:[#allocation2 + $0x78] sm:$0xff] %v387
  // Predicated region
  $region18: #{generator_forward.101} parent=0 // pred_check
    %p404 = pneg %p15
  $region19: #{generator_forward.101} parent=0 // pred_check_branch
    %406 = sbr.rel (%p404) target = $region21
  $region20: #{generator_forward.101} parent=0 // pred_region
    %v407 = vld [vmem:[#allocation2] sm:$0xff]
    %v408 = vld [vmem:[#allocation2 + $0x8] sm:$0xff]
    %v409 = vld [vmem:[#allocation2 + $0x10] sm:$0xff]
    %v410 = vld [vmem:[#allocation2 + $0x18] sm:$0xff]
    %v411 = vld [vmem:[#allocation2 + $0x20] sm:$0xff]
    %v412 = vld [vmem:[#allocation2 + $0x28] sm:$0xff]
    %v413 = vld [vmem:[#allocation2 + $0x30] sm:$0xff]
    %v414 = vld [vmem:[#allocation2 + $0x38] sm:$0xff]
    %v415 = vld [vmem:[#allocation2 + $0x40] sm:$0xff]
    %v416 = vld [vmem:[#allocation2 + $0x48] sm:$0xff]
    %v417 = vld [vmem:[#allocation2 + $0x50] sm:$0xff]
    %v418 = vld [vmem:[#allocation2 + $0x58] sm:$0xff]
    %v419 = vld [vmem:[#allocation2 + $0x60] sm:$0xff]
    %v420 = vld [vmem:[#allocation2 + $0x68] sm:$0xff]
    %v421 = vld [vmem:[#allocation2 + $0x70] sm:$0xff]
    %v422 = vld [vmem:[#allocation2 + $0x78] sm:$0xff]
    %v423 = vld [vmem:[%s2] sm:$0x1]
    %v425 = vlaneseq
    %v426 = vshrl.u32 %v425, 7
    %v427 = vsub.s32 0, %v426
    %v428 = vrot.slane %v423, %v427
    %v430 = vadd.f32 %v407, %v428
    %v431 = vadd.f32 %v408, %v428
    %v432 = vadd.f32 %v409, %v428
    %v433 = vadd.f32 %v410, %v428
    %v434 = vadd.f32 %v411, %v428
    %v435 = vadd.f32 %v412, %v428
    %v436 = vadd.f32 %v413, %v428
    %v437 = vadd.f32 %v414, %v428
    %v438 = vadd.f32 %v415, %v428
    %v439 = vadd.f32 %v416, %v428
    %v440 = vadd.f32 %v417, %v428
    %v441 = vadd.f32 %v418, %v428
    %v442 = vadd.f32 %v419, %v428
    %v443 = vadd.f32 %v420, %v428
    %v444 = vadd.f32 %v421, %v428
    %v445 = vadd.f32 %v422, %v428
    %v446 = vpack.c.bf16 %v431, %v430
    %v447 = vpack.c.bf16 %v433, %v432
    %v448 = vpack.c.bf16 %v435, %v434
    %v449 = vpack.c.bf16 %v437, %v436
    %v450 = vpack.c.bf16 %v439, %v438
    %v451 = vpack.c.bf16 %v441, %v440
    %v452 = vpack.c.bf16 %v443, %v442
    %v453 = vpack.c.bf16 %v445, %v444
    %v462 = vunpack.c.l.b16 %v446
    %v463 = vunpack.c.h.b16 %v446
    %v464 = vunpack.c.l.b16 %v447
    %v465 = vunpack.c.h.b16 %v447
    %v466 = vunpack.c.l.b16 %v448
    %v467 = vunpack.c.h.b16 %v448
    %v468 = vunpack.c.l.b16 %v449
    %v469 = vunpack.c.h.b16 %v449
    %v470 = vunpack.c.l.b16 %v450
    %v471 = vunpack.c.h.b16 %v450
    %v472 = vunpack.c.l.b16 %v451
    %v473 = vunpack.c.h.b16 %v451
    %v474 = vunpack.c.l.b16 %v452
    %v475 = vunpack.c.h.b16 %v452
    %v476 = vunpack.c.l.b16 %v453
    %v477 = vunpack.c.h.b16 %v453
    %v478 = vpack.c.b16 %v462, %v462
    %v479 = vpack.c.b16 %v463, %v463
    %v480 = vpack.c.b16 %v464, %v464
    %v481 = vpack.c.b16 %v465, %v465
    %v482 = vpack.c.b16 %v466, %v466
    %v483 = vpack.c.b16 %v467, %v467
    %v484 = vpack.c.b16 %v468, %v468
    %v485 = vpack.c.b16 %v469, %v469
    %v486 = vpack.c.b16 %v470, %v470
    %v487 = vpack.c.b16 %v471, %v471
    %v488 = vpack.c.b16 %v472, %v472
    %v489 = vpack.c.b16 %v473, %v473
    %v490 = vpack.c.b16 %v474, %v474
    %v491 = vpack.c.b16 %v475, %v475
    %v492 = vpack.c.b16 %v476, %v476
    %v493 = vpack.c.b16 %v477, %v477
    %510 = vst [vmem:[%s3] sm:$0xf] %v478
    %511 = vst [vmem:[%s3 + $0x4] sm:$0xf] %v479
    %512 = vst [vmem:[%s3 + $0x8] sm:$0xf] %v480
    %513 = vst [vmem:[%s3 + $0xc] sm:$0xf] %v481
    %514 = vst [vmem:[%s3 + $0x10] sm:$0xf] %v482
    %515 = vst [vmem:[%s3 + $0x14] sm:$0xf] %v483
    %516 = vst [vmem:[%s3 + $0x18] sm:$0xf] %v484
    %517 = vst [vmem:[%s3 + $0x1c] sm:$0xf] %v485
    %518 = vst [vmem:[%s3 + $0x20] sm:$0xf] %v486
    %519 = vst [vmem:[%s3 + $0x24] sm:$0xf] %v487
    %520 = vst [vmem:[%s3 + $0x28] sm:$0xf] %v488
    %521 = vst [vmem:[%s3 + $0x2c] sm:$0xf] %v489
    %522 = vst [vmem:[%s3 + $0x30] sm:$0xf] %v490
    %523 = vst [vmem:[%s3 + $0x34] sm:$0xf] %v491
    %524 = vst [vmem:[%s3 + $0x38] sm:$0xf] %v492
    %525 = vst [vmem:[%s3 + $0x3c] sm:$0xf] %v493
  $region21: #{generator_forward.101} parent=0 // pred_fallthru
    _
  // Predicated region
  $region22: #{generator_forward.101} parent=0 // pred_check
    _
  $region23: #{generator_forward.101} parent=0 // pred_check_branch
    %527 = sbr.rel (0) target = $region25
  $region24: #{generator_forward.101} parent=0 // pred_region
    _
  $region25: #{generator_forward.101} parent=0 // pred_fallthru
    _
  // Predicated region
  $region26: #{generator_forward.101} parent=0 // pred_check
    _
  $region27: #{generator_forward.101} parent=0 // pred_check_branch
    %529 = sbr.rel (0) target = $region29
  $region28: #{generator_forward.101} parent=0 // pred_region
    _
  $region29: #{generator_forward.101} parent=0 // pred_fallthru
    _

// kernel: generator_forward.100
$region0: #{generator_forward.100}
  #allocation0 [shape = 'u32[]', space=smem, size = 0x4, offset = 0x4, fixed_abs, tag = 'smem constant byte address 0x4 - core index']
  #allocation1 [shape = 'u32[144,128]{1,0:T(1,128)}', space=vmem, size = 0x12000, scoped, tag = 'internal scratch']
  #allocation2 [shape = 'f32[128,128]{1,0:T(8,128)}', space=vmem, size = 0x10000, scoped, tag = 'scratch operand']
  %s0 = inlined_call_operand.vmem [shape: bf16[128,128], index: 0, kind: input, shape index: {}]
  %s1 = inlined_call_operand.vmem [shape: bf16[128,128], index: 1, kind: input, shape index: {}]
  %s2 = inlined_call_operand.vmem [shape: f32[1,128], index: 2, kind: input, shape index: {}]
  %s3 = inlined_call_operand.vmem [shape: bf16[128,128], index: 3, kind: output, shape index: {}]
  %s4 = sld [smem:[#allocation0]]
  $region30: #{generator_forward.100} parent=0
    _
  %s6 = ssub.s32 1, %s4
  %s7 = scalar_select 0, %s6, %s4
  // Predicated region
  $region2: #{generator_forward.100} parent=0 // pred_check
    _
  $region3: #{generator_forward.100} parent=0 // pred_check_branch
    %9 = sbr.rel (0) target = $region5
  $region4: #{generator_forward.100} parent=0 // pred_region
    _
  $region5: #{generator_forward.100} parent=0 // pred_fallthru
    _
  // Predicated region
  $region6: #{generator_forward.100} parent=0 // pred_check
    _
  $region7: #{generator_forward.100} parent=0 // pred_check_branch
    %11 = sbr.rel (0) target = $region9
  $region8: #{generator_forward.100} parent=0 // pred_region
    _
  $region9: #{generator_forward.100} parent=0 // pred_fallthru
    _
  // Predicated region
  $region10: #{generator_forward.100} parent=0 // pred_check
    _
  $region11: #{generator_forward.100} parent=0 // pred_check_branch
    %13 = sbr.rel (0) target = $region13
  $region12: #{generator_forward.100} parent=0 // pred_region
    _
  $region13: #{generator_forward.100} parent=0 // pred_fallthru
    _
  %p15 = scmp.eq.s32.totalorder 0, 0
  // Predicated region
  $region14: #{generator_forward.100} parent=0 // pred_check
    %p16 = pneg %p15
  $region15: #{generator_forward.100} parent=0 // pred_check_branch
    %18 = sbr.rel (%p16) target = $region17
  $region16: #{generator_forward.100} parent=0 // pred_region
    %19 = vst [vmem:[#allocation2] sm:$0xff] 0.0
    %20 = vst [vmem:[#allocation2 + $0x8] sm:$0xff] 0.0
    %21 = vst [vmem:[#allocation2 + $0x10] sm:$0xff] 0.0
    %22 = vst [vmem:[#allocation2 + $0x18] sm:$0xff] 0.0
    %23 = vst [vmem:[#allocation2 + $0x20] sm:$0xff] 0.0
    %24 = vst [vmem:[#allocation2 + $0x28] sm:$0xff] 0.0
    %25 = vst [vmem:[#allocation2 + $0x30] sm:$0xff] 0.0
    %26 = vst [vmem:[#allocation2 + $0x38] sm:$0xff] 0.0
    %27 = vst [vmem:[#allocation2 + $0x40] sm:$0xff] 0.0
    %28 = vst [vmem:[#allocation2 + $0x48] sm:$0xff] 0.0
    %29 = vst [vmem:[#allocation2 + $0x50] sm:$0xff] 0.0
    %30 = vst [vmem:[#allocation2 + $0x58] sm:$0xff] 0.0
    %31 = vst [vmem:[#allocation2 + $0x60] sm:$0xff] 0.0
    %32 = vst [vmem:[#allocation2 + $0x68] sm:$0xff] 0.0
    %33 = vst [vmem:[#allocation2 + $0x70] sm:$0xff] 0.0
    %34 = vst [vmem:[#allocation2 + $0x78] sm:$0xff] 0.0
  $region17: #{generator_forward.100} parent=0 // pred_fallthru
    _
  %v35 = vld [vmem:[#allocation2] sm:$0xff]
  %v36 = vld [vmem:[#allocation2 + $0x8] sm:$0xff]
  %v37 = vld [vmem:[#allocation2 + $0x10] sm:$0xff]
  %v38 = vld [vmem:[#allocation2 + $0x18] sm:$0xff]
  %v39 = vld [vmem:[#allocation2 + $0x20] sm:$0xff]
  %v40 = vld [vmem:[#allocation2 + $0x28] sm:$0xff]
  %v41 = vld [vmem:[#allocation2 + $0x30] sm:$0xff]
  %v42 = vld [vmem:[#allocation2 + $0x38] sm:$0xff]
  %v43 = vld [vmem:[#allocation2 + $0x40] sm:$0xff]
  %v44 = vld [vmem:[#allocation2 + $0x48] sm:$0xff]
  %v45 = vld [vmem:[#allocation2 + $0x50] sm:$0xff]
  %v46 = vld [vmem:[#allocation2 + $0x58] sm:$0xff]
  %v47 = vld [vmem:[#allocation2 + $0x60] sm:$0xff]
  %v48 = vld [vmem:[#allocation2 + $0x68] sm:$0xff]
  %v49 = vld [vmem:[#allocation2 + $0x70] sm:$0xff]
  %v50 = vld [vmem:[#allocation2 + $0x78] sm:$0xff]
  %v51 = vld [vmem:[%s0] sm:$0xf]
  %v52 = vld [vmem:[%s0 + $0x4] sm:$0xf]
  %v53 = vld [vmem:[%s0 + $0x8] sm:$0xf]
  %v54 = vld [vmem:[%s0 + $0xc] sm:$0xf]
  %v55 = vld [vmem:[%s0 + $0x10] sm:$0xf]
  %v56 = vld [vmem:[%s0 + $0x14] sm:$0xf]
  %v57 = vld [vmem:[%s0 + $0x18] sm:$0xf]
  %v58 = vld [vmem:[%s0 + $0x1c] sm:$0xf]
  %v59 = vld [vmem:[%s0 + $0x20] sm:$0xf]
  %v60 = vld [vmem:[%s0 + $0x24] sm:$0xf]
  %v61 = vld [vmem:[%s0 + $0x28] sm:$0xf]
  %v62 = vld [vmem:[%s0 + $0x2c] sm:$0xf]
  %v63 = vld [vmem:[%s0 + $0x30] sm:$0xf]
  %v64 = vld [vmem:[%s0 + $0x34] sm:$0xf]
  %v65 = vld [vmem:[%s0 + $0x38] sm:$0xf]
  %v66 = vld [vmem:[%s0 + $0x3c] sm:$0xf]
  %v67 = vld [vmem:[%s1] sm:$0xf]
  %v68 = vld [vmem:[%s1 + $0x4] sm:$0xf]
  %v69 = vld [vmem:[%s1 + $0x8] sm:$0xf]
  %v70 = vld [vmem:[%s1 + $0xc] sm:$0xf]
  %v71 = vld [vmem:[%s1 + $0x10] sm:$0xf]
  %v72 = vld [vmem:[%s1 + $0x14] sm:$0xf]
  %v73 = vld [vmem:[%s1 + $0x18] sm:$0xf]
  %v74 = vld [vmem:[%s1 + $0x1c] sm:$0xf]
  %v75 = vld [vmem:[%s1 + $0x20] sm:$0xf]
  %v76 = vld [vmem:[%s1 + $0x24] sm:$0xf]
  %v77 = vld [vmem:[%s1 + $0x28] sm:$0xf]
  %v78 = vld [vmem:[%s1 + $0x2c] sm:$0xf]
  %v79 = vld [vmem:[%s1 + $0x30] sm:$0xf]
  %v80 = vld [vmem:[%s1 + $0x34] sm:$0xf]
  %v81 = vld [vmem:[%s1 + $0x38] sm:$0xf]
  %v82 = vld [vmem:[%s1 + $0x3c] sm:$0xf]
  %v99 = vunpack.c.l.b16 %v51
  %v100 = vunpack.c.l.b16 %v52
  %v101 = vunpack.c.l.b16 %v53
  %v102 = vunpack.c.l.b16 %v54
  %v103 = vunpack.c.l.b16 %v55
  %v104 = vunpack.c.l.b16 %v56
  %v105 = vunpack.c.l.b16 %v57
  %v106 = vunpack.c.l.b16 %v58
  %v107 = vunpack.c.l.b16 %v59
  %v108 = vunpack.c.l.b16 %v60
  %v109 = vunpack.c.l.b16 %v61
  %v110 = vunpack.c.l.b16 %v62
  %v111 = vunpack.c.l.b16 %v63
  %v112 = vunpack.c.l.b16 %v64
  %v113 = vunpack.c.l.b16 %v65
  %v114 = vunpack.c.l.b16 %v66
  %v115 = vpack.c.b16 %v100, %v99
  %v116 = vpack.c.b16 %v102, %v101
  %v117 = vpack.c.b16 %v104, %v103
  %v118 = vpack.c.b16 %v106, %v105
  %v119 = vpack.c.b16 %v108, %v107
  %v120 = vpack.c.b16 %v110, %v109
  %v121 = vpack.c.b16 %v112, %v111
  %v122 = vpack.c.b16 %v114, %v113
  %v147 = vunpack.c.l.b16 %v67
  %v148 = vunpack.c.l.b16 %v68
  %v149 = vunpack.c.l.b16 %v69
  %v150 = vunpack.c.l.b16 %v70
  %v151 = vunpack.c.l.b16 %v71
  %v152 = vunpack.c.l.b16 %v72
  %v153 = vunpack.c.l.b16 %v73
  %v154 = vunpack.c.l.b16 %v74
  %v155 = vunpack.c.l.b16 %v75
  %v156 = vunpack.c.l.b16 %v76
  %v157 = vunpack.c.l.b16 %v77
  %v158 = vunpack.c.l.b16 %v78
  %v159 = vunpack.c.l.b16 %v79
  %v160 = vunpack.c.l.b16 %v80
  %v161 = vunpack.c.l.b16 %v81
  %v162 = vunpack.c.l.b16 %v82
  %v163 = vpack.c.b16 %v148, %v147
  %v164 = vpack.c.b16 %v150, %v149
  %v165 = vpack.c.b16 %v152, %v151
  %v166 = vpack.c.b16 %v154, %v153
  %v167 = vpack.c.b16 %v156, %v155
  %v168 = vpack.c.b16 %v158, %v157
  %v169 = vpack.c.b16 %v160, %v159
  %v170 = vpack.c.b16 %v162, %v161
  %179 = vmatprep.subr.bf16.mxu0 0
  %180 = vmatpush1.bf16.msra.mxu0 %v170
  %181 = vmatprep.subr.bf16.mxu0 0
  %182 = vmatpush1.bf16.msra.mxu0 %v169
  %183 = vmatprep.subr.bf16.mxu0 0
  %184 = vmatpush1.bf16.msra.mxu0 %v168
  %185 = vmatprep.subr.bf16.mxu0 0
  %186 = vmatpush1.bf16.msra.mxu0 %v167
  %187 = vmatprep.subr.bf16.mxu0 0
  %188 = vmatpush1.bf16.msra.mxu0 %v166
  %189 = vmatprep.subr.bf16.mxu0 0
  %190 = vmatpush1.bf16.msra.mxu0 %v165
  %191 = vmatprep.subr.bf16.mxu0 0
  %192 = vmatpush1.bf16.msra.mxu0 %v164
  %193 = vmatprep.subr.bf16.mxu0 0
  %194 = vmatpush1.bf16.msra.mxu0 %v163
  %195 = vmatprep.subr.bf16.mxu0 0
  %196 = vmatpush2.bf16.msra.mxu0 0
  %197 = vmatprep.subr.bf16.mxu0 0
  %198 = vmatpush2.bf16.msra.mxu0 0
  %199 = vmatprep.subr.bf16.mxu0 0
  %200 = vmatpush2.bf16.msra.mxu0 0
  %201 = vmatprep.subr.bf16.mxu0 0
  %202 = vmatpush2.bf16.msra.mxu0 0
  %203 = vmatprep.subr.bf16.mxu0 0
  %204 = vmatpush2.bf16.msra.mxu0 0
  %205 = vmatprep.subr.bf16.mxu0 0
  %206 = vmatpush2.bf16.msra.mxu0 0
  %207 = vmatprep.subr.bf16.mxu0 0
  %208 = vmatpush2.bf16.msra.mxu0 0
  %209 = vmatprep.subr.bf16.mxu0 0
  %210 = vmatpush2.bf16.msra.mxu0 0
  %211 = vmatprep.mubr.bf16.mxu0 0
  %212 = vmatmul.mubr.bf16.gmra.mxu0 %v115
  %v213 = vpop.f32.mrf.mxu0
  %v214 = vadd.f32 0.0, %v213
  %v215 = vpop.f32.mrf.mxu0
  %v216 = vpop.f32.mrf.mxu0
  %v217 = vadd.f32 0.0, %v216
  %v218 = vpop.f32.mrf.mxu0
  %219 = vmatprep.mubr.bf16.mxu0 0
  %220 = vmatmul.mubr.bf16.gmra.mxu0 %v116
  %v221 = vpop.f32.mrf.mxu0
  %v222 = vadd.f32 0.0, %v221
  %v223 = vpop.f32.mrf.mxu0
  %v224 = vpop.f32.mrf.mxu0
  %v225 = vadd.f32 0.0, %v224
  %v226 = vpop.f32.mrf.mxu0
  %227 = vmatprep.mubr.bf16.mxu0 0
  %228 = vmatmul.mubr.bf16.gmra.mxu0 %v117
  %v229 = vpop.f32.mrf.mxu0
  %v230 = vadd.f32 0.0, %v229
  %v231 = vpop.f32.mrf.mxu0
  %v232 = vpop.f32.mrf.mxu0
  %v233 = vadd.f32 0.0, %v232
  %v234 = vpop.f32.mrf.mxu0
  %235 = vmatprep.mubr.bf16.mxu0 0
  %236 = vmatmul.mubr.bf16.gmra.mxu0 %v118
  %v237 = vpop.f32.mrf.mxu0
  %v238 = vadd.f32 0.0, %v237
  %v239 = vpop.f32.mrf.mxu0
  %v240 = vpop.f32.mrf.mxu0
  %v241 = vadd.f32 0.0, %v240
  %v242 = vpop.f32.mrf.mxu0
  %243 = vmatprep.mubr.bf16.mxu0 0
  %244 = vmatmul.mubr.bf16.gmra.mxu0 %v119
  %v245 = vpop.f32.mrf.mxu0
  %v246 = vadd.f32 0.0, %v245
  %v247 = vpop.f32.mrf.mxu0
  %v248 = vpop.f32.mrf.mxu0
  %v249 = vadd.f32 0.0, %v248
  %v250 = vpop.f32.mrf.mxu0
  %251 = vmatprep.mubr.bf16.mxu0 0
  %252 = vmatmul.mubr.bf16.gmra.mxu0 %v120
  %v253 = vpop.f32.mrf.mxu0
  %v254 = vadd.f32 0.0, %v253
  %v255 = vpop.f32.mrf.mxu0
  %v256 = vpop.f32.mrf.mxu0
  %v257 = vadd.f32 0.0, %v256
  %v258 = vpop.f32.mrf.mxu0
  %259 = vmatprep.mubr.bf16.mxu0 0
  %260 = vmatmul.mubr.bf16.gmra.mxu0 %v121
  %v261 = vpop.f32.mrf.mxu0
  %v262 = vadd.f32 0.0, %v261
  %v263 = vpop.f32.mrf.mxu0
  %v264 = vpop.f32.mrf.mxu0
  %v265 = vadd.f32 0.0, %v264
  %v266 = vpop.f32.mrf.mxu0
  %267 = vmatprep.mubr.bf16.mxu0 0
  %268 = vmatmul.mubr.bf16.gmra.mxu0 %v122
  %v269 = vpop.f32.mrf.mxu0
  %v270 = vadd.f32 0.0, %v269
  %v271 = vpop.f32.mrf.mxu0
  %v272 = vpop.f32.mrf.mxu0
  %v273 = vadd.f32 0.0, %v272
  %v274 = vpop.f32.mrf.mxu0
  %275 = vdwg.mxu0
  %v276 = vadd.f32 %v35, %v214
  %v277 = vadd.f32 %v36, %v217
  %v278 = vadd.f32 %v37, %v222
  %v279 = vadd.f32 %v38, %v225
  %v280 = vadd.f32 %v39, %v230
  %v281 = vadd.f32 %v40, %v233
  %v282 = vadd.f32 %v41, %v238
  %v283 = vadd.f32 %v42, %v241
  %v284 = vadd.f32 %v43, %v246
  %v285 = vadd.f32 %v44, %v249
  %v286 = vadd.f32 %v45, %v254
  %v287 = vadd.f32 %v46, %v257
  %v288 = vadd.f32 %v47, %v262
  %v289 = vadd.f32 %v48, %v265
  %v290 = vadd.f32 %v49, %v270
  %v291 = vadd.f32 %v50, %v273
  %292 = vst [vmem:[#allocation2] sm:$0xff] %v276
  %293 = vst [vmem:[#allocation2 + $0x8] sm:$0xff] %v277
  %294 = vst [vmem:[#allocation2 + $0x10] sm:$0xff] %v278
  %295 = vst [vmem:[#allocation2 + $0x18] sm:$0xff] %v279
  %296 = vst [vmem:[#allocation2 + $0x20] sm:$0xff] %v280
  %297 = vst [vmem:[#allocation2 + $0x28] sm:$0xff] %v281
  %298 = vst [vmem:[#allocation2 + $0x30] sm:$0xff] %v282
  %299 = vst [vmem:[#allocation2 + $0x38] sm:$0xff] %v283
  %300 = vst [vmem:[#allocation2 + $0x40] sm:$0xff] %v284
  %301 = vst [vmem:[#allocation2 + $0x48] sm:$0xff] %v285
  %302 = vst [vmem:[#allocation2 + $0x50] sm:$0xff] %v286
  %303 = vst [vmem:[#allocation2 + $0x58] sm:$0xff] %v287
  %304 = vst [vmem:[#allocation2 + $0x60] sm:$0xff] %v288
  %305 = vst [vmem:[#allocation2 + $0x68] sm:$0xff] %v289
  %306 = vst [vmem:[#allocation2 + $0x70] sm:$0xff] %v290
  %307 = vst [vmem:[#allocation2 + $0x78] sm:$0xff] %v291
  // Predicated region
  $region18: #{generator_forward.100} parent=0 // pred_check
    %p308 = pneg %p15
  $region19: #{generator_forward.100} parent=0 // pred_check_branch
    %310 = sbr.rel (%p308) target = $region21
  $region20: #{generator_forward.100} parent=0 // pred_region
    %v311 = vld [vmem:[#allocation2] sm:$0xff]
    %v312 = vld [vmem:[#allocation2 + $0x8] sm:$0xff]
    %v313 = vld [vmem:[#allocation2 + $0x10] sm:$0xff]
    %v314 = vld [vmem:[#allocation2 + $0x18] sm:$0xff]
    %v315 = vld [vmem:[#allocation2 + $0x20] sm:$0xff]
    %v316 = vld [vmem:[#allocation2 + $0x28] sm:$0xff]
    %v317 = vld [vmem:[#allocation2 + $0x30] sm:$0xff]
    %v318 = vld [vmem:[#allocation2 + $0x38] sm:$0xff]
    %v319 = vld [vmem:[#allocation2 + $0x40] sm:$0xff]
    %v320 = vld [vmem:[#allocation2 + $0x48] sm:$0xff]
    %v321 = vld [vmem:[#allocation2 + $0x50] sm:$0xff]
    %v322 = vld [vmem:[#allocation2 + $0x58] sm:$0xff]
    %v323 = vld [vmem:[#allocation2 + $0x60] sm:$0xff]
    %v324 = vld [vmem:[#allocation2 + $0x68] sm:$0xff]
    %v325 = vld [vmem:[#allocation2 + $0x70] sm:$0xff]
    %v326 = vld [vmem:[#allocation2 + $0x78] sm:$0xff]
    %v327 = vld [vmem:[%s2] sm:$0x1]
    %v329 = vlaneseq
    %v330 = vshrl.u32 %v329, 7
    %v331 = vsub.s32 0, %v330
    %v332 = vrot.slane %v327, %v331
    %v334 = vadd.f32 %v311, %v332
    %v335 = vadd.f32 %v312, %v332
    %v336 = vadd.f32 %v313, %v332
    %v337 = vadd.f32 %v314, %v332
    %v338 = vadd.f32 %v315, %v332
    %v339 = vadd.f32 %v316, %v332
    %v340 = vadd.f32 %v317, %v332
    %v341 = vadd.f32 %v318, %v332
    %v342 = vadd.f32 %v319, %v332
    %v343 = vadd.f32 %v320, %v332
    %v344 = vadd.f32 %v321, %v332
    %v345 = vadd.f32 %v322, %v332
    %v346 = vadd.f32 %v323, %v332
    %v347 = vadd.f32 %v324, %v332
    %v348 = vadd.f32 %v325, %v332
    %v349 = vadd.f32 %v326, %v332
    %v350 = vpack.c.bf16 %v335, %v334
    %v351 = vpack.c.bf16 %v337, %v336
    %v352 = vpack.c.bf16 %v339, %v338
    %v353 = vpack.c.bf16 %v341, %v340
    %v354 = vpack.c.bf16 %v343, %v342
    %v355 = vpack.c.bf16 %v345, %v344
    %v356 = vpack.c.bf16 %v347, %v346
    %v357 = vpack.c.bf16 %v349, %v348
    %v366 = vunpack.c.l.b16 %v350
    %v367 = vunpack.c.h.b16 %v350
    %v368 = vunpack.c.l.b16 %v351
    %v369 = vunpack.c.h.b16 %v351
    %v370 = vunpack.c.l.b16 %v352
    %v371 = vunpack.c.h.b16 %v352
    %v372 = vunpack.c.l.b16 %v353
    %v373 = vunpack.c.h.b16 %v353
    %v374 = vunpack.c.l.b16 %v354
    %v375 = vunpack.c.h.b16 %v354
    %v376 = vunpack.c.l.b16 %v355
    %v377 = vunpack.c.h.b16 %v355
    %v378 = vunpack.c.l.b16 %v356
    %v379 = vunpack.c.h.b16 %v356
    %v380 = vunpack.c.l.b16 %v357
    %v381 = vunpack.c.h.b16 %v357
    %v382 = vpack.c.b16 %v366, %v366
    %v383 = vpack.c.b16 %v367, %v367
    %v384 = vpack.c.b16 %v368, %v368
    %v385 = vpack.c.b16 %v369, %v369
    %v386 = vpack.c.b16 %v370, %v370
    %v387 = vpack.c.b16 %v371, %v371
    %v388 = vpack.c.b16 %v372, %v372
    %v389 = vpack.c.b16 %v373, %v373
    %v390 = vpack.c.b16 %v374, %v374
    %v391 = vpack.c.b16 %v375, %v375
    %v392 = vpack.c.b16 %v376, %v376
    %v393 = vpack.c.b16 %v377, %v377
    %v394 = vpack.c.b16 %v378, %v378
    %v395 = vpack.c.b16 %v379, %v379
    %v396 = vpack.c.b16 %v380, %v380
    %v397 = vpack.c.b16 %v381, %v381
    %414 = vst [vmem:[%s3] sm:$0xf] %v382
    %415 = vst [vmem:[%s3 + $0x4] sm:$0xf] %v383
    %416 = vst [vmem:[%s3 + $0x8] sm:$0xf] %v384
    %417 = vst [vmem:[%s3 + $0xc] sm:$0xf] %v385
    %418 = vst [vmem:[%s3 + $0x10] sm:$0xf] %v386
    %419 = vst [vmem:[%s3 + $0x14] sm:$0xf] %v387
    %420 = vst [vmem:[%s3 + $0x18] sm:$0xf] %v388
    %421 = vst [vmem:[%s3 + $0x1c] sm:$0xf] %v389
    %422 = vst [vmem:[%s3 + $0x20] sm:$0xf] %v390
    %423 = vst [vmem:[%s3 + $0x24] sm:$0xf] %v391
    %424 = vst [vmem:[%s3 + $0x28] sm:$0xf] %v392
    %425 = vst [vmem:[%s3 + $0x2c] sm:$0xf] %v393
    %426 = vst [vmem:[%s3 + $0x30] sm:$0xf] %v394
    %427 = vst [vmem:[%s3 + $0x34] sm:$0xf] %v395
    %428 = vst [vmem:[%s3 + $0x38] sm:$0xf] %v396
    %429 = vst [vmem:[%s3 + $0x3c] sm:$0xf] %v397
  $region21: #{generator_forward.100} parent=0 // pred_fallthru
    _
  // Predicated region
  $region22: #{generator_forward.100} parent=0 // pred_check
    _
  $region23: #{generator_forward.100} parent=0 // pred_check_branch
    %431 = sbr.rel (0) target = $region25
  $region24: #{generator_forward.100} parent=0 // pred_region
    _
  $region25: #{generator_forward.100} parent=0 // pred_fallthru
    _
  // Predicated region
  $region26: #{generator_forward.100} parent=0 // pred_check
    _
  $region27: #{generator_forward.100} parent=0 // pred_check_branch
    %433 = sbr.rel (0) target = $region29
  $region28: #{generator_forward.100} parent=0 // pred_region
    _
  $region29: #{generator_forward.100} parent=0 // pred_fallthru
    _

// kernel: generator_forward.103
$region0: #{generator_forward.103}
  #allocation0 [shape = 'u32[]', space=smem, size = 0x4, offset = 0x4, fixed_abs, tag = 'smem constant byte address 0x4 - core index']
  #allocation1 [shape = 'u32[144,128]{1,0:T(1,128)}', space=vmem, size = 0x12000, scoped, tag = 'internal scratch']
  #allocation2 [shape = 'f32[128,128]{1,0:T(8,128)}', space=vmem, size = 0x10000, scoped, tag = 'scratch operand']
  %s0 = inlined_call_operand.vmem [shape: bf16[128,512], index: 0, kind: input, shape index: {}]
  %s1 = inlined_call_operand.vmem [shape: bf16[512,128], index: 1, kind: input, shape index: {}]
  %s2 = inlined_call_operand.vmem [shape: f32[1,128], index: 2, kind: input, shape index: {}]
  %s3 = inlined_call_operand.vmem [shape: bf16[128,128], index: 3, kind: output, shape index: {}]
  %s4 = sld [smem:[#allocation0]]
  $region91: #{generator_forward.103} parent=0
    _
  %s6 = ssub.s32 1, %s4
  %s7 = scalar_select 0, %s6, %s4
  $region1: #{generator_forward.103} parent=0
    #allocation3 [shape = 'u8[131072]{0}', space=vmem, size = 0x20000, scoped, tag = 'input window, operand 0']
    loop: start=0, step=1, limit=4
    $region2: #{generator_forward.103} parent=1 // loop_pre_header
      _
    $region3: #{generator_forward.103} parent=1 // loop_header
      %s9 = sphi 0, %s13
      %p10 = scmp.ge.s32.totalorder %s9, 4
      %s16 = sphi 0, %s35
      %s17 = sphi 0, %s31
      %s18 = sphi 0, %s27
      %s19 = sphi 0, %s16
      %s20 = sphi 0, %s17
      %s21 = sphi 0, %s18
      %s22 = sphi 0, %s19
      %s23 = sphi 0, %s20
      %s24 = sphi 0, %s21
      %s40 = sphi 0, %s42
      %s43 = sphi 0, %s40
      %s44 = sphi 0, %s43
      %s60 = sphi 0, %s44
      %s68 = sphi 0, %s70
      %s71 = sphi 0, %s68
      %s72 = sphi 0, %s71
      %s88 = sphi 0, %s72
      %s94 = sphi 0, %s96
      %s97 = sphi 0, %s94
      %s98 = sphi 0, %s97
      %s114 = sphi 0, %s98
      %s122 = sphi 0, %s124
      %s125 = sphi 0, %s122
      %s126 = sphi 0, %s125
      %s142 = sphi 0, %s126
    $region4: #{generator_forward.103} parent=1 // loop_header_branch
      %12 = sbr.rel (%p10) target = $region8
    $region5: #{generator_forward.103} parent=1 // loop_body
      %s14 = ssub.s32 %s9, 1
      %s15 = ssub.s32 %s9, 2
      %s25 = sadd.s32 1, %s18
      %p26 = scmp.ge.s32.totalorder %s25, 2
      %s27 = scalar_select %p26, 0, %s25
      %s28 = sadd.s32 1, %s17
      %s29 = scalar_select %p26, %s28, %s17
      %p30 = scmp.ge.s32.totalorder %s29, 1
      %s31 = scalar_select %p30, 0, %s29
      %s32 = sadd.s32 1, %s16
      %s33 = scalar_select %p30, %s32, %s16
      %p34 = scmp.ge.s32.totalorder %s33, 1
      %s35 = scalar_select %p34, 0, %s33
      %s36 = ssub.s32 %s16, %s35
      %s37 = ssub.s32 %s18, %s27
      %s38 = sor.u32 %s36, %s37
      %p39 = scmp.eq.s32.totalorder %s38, 0
      %s41 = sadd.s32 %s40, 1
      %s42 = scalar_select %p39, %s40, %s41
      %p45 = pneg %p39
      %p46 = scmp.eq.s32.totalorder %s9, 1
      %p47 = por %p45, %p46
      %p48 = scmp.ne.s32.totalorder %s40, %s43
      %p49 = scmp.eq.s32.totalorder %s9, 0
      %p50 = por %p48, %p49
      %p51 = scmp.ne.s32.totalorder %s40, %s43
      %p52 = scmp.eq.s32.totalorder %s14, 1
      %p53 = por %p51, %p52
      %p54 = scmp.ne.s32.totalorder %s43, %s44
      %p55 = scmp.eq.s32.totalorder %s14, 0
      %p56 = por %p54, %p55
      %p57 = scmp.ne.s32.totalorder %s43, %s44
      %p58 = scmp.eq.s32.totalorder %s15, 1
      %p59 = por %p57, %p58
      %p61 = scmp.ne.s32.totalorder %s44, %s60
      %p62 = scmp.eq.s32.totalorder %s15, 0
      %p63 = por %p61, %p62
      %s64 = ssub.s32 %s18, %s27
      %s65 = ssub.s32 %s17, %s31
      %s66 = sor.u32 %s64, %s65
      %p67 = scmp.eq.s32.totalorder %s66, 0
      %s69 = sadd.s32 %s68, 1
      %s70 = scalar_select %p67, %s68, %s69
      %p73 = pneg %p67
      %p74 = scmp.eq.s32.totalorder %s9, 1
      %p75 = por %p73, %p74
      %p76 = scmp.ne.s32.totalorder %s68, %s71
      %p77 = scmp.eq.s32.totalorder %s9, 0
      %p78 = por %p76, %p77
      %p79 = scmp.ne.s32.totalorder %s68, %s71
      %p80 = scmp.eq.s32.totalorder %s14, 1
      %p81 = por %p79, %p80
      %p82 = scmp.ne.s32.totalorder %s71, %s72
      %p83 = scmp.eq.s32.totalorder %s14, 0
      %p84 = por %p82, %p83
      %p85 = scmp.ne.s32.totalorder %s71, %s72
      %p86 = scmp.eq.s32.totalorder %s15, 1
      %p87 = por %p85, %p86
      %p89 = scmp.ne.s32.totalorder %s72, %s88
      %p90 = scmp.eq.s32.totalorder %s15, 0
      %p91 = por %p89, %p90
      %s92 = ssub.s32 %s17, %s31
      %p93 = scmp.eq.s32.totalorder %s92, 0
      %s95 = sadd.s32 %s94, 1
      %s96 = scalar_select %p93, %s94, %s95
      %p99 = pneg %p93
      %p100 = scmp.eq.s32.totalorder %s9, 1
      %p101 = por %p99, %p100
      %p102 = scmp.ne.s32.totalorder %s94, %s97
      %p103 = scmp.eq.s32.totalorder %s9, 0
      %p104 = por %p102, %p103
      %p105 = scmp.ne.s32.totalorder %s94, %s97
      %p106 = scmp.eq.s32.totalorder %s14, 1
      %p107 = por %p105, %p106
      %p108 = scmp.ne.s32.totalorder %s97, %s98
      %p109 = scmp.eq.s32.totalorder %s14, 0
      %p110 = por %p108, %p109
      %p111 = scmp.ne.s32.totalorder %s97, %s98
      %p112 = scmp.eq.s32.totalorder %s15, 1
      %p113 = por %p111, %p112
      %p115 = scmp.ne.s32.totalorder %s98, %s114
      %p116 = scmp.eq.s32.totalorder %s15, 0
      %p117 = por %p115, %p116
      %s118 = ssub.s32 %s16, %s35
      %s119 = ssub.s32 %s17, %s31
      %s120 = sor.u32 %s118, %s119
      %p121 = scmp.eq.s32.totalorder %s120, 0
      %s123 = sadd.s32 %s122, 1
      %s124 = scalar_select %p121, %s122, %s123
      %p127 = pneg %p121
      %p128 = scmp.eq.s32.totalorder %s9, 1
      %p129 = por %p127, %p128
      %p130 = scmp.ne.s32.totalorder %s122, %s125
      %p131 = scmp.eq.s32.totalorder %s9, 0
      %p132 = por %p130, %p131
      %p133 = scmp.ne.s32.totalorder %s122, %s125
      %p134 = scmp.eq.s32.totalorder %s14, 1
      %p135 = por %p133, %p134
      %p136 = scmp.ne.s32.totalorder %s125, %s126
      %p137 = scmp.eq.s32.totalorder %s14, 0
      %p138 = por %p136, %p137
      %p139 = scmp.ne.s32.totalorder %s125, %s126
      %p140 = scmp.eq.s32.totalorder %s15, 1
      %p141 = por %p139, %p140
      %p143 = scmp.ne.s32.totalorder %s126, %s142
      %p144 = scmp.eq.s32.totalorder %s15, 0
      %p145 = por %p143, %p144
      %p146 = scmp.le.s32.totalorder 1, %s9
      %p147 = scmp.lt.s32.totalorder %s9, 3
      %p148 = pnand %p146, %p147
      %p149 = pneg %p148
      // Predicated region
      $region9: #{generator_forward.103} parent=5 // pred_check
        _
      $region10: #{generator_forward.103} parent=5 // pred_check_branch
        %151 = sbr.rel (%p148) target = $region12
      $region11: #{generator_forward.103} parent=5 // pred_region
        %s152 = ssub.s32 %s9, 1
        // Predicated region
        $region13: #{generator_forward.103} parent=11 // pred_check
          %p153 = pneg %p110
        $region14: #{generator_forward.103} parent=11 // pred_check_branch
          %155 = sbr.rel (%p153) target = $region16
        $region15: #{generator_forward.103} parent=11 // pred_region
          %p156 = scmp.lt.s32.totalorder %s20, 0
          %s157 = scalar_select %p156, %s20, 0
          %s158 = scalar_lea.vmem %s2, %s157
        $region16: #{generator_forward.103} parent=11 // pred_fallthru
          _
      $region12: #{generator_forward.103} parent=5 // pred_fallthru
        _
      %p159 = scmp.lt.s32.totalorder %s9, 2
      // Predicated region
      $region17: #{generator_forward.103} parent=5 // pred_check
        %p160 = pneg %p159
      $region18: #{generator_forward.103} parent=5 // pred_check_branch
        %162 = sbr.rel (%p160) target = $region20
      $region19: #{generator_forward.103} parent=5 // pred_region
        // Predicated region
        $region21: #{generator_forward.103} parent=19 // pred_check
          %p163 = pneg %p50
        $region22: #{generator_forward.103} parent=19 // pred_check_branch
          %165 = sbr.rel (%p163) target = $region24
        $region23: #{generator_forward.103} parent=19 // pred_region
          %s166 = sand.u32 %s40, 1
          %s167 = sand.u32 %s40, 1
          %s168 = smul.addr %s167, 128
          %s169 = scalar_lea.vmem [#allocation3], %s168
          %s170 = smul.u32 16, %s16
          %s171 = smul.u32 2, %s18
          %s172 = smul.addr %s170, 4
          %s173 = sadd.s32 %s171, %s172
          %s174 = smul.addr %s173, 4
          %s175 = scalar_lea.vmem %s0, %s174
          // Predicated region
          $region25: #{generator_forward.103} parent=23 // pred_check
            _
          $region26: #{generator_forward.103} parent=23 // pred_check_branch
            %177 = sbr.rel (0) target = $region28
          $region27: #{generator_forward.103} parent=23 // pred_region
            // Predicated region
            $region29: #{generator_forward.103} parent=27 // pred_check
              _
            $region30: #{generator_forward.103} parent=27 // pred_check_branch
              %179 = sbr.rel (0) target = $region32
            $region31: #{generator_forward.103} parent=27 // pred_region
              // Predicated region
              $region44: #{generator_forward.103} parent=31 // pred_check
                _
              $region45: #{generator_forward.103} parent=31 // pred_check_branch
                %225 = sbr.rel (0) target = $region47
              $region46: #{generator_forward.103} parent=31 // pred_region
                loop: start=0, step=1, limit=1
                $region48: #{generator_forward.103} parent=46 // loop_pre_header
                  _
                $region49: #{generator_forward.103} parent=46 // loop_header
                  %s227 = sphi 0, %s231
                  %p228 = scmp.ge.s32.totalorder %s227, 1
                  %s232 = sphi %s175, %s175
                  %s233 = sphi %s169, %s169
                $region50: #{generator_forward.103} parent=46 // loop_header_branch
                  %230 = sbr.rel (%p228) target = $region54
                $region51: #{generator_forward.103} parent=46 // loop_body
                  %v234 = vld [vmem:[%s232] sm:$0xff]
                  %235 = vst [vmem:[%s233] sm:$0xff] %v234
                  %v236 = vld [vmem:[%s232 + $0x10] sm:$0xff]
                  %237 = vst [vmem:[%s233 + $0x8] sm:$0xff] %v236
                  %v238 = vld [vmem:[%s232 + $0x20] sm:$0xff]
                  %239 = vst [vmem:[%s233 + $0x10] sm:$0xff] %v238
                  %v240 = vld [vmem:[%s232 + $0x30] sm:$0xff]
                  %241 = vst [vmem:[%s233 + $0x18] sm:$0xff] %v240
                  %v242 = vld [vmem:[%s232 + $0x40] sm:$0xff]
                  %243 = vst [vmem:[%s233 + $0x20] sm:$0xff] %v242
                  %v244 = vld [vmem:[%s232 + $0x50] sm:$0xff]
                  %245 = vst [vmem:[%s233 + $0x28] sm:$0xff] %v244
                  %v246 = vld [vmem:[%s232 + $0x60] sm:$0xff]
                  %247 = vst [vmem:[%s233 + $0x30] sm:$0xff] %v246
                  %v248 = vld [vmem:[%s232 + $0x70] sm:$0xff]
                  %249 = vst [vmem:[%s233 + $0x38] sm:$0xff] %v248
                  %v250 = vld [vmem:[%s232 + $0x80] sm:$0xff]
                  %251 = vst [vmem:[%s233 + $0x40] sm:$0xff] %v250
                  %v252 = vld [vmem:[%s232 + $0x90] sm:$0xff]
                  %253 = vst [vmem:[%s233 + $0x48] sm:$0xff] %v252
                  %v254 = vld [vmem:[%s232 + $0xa0] sm:$0xff]
                  %255 = vst [vmem:[%s233 + $0x50] sm:$0xff] %v254
                  %v256 = vld [vmem:[%s232 + $0xb0] sm:$0xff]
                  %257 = vst [vmem:[%s233 + $0x58] sm:$0xff] %v256
                  %v258 = vld [vmem:[%s232 + $0xc0] sm:$0xff]
                  %259 = vst [vmem:[%s233 + $0x60] sm:$0xff] %v258
                  %v260 = vld [vmem:[%s232 + $0xd0] sm:$0xff]
                  %261 = vst [vmem:[%s233 + $0x68] sm:$0xff] %v260
                  %v262 = vld [vmem:[%s232 + $0xe0] sm:$0xff]
                  %263 = vst [vmem:[%s233 + $0x70] sm:$0xff] %v262
                  %v264 = vld [vmem:[%s232 + $0xf0] sm:$0xff]
                  %265 = vst [vmem:[%s233 + $0x78] sm:$0xff] %v264
                $region52: #{generator_forward.103} parent=46 // loop_footer
                  %s231 = sadd.s32 1, %s227
                $region53: #{generator_forward.103} parent=46 // loop_footer_branch
                  %226 = sbr.rel target = $region49
                $region54: #{generator_forward.103} parent=46 // loop_exit
                  _
              $region47: #{generator_forward.103} parent=31 // pred_fallthru
                _
              // Predicated region
              $region55: #{generator_forward.103} parent=31 // pred_check
                _
              $region56: #{generator_forward.103} parent=31 // pred_check_branch
                %267 = sbr.rel target = $region58
              $region57: #{generator_forward.103} parent=31 // pred_region
                _
              $region58: #{generator_forward.103} parent=31 // pred_fallthru
                _
            $region32: #{generator_forward.103} parent=27 // pred_fallthru
              _
            // Predicated region
            $region33: #{generator_forward.103} parent=27 // pred_check
              _
            $region34: #{generator_forward.103} parent=27 // pred_check_branch
              %181 = sbr.rel target = $region36
            $region35: #{generator_forward.103} parent=27 // pred_region
              %s183 = ssub.s32 256, 1
              loop: start=0, step=1, limit=1
              $region37: #{generator_forward.103} parent=35 // loop_pre_header
                _
              $region38: #{generator_forward.103} parent=35 // loop_header
                %s185 = sphi 0, %s189
                %p186 = scmp.ge.s32.totalorder %s185, 1
                %s190 = sphi %s175, %s175
                %s191 = sphi %s169, %s169
              $region39: #{generator_forward.103} parent=35 // loop_header_branch
                %188 = sbr.rel (%p186) target = $region43
              $region40: #{generator_forward.103} parent=35 // loop_body
                %v192 = vld [vmem:[%s190] sm:%s183]
                %193 = vst [vmem:[%s191] sm:%s183] %v192
                %v194 = vld [vmem:[%s190 + $0x10] sm:%s183]
                %195 = vst [vmem:[%s191 + $0x8] sm:%s183] %v194
                %v196 = vld [vmem:[%s190 + $0x20] sm:%s183]
                %197 = vst [vmem:[%s191 + $0x10] sm:%s183] %v196
                %v198 = vld [vmem:[%s190 + $0x30] sm:%s183]
                %199 = vst [vmem:[%s191 + $0x18] sm:%s183] %v198
                %v200 = vld [vmem:[%s190 + $0x40] sm:%s183]
                %201 = vst [vmem:[%s191 + $0x20] sm:%s183] %v200
                %v202 = vld [vmem:[%s190 + $0x50] sm:%s183]
                %203 = vst [vmem:[%s191 + $0x28] sm:%s183] %v202
                %v204 = vld [vmem:[%s190 + $0x60] sm:%s183]
                %205 = vst [vmem:[%s191 + $0x30] sm:%s183] %v204
                %v206 = vld [vmem:[%s190 + $0x70] sm:%s183]
                %207 = vst [vmem:[%s191 + $0x38] sm:%s183] %v206
                %v208 = vld [vmem:[%s190 + $0x80] sm:%s183]
                %209 = vst [vmem:[%s191 + $0x40] sm:%s183] %v208
                %v210 = vld [vmem:[%s190 + $0x90] sm:%s183]
                %211 = vst [vmem:[%s191 + $0x48] sm:%s183] %v210
                %v212 = vld [vmem:[%s190 + $0xa0] sm:%s183]
                %213 = vst [vmem:[%s191 + $0x50] sm:%s183] %v212
                %v214 = vld [vmem:[%s190 + $0xb0] sm:%s183]
                %215 = vst [vmem:[%s191 + $0x58] sm:%s183] %v214
                %v216 = vld [vmem:[%s190 + $0xc0] sm:%s183]
                %217 = vst [vmem:[%s191 + $0x60] sm:%s183] %v216
                %v218 = vld [vmem:[%s190 + $0xd0] sm:%s183]
                %219 = vst [vmem:[%s191 + $0x68] sm:%s183] %v218
                %v220 = vld [vmem:[%s190 + $0xe0] sm:%s183]
                %221 = vst [vmem:[%s191 + $0x70] sm:%s183] %v220
                %v222 = vld [vmem:[%s190 + $0xf0] sm:%s183]
                %223 = vst [vmem:[%s191 + $0x78] sm:%s183] %v222
              $region41: #{generator_forward.103} parent=35 // loop_footer
                %s189 = sadd.s32 1, %s185
              $region42: #{generator_forward.103} parent=35 // loop_footer_branch
                %184 = sbr.rel target = $region38
              $region43: #{generator_forward.103} parent=35 // loop_exit
                _
            $region36: #{generator_forward.103} parent=27 // pred_fallthru
              _
          $region28: #{generator_forward.103} parent=23 // pred_fallthru
            _
          %268 = vnop
        $region24: #{generator_forward.103} parent=19 // pred_fallthru
          _
        // Predicated region
        $region59: #{generator_forward.103} parent=19 // pred_check
          %p269 = pneg %p78
        $region60: #{generator_forward.103} parent=19 // pred_check_branch
          %271 = sbr.rel (%p269) target = $region62
        $region61: #{generator_forward.103} parent=19 // pred_region
          %s272 = smul.u32 32, %s18
          %p273 = scmp.lt.s32.totalorder %s272, 63
          %s274 = scalar_select %p273, %s272, 63
          %p275 = scmp.lt.s32.totalorder %s17, 0
          %s276 = scalar_select %p275, %s17, 0
          %s277 = sadd.s32 %s276, %s274
          %s278 = smul.addr %s277, 4
          %s279 = scalar_lea.vmem %s1, %s278
          %s280 = smul.u32 32, %s18
        $region62: #{generator_forward.103} parent=19 // pred_fallthru
          _
      $region20: #{generator_forward.103} parent=5 // pred_fallthru
        _
      %p281 = scmp.le.s32.totalorder 1, %s9
      %p282 = scmp.lt.s32.totalorder %s9, 3
      %p283 = pnand %p281, %p282
      %p284 = pneg %p283
      // Predicated region
      $region63: #{generator_forward.103} parent=5 // pred_check
        _
      $region64: #{generator_forward.103} parent=5 // pred_check_branch
        %286 = sbr.rel (%p283) target = $region66
      $region65: #{generator_forward.103} parent=5 // pred_region
        %s287 = ssub.s32 %s9, 1
        %s288 = sand.u32 %s43, 1
        %s289 = sand.u32 %s43, 1
        %s290 = smul.addr %s289, 128
        %s291 = scalar_lea.vmem [#allocation3], %s290
        // Predicated region
        $region67: #{generator_forward.103} parent=65 // pred_check
          %p292 = pneg %p56
        $region68: #{generator_forward.103} parent=65 // pred_check_branch
          %294 = sbr.rel (%p292) target = $region70
        $region69: #{generator_forward.103} parent=65 // pred_region
          _
        $region70: #{generator_forward.103} parent=65 // pred_fallthru
          _
        %s295 = sand.u32 %s43, 1
        %s296 = sand.u32 %s43, 1
        %s297 = smul.addr %s296, 128
        %s298 = scalar_lea.vmem [#allocation3], %s297
        %p299 = pneg %p56
        %p300 = pneg %p53
        %s301 = smul.u32 32, %s21
        %p302 = scmp.lt.s32.totalorder %s301, 63
        %s303 = scalar_select %p302, %s301, 63
        %p304 = scmp.lt.s32.totalorder %s20, 0
        %s305 = scalar_select %p304, %s20, 0
        %s306 = sadd.s32 %s305, %s303
        %s307 = smul.addr %s306, 4
        %s308 = scalar_lea.vmem %s1, %s307
        %p309 = pneg %p84
        %p310 = pneg %p81
        %p311 = scmp.lt.s32.totalorder %s20, 0
        %s312 = scalar_select %p311, %s20, 0
        %s313 = scalar_lea.vmem %s2, %s312
        %p314 = pneg %p110
        %p315 = pneg %p107
        %p316 = pneg %p138
        %p317 = pneg %p135
        %s318 = smul.u32 16, %s19
        %p319 = scmp.lt.s32.totalorder %s318, 15
        %s320 = scalar_select %p319, %s318, 15
        %p321 = scmp.lt.s32.totalorder %s20, 0
        %s322 = scalar_select %p321, %s20, 0
        %s323 = sadd.s32 %s322, %s320
        %s324 = smul.addr %s323, 4
        %s325 = scalar_lea.vmem %s3, %s324
        %s326 = smul.u32 16, %s19
        %s327 = smul.u32 2, %s21
        %s328 = smul.u32 32, %s21
        %p329 = scmp.lt.s32.totalorder %s328, 63
        %s330 = scalar_select %p329, %s328, 63
        %p331 = scmp.lt.s32.totalorder %s20, 0
        %s332 = scalar_select %p331, %s20, 0
        %s333 = sadd.s32 %s332, %s330
        %s334 = smul.addr %s333, 4
        %s335 = scalar_lea.vmem %s1, %s334
        %s336 = smul.u32 32, %s21
        %p337 = scmp.lt.s32.totalorder %s20, 0
        %s338 = scalar_select %p337, %s20, 0
        %s339 = scalar_lea.vmem %s2, %s338
        %s340 = smul.u32 16, %s19
        %p341 = scmp.lt.s32.totalorder %s340, 15
        %s342 = scalar_select %p341, %s340, 15
        %p343 = scmp.lt.s32.totalorder %s20, 0
        %s344 = scalar_select %p343, %s20, 0
        %s345 = sadd.s32 %s344, %s342
        %s346 = smul.addr %s345, 4
        %s347 = scalar_lea.vmem %s3, %s346
        %s348 = smul.u32 16, %s19
        %p350 = scmp.eq.s32.totalorder %s21, 0
        // Predicated region
        $region71: #{generator_forward.103} parent=65 // pred_check
          %p351 = pneg %p350
        $region72: #{generator_forward.103} parent=65 // pred_check_branch
          %353 = sbr.rel (%p351) target = $region74
        $region73: #{generator_forward.103} parent=65 // pred_region
          %354 = vst [vmem:[#allocation2] sm:$0xff] 0.0
          %355 = vst [vmem:[#allocation2 + $0x8] sm:$0xff] 0.0
          %356 = vst [vmem:[#allocation2 + $0x10] sm:$0xff] 0.0
          %357 = vst [vmem:[#allocation2 + $0x18] sm:$0xff] 0.0
          %358 = vst [vmem:[#allocation2 + $0x20] sm:$0xff] 0.0
          %359 = vst [vmem:[#allocation2 + $0x28] sm:$0xff] 0.0
          %360 = vst [vmem:[#allocation2 + $0x30] sm:$0xff] 0.0
          %361 = vst [vmem:[#allocation2 + $0x38] sm:$0xff] 0.0
          %362 = vst [vmem:[#allocation2 + $0x40] sm:$0xff] 0.0
          %363 = vst [vmem:[#allocation2 + $0x48] sm:$0xff] 0.0
          %364 = vst [vmem:[#allocation2 + $0x50] sm:$0xff] 0.0
          %365 = vst [vmem:[#allocation2 + $0x58] sm:$0xff] 0.0
          %366 = vst [vmem:[#allocation2 + $0x60] sm:$0xff] 0.0
          %367 = vst [vmem:[#allocation2 + $0x68] sm:$0xff] 0.0
          %368 = vst [vmem:[#allocation2 + $0x70] sm:$0xff] 0.0
          %369 = vst [vmem:[#allocation2 + $0x78] sm:$0xff] 0.0
        $region74: #{generator_forward.103} parent=65 // pred_fallthru
          _
        %v370 = vld [vmem:[#allocation2] sm:$0xff]
        %v371 = vld [vmem:[#allocation2 + $0x8] sm:$0xff]
        %v372 = vld [vmem:[#allocation2 + $0x10] sm:$0xff]
        %v373 = vld [vmem:[#allocation2 + $0x18] sm:$0xff]
        %v374 = vld [vmem:[#allocation2 + $0x20] sm:$0xff]
        %v375 = vld [vmem:[#allocation2 + $0x28] sm:$0xff]
        %v376 = vld [vmem:[#allocation2 + $0x30] sm:$0xff]
        %v377 = vld [vmem:[#allocation2 + $0x38] sm:$0xff]
        %v378 = vld [vmem:[#allocation2 + $0x40] sm:$0xff]
        %v379 = vld [vmem:[#allocation2 + $0x48] sm:$0xff]
        %v380 = vld [vmem:[#allocation2 + $0x50] sm:$0xff]
        %v381 = vld [vmem:[#allocation2 + $0x58] sm:$0xff]
        %v382 = vld [vmem:[#allocation2 + $0x60] sm:$0xff]
        %v383 = vld [vmem:[#allocation2 + $0x68] sm:$0xff]
        %v384 = vld [vmem:[#allocation2 + $0x70] sm:$0xff]
        %v385 = vld [vmem:[#allocation2 + $0x78] sm:$0xff]
        %v386 = vld [vmem:[%s291] sm:$0xff]
        %v387 = vld [vmem:[%s291 + $0x8] sm:$0xff]
        %v388 = vld [vmem:[%s291 + $0x10] sm:$0xff]
        %v389 = vld [vmem:[%s291 + $0x18] sm:$0xff]
        %v390 = vld [vmem:[%s291 + $0x20] sm:$0xff]
        %v391 = vld [vmem:[%s291 + $0x28] sm:$0xff]
        %v392 = vld [vmem:[%s291 + $0x30] sm:$0xff]
        %v393 = vld [vmem:[%s291 + $0x38] sm:$0xff]
        %v394 = vld [vmem:[%s291 + $0x40] sm:$0xff]
        %v395 = vld [vmem:[%s291 + $0x48] sm:$0xff]
        %v396 = vld [vmem:[%s291 + $0x50] sm:$0xff]
        %v397 = vld [vmem:[%s291 + $0x58] sm:$0xff]
        %v398 = vld [vmem:[%s291 + $0x60] sm:$0xff]
        %v399 = vld [vmem:[%s291 + $0x68] sm:$0xff]
        %v400 = vld [vmem:[%s291 + $0x70] sm:$0xff]
        %v401 = vld [vmem:[%s291 + $0x78] sm:$0xff]
        %v402 = vld [vmem:[%s335] sm:$0xf]
        %v403 = vld [vmem:[%s335 + $0x4] sm:$0xf]
        %v404 = vld [vmem:[%s335 + $0x8] sm:$0xf]
        %v405 = vld [vmem:[%s335 + $0xc] sm:$0xf]
        %v406 = vld [vmem:[%s335 + $0x10] sm:$0xf]
        %v407 = vld [vmem:[%s335 + $0x14] sm:$0xf]
        %v408 = vld [vmem:[%s335 + $0x18] sm:$0xf]
        %v409 = vld [vmem:[%s335 + $0x1c] sm:$0xf]
        %v410 = vld [vmem:[%s335 + $0x20] sm:$0xf]
        %v411 = vld [vmem:[%s335 + $0x24] sm:$0xf]
        %v412 = vld [vmem:[%s335 + $0x28] sm:$0xf]
        %v413 = vld [vmem:[%s335 + $0x2c] sm:$0xf]
        %v414 = vld [vmem:[%s335 + $0x30] sm:$0xf]
        %v415 = vld [vmem:[%s335 + $0x34] sm:$0xf]
        %v416 = vld [vmem:[%s335 + $0x38] sm:$0xf]
        %v417 = vld [vmem:[%s335 + $0x3c] sm:$0xf]
        %v418 = vld [vmem:[%s335 + $0x40] sm:$0xf]
        %v419 = vld [vmem:[%s335 + $0x44] sm:$0xf]
        %v420 = vld [vmem:[%s335 + $0x48] sm:$0xf]
        %v421 = vld [vmem:[%s335 + $0x4c] sm:$0xf]
        %v422 = vld [vmem:[%s335 + $0x50] sm:$0xf]
        %v423 = vld [vmem:[%s335 + $0x54] sm:$0xf]
        %v424 = vld [vmem:[%s335 + $0x58] sm:$0xf]
        %v425 = vld [vmem:[%s335 + $0x5c] sm:$0xf]
        %v426 = vld [vmem:[%s335 + $0x60] sm:$0xf]
        %v427 = vld [vmem:[%s335 + $0x64] sm:$0xf]
        %v428 = vld [vmem:[%s335 + $0x68] sm:$0xf]
        %v429 = vld [vmem:[%s335 + $0x6c] sm:$0xf]
        %v430 = vld [vmem:[%s335 + $0x70] sm:$0xf]
        %v431 = vld [vmem:[%s335 + $0x74] sm:$0xf]
        %v432 = vld [vmem:[%s335 + $0x78] sm:$0xf]
        %v433 = vld [vmem:[%s335 + $0x7c] sm:$0xf]
        %v450 = vunpack.c.l.b16 %v386
        %v451 = vunpack.c.h.b16 %v386
        %v452 = vunpack.c.l.b16 %v387
        %v453 = vunpack.c.h.b16 %v387
        %v454 = vunpack.c.l.b16 %v388
        %v455 = vunpack.c.h.b16 %v388
        %v456 = vunpack.c.l.b16 %v389
        %v457 = vunpack.c.h.b16 %v389
        %v458 = vunpack.c.l.b16 %v390
        %v459 = vunpack.c.h.b16 %v390
        %v460 = vunpack.c.l.b16 %v391
        %v461 = vunpack.c.h.b16 %v391
        %v462 = vunpack.c.l.b16 %v392
        %v463 = vunpack.c.h.b16 %v392
        %v464 = vunpack.c.l.b16 %v393
        %v465 = vunpack.c.h.b16 %v393
        %v466 = vunpack.c.l.b16 %v394
        %v467 = vunpack.c.h.b16 %v394
        %v468 = vunpack.c.l.b16 %v395
        %v469 = vunpack.c.h.b16 %v395
        %v470 = vunpack.c.l.b16 %v396
        %v471 = vunpack.c.h.b16 %v396
        %v472 = vunpack.c.l.b16 %v397
        %v473 = vunpack.c.h.b16 %v397
        %v474 = vunpack.c.l.b16 %v398
        %v475 = vunpack.c.h.b16 %v398
        %v476 = vunpack.c.l.b16 %v399
        %v477 = vunpack.c.h.b16 %v399
        %v478 = vunpack.c.l.b16 %v400
        %v479 = vunpack.c.h.b16 %v400
        %v480 = vunpack.c.l.b16 %v401
        %v481 = vunpack.c.h.b16 %v401
        %v482 = vpack.c.b16 %v452, %v450
        %v483 = vpack.c.b16 %v453, %v451
        %v484 = vpack.c.b16 %v456, %v454
        %v485 = vpack.c.b16 %v457, %v455
        %v486 = vpack.c.b16 %v460, %v458
        %v487 = vpack.c.b16 %v461, %v459
        %v488 = vpack.c.b16 %v464, %v462
        %v489 = vpack.c.b16 %v465, %v463
        %v490 = vpack.c.b16 %v468, %v466
        %v491 = vpack.c.b16 %v469, %v467
        %v492 = vpack.c.b16 %v472, %v470
        %v493 = vpack.c.b16 %v473, %v471
        %v494 = vpack.c.b16 %v476, %v474
        %v495 = vpack.c.b16 %v477, %v475
        %v496 = vpack.c.b16 %v480, %v478
        %v497 = vpack.c.b16 %v481, %v479
        %v546 = vunpack.c.l.b16 %v402
        %v547 = vunpack.c.l.b16 %v403
        %v548 = vunpack.c.l.b16 %v404
        %v549 = vunpack.c.l.b16 %v405
        %v550 = vunpack.c.l.b16 %v406
        %v551 = vunpack.c.l.b16 %v407
        %v552 = vunpack.c.l.b16 %v408
        %v553 = vunpack.c.l.b16 %v409
        %v554 = vunpack.c.l.b16 %v410
        %v555 = vunpack.c.l.b16 %v411
        %v556 = vunpack.c.l.b16 %v412
        %v557 = vunpack.c.l.b16 %v413
        %v558 = vunpack.c.l.b16 %v414
        %v559 = vunpack.c.l.b16 %v415
        %v560 = vunpack.c.l.b16 %v416
        %v561 = vunpack.c.l.b16 %v417
        %v562 = vunpack.c.l.b16 %v418
        %v563 = vunpack.c.l.b16 %v419
        %v564 = vunpack.c.l.b16 %v420
        %v565 = vunpack.c.l.b16 %v421
        %v566 = vunpack.c.l.b16 %v422
        %v567 = vunpack.c.l.b16 %v423
        %v568 = vunpack.c.l.b16 %v424
        %v569 = vunpack.c.l.b16 %v425
        %v570 = vunpack.c.l.b16 %v426
        %v571 = vunpack.c.l.b16 %v427
        %v572 = vunpack.c.l.b16 %v428
        %v573 = vunpack.c.l.b16 %v429
        %v574 = vunpack.c.l.b16 %v430
        %v575 = vunpack.c.l.b16 %v431
        %v576 = vunpack.c.l.b16 %v432
        %v577 = vunpack.c.l.b16 %v433
        %v578 = vpack.c.b16 %v547, %v546
        %v579 = vpack.c.b16 %v549, %v548
        %v580 = vpack.c.b16 %v551, %v550
        %v581 = vpack.c.b16 %v553, %v552
        %v582 = vpack.c.b16 %v555, %v554
        %v583 = vpack.c.b16 %v557, %v556
        %v584 = vpack.c.b16 %v559, %v558
        %v585 = vpack.c.b16 %v561, %v560
        %v586 = vpack.c.b16 %v563, %v562
        %v587 = vpack.c.b16 %v565, %v564
        %v588 = vpack.c.b16 %v567, %v566
        %v589 = vpack.c.b16 %v569, %v568
        %v590 = vpack.c.b16 %v571, %v570
        %v591 = vpack.c.b16 %v573, %v572
        %v592 = vpack.c.b16 %v575, %v574
        %v593 = vpack.c.b16 %v577, %v576
        %610 = vmatprep.subr.bf16.mxu0 0
        %611 = vmatpush1.bf16.msra.mxu0 %v585
        %612 = vmatprep.subr.bf16.mxu0 0
        %613 = vmatpush1.bf16.msra.mxu0 %v584
        %614 = vmatprep.subr.bf16.mxu0 0
        %615 = vmatpush1.bf16.msra.mxu0 %v583
        %616 = vmatprep.subr.bf16.mxu0 0
        %617 = vmatpush1.bf16.msra.mxu0 %v582
        %618 = vmatprep.subr.bf16.mxu0 0
        %619 = vmatpush1.bf16.msra.mxu0 %v581
        %620 = vmatprep.subr.bf16.mxu0 0
        %621 = vmatpush1.bf16.msra.mxu0 %v580
        %622 = vmatprep.subr.bf16.mxu0 0
        %623 = vmatpush1.bf16.msra.mxu0 %v579
        %624 = vmatprep.subr.bf16.mxu0 0
        %625 = vmatpush1.bf16.msra.mxu0 %v578
        %626 = vmatprep.subr.bf16.mxu0 0
        %627 = vmatpush2.bf16.msra.mxu0 %v593
        %628 = vmatprep.subr.bf16.mxu0 0
        %629 = vmatpush2.bf16.msra.mxu0 %v592
        %630 = vmatprep.subr.bf16.mxu0 0
        %631 = vmatpush2.bf16.msra.mxu0 %v591
        %632 = vmatprep.subr.bf16.mxu0 0
        %633 = vmatpush2.bf16.msra.mxu0 %v590
        %634 = vmatprep.subr.bf16.mxu0 0
        %635 = vmatpush2.bf16.msra.mxu0 %v589
        %636 = vmatprep.subr.bf16.mxu0 0
        %637 = vmatpush2.bf16.msra.mxu0 %v588
        %638 = vmatprep.subr.bf16.mxu0 0
        %639 = vmatpush2.bf16.msra.mxu0 %v587
        %640 = vmatprep.subr.bf16.mxu0 0
        %641 = vmatpush2.bf16.msra.mxu0 %v586
        %642 = vmatprep.mubr.bf16.mxu0 %v483
        %643 = vmatmul.mubr.bf16.gmra.mxu0 %v482
        %v644 = vpop.f32.mrf.mxu0
        %v645 = vadd.f32 0.0, %v644
        %v646 = vpop.f32.mrf.mxu0
        %v647 = vpop.f32.mrf.mxu0
        %v648 = vadd.f32 0.0, %v647
        %v649 = vpop.f32.mrf.mxu0
        %650 = vmatprep.mubr.bf16.mxu0 %v485
        %651 = vmatmul.mubr.bf16.gmra.mxu0 %v484
        %v652 = vpop.f32.mrf.mxu0
        %v653 = vadd.f32 0.0, %v652
        %v654 = vpop.f32.mrf.mxu0
        %v655 = vpop.f32.mrf.mxu0
        %v656 = vadd.f32 0.0, %v655
        %v657 = vpop.f32.mrf.mxu0
        %658 = vmatprep.mubr.bf16.mxu0 %v487
        %659 = vmatmul.mubr.bf16.gmra.mxu0 %v486
        %v660 = vpop.f32.mrf.mxu0
        %v661 = vadd.f32 0.0, %v660
        %v662 = vpop.f32.mrf.mxu0
        %v663 = vpop.f32.mrf.mxu0
        %v664 = vadd.f32 0.0, %v663
        %v665 = vpop.f32.mrf.mxu0
        %666 = vmatprep.mubr.bf16.mxu0 %v489
        %667 = vmatmul.mubr.bf16.gmra.mxu0 %v488
        %v668 = vpop.f32.mrf.mxu0
        %v669 = vadd.f32 0.0, %v668
        %v670 = vpop.f32.mrf.mxu0
        %v671 = vpop.f32.mrf.mxu0
        %v672 = vadd.f32 0.0, %v671
        %v673 = vpop.f32.mrf.mxu0
        %674 = vmatprep.mubr.bf16.mxu0 %v491
        %675 = vmatmul.mubr.bf16.gmra.mxu0 %v490
        %v676 = vpop.f32.mrf.mxu0
        %v677 = vadd.f32 0.0, %v676
        %v678 = vpop.f32.mrf.mxu0
        %v679 = vpop.f32.mrf.mxu0
        %v680 = vadd.f32 0.0, %v679
        %v681 = vpop.f32.mrf.mxu0
        %682 = vmatprep.mubr.bf16.mxu0 %v493
        %683 = vmatmul.mubr.bf16.gmra.mxu0 %v492
        %v684 = vpop.f32.mrf.mxu0
        %v685 = vadd.f32 0.0, %v684
        %v686 = vpop.f32.mrf.mxu0
        %v687 = vpop.f32.mrf.mxu0
        %v688 = vadd.f32 0.0, %v687
        %v689 = vpop.f32.mrf.mxu0
        %690 = vmatprep.mubr.bf16.mxu0 %v495
        %691 = vmatmul.mubr.bf16.gmra.mxu0 %v494
        %v692 = vpop.f32.mrf.mxu0
        %v693 = vadd.f32 0.0, %v692
        %v694 = vpop.f32.mrf.mxu0
        %v695 = vpop.f32.mrf.mxu0
        %v696 = vadd.f32 0.0, %v695
        %v697 = vpop.f32.mrf.mxu0
        %698 = vmatprep.mubr.bf16.mxu0 %v497
        %699 = vmatmul.mubr.bf16.gmra.mxu0 %v496
        %v700 = vpop.f32.mrf.mxu0
        %v701 = vadd.f32 0.0, %v700
        %v702 = vpop.f32.mrf.mxu0
        %v703 = vpop.f32.mrf.mxu0
        %v704 = vadd.f32 0.0, %v703
        %v705 = vpop.f32.mrf.mxu0
        %706 = vdwg.mxu0
        %v707 = vadd.f32 %v370, %v645
        %v708 = vadd.f32 %v371, %v648
        %v709 = vadd.f32 %v372, %v653
        %v710 = vadd.f32 %v373, %v656
        %v711 = vadd.f32 %v374, %v661
        %v712 = vadd.f32 %v375, %v664
        %v713 = vadd.f32 %v376, %v669
        %v714 = vadd.f32 %v377, %v672
        %v715 = vadd.f32 %v378, %v677
        %v716 = vadd.f32 %v379, %v680
        %v717 = vadd.f32 %v380, %v685
        %v718 = vadd.f32 %v381, %v688
        %v719 = vadd.f32 %v382, %v693
        %v720 = vadd.f32 %v383, %v696
        %v721 = vadd.f32 %v384, %v701
        %v722 = vadd.f32 %v385, %v704
        %723 = vst [vmem:[#allocation2] sm:$0xff] %v707
        %724 = vst [vmem:[#allocation2 + $0x8] sm:$0xff] %v708
        %725 = vst [vmem:[#allocation2 + $0x10] sm:$0xff] %v709
        %726 = vst [vmem:[#allocation2 + $0x18] sm:$0xff] %v710
        %727 = vst [vmem:[#allocation2 + $0x20] sm:$0xff] %v711
        %728 = vst [vmem:[#allocation2 + $0x28] sm:$0xff] %v712
        %729 = vst [vmem:[#allocation2 + $0x30] sm:$0xff] %v713
        %730 = vst [vmem:[#allocation2 + $0x38] sm:$0xff] %v714
        %731 = vst [vmem:[#allocation2 + $0x40] sm:$0xff] %v715
        %732 = vst [vmem:[#allocation2 + $0x48] sm:$0xff] %v716
        %733 = vst [vmem:[#allocation2 + $0x50] sm:$0xff] %v717
        %734 = vst [vmem:[#allocation2 + $0x58] sm:$0xff] %v718
        %735 = vst [vmem:[#allocation2 + $0x60] sm:$0xff] %v719
        %736 = vst [vmem:[#allocation2 + $0x68] sm:$0xff] %v720
        %737 = vst [vmem:[#allocation2 + $0x70] sm:$0xff] %v721
        %738 = vst [vmem:[#allocation2 + $0x78] sm:$0xff] %v722
        %p739 = scmp.eq.s32.totalorder %s21, 1
        // Predicated region
        $region75: #{generator_forward.103} parent=65 // pred_check
          %p740 = pneg %p739
        $region76: #{generator_forward.103} parent=65 // pred_check_branch
          %742 = sbr.rel (%p740) target = $region78
        $region77: #{generator_forward.103} parent=65 // pred_region
          %v743 = vld [vmem:[#allocation2] sm:$0xff]
          %v744 = vld [vmem:[#allocation2 + $0x8] sm:$0xff]
          %v745 = vld [vmem:[#allocation2 + $0x10] sm:$0xff]
          %v746 = vld [vmem:[#allocation2 + $0x18] sm:$0xff]
          %v747 = vld [vmem:[#allocation2 + $0x20] sm:$0xff]
          %v748 = vld [vmem:[#allocation2 + $0x28] sm:$0xff]
          %v749 = vld [vmem:[#allocation2 + $0x30] sm:$0xff]
          %v750 = vld [vmem:[#allocation2 + $0x38] sm:$0xff]
          %v751 = vld [vmem:[#allocation2 + $0x40] sm:$0xff]
          %v752 = vld [vmem:[#allocation2 + $0x48] sm:$0xff]
          %v753 = vld [vmem:[#allocation2 + $0x50] sm:$0xff]
          %v754 = vld [vmem:[#allocation2 + $0x58] sm:$0xff]
          %v755 = vld [vmem:[#allocation2 + $0x60] sm:$0xff]
          %v756 = vld [vmem:[#allocation2 + $0x68] sm:$0xff]
          %v757 = vld [vmem:[#allocation2 + $0x70] sm:$0xff]
          %v758 = vld [vmem:[#allocation2 + $0x78] sm:$0xff]
          %v759 = vld [vmem:[%s339] sm:$0x1]
          %v761 = vlaneseq
          %v762 = vshrl.u32 %v761, 7
          %v763 = vsub.s32 0, %v762
          %v764 = vrot.slane %v759, %v763
          %v766 = vadd.f32 %v743, %v764
          %v767 = vadd.f32 %v744, %v764
          %v768 = vadd.f32 %v745, %v764
          %v769 = vadd.f32 %v746, %v764
          %v770 = vadd.f32 %v747, %v764
          %v771 = vadd.f32 %v748, %v764
          %v772 = vadd.f32 %v749, %v764
          %v773 = vadd.f32 %v750, %v764
          %v774 = vadd.f32 %v751, %v764
          %v775 = vadd.f32 %v752, %v764
          %v776 = vadd.f32 %v753, %v764
          %v777 = vadd.f32 %v754, %v764
          %v778 = vadd.f32 %v755, %v764
          %v779 = vadd.f32 %v756, %v764
          %v780 = vadd.f32 %v757, %v764
          %v781 = vadd.f32 %v758, %v764
          %v782 = vpack.c.bf16 %v767, %v766
          %v783 = vpack.c.bf16 %v769, %v768
          %v784 = vpack.c.bf16 %v771, %v770
          %v785 = vpack.c.bf16 %v773, %v772
          %v786 = vpack.c.bf16 %v775, %v774
          %v787 = vpack.c.bf16 %v777, %v776
          %v788 = vpack.c.bf16 %v779, %v778
          %v789 = vpack.c.bf16 %v781, %v780
          %v798 = vunpack.c.l.b16 %v782
          %v799 = vunpack.c.h.b16 %v782
          %v800 = vunpack.c.l.b16 %v783
          %v801 = vunpack.c.h.b16 %v783
          %v802 = vunpack.c.l.b16 %v784
          %v803 = vunpack.c.h.b16 %v784
          %v804 = vunpack.c.l.b16 %v785
          %v805 = vunpack.c.h.b16 %v785
          %v806 = vunpack.c.l.b16 %v786
          %v807 = vunpack.c.h.b16 %v786
          %v808 = vunpack.c.l.b16 %v787
          %v809 = vunpack.c.h.b16 %v787
          %v810 = vunpack.c.l.b16 %v788
          %v811 = vunpack.c.h.b16 %v788
          %v812 = vunpack.c.l.b16 %v789
          %v813 = vunpack.c.h.b16 %v789
          %v814 = vpack.c.b16 %v798, %v798
          %v815 = vpack.c.b16 %v799, %v799
          %v816 = vpack.c.b16 %v800, %v800
          %v817 = vpack.c.b16 %v801, %v801
          %v818 = vpack.c.b16 %v802, %v802
          %v819 = vpack.c.b16 %v803, %v803
          %v820 = vpack.c.b16 %v804, %v804
          %v821 = vpack.c.b16 %v805, %v805
          %v822 = vpack.c.b16 %v806, %v806
          %v823 = vpack.c.b16 %v807, %v807
          %v824 = vpack.c.b16 %v808, %v808
          %v825 = vpack.c.b16 %v809, %v809
          %v826 = vpack.c.b16 %v810, %v810
          %v827 = vpack.c.b16 %v811, %v811
          %v828 = vpack.c.b16 %v812, %v812
          %v829 = vpack.c.b16 %v813, %v813
          %846 = vst [vmem:[%s347] sm:$0xf] %v814
          %847 = vst [vmem:[%s347 + $0x4] sm:$0xf] %v815
          %848 = vst [vmem:[%s347 + $0x8] sm:$0xf] %v816
          %849 = vst [vmem:[%s347 + $0xc] sm:$0xf] %v817
          %850 = vst [vmem:[%s347 + $0x10] sm:$0xf] %v818
          %851 = vst [vmem:[%s347 + $0x14] sm:$0xf] %v819
          %852 = vst [vmem:[%s347 + $0x18] sm:$0xf] %v820
          %853 = vst [vmem:[%s347 + $0x1c] sm:$0xf] %v821
          %854 = vst [vmem:[%s347 + $0x20] sm:$0xf] %v822
          %855 = vst [vmem:[%s347 + $0x24] sm:$0xf] %v823
          %856 = vst [vmem:[%s347 + $0x28] sm:$0xf] %v824
          %857 = vst [vmem:[%s347 + $0x2c] sm:$0xf] %v825
          %858 = vst [vmem:[%s347 + $0x30] sm:$0xf] %v826
          %859 = vst [vmem:[%s347 + $0x34] sm:$0xf] %v827
          %860 = vst [vmem:[%s347 + $0x38] sm:$0xf] %v828
          %861 = vst [vmem:[%s347 + $0x3c] sm:$0xf] %v829
        $region78: #{generator_forward.103} parent=65 // pred_fallthru
          _
        %s862 = smul.u32 16, %s19
        %p863 = scmp.lt.s32.totalorder %s862, 15
        %s864 = scalar_select %p863, %s862, 15
        %p865 = scmp.lt.s32.totalorder %s20, 0
        %s866 = scalar_select %p865, %s20, 0
        %s867 = sadd.s32 %s866, %s864
        %s868 = smul.addr %s867, 4
        %s869 = scalar_lea.vmem %s3, %s868
        // Predicated region
        $region79: #{generator_forward.103} parent=65 // pred_check
          %p870 = pneg %p135
        $region80: #{generator_forward.103} parent=65 // pred_check_branch
          %872 = sbr.rel (%p870) target = $region82
        $region81: #{generator_forward.103} parent=65 // pred_region
          %s873 = smul.u32 16, %s19
        $region82: #{generator_forward.103} parent=65 // pred_fallthru
          _
        // Predicated region
        $region83: #{generator_forward.103} parent=65 // pred_check
          %p874 = pneg %p135
        $region84: #{generator_forward.103} parent=65 // pred_check_branch
          %876 = sbr.rel (%p874) target = $region86
        $region85: #{generator_forward.103} parent=65 // pred_region
          %s877 = smul.u32 16, %s19
          %p878 = scmp.lt.s32.totalorder %s877, 15
          %s879 = scalar_select %p878, %s877, 15
          %p880 = scmp.lt.s32.totalorder %s20, 0
          %s881 = scalar_select %p880, %s20, 0
          %s882 = sadd.s32 %s881, %s879
          %s883 = smul.addr %s882, 4
          %s884 = scalar_lea.vmem %s3, %s883
        $region86: #{generator_forward.103} parent=65 // pred_fallthru
          _
      $region66: #{generator_forward.103} parent=5 // pred_fallthru
        _
      %p885 = scmp.le.s32.totalorder 2, %s9
      // Predicated region
      $region87: #{generator_forward.103} parent=5 // pred_check
        %p886 = pneg %p885
      $region88: #{generator_forward.103} parent=5 // pred_check_branch
        %888 = sbr.rel (%p886) target = $region90
      $region89: #{generator_forward.103} parent=5 // pred_region
        %s889 = ssub.s32 %s9, 2
      $region90: #{generator_forward.103} parent=5 // pred_fallthru
        _
    $region6: #{generator_forward.103} parent=1 // loop_footer
      %s13 = sadd.s32 1, %s9
    $region7: #{generator_forward.103} parent=1 // loop_footer_branch
      %8 = sbr.rel target = $region3
    $region8: #{generator_forward.103} parent=1 // loop_exit
      _

// kernel: generator_forward.105
$region0: #{generator_forward.105}
  #allocation0 [shape = 'u32[]', space=smem, size = 0x4, offset = 0x4, fixed_abs, tag = 'smem constant byte address 0x4 - core index']
  #allocation1 [shape = 'u32[144,128]{1,0:T(1,128)}', space=vmem, size = 0x12000, scoped, tag = 'internal scratch']
  #allocation2 [shape = 'f32[256,128]{1,0:T(8,128)}', space=vmem, size = 0x20000, scoped, tag = 'scratch operand']
  %s0 = inlined_call_operand.vmem [shape: bf16[512,3328], index: 0, kind: input, shape index: {}]
  %s1 = inlined_call_operand.vmem [shape: bf16[3328,128], index: 1, kind: input, shape index: {}]
  %s2 = inlined_call_operand.vmem [shape: f32[1,128], index: 2, kind: input, shape index: {}]
  %s3 = inlined_call_operand.vmem [shape: f32[512,128], index: 3, kind: output, shape index: {}]
  %s4 = sld [smem:[#allocation0]]
  $region91: #{generator_forward.105} parent=0
    _
  %s6 = ssub.s32 1, %s4
  %s7 = scalar_select 0, %s6, %s4
  $region1: #{generator_forward.105} parent=0
    #allocation3 [shape = 'u8[262144]{0}', space=vmem, size = 0x40000, scoped, tag = 'input window, operand 0']
    loop: start=0, step=1, limit=28
    $region2: #{generator_forward.105} parent=1 // loop_pre_header
      _
    $region3: #{generator_forward.105} parent=1 // loop_header
      %s9 = sphi 0, %s13
      %p10 = scmp.ge.s32.totalorder %s9, 28
      %s16 = sphi 0, %s35
      %s17 = sphi 0, %s31
      %s18 = sphi 0, %s27
      %s19 = sphi 0, %s16
      %s20 = sphi 0, %s17
      %s21 = sphi 0, %s18
      %s22 = sphi 0, %s19
      %s23 = sphi 0, %s20
      %s24 = sphi 0, %s21
      %s40 = sphi 0, %s42
      %s43 = sphi 0, %s40
      %s44 = sphi 0, %s43
      %s60 = sphi 0, %s44
      %s68 = sphi 0, %s70
      %s71 = sphi 0, %s68
      %s72 = sphi 0, %s71
      %s88 = sphi 0, %s72
      %s94 = sphi 0, %s96
      %s97 = sphi 0, %s94
      %s98 = sphi 0, %s97
      %s114 = sphi 0, %s98
      %s122 = sphi 0, %s124
      %s125 = sphi 0, %s122
      %s126 = sphi 0, %s125
      %s142 = sphi 0, %s126
    $region4: #{generator_forward.105} parent=1 // loop_header_branch
      %12 = sbr.rel (%p10) target = $region8
    $region5: #{generator_forward.105} parent=1 // loop_body
      %s14 = ssub.s32 %s9, 1
      %s15 = ssub.s32 %s9, 2
      %s25 = sadd.s32 1, %s18
      %p26 = scmp.ge.s32.totalorder %s25, 13
      %s27 = scalar_select %p26, 0, %s25
      %s28 = sadd.s32 1, %s17
      %s29 = scalar_select %p26, %s28, %s17
      %p30 = scmp.ge.s32.totalorder %s29, 1
      %s31 = scalar_select %p30, 0, %s29
      %s32 = sadd.s32 1, %s16
      %s33 = scalar_select %p30, %s32, %s16
      %p34 = scmp.ge.s32.totalorder %s33, 2
      %s35 = scalar_select %p34, 0, %s33
      %s36 = ssub.s32 %s16, %s35
      %s37 = ssub.s32 %s18, %s27
      %s38 = sor.u32 %s36, %s37
      %p39 = scmp.eq.s32.totalorder %s38, 0
      %s41 = sadd.s32 %s40, 1
      %s42 = scalar_select %p39, %s40, %s41
      %p45 = pneg %p39
      %p46 = scmp.eq.s32.totalorder %s9, 25
      %p47 = por %p45, %p46
      %p48 = scmp.ne.s32.totalorder %s40, %s43
      %p49 = scmp.eq.s32.totalorder %s9, 0
      %p50 = por %p48, %p49
      %p51 = scmp.ne.s32.totalorder %s40, %s43
      %p52 = scmp.eq.s32.totalorder %s14, 25
      %p53 = por %p51, %p52
      %p54 = scmp.ne.s32.totalorder %s43, %s44
      %p55 = scmp.eq.s32.totalorder %s14, 0
      %p56 = por %p54, %p55
      %p57 = scmp.ne.s32.totalorder %s43, %s44
      %p58 = scmp.eq.s32.totalorder %s15, 25
      %p59 = por %p57, %p58
      %p61 = scmp.ne.s32.totalorder %s44, %s60
      %p62 = scmp.eq.s32.totalorder %s15, 0
      %p63 = por %p61, %p62
      %s64 = ssub.s32 %s18, %s27
      %s65 = ssub.s32 %s17, %s31
      %s66 = sor.u32 %s64, %s65
      %p67 = scmp.eq.s32.totalorder %s66, 0
      %s69 = sadd.s32 %s68, 1
      %s70 = scalar_select %p67, %s68, %s69
      %p73 = pneg %p67
      %p74 = scmp.eq.s32.totalorder %s9, 25
      %p75 = por %p73, %p74
      %p76 = scmp.ne.s32.totalorder %s68, %s71
      %p77 = scmp.eq.s32.totalorder %s9, 0
      %p78 = por %p76, %p77
      %p79 = scmp.ne.s32.totalorder %s68, %s71
      %p80 = scmp.eq.s32.totalorder %s14, 25
      %p81 = por %p79, %p80
      %p82 = scmp.ne.s32.totalorder %s71, %s72
      %p83 = scmp.eq.s32.totalorder %s14, 0
      %p84 = por %p82, %p83
      %p85 = scmp.ne.s32.totalorder %s71, %s72
      %p86 = scmp.eq.s32.totalorder %s15, 25
      %p87 = por %p85, %p86
      %p89 = scmp.ne.s32.totalorder %s72, %s88
      %p90 = scmp.eq.s32.totalorder %s15, 0
      %p91 = por %p89, %p90
      %s92 = ssub.s32 %s17, %s31
      %p93 = scmp.eq.s32.totalorder %s92, 0
      %s95 = sadd.s32 %s94, 1
      %s96 = scalar_select %p93, %s94, %s95
      %p99 = pneg %p93
      %p100 = scmp.eq.s32.totalorder %s9, 25
      %p101 = por %p99, %p100
      %p102 = scmp.ne.s32.totalorder %s94, %s97
      %p103 = scmp.eq.s32.totalorder %s9, 0
      %p104 = por %p102, %p103
      %p105 = scmp.ne.s32.totalorder %s94, %s97
      %p106 = scmp.eq.s32.totalorder %s14, 25
      %p107 = por %p105, %p106
      %p108 = scmp.ne.s32.totalorder %s97, %s98
      %p109 = scmp.eq.s32.totalorder %s14, 0
      %p110 = por %p108, %p109
      %p111 = scmp.ne.s32.totalorder %s97, %s98
      %p112 = scmp.eq.s32.totalorder %s15, 25
      %p113 = por %p111, %p112
      %p115 = scmp.ne.s32.totalorder %s98, %s114
      %p116 = scmp.eq.s32.totalorder %s15, 0
      %p117 = por %p115, %p116
      %s118 = ssub.s32 %s16, %s35
      %s119 = ssub.s32 %s17, %s31
      %s120 = sor.u32 %s118, %s119
      %p121 = scmp.eq.s32.totalorder %s120, 0
      %s123 = sadd.s32 %s122, 1
      %s124 = scalar_select %p121, %s122, %s123
      %p127 = pneg %p121
      %p128 = scmp.eq.s32.totalorder %s9, 25
      %p129 = por %p127, %p128
      %p130 = scmp.ne.s32.totalorder %s122, %s125
      %p131 = scmp.eq.s32.totalorder %s9, 0
      %p132 = por %p130, %p131
      %p133 = scmp.ne.s32.totalorder %s122, %s125
      %p134 = scmp.eq.s32.totalorder %s14, 25
      %p135 = por %p133, %p134
      %p136 = scmp.ne.s32.totalorder %s125, %s126
      %p137 = scmp.eq.s32.totalorder %s14, 0
      %p138 = por %p136, %p137
      %p139 = scmp.ne.s32.totalorder %s125, %s126
      %p140 = scmp.eq.s32.totalorder %s15, 25
      %p141 = por %p139, %p140
      %p143 = scmp.ne.s32.totalorder %s126, %s142
      %p144 = scmp.eq.s32.totalorder %s15, 0
      %p145 = por %p143, %p144
      %p146 = scmp.le.s32.totalorder 1, %s9
      %p147 = scmp.lt.s32.totalorder %s9, 27
      %p148 = pnand %p146, %p147
      %p149 = pneg %p148
      // Predicated region
      $region9: #{generator_forward.105} parent=5 // pred_check
        _
      $region10: #{generator_forward.105} parent=5 // pred_check_branch
        %151 = sbr.rel (%p148) target = $region12
      $region11: #{generator_forward.105} parent=5 // pred_region
        %s152 = ssub.s32 %s9, 1
        // Predicated region
        $region13: #{generator_forward.105} parent=11 // pred_check
          %p153 = pneg %p110
        $region14: #{generator_forward.105} parent=11 // pred_check_branch
          %155 = sbr.rel (%p153) target = $region16
        $region15: #{generator_forward.105} parent=11 // pred_region
          %p156 = scmp.lt.s32.totalorder %s20, 0
          %s157 = scalar_select %p156, %s20, 0
          %s158 = scalar_lea.vmem %s2, %s157
        $region16: #{generator_forward.105} parent=11 // pred_fallthru
          _
      $region12: #{generator_forward.105} parent=5 // pred_fallthru
        _
      %p159 = scmp.lt.s32.totalorder %s9, 26
      // Predicated region
      $region17: #{generator_forward.105} parent=5 // pred_check
        %p160 = pneg %p159
      $region18: #{generator_forward.105} parent=5 // pred_check_branch
        %162 = sbr.rel (%p160) target = $region20
      $region19: #{generator_forward.105} parent=5 // pred_region
        // Predicated region
        $region21: #{generator_forward.105} parent=19 // pred_check
          %p163 = pneg %p50
        $region22: #{generator_forward.105} parent=19 // pred_check_branch
          %165 = sbr.rel (%p163) target = $region24
        $region23: #{generator_forward.105} parent=19 // pred_region
          %s166 = sand.u32 %s40, 1
          %s167 = sand.u32 %s40, 1
          %s168 = smul.addr %s167, 256
          %s169 = scalar_lea.vmem [#allocation3], %s168
          %s170 = smul.u32 32, %s16
          %s171 = smul.u32 2, %s18
          %s172 = smul.addr %s170, 26
          %s173 = sadd.s32 %s171, %s172
          %s174 = smul.addr %s173, 4
          %s175 = scalar_lea.vmem %s0, %s174
          // Predicated region
          $region25: #{generator_forward.105} parent=23 // pred_check
            _
          $region26: #{generator_forward.105} parent=23 // pred_check_branch
            %177 = sbr.rel (0) target = $region28
          $region27: #{generator_forward.105} parent=23 // pred_region
            // Predicated region
            $region29: #{generator_forward.105} parent=27 // pred_check
              _
            $region30: #{generator_forward.105} parent=27 // pred_check_branch
              %179 = sbr.rel (0) target = $region32
            $region31: #{generator_forward.105} parent=27 // pred_region
              // Predicated region
              $region44: #{generator_forward.105} parent=31 // pred_check
                _
              $region45: #{generator_forward.105} parent=31 // pred_check_branch
                %257 = sbr.rel (0) target = $region47
              $region46: #{generator_forward.105} parent=31 // pred_region
                loop: start=0, step=1, limit=1
                $region48: #{generator_forward.105} parent=46 // loop_pre_header
                  _
                $region49: #{generator_forward.105} parent=46 // loop_header
                  %s259 = sphi 0, %s263
                  %p260 = scmp.ge.s32.totalorder %s259, 1
                  %s264 = sphi %s175, %s175
                  %s265 = sphi %s169, %s169
                $region50: #{generator_forward.105} parent=46 // loop_header_branch
                  %262 = sbr.rel (%p260) target = $region54
                $region51: #{generator_forward.105} parent=46 // loop_body
                  %v266 = vld [vmem:[%s264] sm:$0xff]
                  %267 = vst [vmem:[%s265] sm:$0xff] %v266
                  %v268 = vld [vmem:[%s264 + $0x68] sm:$0xff]
                  %269 = vst [vmem:[%s265 + $0x8] sm:$0xff] %v268
                  %v270 = vld [vmem:[%s264 + $0xd0] sm:$0xff]
                  %271 = vst [vmem:[%s265 + $0x10] sm:$0xff] %v270
                  %v272 = vld [vmem:[%s264 + $0x138] sm:$0xff]
                  %273 = vst [vmem:[%s265 + $0x18] sm:$0xff] %v272
                  %v274 = vld [vmem:[%s264 + $0x1a0] sm:$0xff]
                  %275 = vst [vmem:[%s265 + $0x20] sm:$0xff] %v274
                  %v276 = vld [vmem:[%s264 + $0x208] sm:$0xff]
                  %277 = vst [vmem:[%s265 + $0x28] sm:$0xff] %v276
                  %v278 = vld [vmem:[%s264 + $0x270] sm:$0xff]
                  %279 = vst [vmem:[%s265 + $0x30] sm:$0xff] %v278
                  %v280 = vld [vmem:[%s264 + $0x2d8] sm:$0xff]
                  %281 = vst [vmem:[%s265 + $0x38] sm:$0xff] %v280
                  %v282 = vld [vmem:[%s264 + $0x340] sm:$0xff]
                  %283 = vst [vmem:[%s265 + $0x40] sm:$0xff] %v282
                  %v284 = vld [vmem:[%s264 + $0x3a8] sm:$0xff]
                  %285 = vst [vmem:[%s265 + $0x48] sm:$0xff] %v284
                  %v286 = vld [vmem:[%s264 + $0x410] sm:$0xff]
                  %287 = vst [vmem:[%s265 + $0x50] sm:$0xff] %v286
                  %v288 = vld [vmem:[%s264 + $0x478] sm:$0xff]
                  %289 = vst [vmem:[%s265 + $0x58] sm:$0xff] %v288
                  %v290 = vld [vmem:[%s264 + $0x4e0] sm:$0xff]
                  %291 = vst [vmem:[%s265 + $0x60] sm:$0xff] %v290
                  %v292 = vld [vmem:[%s264 + $0x548] sm:$0xff]
                  %293 = vst [vmem:[%s265 + $0x68] sm:$0xff] %v292
                  %v294 = vld [vmem:[%s264 + $0x5b0] sm:$0xff]
                  %295 = vst [vmem:[%s265 + $0x70] sm:$0xff] %v294
                  %v296 = vld [vmem:[%s264 + $0x618] sm:$0xff]
                  %297 = vst [vmem:[%s265 + $0x78] sm:$0xff] %v296
                  %v298 = vld [vmem:[%s264 + $0x680] sm:$0xff]
                  %299 = vst [vmem:[%s265 + $0x80] sm:$0xff] %v298
                  %v300 = vld [vmem:[%s264 + $0x6e8] sm:$0xff]
                  %301 = vst [vmem:[%s265 + $0x88] sm:$0xff] %v300
                  %v302 = vld [vmem:[%s264 + $0x750] sm:$0xff]
                  %303 = vst [vmem:[%s265 + $0x90] sm:$0xff] %v302
                  %v304 = vld [vmem:[%s264 + $0x7b8] sm:$0xff]
                  %305 = vst [vmem:[%s265 + $0x98] sm:$0xff] %v304
                  %v306 = vld [vmem:[%s264 + $0x820] sm:$0xff]
                  %307 = vst [vmem:[%s265 + $0xa0] sm:$0xff] %v306
                  %v308 = vld [vmem:[%s264 + $0x888] sm:$0xff]
                  %309 = vst [vmem:[%s265 + $0xa8] sm:$0xff] %v308
                  %v310 = vld [vmem:[%s264 + $0x8f0] sm:$0xff]
                  %311 = vst [vmem:[%s265 + $0xb0] sm:$0xff] %v310
                  %v312 = vld [vmem:[%s264 + $0x958] sm:$0xff]
                  %313 = vst [vmem:[%s265 + $0xb8] sm:$0xff] %v312
                  %v314 = vld [vmem:[%s264 + $0x9c0] sm:$0xff]
                  %315 = vst [vmem:[%s265 + $0xc0] sm:$0xff] %v314
                  %v316 = vld [vmem:[%s264 + $0xa28] sm:$0xff]
                  %317 = vst [vmem:[%s265 + $0xc8] sm:$0xff] %v316
                  %v318 = vld [vmem:[%s264 + $0xa90] sm:$0xff]
                  %319 = vst [vmem:[%s265 + $0xd0] sm:$0xff] %v318
                  %v320 = vld [vmem:[%s264 + $0xaf8] sm:$0xff]
                  %321 = vst [vmem:[%s265 + $0xd8] sm:$0xff] %v320
                  %v322 = vld [vmem:[%s264 + $0xb60] sm:$0xff]
                  %323 = vst [vmem:[%s265 + $0xe0] sm:$0xff] %v322
                  %v324 = vld [vmem:[%s264 + $0xbc8] sm:$0xff]
                  %325 = vst [vmem:[%s265 + $0xe8] sm:$0xff] %v324
                  %v326 = vld [vmem:[%s264 + $0xc30] sm:$0xff]
                  %327 = vst [vmem:[%s265 + $0xf0] sm:$0xff] %v326
                  %v328 = vld [vmem:[%s264 + $0xc98] sm:$0xff]
                  %329 = vst [vmem:[%s265 + $0xf8] sm:$0xff] %v328
                $region52: #{generator_forward.105} parent=46 // loop_footer
                  %s263 = sadd.s32 1, %s259
                $region53: #{generator_forward.105} parent=46 // loop_footer_branch
                  %258 = sbr.rel target = $region49
                $region54: #{generator_forward.105} parent=46 // loop_exit
                  _
              $region47: #{generator_forward.105} parent=31 // pred_fallthru
                _
              // Predicated region
              $region55: #{generator_forward.105} parent=31 // pred_check
                _
              $region56: #{generator_forward.105} parent=31 // pred_check_branch
                %331 = sbr.rel target = $region58
              $region57: #{generator_forward.105} parent=31 // pred_region
                _
              $region58: #{generator_forward.105} parent=31 // pred_fallthru
                _
            $region32: #{generator_forward.105} parent=27 // pred_fallthru
              _
            // Predicated region
            $region33: #{generator_forward.105} parent=27 // pred_check
              _
            $region34: #{generator_forward.105} parent=27 // pred_check_branch
              %181 = sbr.rel target = $region36
            $region35: #{generator_forward.105} parent=27 // pred_region
              %s183 = ssub.s32 256, 1
              loop: start=0, step=1, limit=1
              $region37: #{generator_forward.105} parent=35 // loop_pre_header
                _
              $region38: #{generator_forward.105} parent=35 // loop_header
                %s185 = sphi 0, %s189
                %p186 = scmp.ge.s32.totalorder %s185, 1
                %s190 = sphi %s175, %s175
                %s191 = sphi %s169, %s169
              $region39: #{generator_forward.105} parent=35 // loop_header_branch
                %188 = sbr.rel (%p186) target = $region43
              $region40: #{generator_forward.105} parent=35 // loop_body
                %v192 = vld [vmem:[%s190] sm:%s183]
                %193 = vst [vmem:[%s191] sm:%s183] %v192
                %v194 = vld [vmem:[%s190 + $0x68] sm:%s183]
                %195 = vst [vmem:[%s191 + $0x8] sm:%s183] %v194
                %v196 = vld [vmem:[%s190 + $0xd0] sm:%s183]
                %197 = vst [vmem:[%s191 + $0x10] sm:%s183] %v196
                %v198 = vld [vmem:[%s190 + $0x138] sm:%s183]
                %199 = vst [vmem:[%s191 + $0x18] sm:%s183] %v198
                %v200 = vld [vmem:[%s190 + $0x1a0] sm:%s183]
                %201 = vst [vmem:[%s191 + $0x20] sm:%s183] %v200
                %v202 = vld [vmem:[%s190 + $0x208] sm:%s183]
                %203 = vst [vmem:[%s191 + $0x28] sm:%s183] %v202
                %v204 = vld [vmem:[%s190 + $0x270] sm:%s183]
                %205 = vst [vmem:[%s191 + $0x30] sm:%s183] %v204
                %v206 = vld [vmem:[%s190 + $0x2d8] sm:%s183]
                %207 = vst [vmem:[%s191 + $0x38] sm:%s183] %v206
                %v208 = vld [vmem:[%s190 + $0x340] sm:%s183]
                %209 = vst [vmem:[%s191 + $0x40] sm:%s183] %v208
                %v210 = vld [vmem:[%s190 + $0x3a8] sm:%s183]
                %211 = vst [vmem:[%s191 + $0x48] sm:%s183] %v210
                %v212 = vld [vmem:[%s190 + $0x410] sm:%s183]
                %213 = vst [vmem:[%s191 + $0x50] sm:%s183] %v212
                %v214 = vld [vmem:[%s190 + $0x478] sm:%s183]
                %215 = vst [vmem:[%s191 + $0x58] sm:%s183] %v214
                %v216 = vld [vmem:[%s190 + $0x4e0] sm:%s183]
                %217 = vst [vmem:[%s191 + $0x60] sm:%s183] %v216
                %v218 = vld [vmem:[%s190 + $0x548] sm:%s183]
                %219 = vst [vmem:[%s191 + $0x68] sm:%s183] %v218
                %v220 = vld [vmem:[%s190 + $0x5b0] sm:%s183]
                %221 = vst [vmem:[%s191 + $0x70] sm:%s183] %v220
                %v222 = vld [vmem:[%s190 + $0x618] sm:%s183]
                %223 = vst [vmem:[%s191 + $0x78] sm:%s183] %v222
                %v224 = vld [vmem:[%s190 + $0x680] sm:%s183]
                %225 = vst [vmem:[%s191 + $0x80] sm:%s183] %v224
                %v226 = vld [vmem:[%s190 + $0x6e8] sm:%s183]
                %227 = vst [vmem:[%s191 + $0x88] sm:%s183] %v226
                %v228 = vld [vmem:[%s190 + $0x750] sm:%s183]
                %229 = vst [vmem:[%s191 + $0x90] sm:%s183] %v228
                %v230 = vld [vmem:[%s190 + $0x7b8] sm:%s183]
                %231 = vst [vmem:[%s191 + $0x98] sm:%s183] %v230
                %v232 = vld [vmem:[%s190 + $0x820] sm:%s183]
                %233 = vst [vmem:[%s191 + $0xa0] sm:%s183] %v232
                %v234 = vld [vmem:[%s190 + $0x888] sm:%s183]
                %235 = vst [vmem:[%s191 + $0xa8] sm:%s183] %v234
                %v236 = vld [vmem:[%s190 + $0x8f0] sm:%s183]
                %237 = vst [vmem:[%s191 + $0xb0] sm:%s183] %v236
                %v238 = vld [vmem:[%s190 + $0x958] sm:%s183]
                %239 = vst [vmem:[%s191 + $0xb8] sm:%s183] %v238
                %v240 = vld [vmem:[%s190 + $0x9c0] sm:%s183]
                %241 = vst [vmem:[%s191 + $0xc0] sm:%s183] %v240
                %v242 = vld [vmem:[%s190 + $0xa28] sm:%s183]
                %243 = vst [vmem:[%s191 + $0xc8] sm:%s183] %v242
                %v244 = vld [vmem:[%s190 + $0xa90] sm:%s183]
                %245 = vst [vmem:[%s191 + $0xd0] sm:%s183] %v244
                %v246 = vld [vmem:[%s190 + $0xaf8] sm:%s183]
                %247 = vst [vmem:[%s191 + $0xd8] sm:%s183] %v246
                %v248 = vld [vmem:[%s190 + $0xb60] sm:%s183]
                %249 = vst [vmem:[%s191 + $0xe0] sm:%s183] %v248
                %v250 = vld [vmem:[%s190 + $0xbc8] sm:%s183]
                %251 = vst [vmem:[%s191 + $0xe8] sm:%s183] %v250
                %v252 = vld [vmem:[%s190 + $0xc30] sm:%s183]
                %253 = vst [vmem:[%s191 + $0xf0] sm:%s183] %v252
                %v254 = vld [vmem:[%s190 + $0xc98] sm:%s183]
                %255 = vst [vmem:[%s191 + $0xf8] sm:%s183] %v254
              $region41: #{generator_forward.105} parent=35 // loop_footer
                %s189 = sadd.s32 1, %s185
              $region42: #{generator_forward.105} parent=35 // loop_footer_branch
                %184 = sbr.rel target = $region38
              $region43: #{generator_forward.105} parent=35 // loop_exit
                _
            $region36: #{generator_forward.105} parent=27 // pred_fallthru
              _
          $region28: #{generator_forward.105} parent=23 // pred_fallthru
            _
          %332 = vnop
        $region24: #{generator_forward.105} parent=19 // pred_fallthru
          _
        // Predicated region
        $region59: #{generator_forward.105} parent=19 // pred_check
          %p333 = pneg %p78
        $region60: #{generator_forward.105} parent=19 // pred_check_branch
          %335 = sbr.rel (%p333) target = $region62
        $region61: #{generator_forward.105} parent=19 // pred_region
          %s336 = smul.u32 32, %s18
          %p337 = scmp.lt.s32.totalorder %s336, 415
          %s338 = scalar_select %p337, %s336, 415
          %p339 = scmp.lt.s32.totalorder %s17, 0
          %s340 = scalar_select %p339, %s17, 0
          %s341 = sadd.s32 %s340, %s338
          %s342 = smul.addr %s341, 4
          %s343 = scalar_lea.vmem %s1, %s342
          %s344 = smul.u32 32, %s18
        $region62: #{generator_forward.105} parent=19 // pred_fallthru
          _
      $region20: #{generator_forward.105} parent=5 // pred_fallthru
        _
      %p345 = scmp.le.s32.totalorder 1, %s9
      %p346 = scmp.lt.s32.totalorder %s9, 27
      %p347 = pnand %p345, %p346
      %p348 = pneg %p347
      // Predicated region
      $region63: #{generator_forward.105} parent=5 // pred_check
        _
      $region64: #{generator_forward.105} parent=5 // pred_check_branch
        %350 = sbr.rel (%p347) target = $region66
      $region65: #{generator_forward.105} parent=5 // pred_region
        %s351 = ssub.s32 %s9, 1
        %s352 = sand.u32 %s43, 1
        %s353 = sand.u32 %s43, 1
        %s354 = smul.addr %s353, 256
        %s355 = scalar_lea.vmem [#allocation3], %s354
        // Predicated region
        $region67: #{generator_forward.105} parent=65 // pred_check
          %p356 = pneg %p56
        $region68: #{generator_forward.105} parent=65 // pred_check_branch
          %358 = sbr.rel (%p356) target = $region70
        $region69: #{generator_forward.105} parent=65 // pred_region
          _
        $region70: #{generator_forward.105} parent=65 // pred_fallthru
          _
        %s359 = sand.u32 %s43, 1
        %s360 = sand.u32 %s43, 1
        %s361 = smul.addr %s360, 256
        %s362 = scalar_lea.vmem [#allocation3], %s361
        %p363 = pneg %p56
        %p364 = pneg %p53
        %s365 = smul.u32 32, %s21
        %p366 = scmp.lt.s32.totalorder %s365, 415
        %s367 = scalar_select %p366, %s365, 415
        %p368 = scmp.lt.s32.totalorder %s20, 0
        %s369 = scalar_select %p368, %s20, 0
        %s370 = sadd.s32 %s369, %s367
        %s371 = smul.addr %s370, 4
        %s372 = scalar_lea.vmem %s1, %s371
        %p373 = pneg %p84
        %p374 = pneg %p81
        %p375 = scmp.lt.s32.totalorder %s20, 0
        %s376 = scalar_select %p375, %s20, 0
        %s377 = scalar_lea.vmem %s2, %s376
        %p378 = pneg %p110
        %p379 = pneg %p107
        %p380 = pneg %p138
        %p381 = pneg %p135
        %s382 = smul.u32 32, %s19
        %p383 = scmp.lt.s32.totalorder %s382, 63
        %s384 = scalar_select %p383, %s382, 63
        %p385 = scmp.lt.s32.totalorder %s20, 0
        %s386 = scalar_select %p385, %s20, 0
        %s387 = sadd.s32 %s386, %s384
        %s388 = smul.addr %s387, 8
        %s389 = scalar_lea.vmem %s3, %s388
        %s390 = smul.u32 32, %s19
        %s391 = smul.u32 2, %s21
        %s392 = smul.u32 32, %s21
        %p393 = scmp.lt.s32.totalorder %s392, 415
        %s394 = scalar_select %p393, %s392, 415
        %p395 = scmp.lt.s32.totalorder %s20, 0
        %s396 = scalar_select %p395, %s20, 0
        %s397 = sadd.s32 %s396, %s394
        %s398 = smul.addr %s397, 4
        %s399 = scalar_lea.vmem %s1, %s398
        %s400 = smul.u32 32, %s21
        %p401 = scmp.lt.s32.totalorder %s20, 0
        %s402 = scalar_select %p401, %s20, 0
        %s403 = scalar_lea.vmem %s2, %s402
        %s404 = smul.u32 32, %s19
        %p405 = scmp.lt.s32.totalorder %s404, 63
        %s406 = scalar_select %p405, %s404, 63
        %p407 = scmp.lt.s32.totalorder %s20, 0
        %s408 = scalar_select %p407, %s20, 0
        %s409 = sadd.s32 %s408, %s406
        %s410 = smul.addr %s409, 8
        %s411 = scalar_lea.vmem %s3, %s410
        %s412 = smul.u32 32, %s19
        %p414 = scmp.eq.s32.totalorder %s21, 0
        // Predicated region
        $region71: #{generator_forward.105} parent=65 // pred_check
          %p415 = pneg %p414
        $region72: #{generator_forward.105} parent=65 // pred_check_branch
          %417 = sbr.rel (%p415) target = $region74
        $region73: #{generator_forward.105} parent=65 // pred_region
          %418 = vst [vmem:[#allocation2] sm:$0xff] 0.0
          %419 = vst [vmem:[#allocation2 + $0x8] sm:$0xff] 0.0
          %420 = vst [vmem:[#allocation2 + $0x10] sm:$0xff] 0.0
          %421 = vst [vmem:[#allocation2 + $0x18] sm:$0xff] 0.0
          %422 = vst [vmem:[#allocation2 + $0x20] sm:$0xff] 0.0
          %423 = vst [vmem:[#allocation2 + $0x28] sm:$0xff] 0.0
          %424 = vst [vmem:[#allocation2 + $0x30] sm:$0xff] 0.0
          %425 = vst [vmem:[#allocation2 + $0x38] sm:$0xff] 0.0
          %426 = vst [vmem:[#allocation2 + $0x40] sm:$0xff] 0.0
          %427 = vst [vmem:[#allocation2 + $0x48] sm:$0xff] 0.0
          %428 = vst [vmem:[#allocation2 + $0x50] sm:$0xff] 0.0
          %429 = vst [vmem:[#allocation2 + $0x58] sm:$0xff] 0.0
          %430 = vst [vmem:[#allocation2 + $0x60] sm:$0xff] 0.0
          %431 = vst [vmem:[#allocation2 + $0x68] sm:$0xff] 0.0
          %432 = vst [vmem:[#allocation2 + $0x70] sm:$0xff] 0.0
          %433 = vst [vmem:[#allocation2 + $0x78] sm:$0xff] 0.0
          %434 = vst [vmem:[#allocation2 + $0x80] sm:$0xff] 0.0
          %435 = vst [vmem:[#allocation2 + $0x88] sm:$0xff] 0.0
          %436 = vst [vmem:[#allocation2 + $0x90] sm:$0xff] 0.0
          %437 = vst [vmem:[#allocation2 + $0x98] sm:$0xff] 0.0
          %438 = vst [vmem:[#allocation2 + $0xa0] sm:$0xff] 0.0
          %439 = vst [vmem:[#allocation2 + $0xa8] sm:$0xff] 0.0
          %440 = vst [vmem:[#allocation2 + $0xb0] sm:$0xff] 0.0
          %441 = vst [vmem:[#allocation2 + $0xb8] sm:$0xff] 0.0
          %442 = vst [vmem:[#allocation2 + $0xc0] sm:$0xff] 0.0
          %443 = vst [vmem:[#allocation2 + $0xc8] sm:$0xff] 0.0
          %444 = vst [vmem:[#allocation2 + $0xd0] sm:$0xff] 0.0
          %445 = vst [vmem:[#allocation2 + $0xd8] sm:$0xff] 0.0
          %446 = vst [vmem:[#allocation2 + $0xe0] sm:$0xff] 0.0
          %447 = vst [vmem:[#allocation2 + $0xe8] sm:$0xff] 0.0
          %448 = vst [vmem:[#allocation2 + $0xf0] sm:$0xff] 0.0
          %449 = vst [vmem:[#allocation2 + $0xf8] sm:$0xff] 0.0
        $region74: #{generator_forward.105} parent=65 // pred_fallthru
          _
        %v450 = vld [vmem:[#allocation2] sm:$0xff]
        %v451 = vld [vmem:[#allocation2 + $0x8] sm:$0xff]
        %v452 = vld [vmem:[#allocation2 + $0x10] sm:$0xff]
        %v453 = vld [vmem:[#allocation2 + $0x18] sm:$0xff]
        %v454 = vld [vmem:[#allocation2 + $0x20] sm:$0xff]
        %v455 = vld [vmem:[#allocation2 + $0x28] sm:$0xff]
        %v456 = vld [vmem:[#allocation2 + $0x30] sm:$0xff]
        %v457 = vld [vmem:[#allocation2 + $0x38] sm:$0xff]
        %v458 = vld [vmem:[#allocation2 + $0x40] sm:$0xff]
        %v459 = vld [vmem:[#allocation2 + $0x48] sm:$0xff]
        %v460 = vld [vmem:[#allocation2 + $0x50] sm:$0xff]
        %v461 = vld [vmem:[#allocation2 + $0x58] sm:$0xff]
        %v462 = vld [vmem:[#allocation2 + $0x60] sm:$0xff]
        %v463 = vld [vmem:[#allocation2 + $0x68] sm:$0xff]
        %v464 = vld [vmem:[#allocation2 + $0x70] sm:$0xff]
        %v465 = vld [vmem:[#allocation2 + $0x78] sm:$0xff]
        %v466 = vld [vmem:[#allocation2 + $0x80] sm:$0xff]
        %v467 = vld [vmem:[#allocation2 + $0x88] sm:$0xff]
        %v468 = vld [vmem:[#allocation2 + $0x90] sm:$0xff]
        %v469 = vld [vmem:[#allocation2 + $0x98] sm:$0xff]
        %v470 = vld [vmem:[#allocation2 + $0xa0] sm:$0xff]
        %v471 = vld [vmem:[#allocation2 + $0xa8] sm:$0xff]
        %v472 = vld [vmem:[#allocation2 + $0xb0] sm:$0xff]
        %v473 = vld [vmem:[#allocation2 + $0xb8] sm:$0xff]
        %v474 = vld [vmem:[#allocation2 + $0xc0] sm:$0xff]
        %v475 = vld [vmem:[#allocation2 + $0xc8] sm:$0xff]
        %v476 = vld [vmem:[#allocation2 + $0xd0] sm:$0xff]
        %v477 = vld [vmem:[#allocation2 + $0xd8] sm:$0xff]
        %v478 = vld [vmem:[#allocation2 + $0xe0] sm:$0xff]
        %v479 = vld [vmem:[#allocation2 + $0xe8] sm:$0xff]
        %v480 = vld [vmem:[#allocation2 + $0xf0] sm:$0xff]
        %v481 = vld [vmem:[#allocation2 + $0xf8] sm:$0xff]
        %v482 = vld [vmem:[%s355] sm:$0xff]
        %v483 = vld [vmem:[%s355 + $0x8] sm:$0xff]
        %v484 = vld [vmem:[%s355 + $0x10] sm:$0xff]
        %v485 = vld [vmem:[%s355 + $0x18] sm:$0xff]
        %v486 = vld [vmem:[%s355 + $0x20] sm:$0xff]
        %v487 = vld [vmem:[%s355 + $0x28] sm:$0xff]
        %v488 = vld [vmem:[%s355 + $0x30] sm:$0xff]
        %v489 = vld [vmem:[%s355 + $0x38] sm:$0xff]
        %v490 = vld [vmem:[%s355 + $0x40] sm:$0xff]
        %v491 = vld [vmem:[%s355 + $0x48] sm:$0xff]
        %v492 = vld [vmem:[%s355 + $0x50] sm:$0xff]
        %v493 = vld [vmem:[%s355 + $0x58] sm:$0xff]
        %v494 = vld [vmem:[%s355 + $0x60] sm:$0xff]
        %v495 = vld [vmem:[%s355 + $0x68] sm:$0xff]
        %v496 = vld [vmem:[%s355 + $0x70] sm:$0xff]
        %v497 = vld [vmem:[%s355 + $0x78] sm:$0xff]
        %v498 = vld [vmem:[%s355 + $0x80] sm:$0xff]
        %v499 = vld [vmem:[%s355 + $0x88] sm:$0xff]
        %v500 = vld [vmem:[%s355 + $0x90] sm:$0xff]
        %v501 = vld [vmem:[%s355 + $0x98] sm:$0xff]
        %v502 = vld [vmem:[%s355 + $0xa0] sm:$0xff]
        %v503 = vld [vmem:[%s355 + $0xa8] sm:$0xff]
        %v504 = vld [vmem:[%s355 + $0xb0] sm:$0xff]
        %v505 = vld [vmem:[%s355 + $0xb8] sm:$0xff]
        %v506 = vld [vmem:[%s355 + $0xc0] sm:$0xff]
        %v507 = vld [vmem:[%s355 + $0xc8] sm:$0xff]
        %v508 = vld [vmem:[%s355 + $0xd0] sm:$0xff]
        %v509 = vld [vmem:[%s355 + $0xd8] sm:$0xff]
        %v510 = vld [vmem:[%s355 + $0xe0] sm:$0xff]
        %v511 = vld [vmem:[%s355 + $0xe8] sm:$0xff]
        %v512 = vld [vmem:[%s355 + $0xf0] sm:$0xff]
        %v513 = vld [vmem:[%s355 + $0xf8] sm:$0xff]
        %v514 = vld [vmem:[%s399] sm:$0xf]
        %v515 = vld [vmem:[%s399 + $0x4] sm:$0xf]
        %v516 = vld [vmem:[%s399 + $0x8] sm:$0xf]
        %v517 = vld [vmem:[%s399 + $0xc] sm:$0xf]
        %v518 = vld [vmem:[%s399 + $0x10] sm:$0xf]
        %v519 = vld [vmem:[%s399 + $0x14] sm:$0xf]
        %v520 = vld [vmem:[%s399 + $0x18] sm:$0xf]
        %v521 = vld [vmem:[%s399 + $0x1c] sm:$0xf]
        %v522 = vld [vmem:[%s399 + $0x20] sm:$0xf]
        %v523 = vld [vmem:[%s399 + $0x24] sm:$0xf]
        %v524 = vld [vmem:[%s399 + $0x28] sm:$0xf]
        %v525 = vld [vmem:[%s399 + $0x2c] sm:$0xf]
        %v526 = vld [vmem:[%s399 + $0x30] sm:$0xf]
        %v527 = vld [vmem:[%s399 + $0x34] sm:$0xf]
        %v528 = vld [vmem:[%s399 + $0x38] sm:$0xf]
        %v529 = vld [vmem:[%s399 + $0x3c] sm:$0xf]
        %v530 = vld [vmem:[%s399 + $0x40] sm:$0xf]
        %v531 = vld [vmem:[%s399 + $0x44] sm:$0xf]
        %v532 = vld [vmem:[%s399 + $0x48] sm:$0xf]
        %v533 = vld [vmem:[%s399 + $0x4c] sm:$0xf]
        %v534 = vld [vmem:[%s399 + $0x50] sm:$0xf]
        %v535 = vld [vmem:[%s399 + $0x54] sm:$0xf]
        %v536 = vld [vmem:[%s399 + $0x58] sm:$0xf]
        %v537 = vld [vmem:[%s399 + $0x5c] sm:$0xf]
        %v538 = vld [vmem:[%s399 + $0x60] sm:$0xf]
        %v539 = vld [vmem:[%s399 + $0x64] sm:$0xf]
        %v540 = vld [vmem:[%s399 + $0x68] sm:$0xf]
        %v541 = vld [vmem:[%s399 + $0x6c] sm:$0xf]
        %v542 = vld [vmem:[%s399 + $0x70] sm:$0xf]
        %v543 = vld [vmem:[%s399 + $0x74] sm:$0xf]
        %v544 = vld [vmem:[%s399 + $0x78] sm:$0xf]
        %v545 = vld [vmem:[%s399 + $0x7c] sm:$0xf]
        %v578 = vunpack.c.l.b16 %v482
        %v579 = vunpack.c.h.b16 %v482
        %v580 = vunpack.c.l.b16 %v483
        %v581 = vunpack.c.h.b16 %v483
        %v582 = vunpack.c.l.b16 %v484
        %v583 = vunpack.c.h.b16 %v484
        %v584 = vunpack.c.l.b16 %v485
        %v585 = vunpack.c.h.b16 %v485
        %v586 = vunpack.c.l.b16 %v486
        %v587 = vunpack.c.h.b16 %v486
        %v588 = vunpack.c.l.b16 %v487
        %v589 = vunpack.c.h.b16 %v487
        %v590 = vunpack.c.l.b16 %v488
        %v591 = vunpack.c.h.b16 %v488
        %v592 = vunpack.c.l.b16 %v489
        %v593 = vunpack.c.h.b16 %v489
        %v594 = vunpack.c.l.b16 %v490
        %v595 = vunpack.c.h.b16 %v490
        %v596 = vunpack.c.l.b16 %v491
        %v597 = vunpack.c.h.b16 %v491
        %v598 = vunpack.c.l.b16 %v492
        %v599 = vunpack.c.h.b16 %v492
        %v600 = vunpack.c.l.b16 %v493
        %v601 = vunpack.c.h.b16 %v493
        %v602 = vunpack.c.l.b16 %v494
        %v603 = vunpack.c.h.b16 %v494
        %v604 = vunpack.c.l.b16 %v495
        %v605 = vunpack.c.h.b16 %v495
        %v606 = vunpack.c.l.b16 %v496
        %v607 = vunpack.c.h.b16 %v496
        %v608 = vunpack.c.l.b16 %v497
        %v609 = vunpack.c.h.b16 %v497
        %v610 = vunpack.c.l.b16 %v498
        %v611 = vunpack.c.h.b16 %v498
        %v612 = vunpack.c.l.b16 %v499
        %v613 = vunpack.c.h.b16 %v499
        %v614 = vunpack.c.l.b16 %v500
        %v615 = vunpack.c.h.b16 %v500
        %v616 = vunpack.c.l.b16 %v501
        %v617 = vunpack.c.h.b16 %v501
        %v618 = vunpack.c.l.b16 %v502
        %v619 = vunpack.c.h.b16 %v502
        %v620 = vunpack.c.l.b16 %v503
        %v621 = vunpack.c.h.b16 %v503
        %v622 = vunpack.c.l.b16 %v504
        %v623 = vunpack.c.h.b16 %v504
        %v624 = vunpack.c.l.b16 %v505
        %v625 = vunpack.c.h.b16 %v505
        %v626 = vunpack.c.l.b16 %v506
        %v627 = vunpack.c.h.b16 %v506
        %v628 = vunpack.c.l.b16 %v507
        %v629 = vunpack.c.h.b16 %v507
        %v630 = vunpack.c.l.b16 %v508
        %v631 = vunpack.c.h.b16 %v508
        %v632 = vunpack.c.l.b16 %v509
        %v633 = vunpack.c.h.b16 %v509
        %v634 = vunpack.c.l.b16 %v510
        %v635 = vunpack.c.h.b16 %v510
        %v636 = vunpack.c.l.b16 %v511
        %v637 = vunpack.c.h.b16 %v511
        %v638 = vunpack.c.l.b16 %v512
        %v639 = vunpack.c.h.b16 %v512
        %v640 = vunpack.c.l.b16 %v513
        %v641 = vunpack.c.h.b16 %v513
        %v642 = vpack.c.b16 %v580, %v578
        %v643 = vpack.c.b16 %v581, %v579
        %v644 = vpack.c.b16 %v584, %v582
        %v645 = vpack.c.b16 %v585, %v583
        %v646 = vpack.c.b16 %v588, %v586
        %v647 = vpack.c.b16 %v589, %v587
        %v648 = vpack.c.b16 %v592, %v590
        %v649 = vpack.c.b16 %v593, %v591
        %v650 = vpack.c.b16 %v596, %v594
        %v651 = vpack.c.b16 %v597, %v595
        %v652 = vpack.c.b16 %v600, %v598
        %v653 = vpack.c.b16 %v601, %v599
        %v654 = vpack.c.b16 %v604, %v602
        %v655 = vpack.c.b16 %v605, %v603
        %v656 = vpack.c.b16 %v608, %v606
        %v657 = vpack.c.b16 %v609, %v607
        %v658 = vpack.c.b16 %v612, %v610
        %v659 = vpack.c.b16 %v613, %v611
        %v660 = vpack.c.b16 %v616, %v614
        %v661 = vpack.c.b16 %v617, %v615
        %v662 = vpack.c.b16 %v620, %v618
        %v663 = vpack.c.b16 %v621, %v619
        %v664 = vpack.c.b16 %v624, %v622
        %v665 = vpack.c.b16 %v625, %v623
        %v666 = vpack.c.b16 %v628, %v626
        %v667 = vpack.c.b16 %v629, %v627
        %v668 = vpack.c.b16 %v632, %v630
        %v669 = vpack.c.b16 %v633, %v631
        %v670 = vpack.c.b16 %v636, %v634
        %v671 = vpack.c.b16 %v637, %v635
        %v672 = vpack.c.b16 %v640, %v638
        %v673 = vpack.c.b16 %v641, %v639
        %v738 = vunpack.c.l.b16 %v514
        %v739 = vunpack.c.l.b16 %v515
        %v740 = vunpack.c.l.b16 %v516
        %v741 = vunpack.c.l.b16 %v517
        %v742 = vunpack.c.l.b16 %v518
        %v743 = vunpack.c.l.b16 %v519
        %v744 = vunpack.c.l.b16 %v520
        %v745 = vunpack.c.l.b16 %v521
        %v746 = vunpack.c.l.b16 %v522
        %v747 = vunpack.c.l.b16 %v523
        %v748 = vunpack.c.l.b16 %v524
        %v749 = vunpack.c.l.b16 %v525
        %v750 = vunpack.c.l.b16 %v526
        %v751 = vunpack.c.l.b16 %v527
        %v752 = vunpack.c.l.b16 %v528
        %v753 = vunpack.c.l.b16 %v529
        %v754 = vunpack.c.l.b16 %v530
        %v755 = vunpack.c.l.b16 %v531
        %v756 = vunpack.c.l.b16 %v532
        %v757 = vunpack.c.l.b16 %v533
        %v758 = vunpack.c.l.b16 %v534
        %v759 = vunpack.c.l.b16 %v535
        %v760 = vunpack.c.l.b16 %v536
        %v761 = vunpack.c.l.b16 %v537
        %v762 = vunpack.c.l.b16 %v538
        %v763 = vunpack.c.l.b16 %v539
        %v764 = vunpack.c.l.b16 %v540
        %v765 = vunpack.c.l.b16 %v541
        %v766 = vunpack.c.l.b16 %v542
        %v767 = vunpack.c.l.b16 %v543
        %v768 = vunpack.c.l.b16 %v544
        %v769 = vunpack.c.l.b16 %v545
        %v770 = vpack.c.b16 %v739, %v738
        %v771 = vpack.c.b16 %v741, %v740
        %v772 = vpack.c.b16 %v743, %v742
        %v773 = vpack.c.b16 %v745, %v744
        %v774 = vpack.c.b16 %v747, %v746
        %v775 = vpack.c.b16 %v749, %v748
        %v776 = vpack.c.b16 %v751, %v750
        %v777 = vpack.c.b16 %v753, %v752
        %v778 = vpack.c.b16 %v755, %v754
        %v779 = vpack.c.b16 %v757, %v756
        %v780 = vpack.c.b16 %v759, %v758
        %v781 = vpack.c.b16 %v761, %v760
        %v782 = vpack.c.b16 %v763, %v762
        %v783 = vpack.c.b16 %v765, %v764
        %v784 = vpack.c.b16 %v767, %v766
        %v785 = vpack.c.b16 %v769, %v768
        %802 = vmatprep.subr.bf16.mxu0 0
        %803 = vmatpush1.bf16.msra.mxu0 %v777
        %804 = vmatprep.subr.bf16.mxu0 0
        %805 = vmatpush1.bf16.msra.mxu0 %v776
        %806 = vmatprep.subr.bf16.mxu0 0
        %807 = vmatpush1.bf16.msra.mxu0 %v775
        %808 = vmatprep.subr.bf16.mxu0 0
        %809 = vmatpush1.bf16.msra.mxu0 %v774
        %810 = vmatprep.subr.bf16.mxu0 0
        %811 = vmatpush1.bf16.msra.mxu0 %v773
        %812 = vmatprep.subr.bf16.mxu0 0
        %813 = vmatpush1.bf16.msra.mxu0 %v772
        %814 = vmatprep.subr.bf16.mxu0 0
        %815 = vmatpush1.bf16.msra.mxu0 %v771
        %816 = vmatprep.subr.bf16.mxu0 0
        %817 = vmatpush1.bf16.msra.mxu0 %v770
        %818 = vmatprep.subr.bf16.mxu0 0
        %819 = vmatpush2.bf16.msra.mxu0 %v785
        %820 = vmatprep.subr.bf16.mxu0 0
        %821 = vmatpush2.bf16.msra.mxu0 %v784
        %822 = vmatprep.subr.bf16.mxu0 0
        %823 = vmatpush2.bf16.msra.mxu0 %v783
        %824 = vmatprep.subr.bf16.mxu0 0
        %825 = vmatpush2.bf16.msra.mxu0 %v782
        %826 = vmatprep.subr.bf16.mxu0 0
        %827 = vmatpush2.bf16.msra.mxu0 %v781
        %828 = vmatprep.subr.bf16.mxu0 0
        %829 = vmatpush2.bf16.msra.mxu0 %v780
        %830 = vmatprep.subr.bf16.mxu0 0
        %831 = vmatpush2.bf16.msra.mxu0 %v779
        %832 = vmatprep.subr.bf16.mxu0 0
        %833 = vmatpush2.bf16.msra.mxu0 %v778
        %834 = vmatprep.mubr.bf16.mxu0 %v643
        %835 = vmatmul.mubr.bf16.gmra.mxu0 %v642
        %v836 = vpop.f32.mrf.mxu0
        %v837 = vadd.f32 0.0, %v836
        %v838 = vpop.f32.mrf.mxu0
        %v839 = vpop.f32.mrf.mxu0
        %v840 = vadd.f32 0.0, %v839
        %v841 = vpop.f32.mrf.mxu0
        %842 = vmatprep.mubr.bf16.mxu0 %v645
        %843 = vmatmul.mubr.bf16.gmra.mxu0 %v644
        %v844 = vpop.f32.mrf.mxu0
        %v845 = vadd.f32 0.0, %v844
        %v846 = vpop.f32.mrf.mxu0
        %v847 = vpop.f32.mrf.mxu0
        %v848 = vadd.f32 0.0, %v847
        %v849 = vpop.f32.mrf.mxu0
        %850 = vmatprep.mubr.bf16.mxu0 %v647
        %851 = vmatmul.mubr.bf16.gmra.mxu0 %v646
        %v852 = vpop.f32.mrf.mxu0
        %v853 = vadd.f32 0.0, %v852
        %v854 = vpop.f32.mrf.mxu0
        %v855 = vpop.f32.mrf.mxu0
        %v856 = vadd.f32 0.0, %v855
        %v857 = vpop.f32.mrf.mxu0
        %858 = vmatprep.mubr.bf16.mxu0 %v649
        %859 = vmatmul.mubr.bf16.gmra.mxu0 %v648
        %v860 = vpop.f32.mrf.mxu0
        %v861 = vadd.f32 0.0, %v860
        %v862 = vpop.f32.mrf.mxu0
        %v863 = vpop.f32.mrf.mxu0
        %v864 = vadd.f32 0.0, %v863
        %v865 = vpop.f32.mrf.mxu0
        %866 = vmatprep.mubr.bf16.mxu0 %v651
        %867 = vmatmul.mubr.bf16.gmra.mxu0 %v650
        %v868 = vpop.f32.mrf.mxu0
        %v869 = vadd.f32 0.0, %v868
        %v870 = vpop.f32.mrf.mxu0
        %v871 = vpop.f32.mrf.mxu0
        %v872 = vadd.f32 0.0, %v871
        %v873 = vpop.f32.mrf.mxu0
        %874 = vmatprep.mubr.bf16.mxu0 %v653
        %875 = vmatmul.mubr.bf16.gmra.mxu0 %v652
        %v876 = vpop.f32.mrf.mxu0
        %v877 = vadd.f32 0.0, %v876
        %v878 = vpop.f32.mrf.mxu0
        %v879 = vpop.f32.mrf.mxu0
        %v880 = vadd.f32 0.0, %v879
        %v881 = vpop.f32.mrf.mxu0
        %882 = vmatprep.mubr.bf16.mxu0 %v655
        %883 = vmatmul.mubr.bf16.gmra.mxu0 %v654
        %v884 = vpop.f32.mrf.mxu0
        %v885 = vadd.f32 0.0, %v884
        %v886 = vpop.f32.mrf.mxu0
        %v887 = vpop.f32.mrf.mxu0
        %v888 = vadd.f32 0.0, %v887
        %v889 = vpop.f32.mrf.mxu0
        %890 = vmatprep.mubr.bf16.mxu0 %v657
        %891 = vmatmul.mubr.bf16.gmra.mxu0 %v656
        %v892 = vpop.f32.mrf.mxu0
        %v893 = vadd.f32 0.0, %v892
        %v894 = vpop.f32.mrf.mxu0
        %v895 = vpop.f32.mrf.mxu0
        %v896 = vadd.f32 0.0, %v895
        %v897 = vpop.f32.mrf.mxu0
        %898 = vmatprep.mubr.bf16.mxu0 %v659
        %899 = vmatmul.mubr.bf16.gmra.mxu0 %v658
        %v900 = vpop.f32.mrf.mxu0
        %v901 = vadd.f32 0.0, %v900
        %v902 = vpop.f32.mrf.mxu0
        %v903 = vpop.f32.mrf.mxu0
        %v904 = vadd.f32 0.0, %v903
        %v905 = vpop.f32.mrf.mxu0
        %906 = vmatprep.mubr.bf16.mxu0 %v661
        %907 = vmatmul.mubr.bf16.gmra.mxu0 %v660
        %v908 = vpop.f32.mrf.mxu0
        %v909 = vadd.f32 0.0, %v908
        %v910 = vpop.f32.mrf.mxu0
        %v911 = vpop.f32.mrf.mxu0
        %v912 = vadd.f32 0.0, %v911
        %v913 = vpop.f32.mrf.mxu0
        %914 = vmatprep.mubr.bf16.mxu0 %v663
        %915 = vmatmul.mubr.bf16.gmra.mxu0 %v662
        %v916 = vpop.f32.mrf.mxu0
        %v917 = vadd.f32 0.0, %v916
        %v918 = vpop.f32.mrf.mxu0
        %v919 = vpop.f32.mrf.mxu0
        %v920 = vadd.f32 0.0, %v919
        %v921 = vpop.f32.mrf.mxu0
        %922 = vmatprep.mubr.bf16.mxu0 %v665
        %923 = vmatmul.mubr.bf16.gmra.mxu0 %v664
        %v924 = vpop.f32.mrf.mxu0
        %v925 = vadd.f32 0.0, %v924
        %v926 = vpop.f32.mrf.mxu0
        %v927 = vpop.f32.mrf.mxu0
        %v928 = vadd.f32 0.0, %v927
        %v929 = vpop.f32.mrf.mxu0
        %930 = vmatprep.mubr.bf16.mxu0 %v667
        %931 = vmatmul.mubr.bf16.gmra.mxu0 %v666
        %v932 = vpop.f32.mrf.mxu0
        %v933 = vadd.f32 0.0, %v932
        %v934 = vpop.f32.mrf.mxu0
        %v935 = vpop.f32.mrf.mxu0
        %v936 = vadd.f32 0.0, %v935
        %v937 = vpop.f32.mrf.mxu0
        %938 = vmatprep.mubr.bf16.mxu0 %v669
        %939 = vmatmul.mubr.bf16.gmra.mxu0 %v668
        %v940 = vpop.f32.mrf.mxu0
        %v941 = vadd.f32 0.0, %v940
        %v942 = vpop.f32.mrf.mxu0
        %v943 = vpop.f32.mrf.mxu0
        %v944 = vadd.f32 0.0, %v943
        %v945 = vpop.f32.mrf.mxu0
        %946 = vmatprep.mubr.bf16.mxu0 %v671
        %947 = vmatmul.mubr.bf16.gmra.mxu0 %v670
        %v948 = vpop.f32.mrf.mxu0
        %v949 = vadd.f32 0.0, %v948
        %v950 = vpop.f32.mrf.mxu0
        %v951 = vpop.f32.mrf.mxu0
        %v952 = vadd.f32 0.0, %v951
        %v953 = vpop.f32.mrf.mxu0
        %954 = vmatprep.mubr.bf16.mxu0 %v673
        %955 = vmatmul.mubr.bf16.gmra.mxu0 %v672
        %v956 = vpop.f32.mrf.mxu0
        %v957 = vadd.f32 0.0, %v956
        %v958 = vpop.f32.mrf.mxu0
        %v959 = vpop.f32.mrf.mxu0
        %v960 = vadd.f32 0.0, %v959
        %v961 = vpop.f32.mrf.mxu0
        %962 = vdwg.mxu0
        %v963 = vadd.f32 %v450, %v837
        %v964 = vadd.f32 %v451, %v840
        %v965 = vadd.f32 %v452, %v845
        %v966 = vadd.f32 %v453, %v848
        %v967 = vadd.f32 %v454, %v853
        %v968 = vadd.f32 %v455, %v856
        %v969 = vadd.f32 %v456, %v861
        %v970 = vadd.f32 %v457, %v864
        %v971 = vadd.f32 %v458, %v869
        %v972 = vadd.f32 %v459, %v872
        %v973 = vadd.f32 %v460, %v877
        %v974 = vadd.f32 %v461, %v880
        %v975 = vadd.f32 %v462, %v885
        %v976 = vadd.f32 %v463, %v888
        %v977 = vadd.f32 %v464, %v893
        %v978 = vadd.f32 %v465, %v896
        %v979 = vadd.f32 %v466, %v901
        %v980 = vadd.f32 %v467, %v904
        %v981 = vadd.f32 %v468, %v909
        %v982 = vadd.f32 %v469, %v912
        %v983 = vadd.f32 %v470, %v917
        %v984 = vadd.f32 %v471, %v920
        %v985 = vadd.f32 %v472, %v925
        %v986 = vadd.f32 %v473, %v928
        %v987 = vadd.f32 %v474, %v933
        %v988 = vadd.f32 %v475, %v936
        %v989 = vadd.f32 %v476, %v941
        %v990 = vadd.f32 %v477, %v944
        %v991 = vadd.f32 %v478, %v949
        %v992 = vadd.f32 %v479, %v952
        %v993 = vadd.f32 %v480, %v957
        %v994 = vadd.f32 %v481, %v960
        %995 = vst [vmem:[#allocation2] sm:$0xff] %v963
        %996 = vst [vmem:[#allocation2 + $0x8] sm:$0xff] %v964
        %997 = vst [vmem:[#allocation2 + $0x10] sm:$0xff] %v965
        %998 = vst [vmem:[#allocation2 + $0x18] sm:$0xff] %v966
        %999 = vst [vmem:[#allocation2 + $0x20] sm:$0xff] %v967
        %1000 = vst [vmem:[#allocation2 + $0x28] sm:$0xff] %v968
        %1001 = vst [vmem:[#allocation2 + $0x30] sm:$0xff] %v969
        %1002 = vst [vmem:[#allocation2 + $0x38] sm:$0xff] %v970
        %1003 = vst [vmem:[#allocation2 + $0x40] sm:$0xff] %v971
        %1004 = vst [vmem:[#allocation2 + $0x48] sm:$0xff] %v972
        %1005 = vst [vmem:[#allocation2 + $0x50] sm:$0xff] %v973
        %1006 = vst [vmem:[#allocation2 + $0x58] sm:$0xff] %v974
        %1007 = vst [vmem:[#allocation2 + $0x60] sm:$0xff] %v975
        %1008 = vst [vmem:[#allocation2 + $0x68] sm:$0xff] %v976
        %1009 = vst [vmem:[#allocation2 + $0x70] sm:$0xff] %v977
        %1010 = vst [vmem:[#allocation2 + $0x78] sm:$0xff] %v978
        %1011 = vst [vmem:[#allocation2 + $0x80] sm:$0xff] %v979
        %1012 = vst [vmem:[#allocation2 + $0x88] sm:$0xff] %v980
        %1013 = vst [vmem:[#allocation2 + $0x90] sm:$0xff] %v981
        %1014 = vst [vmem:[#allocation2 + $0x98] sm:$0xff] %v982
        %1015 = vst [vmem:[#allocation2 + $0xa0] sm:$0xff] %v983
        %1016 = vst [vmem:[#allocation2 + $0xa8] sm:$0xff] %v984
        %1017 = vst [vmem:[#allocation2 + $0xb0] sm:$0xff] %v985
        %1018 = vst [vmem:[#allocation2 + $0xb8] sm:$0xff] %v986
        %1019 = vst [vmem:[#allocation2 + $0xc0] sm:$0xff] %v987
        %1020 = vst [vmem:[#allocation2 + $0xc8] sm:$0xff] %v988
        %1021 = vst [vmem:[#allocation2 + $0xd0] sm:$0xff] %v989
        %1022 = vst [vmem:[#allocation2 + $0xd8] sm:$0xff] %v990
        %1023 = vst [vmem:[#allocation2 + $0xe0] sm:$0xff] %v991
        %1024 = vst [vmem:[#allocation2 + $0xe8] sm:$0xff] %v992
        %1025 = vst [vmem:[#allocation2 + $0xf0] sm:$0xff] %v993
        %1026 = vst [vmem:[#allocation2 + $0xf8] sm:$0xff] %v994
        %p1027 = scmp.eq.s32.totalorder %s21, 12
        // Predicated region
        $region75: #{generator_forward.105} parent=65 // pred_check
          %p1028 = pneg %p1027
        $region76: #{generator_forward.105} parent=65 // pred_check_branch
          %1030 = sbr.rel (%p1028) target = $region78
        $region77: #{generator_forward.105} parent=65 // pred_region
          %v1031 = vld [vmem:[#allocation2] sm:$0xff]
          %v1032 = vld [vmem:[#allocation2 + $0x8] sm:$0xff]
          %v1033 = vld [vmem:[#allocation2 + $0x10] sm:$0xff]
          %v1034 = vld [vmem:[#allocation2 + $0x18] sm:$0xff]
          %v1035 = vld [vmem:[#allocation2 + $0x20] sm:$0xff]
          %v1036 = vld [vmem:[#allocation2 + $0x28] sm:$0xff]
          %v1037 = vld [vmem:[#allocation2 + $0x30] sm:$0xff]
          %v1038 = vld [vmem:[#allocation2 + $0x38] sm:$0xff]
          %v1039 = vld [vmem:[#allocation2 + $0x40] sm:$0xff]
          %v1040 = vld [vmem:[#allocation2 + $0x48] sm:$0xff]
          %v1041 = vld [vmem:[#allocation2 + $0x50] sm:$0xff]
          %v1042 = vld [vmem:[#allocation2 + $0x58] sm:$0xff]
          %v1043 = vld [vmem:[#allocation2 + $0x60] sm:$0xff]
          %v1044 = vld [vmem:[#allocation2 + $0x68] sm:$0xff]
          %v1045 = vld [vmem:[#allocation2 + $0x70] sm:$0xff]
          %v1046 = vld [vmem:[#allocation2 + $0x78] sm:$0xff]
          %v1047 = vld [vmem:[#allocation2 + $0x80] sm:$0xff]
          %v1048 = vld [vmem:[#allocation2 + $0x88] sm:$0xff]
          %v1049 = vld [vmem:[#allocation2 + $0x90] sm:$0xff]
          %v1050 = vld [vmem:[#allocation2 + $0x98] sm:$0xff]
          %v1051 = vld [vmem:[#allocation2 + $0xa0] sm:$0xff]
          %v1052 = vld [vmem:[#allocation2 + $0xa8] sm:$0xff]
          %v1053 = vld [vmem:[#allocation2 + $0xb0] sm:$0xff]
          %v1054 = vld [vmem:[#allocation2 + $0xb8] sm:$0xff]
          %v1055 = vld [vmem:[#allocation2 + $0xc0] sm:$0xff]
          %v1056 = vld [vmem:[#allocation2 + $0xc8] sm:$0xff]
          %v1057 = vld [vmem:[#allocation2 + $0xd0] sm:$0xff]
          %v1058 = vld [vmem:[#allocation2 + $0xd8] sm:$0xff]
          %v1059 = vld [vmem:[#allocation2 + $0xe0] sm:$0xff]
          %v1060 = vld [vmem:[#allocation2 + $0xe8] sm:$0xff]
          %v1061 = vld [vmem:[#allocation2 + $0xf0] sm:$0xff]
          %v1062 = vld [vmem:[#allocation2 + $0xf8] sm:$0xff]
          %v1063 = vld [vmem:[%s403] sm:$0x1]
          %v1065 = vlaneseq
          %v1066 = vshrl.u32 %v1065, 7
          %v1067 = vsub.s32 0, %v1066
          %v1068 = vrot.slane %v1063, %v1067
          %v1070 = vadd.f32 %v1031, %v1068
          %v1071 = vadd.f32 %v1032, %v1068
          %v1072 = vadd.f32 %v1033, %v1068
          %v1073 = vadd.f32 %v1034, %v1068
          %v1074 = vadd.f32 %v1035, %v1068
          %v1075 = vadd.f32 %v1036, %v1068
          %v1076 = vadd.f32 %v1037, %v1068
          %v1077 = vadd.f32 %v1038, %v1068
          %v1078 = vadd.f32 %v1039, %v1068
          %v1079 = vadd.f32 %v1040, %v1068
          %v1080 = vadd.f32 %v1041, %v1068
          %v1081 = vadd.f32 %v1042, %v1068
          %v1082 = vadd.f32 %v1043, %v1068
          %v1083 = vadd.f32 %v1044, %v1068
          %v1084 = vadd.f32 %v1045, %v1068
          %v1085 = vadd.f32 %v1046, %v1068
          %v1086 = vadd.f32 %v1047, %v1068
          %v1087 = vadd.f32 %v1048, %v1068
          %v1088 = vadd.f32 %v1049, %v1068
          %v1089 = vadd.f32 %v1050, %v1068
          %v1090 = vadd.f32 %v1051, %v1068
          %v1091 = vadd.f32 %v1052, %v1068
          %v1092 = vadd.f32 %v1053, %v1068
          %v1093 = vadd.f32 %v1054, %v1068
          %v1094 = vadd.f32 %v1055, %v1068
          %v1095 = vadd.f32 %v1056, %v1068
          %v1096 = vadd.f32 %v1057, %v1068
          %v1097 = vadd.f32 %v1058, %v1068
          %v1098 = vadd.f32 %v1059, %v1068
          %v1099 = vadd.f32 %v1060, %v1068
          %v1100 = vadd.f32 %v1061, %v1068
          %v1101 = vadd.f32 %v1062, %v1068
          %v1102 = vtanh.pop %v1070
          %v1103 = vtanh.pop %v1071
          %v1104 = vtanh.pop %v1072
          %v1105 = vtanh.pop %v1073
          %v1106 = vtanh.pop %v1074
          %v1107 = vtanh.pop %v1075
          %v1108 = vtanh.pop %v1076
          %v1109 = vtanh.pop %v1077
          %v1110 = vtanh.pop %v1078
          %v1111 = vtanh.pop %v1079
          %v1112 = vtanh.pop %v1080
          %v1113 = vtanh.pop %v1081
          %v1114 = vtanh.pop %v1082
          %v1115 = vtanh.pop %v1083
          %v1116 = vtanh.pop %v1084
          %v1117 = vtanh.pop %v1085
          %v1118 = vtanh.pop %v1086
          %v1119 = vtanh.pop %v1087
          %v1120 = vtanh.pop %v1088
          %v1121 = vtanh.pop %v1089
          %v1122 = vtanh.pop %v1090
          %v1123 = vtanh.pop %v1091
          %v1124 = vtanh.pop %v1092
          %v1125 = vtanh.pop %v1093
          %v1126 = vtanh.pop %v1094
          %v1127 = vtanh.pop %v1095
          %v1128 = vtanh.pop %v1096
          %v1129 = vtanh.pop %v1097
          %v1130 = vtanh.pop %v1098
          %v1131 = vtanh.pop %v1099
          %v1132 = vtanh.pop %v1100
          %v1133 = vtanh.pop %v1101
          %1134 = vst [vmem:[%s411] sm:$0xff] %v1102
          %1135 = vst [vmem:[%s411 + $0x8] sm:$0xff] %v1103
          %1136 = vst [vmem:[%s411 + $0x10] sm:$0xff] %v1104
          %1137 = vst [vmem:[%s411 + $0x18] sm:$0xff] %v1105
          %1138 = vst [vmem:[%s411 + $0x20] sm:$0xff] %v1106
          %1139 = vst [vmem:[%s411 + $0x28] sm:$0xff] %v1107
          %1140 = vst [vmem:[%s411 + $0x30] sm:$0xff] %v1108
          %1141 = vst [vmem:[%s411 + $0x38] sm:$0xff] %v1109
          %1142 = vst [vmem:[%s411 + $0x40] sm:$0xff] %v1110
          %1143 = vst [vmem:[%s411 + $0x48] sm:$0xff] %v1111
          %1144 = vst [vmem:[%s411 + $0x50] sm:$0xff] %v1112
          %1145 = vst [vmem:[%s411 + $0x58] sm:$0xff] %v1113
          %1146 = vst [vmem:[%s411 + $0x60] sm:$0xff] %v1114
          %1147 = vst [vmem:[%s411 + $0x68] sm:$0xff] %v1115
          %1148 = vst [vmem:[%s411 + $0x70] sm:$0xff] %v1116
          %1149 = vst [vmem:[%s411 + $0x78] sm:$0xff] %v1117
          %1150 = vst [vmem:[%s411 + $0x80] sm:$0xff] %v1118
          %1151 = vst [vmem:[%s411 + $0x88] sm:$0xff] %v1119
          %1152 = vst [vmem:[%s411 + $0x90] sm:$0xff] %v1120
          %1153 = vst [vmem:[%s411 + $0x98] sm:$0xff] %v1121
          %1154 = vst [vmem:[%s411 + $0xa0] sm:$0xff] %v1122
          %1155 = vst [vmem:[%s411 + $0xa8] sm:$0xff] %v1123
          %1156 = vst [vmem:[%s411 + $0xb0] sm:$0xff] %v1124
          %1157 = vst [vmem:[%s411 + $0xb8] sm:$0xff] %v1125
          %1158 = vst [vmem:[%s411 + $0xc0] sm:$0xff] %v1126
          %1159 = vst [vmem:[%s411 + $0xc8] sm:$0xff] %v1127
          %1160 = vst [vmem:[%s411 + $0xd0] sm:$0xff] %v1128
          %1161 = vst [vmem:[%s411 + $0xd8] sm:$0xff] %v1129
          %1162 = vst [vmem:[%s411 + $0xe0] sm:$0xff] %v1130
          %1163 = vst [vmem:[%s411 + $0xe8] sm:$0xff] %v1131
          %1164 = vst [vmem:[%s411 + $0xf0] sm:$0xff] %v1132
          %1165 = vst [vmem:[%s411 + $0xf8] sm:$0xff] %v1133
        $region78: #{generator_forward.105} parent=65 // pred_fallthru
          _
        %s1166 = smul.u32 32, %s19
        %p1167 = scmp.lt.s32.totalorder %s1166, 63
        %s1168 = scalar_select %p1167, %s1166, 63
        %p1169 = scmp.lt.s32.totalorder %s20, 0
        %s1170 = scalar_select %p1169, %s20, 0
        %s1171 = sadd.s32 %s1170, %s1168
        %s1172 = smul.addr %s1171, 8
        %s1173 = scalar_lea.vmem %s3, %s1172
        // Predicated region
        $region79: #{generator_forward.105} parent=65 // pred_check
          %p1174 = pneg %p135
        $region80: #{generator_forward.105} parent=65 // pred_check_branch
          %1176 = sbr.rel (%p1174) target = $region82
        $region81: #{generator_forward.105} parent=65 // pred_region
          %s1177 = smul.u32 32, %s19
        $region82: #{generator_forward.105} parent=65 // pred_fallthru
          _
      $region66: #{generator_forward.105} parent=5 // pred_fallthru
        _
      %p1178 = scmp.le.s32.totalorder 2, %s9
      // Predicated region
      $region83: #{generator_forward.105} parent=5 // pred_check
        %p1179 = pneg %p1178
      $region84: #{generator_forward.105} parent=5 // pred_check_branch
        %1181 = sbr.rel (%p1179) target = $region86
      $region85: #{generator_forward.105} parent=5 // pred_region
        %s1182 = ssub.s32 %s9, 2
        // Predicated region
        $region87: #{generator_forward.105} parent=85 // pred_check
          %p1183 = pneg %p141
        $region88: #{generator_forward.105} parent=85 // pred_check_branch
          %1185 = sbr.rel (%p1183) target = $region90
        $region89: #{generator_forward.105} parent=85 // pred_region
          %s1186 = smul.u32 32, %s22
          %p1187 = scmp.lt.s32.totalorder %s1186, 63
          %s1188 = scalar_select %p1187, %s1186, 63
          %p1189 = scmp.lt.s32.totalorder %s23, 0
          %s1190 = scalar_select %p1189, %s23, 0
          %s1191 = sadd.s32 %s1190, %s1188
          %s1192 = smul.addr %s1191, 8
          %s1193 = scalar_lea.vmem %s3, %s1192
        $region90: #{generator_forward.105} parent=85 // pred_fallthru
          _
      $region86: #{generator_forward.105} parent=5 // pred_fallthru
        _
    $region6: #{generator_forward.105} parent=1 // loop_footer
      %s13 = sadd.s32 1, %s9
    $region7: #{generator_forward.105} parent=1 // loop_footer_branch
      %8 = sbr.rel target = $region3
    $region8: #{generator_forward.105} parent=1 // loop_exit
      _

</llo_original>
